<compile_context>
chip_gen: v6e
topology: v6e:2x2x1
jax: 0.10.0
libtpu: 0.0.40
codegen_flags: <defaults>
</compile_context>

<pallas_src>
import functools
import numpy as np
import jax
import jax.numpy as jnp
from jax.experimental import pallas as pl
from jax.experimental.pallas import tpu as pltpu


# ----------------------------------------------------------------------------
# Pallas kernel: one grid step processes WB windows (all heads).
# ----------------------------------------------------------------------------
def _window_attn_kernel(x_ref, wqkv_ref, bqkv_ref, wproj_ref, bproj_ref,
                        bm_ref, o_ref, qkv_ref, av_ref, *,
                        num_heads, block_windows, n_mask_windows, seq_len):
    WB, N, H, nW = block_windows, seq_len, num_heads, n_mask_windows
    M, C = x_ref.shape                       # M = WB * N
    hd = C // H

    # Fused QKV projection for all WB windows (bf16 MXU operands, f32 acc).
    # Q columns / bias were pre-scaled by head_dim**-0.5 in the wrapper.
    x_bf = x_ref[...].astype(jnp.bfloat16)
    qkv = jnp.dot(x_bf, wqkv_ref[...],
                  preferred_element_type=jnp.float32) + bqkv_ref[...]   # (M, 3C) f32
    qkv_ref[...] = qkv.astype(jnp.bfloat16)          # stage once in VMEM scratch

    # Static (unrolled) loop over heads; q/k/v are static column slices of the
    # VMEM-resident qkv scratch and the einsums batch the WB windows per head
    # so the MXU stays fed.
    for h in range(H):
        q = qkv_ref[:, h * hd:(h + 1) * hd].reshape(WB, N, hd)
        k = qkv_ref[:, C + h * hd:C + (h + 1) * hd].reshape(WB, N, hd)
        v = qkv_ref[:, 2 * C + h * hd:2 * C + (h + 1) * hd].reshape(WB, N, hd)

        # attention scores (f32) + fused rel-pos bias / additive window mask,
        # broadcast over the WB // nW repeats of the nW mask windows per block.
        s = jnp.einsum('wnd,wmd->wnm', q, k,
                       preferred_element_type=jnp.float32)           # (WB, N, N)
        bmh = bm_ref[:, h]                                            # (nW, N, N)
        s = (s.reshape(WB // nW, nW, N, N) + bmh[None]).reshape(WB, N, N)

        # numerically stable softmax; reciprocal runs on the EUP slot.
        s = s - jnp.max(s, axis=-1, keepdims=True)
        p = jnp.exp(s)
        p = p * pl.reciprocal(jnp.sum(p, axis=-1, keepdims=True), approx=True)

        # attn @ v; park head h's output in its column slice of the scratch
        # (head-merge transpose becomes a static column write).
        o_h = jnp.einsum('wnm,wmd->wnd', p.astype(jnp.bfloat16), v,
                         preferred_element_type=jnp.float32)          # (WB, N, hd)
        av_ref[:, h * hd:(h + 1) * hd] = o_h.reshape(M, hd).astype(jnp.bfloat16)

    # Single full-contraction-depth output projection (K = C) + bias.
    out = jnp.dot(av_ref[...], wproj_ref[...],
                  preferred_element_type=jnp.float32) + bproj_ref[...]
    o_ref[...] = out.astype(o_ref.dtype)


# ----------------------------------------------------------------------------
# Host-side precompute (hoisted out of the per-call path).
# ----------------------------------------------------------------------------
def make_relative_position_index(Wh, Ww):
    coords_h = np.arange(Wh)
    coords_w = np.arange(Ww)
    coords = np.stack(np.meshgrid(coords_h, coords_w, indexing='ij'))   # (2,Wh,Ww)
    coords_flatten = coords.reshape(2, -1)                              # (2, N)
    rel = coords_flatten[:, :, None] - coords_flatten[:, None, :]       # (2, N, N)
    rel = rel.transpose(1, 2, 0).copy()                                 # (N, N, 2)
    rel[:, :, 0] += Wh - 1
    rel[:, :, 1] += Ww - 1
    rel[:, :, 0] *= 2 * Ww - 1
    return rel.sum(-1)                                                  # (N, N)


def precompute_relative_position_bias(rpb_table, window_size):
    """Gather the bias table once per model config -> (H, N, N) f32."""
    Wh, Ww = window_size
    N = Wh * Ww
    idx = jnp.asarray(make_relative_position_index(Wh, Ww)).reshape(-1)
    bias = rpb_table[idx].reshape(N, N, -1)
    return bias.transpose(2, 0, 1).astype(jnp.float32)


def prepare_params(params, num_heads):
    """One-time weight layout / dtype prep for the kernel."""
    C = params['wproj'].shape[0]
    hd = C // num_heads
    scale = hd ** -0.5
    # Fold the q * scale multiply into the Q columns of the qkv projection.
    col_scale = jnp.concatenate([jnp.full((C,), scale, jnp.float32),
                                 jnp.ones((2 * C,), jnp.float32)])
    wqkv = params['wqkv'].astype(jnp.float32) * col_scale[None, :]
    bqkv = params['bqkv'].astype(jnp.float32) * col_scale
    return {
        'wqkv': wqkv.astype(jnp.bfloat16),                            # (C, 3C) bf16
        'bqkv': bqkv.reshape(1, 3 * C),                               # (1, 3C) f32
        'wproj': params['wproj'].astype(jnp.bfloat16),                # (C, C)  bf16
        'bproj': params['bproj'].astype(jnp.float32).reshape(1, C),   # (1, C)  f32
    }


def _choose_block_windows(B_, nW, N, C, H, vmem_budget_bytes=40 * 1024 * 1024):
    """Pick WB: multiple of nW, divides B_, sublane-aligned, VMEM-budgeted.

    Prefers >= 4 grid steps (>= 2 per v7x TensorCore), then >= 2, then the
    largest feasible block.
    """
    lane = lambda c: max(c, 128)

    def footprint(WB):
        M = WB * N
        x_b   = 2 * M * lane(C) * 4                       # f32 x, double-buffered
        out_b = 2 * M * lane(C) * 4                       # f32 out, double-buffered
        qkv_s = M * lane(3 * C) * 2                       # bf16 qkv scratch
        av_s  = M * lane(C) * 2                           # bf16 attn@v scratch
        w_b   = (C * lane(3 * C) + C * lane(C)) * 2       # bf16 weights (single-buf)
        b_b   = (lane(3 * C) + lane(C)) * 4               # f32 biases
        bm_b  = nW * H * N * lane(N) * 4                  # f32 bias+mask
        return x_b + out_b + qkv_s + av_s + w_b + b_b + bm_b

    candidates = []
    r = 1
    while nW * r <= B_:
        cand = nW * r
        if (B_ % cand == 0 and (cand * N) % 8 == 0
                and footprint(cand) <= vmem_budget_bytes):
            candidates.append(cand)
        r += 1
    if not candidates:
        return nW
    for min_steps in (4, 2, 1):
        pref = [c for c in candidates if B_ // c >= min_steps]
        if pref:
            return max(pref)
    return max(candidates)


# ----------------------------------------------------------------------------
# Wrapper
# ----------------------------------------------------------------------------
def window_attention(x, mask, prepared, bias, num_heads, block_windows=None):
    """x: (B_, N, C) f32; mask: (nW, N, N) f32 or None; bias: (H, N, N) f32."""
    B_, N, C = x.shape
    H = num_heads
    assert C % H == 0

    if mask is None:
        nW = 1
        fused = bias[None]                                        # (1, H, N, N)
    else:
        nW = mask.shape[0]
        fused = bias[None] + mask[:, None].astype(jnp.float32)    # (nW, H, N, N)
    assert B_ % nW == 0

    if block_windows is None:
        block_windows = _choose_block_windows(B_, nW, N, C, H)
    WB = block_windows
    assert WB % nW == 0 and B_ % WB == 0
    assert (WB * N) % 8 == 0, "WB*N must be sublane-aligned"  # TODO(synk): pad instead

    grid = B_ // WB
    M = WB * N

    # Lane-contiguous 2-D f32 slab; the bf16 cast happens on the VPU in-kernel.
    xf = x.reshape(B_ * N, C)

    kernel = functools.partial(_window_attn_kernel, num_heads=H,
                               block_windows=WB, n_mask_windows=nW, seq_len=N)

    def build_call(const_mode):
        kw = {} if const_mode is None else {'pipeline_mode': const_mode}
        in_specs = [
            pl.BlockSpec((M, C), lambda b: (b, 0)),                     # x (f32)
            pl.BlockSpec((C, 3 * C), lambda b: (0, 0), **kw),           # wqkv (bf16)
            pl.BlockSpec((1, 3 * C), lambda b: (0, 0), **kw),           # bqkv (f32)
            pl.BlockSpec((C, C), lambda b: (0, 0), **kw),               # wproj (bf16)
            pl.BlockSpec((1, C), lambda b: (0, 0), **kw),               # bproj (f32)
            pl.BlockSpec((nW, H, N, N), lambda b: (0, 0, 0, 0), **kw),  # bias+mask
        ]
        return pl.pallas_call(
            kernel,
            out_shape=jax.ShapeDtypeStruct((B_ * N, C), jnp.float32),
            grid_spec=pltpu.PrefetchScalarGridSpec(
                num_scalar_prefetch=0,
                grid=(grid,),
                in_specs=in_specs,
                out_specs=pl.BlockSpec((M, C), lambda b: (b, 0)),
                scratch_shapes=[pltpu.VMEM((M, 3 * C), jnp.bfloat16),   # qkv stage
                                pltpu.VMEM((M, C), jnp.bfloat16)]),     # attn@v
            compiler_params=pltpu.CompilerParams(
                dimension_semantics=("parallel",),
                vmem_limit_bytes=64 * 1024 * 1024),
        )

    args = (xf, prepared['wqkv'], prepared['bqkv'], prepared['wproj'],
            prepared['bproj'], fused)
    try:
        out = jax.block_until_ready(build_call(pl.Buffered(1))(*args))
    except Exception:
        # Fallback for JAX versions where single-buffered pipeline_mode on
        # constant-index BlockSpecs is unsupported; only costs extra VMEM.
        out = jax.block_until_ready(build_call(None)(*args))

    return out.reshape(B_, N, C)


# ----------------------------------------------------------------------------
# Pure-JAX f32 reference (mirrors the PyTorch forward) for correctness checks.
# ----------------------------------------------------------------------------
def reference(x, mask, params, window_size, num_heads):
    B_, N, C = x.shape
    H = num_heads
    hd = C // H
    scale = hd ** -0.5
    Wh, Ww = window_size

    qkv = x @ params['wqkv'] + params['bqkv']                  # (B_, N, 3C)
    qkv = qkv.reshape(B_, N, 3, H, hd).transpose(2, 0, 3, 1, 4)
    q, k, v = qkv[0], qkv[1], qkv[2]                           # (B_, H, N, hd)
    q = q * scale
    attn = q @ k.transpose(0, 1, 3, 2)                         # (B_, H, N, N)

    rel_index = jnp.asarray(make_relative_position_index(Wh, Ww))
    bias = params['rpb_table'][rel_index.reshape(-1)].reshape(N, N, H)
    bias = bias.transpose(2, 0, 1)                             # (H, N, N)
    attn = attn + bias[None]

    if mask is not None:
        nW = mask.shape[0]
        attn = attn.reshape(B_ // nW, nW, H, N, N) + mask[None, :, None]
        attn = attn.reshape(B_, H, N, N)

    attn = jax.nn.softmax(attn, axis=-1)
    out = (attn @ v).transpose(0, 2, 1, 3).reshape(B_, N, C)
    return out @ params['wproj'] + params['bproj']


# ----------------------------------------------------------------------------
if __name__ == "__main__":
    # Small deterministic config
    dim = 32
    num_heads = 4
    window_size = (4, 4)
    N = window_size[0] * window_size[1]    # 16
    B = 2
    nW = 4
    B_ = B * nW                            # 8

    key = jax.random.PRNGKey(0)
    k_x, k_tbl, k_wq, k_bq, k_wp, k_bp, k_m = jax.random.split(key, 7)

    x = jax.random.normal(k_x, (B_, N, dim), jnp.float32)

    params = {
        # trunc_normal(std=0.02) analogue
        'rpb_table': 0.02 * jax.random.truncated_normal(
            k_tbl, -2.0, 2.0,
            ((2 * window_size[0] - 1) * (2 * window_size[1] - 1), num_heads),
            jnp.float32),
        # Linear weights stored as (in, out) = W.T
        'wqkv': 0.1 * jax.random.normal(k_wq, (dim, 3 * dim), jnp.float32),
        'bqkv': 0.1 * jax.random.normal(k_bq, (3 * dim,), jnp.float32),
        'wproj': 0.1 * jax.random.normal(k_wp, (dim, dim), jnp.float32),
        'bproj': 0.1 * jax.random.normal(k_bp, (dim,), jnp.float32),
    }

    # 0 / -100 additive window mask (shifted-window style)
    mask_bits = jax.random.bernoulli(k_m, 0.3, (nW, N, N))
    mask = jnp.where(mask_bits, -100.0, 0.0).astype(jnp.float32)
    mask = mask * (1.0 - jnp.eye(N, dtype=jnp.float32))[None]

    # One-time precompute (hoisted out of the forward path).
    bias = precompute_relative_position_bias(params['rpb_table'], window_size)
    prepared = prepare_params(params, num_heads)

    # bf16 MXU operands (f32 accumulation) -> compare at ~1e-2-level tolerance.
    out = jax.block_until_ready(
        window_attention(x, mask, prepared, bias, num_heads))
    ref = reference(x, mask, params, window_size, num_heads)
    np.testing.assert_allclose(np.asarray(out), np.asarray(ref),
                               rtol=5e-2, atol=5e-2)

    # Also exercise the mask=None path
    out2 = jax.block_until_ready(
        window_attention(x, None, prepared, bias, num_heads))
    ref2 = reference(x, None, params, window_size, num_heads)
    np.testing.assert_allclose(np.asarray(out2), np.asarray(ref2),
                               rtol=5e-2, atol=5e-2)

    print("KERNEL_OK")
</pallas_src>

<mosaic_0001>
module attributes {stable_mosaic.version = 11 : i64} {
  func.func @_window_attn_kernel(%arg0: i32, %arg1: memref<64x32xf32, #tpu.memory_space<vmem>>, %arg2: memref<32x96xbf16, #tpu.memory_space<vmem>>, %arg3: memref<1x96xf32, #tpu.memory_space<vmem>>, %arg4: memref<32x32xbf16, #tpu.memory_space<vmem>>, %arg5: memref<1x32xf32, #tpu.memory_space<vmem>>, %arg6: memref<4x4x16x16xf32, #tpu.memory_space<vmem>>, %arg7: memref<64x32xf32, #tpu.memory_space<vmem>>, %arg8: memref<64x96xbf16, #tpu.memory_space<vmem>>, %arg9: memref<64x32xbf16, #tpu.memory_space<vmem>>) attributes {dimension_semantics = [#tpu.dimension_semantics<parallel>], iteration_bounds = array<i64: 2>, scalar_prefetch = 0 : i64, scratch_operands = 2 : i64, tpu.core_type = #tpu.core_type<tc>, window_params = [{transform_indices = @transform_0, window_bounds = array<i64: 64, 32>}, {pipeline_mode = #tpu.pipeline_mode<synchronous>, transform_indices = @transform_1, window_bounds = array<i64: 32, 96>}, {pipeline_mode = #tpu.pipeline_mode<synchronous>, transform_indices = @transform_2, window_bounds = array<i64: 1, 96>}, {pipeline_mode = #tpu.pipeline_mode<synchronous>, transform_indices = @transform_3, window_bounds = array<i64: 32, 32>}, {pipeline_mode = #tpu.pipeline_mode<synchronous>, transform_indices = @transform_4, window_bounds = array<i64: 1, 32>}, {pipeline_mode = #tpu.pipeline_mode<synchronous>, transform_indices = @transform_5, window_bounds = array<i64: 4, 4, 16, 16>}, {transform_indices = @transform_6, window_bounds = array<i64: 64, 32>}]} {
    %c0 = arith.constant 0 : index
    %c0_0 = arith.constant 0 : index
    %0 = vector.load %arg1[%c0, %c0_0] : memref<64x32xf32, #tpu.memory_space<vmem>>, vector<64x32xf32>
    %1 = arith.truncf %0 : vector<64x32xf32> to vector<64x32xbf16>
    %c0_1 = arith.constant 0 : index
    %c0_2 = arith.constant 0 : index
    %2 = vector.load %arg2[%c0_1, %c0_2] : memref<32x96xbf16, #tpu.memory_space<vmem>>, vector<32x96xbf16>
    %cst = arith.constant dense<0.000000e+00> : vector<64x96xf32>
    %3 = tpu.matmul %1, %2, %cst {dimension_numbers = #tpu.dot_dimension_numbers<[1], [0], [0], [1], [0, 0, 1, 1], [], []>} : vector<64x32xbf16>, vector<32x96xbf16>, vector<64x96xf32> -> vector<64x96xf32>
    %c0_3 = arith.constant 0 : index
    %c0_4 = arith.constant 0 : index
    %4 = vector.load %arg3[%c0_3, %c0_4] : memref<1x96xf32, #tpu.memory_space<vmem>>, vector<1x96xf32>
    %5 = vector.broadcast %4 : vector<1x96xf32> to vector<64x96xf32>
    %6 = arith.addf %3, %5 : vector<64x96xf32>
    %7 = arith.truncf %6 : vector<64x96xf32> to vector<64x96xbf16>
    %c0_5 = arith.constant 0 : index
    %c0_6 = arith.constant 0 : index
    %8 = vector.load %arg8[%c0_5, %c0_6] : memref<64x96xbf16, #tpu.memory_space<vmem>>, vector<64x96xbf16>
    tpu.vector_store %arg8[%c0_5, %c0_6], %7 {strides = array<i32>} : memref<64x96xbf16, #tpu.memory_space<vmem>>, vector<64x96xbf16>,
    %c0_7 = arith.constant 0 : index
    %c0_8 = arith.constant 0 : index
    %9 = vector.load %arg8[%c0_7, %c0_8] : memref<64x96xbf16, #tpu.memory_space<vmem>>, vector<64x8xbf16>
    %10 = vector.shape_cast %9 : vector<64x8xbf16> to vector<4x16x8xbf16>
    %c0_9 = arith.constant 0 : index
    %c32 = arith.constant 32 : index
    %11 = vector.load %arg8[%c0_9, %c32] : memref<64x96xbf16, #tpu.memory_space<vmem>>, vector<64x8xbf16>
    %12 = vector.shape_cast %11 : vector<64x8xbf16> to vector<4x16x8xbf16>
    %c0_10 = arith.constant 0 : index
    %c64 = arith.constant 64 : index
    %13 = vector.load %arg8[%c0_10, %c64] : memref<64x96xbf16, #tpu.memory_space<vmem>>, vector<64x8xbf16>
    %14 = vector.shape_cast %13 : vector<64x8xbf16> to vector<4x16x8xbf16>
    "tpu.trace_start"() <{level = 10 : i32, message = "wnd,wmd->wnm"}> : () -> ()
    %cst_11 = arith.constant dense<0.000000e+00> : vector<4x16x16xf32>
    %15 = tpu.matmul %10, %12, %cst_11 {dimension_numbers = #tpu.dot_dimension_numbers<[2], [2], [1], [1], [0, 0, 0, 1, 1, 1], [0], [0]>} : vector<4x16x8xbf16>, vector<4x16x8xbf16>, vector<4x16x16xf32> -> vector<4x16x16xf32>
    "tpu.trace_stop"() : () -> ()
    %c0_12 = arith.constant 0 : index
    %c0_13 = arith.constant 0 : index
    %c0_14 = arith.constant 0 : index
    %c0_15 = arith.constant 0 : index
    %16 = vector.load %arg6[%c0_12, %c0_13, %c0_14, %c0_15] : memref<4x4x16x16xf32, #tpu.memory_space<vmem>>, vector<4x1x16x16xf32>
    %17 = vector.shape_cast %16 : vector<4x1x16x16xf32> to vector<4x16x16xf32>
    %18 = vector.shape_cast %15 : vector<4x16x16xf32> to vector<1x4x16x16xf32>
    %19 = vector.shape_cast %17 : vector<4x16x16xf32> to vector<1x4x16x16xf32>
    %20 = arith.addf %18, %19 : vector<1x4x16x16xf32>
    %21 = vector.shape_cast %20 : vector<1x4x16x16xf32> to vector<4x16x16xf32>
    %cst_16 = arith.constant dense<0xFF800000> : vector<4x16xf32>
    %22 = vector.multi_reduction <maximumf>, %21, %cst_16 [2] : vector<4x16x16xf32> to vector<4x16xf32>
    %23 = vector.shape_cast %22 : vector<4x16xf32> to vector<4x16x1xf32>
    %24 = vector.broadcast %23 : vector<4x16x1xf32> to vector<4x16x16xf32>
    %25 = arith.subf %21, %24 : vector<4x16x16xf32>
    %26 = math.exp %25 : vector<4x16x16xf32>
    %cst_17 = arith.constant dense<0.000000e+00> : vector<4x16xf32>
    %27 = vector.multi_reduction <add>, %26, %cst_17 [2] : vector<4x16x16xf32> to vector<4x16xf32>
    %28 = vector.shape_cast %27 : vector<4x16xf32> to vector<4x16x1xf32>
    %29 = tpu.reciprocal %28 {approx = true} : vector<4x16x1xf32> -> vector<4x16x1xf32>
    %30 = vector.broadcast %29 : vector<4x16x1xf32> to vector<4x16x16xf32>
    %31 = arith.mulf %26, %30 : vector<4x16x16xf32>
    %32 = arith.truncf %31 : vector<4x16x16xf32> to vector<4x16x16xbf16>
    "tpu.trace_start"() <{level = 10 : i32, message = "wnm,wmd->wnd"}> : () -> ()
    %cst_18 = arith.constant dense<0.000000e+00> : vector<4x16x8xf32>
    %33 = tpu.matmul %32, %14, %cst_18 {dimension_numbers = #tpu.dot_dimension_numbers<[2], [1], [1], [2], [0, 0, 0, 1, 1, 2], [0], [0]>} : vector<4x16x16xbf16>, vector<4x16x8xbf16>, vector<4x16x8xf32> -> vector<4x16x8xf32>
    "tpu.trace_stop"() : () -> ()
    %34 = vector.shape_cast %33 : vector<4x16x8xf32> to vector<64x8xf32>
    %35 = arith.truncf %34 : vector<64x8xf32> to vector<64x8xbf16>
    %c0_19 = arith.constant 0 : index
    %c0_20 = arith.constant 0 : index
    %36 = vector.load %arg9[%c0_19, %c0_20] : memref<64x32xbf16, #tpu.memory_space<vmem>>, vector<64x8xbf16>
    tpu.vector_store %arg9[%c0_19, %c0_20], %35 {strides = array<i32>} : memref<64x32xbf16, #tpu.memory_space<vmem>>, vector<64x8xbf16>,
    %c0_21 = arith.constant 0 : index
    %c8 = arith.constant 8 : index
    %37 = vector.load %arg8[%c0_21, %c8] : memref<64x96xbf16, #tpu.memory_space<vmem>>, vector<64x8xbf16>
    %38 = vector.shape_cast %37 : vector<64x8xbf16> to vector<4x16x8xbf16>
    %c0_22 = arith.constant 0 : index
    %c40 = arith.constant 40 : index
    %39 = vector.load %arg8[%c0_22, %c40] : memref<64x96xbf16, #tpu.memory_space<vmem>>, vector<64x8xbf16>
    %40 = vector.shape_cast %39 : vector<64x8xbf16> to vector<4x16x8xbf16>
    %c0_23 = arith.constant 0 : index
    %c72 = arith.constant 72 : index
    %41 = vector.load %arg8[%c0_23, %c72] : memref<64x96xbf16, #tpu.memory_space<vmem>>, vector<64x8xbf16>
    %42 = vector.shape_cast %41 : vector<64x8xbf16> to vector<4x16x8xbf16>
    "tpu.trace_start"() <{level = 10 : i32, message = "wnd,wmd->wnm"}> : () -> ()
    %cst_24 = arith.constant dense<0.000000e+00> : vector<4x16x16xf32>
    %43 = tpu.matmul %38, %40, %cst_24 {dimension_numbers = #tpu.dot_dimension_numbers<[2], [2], [1], [1], [0, 0, 0, 1, 1, 1], [0], [0]>} : vector<4x16x8xbf16>, vector<4x16x8xbf16>, vector<4x16x16xf32> -> vector<4x16x16xf32>
    "tpu.trace_stop"() : () -> ()
    %c0_25 = arith.constant 0 : index
    %c1 = arith.constant 1 : index
    %c0_26 = arith.constant 0 : index
    %c0_27 = arith.constant 0 : index
    %44 = vector.load %arg6[%c0_25, %c1, %c0_26, %c0_27] : memref<4x4x16x16xf32, #tpu.memory_space<vmem>>, vector<4x1x16x16xf32>
    %45 = vector.shape_cast %44 : vector<4x1x16x16xf32> to vector<4x16x16xf32>
    %46 = vector.shape_cast %43 : vector<4x16x16xf32> to vector<1x4x16x16xf32>
    %47 = vector.shape_cast %45 : vector<4x16x16xf32> to vector<1x4x16x16xf32>
    %48 = arith.addf %46, %47 : vector<1x4x16x16xf32>
    %49 = vector.shape_cast %48 : vector<1x4x16x16xf32> to vector<4x16x16xf32>
    %cst_28 = arith.constant dense<0xFF800000> : vector<4x16xf32>
    %50 = vector.multi_reduction <maximumf>, %49, %cst_28 [2] : vector<4x16x16xf32> to vector<4x16xf32>
    %51 = vector.shape_cast %50 : vector<4x16xf32> to vector<4x16x1xf32>
    %52 = vector.broadcast %51 : vector<4x16x1xf32> to vector<4x16x16xf32>
    %53 = arith.subf %49, %52 : vector<4x16x16xf32>
    %54 = math.exp %53 : vector<4x16x16xf32>
    %cst_29 = arith.constant dense<0.000000e+00> : vector<4x16xf32>
    %55 = vector.multi_reduction <add>, %54, %cst_29 [2] : vector<4x16x16xf32> to vector<4x16xf32>
    %56 = vector.shape_cast %55 : vector<4x16xf32> to vector<4x16x1xf32>
    %57 = tpu.reciprocal %56 {approx = true} : vector<4x16x1xf32> -> vector<4x16x1xf32>
    %58 = vector.broadcast %57 : vector<4x16x1xf32> to vector<4x16x16xf32>
    %59 = arith.mulf %54, %58 : vector<4x16x16xf32>
    %60 = arith.truncf %59 : vector<4x16x16xf32> to vector<4x16x16xbf16>
    "tpu.trace_start"() <{level = 10 : i32, message = "wnm,wmd->wnd"}> : () -> ()
    %cst_30 = arith.constant dense<0.000000e+00> : vector<4x16x8xf32>
    %61 = tpu.matmul %60, %42, %cst_30 {dimension_numbers = #tpu.dot_dimension_numbers<[2], [1], [1], [2], [0, 0, 0, 1, 1, 2], [0], [0]>} : vector<4x16x16xbf16>, vector<4x16x8xbf16>, vector<4x16x8xf32> -> vector<4x16x8xf32>
    "tpu.trace_stop"() : () -> ()
    %62 = vector.shape_cast %61 : vector<4x16x8xf32> to vector<64x8xf32>
    %63 = arith.truncf %62 : vector<64x8xf32> to vector<64x8xbf16>
    %c0_31 = arith.constant 0 : index
    %c8_32 = arith.constant 8 : index
    %64 = vector.load %arg9[%c0_31, %c8_32] : memref<64x32xbf16, #tpu.memory_space<vmem>>, vector<64x8xbf16>
    tpu.vector_store %arg9[%c0_31, %c8_32], %63 {strides = array<i32>} : memref<64x32xbf16, #tpu.memory_space<vmem>>, vector<64x8xbf16>,
    %c0_33 = arith.constant 0 : index
    %c16 = arith.constant 16 : index
    %65 = vector.load %arg8[%c0_33, %c16] : memref<64x96xbf16, #tpu.memory_space<vmem>>, vector<64x8xbf16>
    %66 = vector.shape_cast %65 : vector<64x8xbf16> to vector<4x16x8xbf16>
    %c0_34 = arith.constant 0 : index
    %c48 = arith.constant 48 : index
    %67 = vector.load %arg8[%c0_34, %c48] : memref<64x96xbf16, #tpu.memory_space<vmem>>, vector<64x8xbf16>
    %68 = vector.shape_cast %67 : vector<64x8xbf16> to vector<4x16x8xbf16>
    %c0_35 = arith.constant 0 : index
    %c80 = arith.constant 80 : index
    %69 = vector.load %arg8[%c0_35, %c80] : memref<64x96xbf16, #tpu.memory_space<vmem>>, vector<64x8xbf16>
    %70 = vector.shape_cast %69 : vector<64x8xbf16> to vector<4x16x8xbf16>
    "tpu.trace_start"() <{level = 10 : i32, message = "wnd,wmd->wnm"}> : () -> ()
    %cst_36 = arith.constant dense<0.000000e+00> : vector<4x16x16xf32>
    %71 = tpu.matmul %66, %68, %cst_36 {dimension_numbers = #tpu.dot_dimension_numbers<[2], [2], [1], [1], [0, 0, 0, 1, 1, 1], [0], [0]>} : vector<4x16x8xbf16>, vector<4x16x8xbf16>, vector<4x16x16xf32> -> vector<4x16x16xf32>
    "tpu.trace_stop"() : () -> ()
    %c0_37 = arith.constant 0 : index
    %c2 = arith.constant 2 : index
    %c0_38 = arith.constant 0 : index
    %c0_39 = arith.constant 0 : index
    %72 = vector.load %arg6[%c0_37, %c2, %c0_38, %c0_39] : memref<4x4x16x16xf32, #tpu.memory_space<vmem>>, vector<4x1x16x16xf32>
    %73 = vector.shape_cast %72 : vector<4x1x16x16xf32> to vector<4x16x16xf32>
    %74 = vector.shape_cast %71 : vector<4x16x16xf32> to vector<1x4x16x16xf32>
    %75 = vector.shape_cast %73 : vector<4x16x16xf32> to vector<1x4x16x16xf32>
    %76 = arith.addf %74, %75 : vector<1x4x16x16xf32>
    %77 = vector.shape_cast %76 : vector<1x4x16x16xf32> to vector<4x16x16xf32>
    %cst_40 = arith.constant dense<0xFF800000> : vector<4x16xf32>
    %78 = vector.multi_reduction <maximumf>, %77, %cst_40 [2] : vector<4x16x16xf32> to vector<4x16xf32>
    %79 = vector.shape_cast %78 : vector<4x16xf32> to vector<4x16x1xf32>
    %80 = vector.broadcast %79 : vector<4x16x1xf32> to vector<4x16x16xf32>
    %81 = arith.subf %77, %80 : vector<4x16x16xf32>
    %82 = math.exp %81 : vector<4x16x16xf32>
    %cst_41 = arith.constant dense<0.000000e+00> : vector<4x16xf32>
    %83 = vector.multi_reduction <add>, %82, %cst_41 [2] : vector<4x16x16xf32> to vector<4x16xf32>
    %84 = vector.shape_cast %83 : vector<4x16xf32> to vector<4x16x1xf32>
    %85 = tpu.reciprocal %84 {approx = true} : vector<4x16x1xf32> -> vector<4x16x1xf32>
    %86 = vector.broadcast %85 : vector<4x16x1xf32> to vector<4x16x16xf32>
    %87 = arith.mulf %82, %86 : vector<4x16x16xf32>
    %88 = arith.truncf %87 : vector<4x16x16xf32> to vector<4x16x16xbf16>
    "tpu.trace_start"() <{level = 10 : i32, message = "wnm,wmd->wnd"}> : () -> ()
    %cst_42 = arith.constant dense<0.000000e+00> : vector<4x16x8xf32>
    %89 = tpu.matmul %88, %70, %cst_42 {dimension_numbers = #tpu.dot_dimension_numbers<[2], [1], [1], [2], [0, 0, 0, 1, 1, 2], [0], [0]>} : vector<4x16x16xbf16>, vector<4x16x8xbf16>, vector<4x16x8xf32> -> vector<4x16x8xf32>
    "tpu.trace_stop"() : () -> ()
    %90 = vector.shape_cast %89 : vector<4x16x8xf32> to vector<64x8xf32>
    %91 = arith.truncf %90 : vector<64x8xf32> to vector<64x8xbf16>
    %c0_43 = arith.constant 0 : index
    %c16_44 = arith.constant 16 : index
    %92 = vector.load %arg9[%c0_43, %c16_44] : memref<64x32xbf16, #tpu.memory_space<vmem>>, vector<64x8xbf16>
    tpu.vector_store %arg9[%c0_43, %c16_44], %91 {strides = array<i32>} : memref<64x32xbf16, #tpu.memory_space<vmem>>, vector<64x8xbf16>,
    %c0_45 = arith.constant 0 : index
    %c24 = arith.constant 24 : index
    %93 = vector.load %arg8[%c0_45, %c24] : memref<64x96xbf16, #tpu.memory_space<vmem>>, vector<64x8xbf16>
    %94 = vector.shape_cast %93 : vector<64x8xbf16> to vector<4x16x8xbf16>
    %c0_46 = arith.constant 0 : index
    %c56 = arith.constant 56 : index
    %95 = vector.load %arg8[%c0_46, %c56] : memref<64x96xbf16, #tpu.memory_space<vmem>>, vector<64x8xbf16>
    %96 = vector.shape_cast %95 : vector<64x8xbf16> to vector<4x16x8xbf16>
    %c0_47 = arith.constant 0 : index
    %c88 = arith.constant 88 : index
    %97 = vector.load %arg8[%c0_47, %c88] : memref<64x96xbf16, #tpu.memory_space<vmem>>, vector<64x8xbf16>
    %98 = vector.shape_cast %97 : vector<64x8xbf16> to vector<4x16x8xbf16>
    "tpu.trace_start"() <{level = 10 : i32, message = "wnd,wmd->wnm"}> : () -> ()
    %cst_48 = arith.constant dense<0.000000e+00> : vector<4x16x16xf32>
    %99 = tpu.matmul %94, %96, %cst_48 {dimension_numbers = #tpu.dot_dimension_numbers<[2], [2], [1], [1], [0, 0, 0, 1, 1, 1], [0], [0]>} : vector<4x16x8xbf16>, vector<4x16x8xbf16>, vector<4x16x16xf32> -> vector<4x16x16xf32>
    "tpu.trace_stop"() : () -> ()
    %c0_49 = arith.constant 0 : index
    %c3 = arith.constant 3 : index
    %c0_50 = arith.constant 0 : index
    %c0_51 = arith.constant 0 : index
    %100 = vector.load %arg6[%c0_49, %c3, %c0_50, %c0_51] : memref<4x4x16x16xf32, #tpu.memory_space<vmem>>, vector<4x1x16x16xf32>
    %101 = vector.shape_cast %100 : vector<4x1x16x16xf32> to vector<4x16x16xf32>
    %102 = vector.shape_cast %99 : vector<4x16x16xf32> to vector<1x4x16x16xf32>
    %103 = vector.shape_cast %101 : vector<4x16x16xf32> to vector<1x4x16x16xf32>
    %104 = arith.addf %102, %103 : vector<1x4x16x16xf32>
    %105 = vector.shape_cast %104 : vector<1x4x16x16xf32> to vector<4x16x16xf32>
    %cst_52 = arith.constant dense<0xFF800000> : vector<4x16xf32>
    %106 = vector.multi_reduction <maximumf>, %105, %cst_52 [2] : vector<4x16x16xf32> to vector<4x16xf32>
    %107 = vector.shape_cast %106 : vector<4x16xf32> to vector<4x16x1xf32>
    %108 = vector.broadcast %107 : vector<4x16x1xf32> to vector<4x16x16xf32>
    %109 = arith.subf %105, %108 : vector<4x16x16xf32>
    %110 = math.exp %109 : vector<4x16x16xf32>
    %cst_53 = arith.constant dense<0.000000e+00> : vector<4x16xf32>
    %111 = vector.multi_reduction <add>, %110, %cst_53 [2] : vector<4x16x16xf32> to vector<4x16xf32>
    %112 = vector.shape_cast %111 : vector<4x16xf32> to vector<4x16x1xf32>
    %113 = tpu.reciprocal %112 {approx = true} : vector<4x16x1xf32> -> vector<4x16x1xf32>
    %114 = vector.broadcast %113 : vector<4x16x1xf32> to vector<4x16x16xf32>
    %115 = arith.mulf %110, %114 : vector<4x16x16xf32>
    %116 = arith.truncf %115 : vector<4x16x16xf32> to vector<4x16x16xbf16>
    "tpu.trace_start"() <{level = 10 : i32, message = "wnm,wmd->wnd"}> : () -> ()
    %cst_54 = arith.constant dense<0.000000e+00> : vector<4x16x8xf32>
    %117 = tpu.matmul %116, %98, %cst_54 {dimension_numbers = #tpu.dot_dimension_numbers<[2], [1], [1], [2], [0, 0, 0, 1, 1, 2], [0], [0]>} : vector<4x16x16xbf16>, vector<4x16x8xbf16>, vector<4x16x8xf32> -> vector<4x16x8xf32>
    "tpu.trace_stop"() : () -> ()
    %118 = vector.shape_cast %117 : vector<4x16x8xf32> to vector<64x8xf32>
    %119 = arith.truncf %118 : vector<64x8xf32> to vector<64x8xbf16>
    %c0_55 = arith.constant 0 : index
    %c24_56 = arith.constant 24 : index
    %120 = vector.load %arg9[%c0_55, %c24_56] : memref<64x32xbf16, #tpu.memory_space<vmem>>, vector<64x8xbf16>
    tpu.vector_store %arg9[%c0_55, %c24_56], %119 {strides = array<i32>} : memref<64x32xbf16, #tpu.memory_space<vmem>>, vector<64x8xbf16>,
    %c0_57 = arith.constant 0 : index
    %c0_58 = arith.constant 0 : index
    %121 = vector.load %arg9[%c0_57, %c0_58] : memref<64x32xbf16, #tpu.memory_space<vmem>>, vector<64x32xbf16>
    %c0_59 = arith.constant 0 : index
    %c0_60 = arith.constant 0 : index
    %122 = vector.load %arg4[%c0_59, %c0_60] : memref<32x32xbf16, #tpu.memory_space<vmem>>, vector<32x32xbf16>
    %cst_61 = arith.constant dense<0.000000e+00> : vector<64x32xf32>
    %123 = tpu.matmul %121, %122, %cst_61 {dimension_numbers = #tpu.dot_dimension_numbers<[1], [0], [0], [1], [0, 0, 1, 1], [], []>} : vector<64x32xbf16>, vector<32x32xbf16>, vector<64x32xf32> -> vector<64x32xf32>
    %c0_62 = arith.constant 0 : index
    %c0_63 = arith.constant 0 : index
    %124 = vector.load %arg5[%c0_62, %c0_63] : memref<1x32xf32, #tpu.memory_space<vmem>>, vector<1x32xf32>
    %125 = vector.broadcast %124 : vector<1x32xf32> to vector<64x32xf32>
    %126 = arith.addf %123, %125 : vector<64x32xf32>
    %c0_64 = arith.constant 0 : index
    %c0_65 = arith.constant 0 : index
    %127 = vector.load %arg7[%c0_64, %c0_65] : memref<64x32xf32, #tpu.memory_space<vmem>>, vector<64x32xf32>
    tpu.vector_store %arg7[%c0_64, %c0_65], %126 {strides = array<i32>} : memref<64x32xf32, #tpu.memory_space<vmem>>, vector<64x32xf32>,
    return
  }
  func.func @transform_0(%arg0: i32) -> (i32, i32) {
    %c0_i32 = arith.constant 0 : i32
    %c0_i32_0 = arith.constant 0 : i32
    return %arg0, %c0_i32 : i32, i32
  }
  func.func @transform_1(%arg0: i32) -> (i32, i32) {
    %c0_i32 = arith.constant 0 : i32
    %c0_i32_0 = arith.constant 0 : i32
    %c0_i32_1 = arith.constant 0 : i32
    return %c0_i32, %c0_i32_0 : i32, i32
  }
  func.func @transform_2(%arg0: i32) -> (i32, i32) {
    %c0_i32 = arith.constant 0 : i32
    %c0_i32_0 = arith.constant 0 : i32
    %c0_i32_1 = arith.constant 0 : i32
    return %c0_i32, %c0_i32_0 : i32, i32
  }
  func.func @transform_3(%arg0: i32) -> (i32, i32) {
    %c0_i32 = arith.constant 0 : i32
    %c0_i32_0 = arith.constant 0 : i32
    %c0_i32_1 = arith.constant 0 : i32
    return %c0_i32, %c0_i32_0 : i32, i32
  }
  func.func @transform_4(%arg0: i32) -> (i32, i32) {
    %c0_i32 = arith.constant 0 : i32
    %c0_i32_0 = arith.constant 0 : i32
    %c0_i32_1 = arith.constant 0 : i32
    return %c0_i32, %c0_i32_0 : i32, i32
  }
  func.func @transform_5(%arg0: i32) -> (i32, i32, i32, i32) {
    %c0_i32 = arith.constant 0 : i32
    %c0_i32_0 = arith.constant 0 : i32
    %c0_i32_1 = arith.constant 0 : i32
    %c0_i32_2 = arith.constant 0 : i32
    %c0_i32_3 = arith.constant 0 : i32
    return %c0_i32, %c0_i32_0, %c0_i32_1, %c0_i32_2 : i32, i32, i32, i32
  }
  func.func @transform_6(%arg0: i32) -> (i32, i32) {
    %c0_i32 = arith.constant 0 : i32
    %c0_i32_0 = arith.constant 0 : i32
    return %arg0, %c0_i32 : i32, i32
  }
}

module attributes {stable_mosaic.version = 11 : i64} {
  func.func @_window_attn_kernel(%arg0: i32, %arg1: memref<64x32xf32, #tpu.memory_space<vmem>>, %arg2: memref<32x96xbf16, #tpu.memory_space<vmem>>, %arg3: memref<1x96xf32, #tpu.memory_space<vmem>>, %arg4: memref<32x32xbf16, #tpu.memory_space<vmem>>, %arg5: memref<1x32xf32, #tpu.memory_space<vmem>>, %arg6: memref<4x4x16x16xf32, #tpu.memory_space<vmem>>, %arg7: memref<64x32xf32, #tpu.memory_space<vmem>>, %arg8: memref<64x96xbf16, #tpu.memory_space<vmem>>, %arg9: memref<64x32xbf16, #tpu.memory_space<vmem>>) attributes {dimension_semantics = [#tpu.dimension_semantics<parallel>], iteration_bounds = array<i64: 2>, scalar_prefetch = 0 : i64, scratch_operands = 2 : i64, tpu.core_type = #tpu.core_type<tc>, window_params = [{transform_indices = @transform_0, window_bounds = array<i64: 64, 32>}, {pipeline_mode = #tpu.pipeline_mode<synchronous>, transform_indices = @transform_1, window_bounds = array<i64: 32, 96>}, {pipeline_mode = #tpu.pipeline_mode<synchronous>, transform_indices = @transform_2, window_bounds = array<i64: 1, 96>}, {pipeline_mode = #tpu.pipeline_mode<synchronous>, transform_indices = @transform_3, window_bounds = array<i64: 32, 32>}, {pipeline_mode = #tpu.pipeline_mode<synchronous>, transform_indices = @transform_4, window_bounds = array<i64: 1, 32>}, {pipeline_mode = #tpu.pipeline_mode<synchronous>, transform_indices = @transform_5, window_bounds = array<i64: 4, 4, 16, 16>}, {transform_indices = @transform_6, window_bounds = array<i64: 64, 32>}]} {
    %c0 = arith.constant 0 : index
    %c0_0 = arith.constant 0 : index
    %0 = vector.load %arg1[%c0, %c0_0] : memref<64x32xf32, #tpu.memory_space<vmem>>, vector<64x32xf32>
    %1 = arith.truncf %0 : vector<64x32xf32> to vector<64x32xbf16>
    %c0_1 = arith.constant 0 : index
    %c0_2 = arith.constant 0 : index
    %2 = vector.load %arg2[%c0_1, %c0_2] : memref<32x96xbf16, #tpu.memory_space<vmem>>, vector<32x96xbf16>
    %cst = arith.constant dense<0.000000e+00> : vector<64x96xf32>
    %3 = tpu.matmul %1, %2, %cst {dimension_numbers = #tpu.dot_dimension_numbers<[1], [0], [0], [1], [0, 0, 1, 1], [], []>} : vector<64x32xbf16>, vector<32x96xbf16>, vector<64x96xf32> -> vector<64x96xf32>
    %c0_3 = arith.constant 0 : index
    %c0_4 = arith.constant 0 : index
    %4 = vector.load %arg3[%c0_3, %c0_4] : memref<1x96xf32, #tpu.memory_space<vmem>>, vector<1x96xf32>
    %5 = vector.broadcast %4 : vector<1x96xf32> to vector<64x96xf32>
    %6 = arith.addf %3, %5 : vector<64x96xf32>
    %7 = arith.truncf %6 : vector<64x96xf32> to vector<64x96xbf16>
    %c0_5 = arith.constant 0 : index
    %c0_6 = arith.constant 0 : index
    %8 = vector.load %arg8[%c0_5, %c0_6] : memref<64x96xbf16, #tpu.memory_space<vmem>>, vector<64x96xbf16>
    tpu.vector_store %arg8[%c0_5, %c0_6], %7 {strides = array<i32>} : memref<64x96xbf16, #tpu.memory_space<vmem>>, vector<64x96xbf16>,
    %c0_7 = arith.constant 0 : index
    %c0_8 = arith.constant 0 : index
    %9 = vector.load %arg8[%c0_7, %c0_8] : memref<64x96xbf16, #tpu.memory_space<vmem>>, vector<64x8xbf16>
    %10 = vector.shape_cast %9 : vector<64x8xbf16> to vector<4x16x8xbf16>
    %c0_9 = arith.constant 0 : index
    %c32 = arith.constant 32 : index
    %11 = vector.load %arg8[%c0_9, %c32] : memref<64x96xbf16, #tpu.memory_space<vmem>>, vector<64x8xbf16>
    %12 = vector.shape_cast %11 : vector<64x8xbf16> to vector<4x16x8xbf16>
    %c0_10 = arith.constant 0 : index
    %c64 = arith.constant 64 : index
    %13 = vector.load %arg8[%c0_10, %c64] : memref<64x96xbf16, #tpu.memory_space<vmem>>, vector<64x8xbf16>
    %14 = vector.shape_cast %13 : vector<64x8xbf16> to vector<4x16x8xbf16>
    "tpu.trace_start"() <{level = 10 : i32, message = "wnd,wmd->wnm"}> : () -> ()
    %cst_11 = arith.constant dense<0.000000e+00> : vector<4x16x16xf32>
    %15 = tpu.matmul %10, %12, %cst_11 {dimension_numbers = #tpu.dot_dimension_numbers<[2], [2], [1], [1], [0, 0, 0, 1, 1, 1], [0], [0]>} : vector<4x16x8xbf16>, vector<4x16x8xbf16>, vector<4x16x16xf32> -> vector<4x16x16xf32>
    "tpu.trace_stop"() : () -> ()
    %c0_12 = arith.constant 0 : index
    %c0_13 = arith.constant 0 : index
    %c0_14 = arith.constant 0 : index
    %c0_15 = arith.constant 0 : index
    %16 = vector.load %arg6[%c0_12, %c0_13, %c0_14, %c0_15] : memref<4x4x16x16xf32, #tpu.memory_space<vmem>>, vector<4x1x16x16xf32>
    %17 = vector.shape_cast %16 : vector<4x1x16x16xf32> to vector<4x16x16xf32>
    %18 = vector.shape_cast %15 : vector<4x16x16xf32> to vector<1x4x16x16xf32>
    %19 = vector.shape_cast %17 : vector<4x16x16xf32> to vector<1x4x16x16xf32>
    %20 = arith.addf %18, %19 : vector<1x4x16x16xf32>
    %21 = vector.shape_cast %20 : vector<1x4x16x16xf32> to vector<4x16x16xf32>
    %cst_16 = arith.constant dense<0xFF800000> : vector<4x16xf32>
    %22 = vector.multi_reduction <maximumf>, %21, %cst_16 [2] : vector<4x16x16xf32> to vector<4x16xf32>
    %23 = vector.shape_cast %22 : vector<4x16xf32> to vector<4x16x1xf32>
    %24 = vector.broadcast %23 : vector<4x16x1xf32> to vector<4x16x16xf32>
    %25 = arith.subf %21, %24 : vector<4x16x16xf32>
    %26 = math.exp %25 : vector<4x16x16xf32>
    %cst_17 = arith.constant dense<0.000000e+00> : vector<4x16xf32>
    %27 = vector.multi_reduction <add>, %26, %cst_17 [2] : vector<4x16x16xf32> to vector<4x16xf32>
    %28 = vector.shape_cast %27 : vector<4x16xf32> to vector<4x16x1xf32>
    %29 = tpu.reciprocal %28 {approx = true} : vector<4x16x1xf32> -> vector<4x16x1xf32>
    %30 = vector.broadcast %29 : vector<4x16x1xf32> to vector<4x16x16xf32>
    %31 = arith.mulf %26, %30 : vector<4x16x16xf32>
    %32 = arith.truncf %31 : vector<4x16x16xf32> to vector<4x16x16xbf16>
    "tpu.trace_start"() <{level = 10 : i32, message = "wnm,wmd->wnd"}> : () -> ()
    %cst_18 = arith.constant dense<0.000000e+00> : vector<4x16x8xf32>
    %33 = tpu.matmul %32, %14, %cst_18 {dimension_numbers = #tpu.dot_dimension_numbers<[2], [1], [1], [2], [0, 0, 0, 1, 1, 2], [0], [0]>} : vector<4x16x16xbf16>, vector<4x16x8xbf16>, vector<4x16x8xf32> -> vector<4x16x8xf32>
    "tpu.trace_stop"() : () -> ()
    %34 = vector.shape_cast %33 : vector<4x16x8xf32> to vector<64x8xf32>
    %35 = arith.truncf %34 : vector<64x8xf32> to vector<64x8xbf16>
    %c0_19 = arith.constant 0 : index
    %c0_20 = arith.constant 0 : index
    %36 = vector.load %arg9[%c0_19, %c0_20] : memref<64x32xbf16, #tpu.memory_space<vmem>>, vector<64x8xbf16>
    tpu.vector_store %arg9[%c0_19, %c0_20], %35 {strides = array<i32>} : memref<64x32xbf16, #tpu.memory_space<vmem>>, vector<64x8xbf16>,
    %c0_21 = arith.constant 0 : index
    %c8 = arith.constant 8 : index
    %37 = vector.load %arg8[%c0_21, %c8] : memref<64x96xbf16, #tpu.memory_space<vmem>>, vector<64x8xbf16>
    %38 = vector.shape_cast %37 : vector<64x8xbf16> to vector<4x16x8xbf16>
    %c0_22 = arith.constant 0 : index
    %c40 = arith.constant 40 : index
    %39 = vector.load %arg8[%c0_22, %c40] : memref<64x96xbf16, #tpu.memory_space<vmem>>, vector<64x8xbf16>
    %40 = vector.shape_cast %39 : vector<64x8xbf16> to vector<4x16x8xbf16>
    %c0_23 = arith.constant 0 : index
    %c72 = arith.constant 72 : index
    %41 = vector.load %arg8[%c0_23, %c72] : memref<64x96xbf16, #tpu.memory_space<vmem>>, vector<64x8xbf16>
    %42 = vector.shape_cast %41 : vector<64x8xbf16> to vector<4x16x8xbf16>
    "tpu.trace_start"() <{level = 10 : i32, message = "wnd,wmd->wnm"}> : () -> ()
    %cst_24 = arith.constant dense<0.000000e+00> : vector<4x16x16xf32>
    %43 = tpu.matmul %38, %40, %cst_24 {dimension_numbers = #tpu.dot_dimension_numbers<[2], [2], [1], [1], [0, 0, 0, 1, 1, 1], [0], [0]>} : vector<4x16x8xbf16>, vector<4x16x8xbf16>, vector<4x16x16xf32> -> vector<4x16x16xf32>
    "tpu.trace_stop"() : () -> ()
    %c0_25 = arith.constant 0 : index
    %c1 = arith.constant 1 : index
    %c0_26 = arith.constant 0 : index
    %c0_27 = arith.constant 0 : index
    %44 = vector.load %arg6[%c0_25, %c1, %c0_26, %c0_27] : memref<4x4x16x16xf32, #tpu.memory_space<vmem>>, vector<4x1x16x16xf32>
    %45 = vector.shape_cast %44 : vector<4x1x16x16xf32> to vector<4x16x16xf32>
    %46 = vector.shape_cast %43 : vector<4x16x16xf32> to vector<1x4x16x16xf32>
    %47 = vector.shape_cast %45 : vector<4x16x16xf32> to vector<1x4x16x16xf32>
    %48 = arith.addf %46, %47 : vector<1x4x16x16xf32>
    %49 = vector.shape_cast %48 : vector<1x4x16x16xf32> to vector<4x16x16xf32>
    %cst_28 = arith.constant dense<0xFF800000> : vector<4x16xf32>
    %50 = vector.multi_reduction <maximumf>, %49, %cst_28 [2] : vector<4x16x16xf32> to vector<4x16xf32>
    %51 = vector.shape_cast %50 : vector<4x16xf32> to vector<4x16x1xf32>
    %52 = vector.broadcast %51 : vector<4x16x1xf32> to vector<4x16x16xf32>
    %53 = arith.subf %49, %52 : vector<4x16x16xf32>
    %54 = math.exp %53 : vector<4x16x16xf32>
    %cst_29 = arith.constant dense<0.000000e+00> : vector<4x16xf32>
    %55 = vector.multi_reduction <add>, %54, %cst_29 [2] : vector<4x16x16xf32> to vector<4x16xf32>
    %56 = vector.shape_cast %55 : vector<4x16xf32> to vector<4x16x1xf32>
    %57 = tpu.reciprocal %56 {approx = true} : vector<4x16x1xf32> -> vector<4x16x1xf32>
    %58 = vector.broadcast %57 : vector<4x16x1xf32> to vector<4x16x16xf32>
    %59 = arith.mulf %54, %58 : vector<4x16x16xf32>
    %60 = arith.truncf %59 : vector<4x16x16xf32> to vector<4x16x16xbf16>
    "tpu.trace_start"() <{level = 10 : i32, message = "wnm,wmd->wnd"}> : () -> ()
    %cst_30 = arith.constant dense<0.000000e+00> : vector<4x16x8xf32>
    %61 = tpu.matmul %60, %42, %cst_30 {dimension_numbers = #tpu.dot_dimension_numbers<[2], [1], [1], [2], [0, 0, 0, 1, 1, 2], [0], [0]>} : vector<4x16x16xbf16>, vector<4x16x8xbf16>, vector<4x16x8xf32> -> vector<4x16x8xf32>
    "tpu.trace_stop"() : () -> ()
    %62 = vector.shape_cast %61 : vector<4x16x8xf32> to vector<64x8xf32>
    %63 = arith.truncf %62 : vector<64x8xf32> to vector<64x8xbf16>
    %c0_31 = arith.constant 0 : index
    %c8_32 = arith.constant 8 : index
    %64 = vector.load %arg9[%c0_31, %c8_32] : memref<64x32xbf16, #tpu.memory_space<vmem>>, vector<64x8xbf16>
    tpu.vector_store %arg9[%c0_31, %c8_32], %63 {strides = array<i32>} : memref<64x32xbf16, #tpu.memory_space<vmem>>, vector<64x8xbf16>,
    %c0_33 = arith.constant 0 : index
    %c16 = arith.constant 16 : index
    %65 = vector.load %arg8[%c0_33, %c16] : memref<64x96xbf16, #tpu.memory_space<vmem>>, vector<64x8xbf16>
    %66 = vector.shape_cast %65 : vector<64x8xbf16> to vector<4x16x8xbf16>
    %c0_34 = arith.constant 0 : index
    %c48 = arith.constant 48 : index
    %67 = vector.load %arg8[%c0_34, %c48] : memref<64x96xbf16, #tpu.memory_space<vmem>>, vector<64x8xbf16>
    %68 = vector.shape_cast %67 : vector<64x8xbf16> to vector<4x16x8xbf16>
    %c0_35 = arith.constant 0 : index
    %c80 = arith.constant 80 : index
    %69 = vector.load %arg8[%c0_35, %c80] : memref<64x96xbf16, #tpu.memory_space<vmem>>, vector<64x8xbf16>
    %70 = vector.shape_cast %69 : vector<64x8xbf16> to vector<4x16x8xbf16>
    "tpu.trace_start"() <{level = 10 : i32, message = "wnd,wmd->wnm"}> : () -> ()
    %cst_36 = arith.constant dense<0.000000e+00> : vector<4x16x16xf32>
    %71 = tpu.matmul %66, %68, %cst_36 {dimension_numbers = #tpu.dot_dimension_numbers<[2], [2], [1], [1], [0, 0, 0, 1, 1, 1], [0], [0]>} : vector<4x16x8xbf16>, vector<4x16x8xbf16>, vector<4x16x16xf32> -> vector<4x16x16xf32>
    "tpu.trace_stop"() : () -> ()
    %c0_37 = arith.constant 0 : index
    %c2 = arith.constant 2 : index
    %c0_38 = arith.constant 0 : index
    %c0_39 = arith.constant 0 : index
    %72 = vector.load %arg6[%c0_37, %c2, %c0_38, %c0_39] : memref<4x4x16x16xf32, #tpu.memory_space<vmem>>, vector<4x1x16x16xf32>
    %73 = vector.shape_cast %72 : vector<4x1x16x16xf32> to vector<4x16x16xf32>
    %74 = vector.shape_cast %71 : vector<4x16x16xf32> to vector<1x4x16x16xf32>
    %75 = vector.shape_cast %73 : vector<4x16x16xf32> to vector<1x4x16x16xf32>
    %76 = arith.addf %74, %75 : vector<1x4x16x16xf32>
    %77 = vector.shape_cast %76 : vector<1x4x16x16xf32> to vector<4x16x16xf32>
    %cst_40 = arith.constant dense<0xFF800000> : vector<4x16xf32>
    %78 = vector.multi_reduction <maximumf>, %77, %cst_40 [2] : vector<4x16x16xf32> to vector<4x16xf32>
    %79 = vector.shape_cast %78 : vector<4x16xf32> to vector<4x16x1xf32>
    %80 = vector.broadcast %79 : vector<4x16x1xf32> to vector<4x16x16xf32>
    %81 = arith.subf %77, %80 : vector<4x16x16xf32>
    %82 = math.exp %81 : vector<4x16x16xf32>
    %cst_41 = arith.constant dense<0.000000e+00> : vector<4x16xf32>
    %83 = vector.multi_reduction <add>, %82, %cst_41 [2] : vector<4x16x16xf32> to vector<4x16xf32>
    %84 = vector.shape_cast %83 : vector<4x16xf32> to vector<4x16x1xf32>
    %85 = tpu.reciprocal %84 {approx = true} : vector<4x16x1xf32> -> vector<4x16x1xf32>
    %86 = vector.broadcast %85 : vector<4x16x1xf32> to vector<4x16x16xf32>
    %87 = arith.mulf %82, %86 : vector<4x16x16xf32>
    %88 = arith.truncf %87 : vector<4x16x16xf32> to vector<4x16x16xbf16>
    "tpu.trace_start"() <{level = 10 : i32, message = "wnm,wmd->wnd"}> : () -> ()
    %cst_42 = arith.constant dense<0.000000e+00> : vector<4x16x8xf32>
    %89 = tpu.matmul %88, %70, %cst_42 {dimension_numbers = #tpu.dot_dimension_numbers<[2], [1], [1], [2], [0, 0, 0, 1, 1, 2], [0], [0]>} : vector<4x16x16xbf16>, vector<4x16x8xbf16>, vector<4x16x8xf32> -> vector<4x16x8xf32>
    "tpu.trace_stop"() : () -> ()
    %90 = vector.shape_cast %89 : vector<4x16x8xf32> to vector<64x8xf32>
    %91 = arith.truncf %90 : vector<64x8xf32> to vector<64x8xbf16>
    %c0_43 = arith.constant 0 : index
    %c16_44 = arith.constant 16 : index
    %92 = vector.load %arg9[%c0_43, %c16_44] : memref<64x32xbf16, #tpu.memory_space<vmem>>, vector<64x8xbf16>
    tpu.vector_store %arg9[%c0_43, %c16_44], %91 {strides = array<i32>} : memref<64x32xbf16, #tpu.memory_space<vmem>>, vector<64x8xbf16>,
    %c0_45 = arith.constant 0 : index
    %c24 = arith.constant 24 : index
    %93 = vector.load %arg8[%c0_45, %c24] : memref<64x96xbf16, #tpu.memory_space<vmem>>, vector<64x8xbf16>
    %94 = vector.shape_cast %93 : vector<64x8xbf16> to vector<4x16x8xbf16>
    %c0_46 = arith.constant 0 : index
    %c56 = arith.constant 56 : index
    %95 = vector.load %arg8[%c0_46, %c56] : memref<64x96xbf16, #tpu.memory_space<vmem>>, vector<64x8xbf16>
    %96 = vector.shape_cast %95 : vector<64x8xbf16> to vector<4x16x8xbf16>
    %c0_47 = arith.constant 0 : index
    %c88 = arith.constant 88 : index
    %97 = vector.load %arg8[%c0_47, %c88] : memref<64x96xbf16, #tpu.memory_space<vmem>>, vector<64x8xbf16>
    %98 = vector.shape_cast %97 : vector<64x8xbf16> to vector<4x16x8xbf16>
    "tpu.trace_start"() <{level = 10 : i32, message = "wnd,wmd->wnm"}> : () -> ()
    %cst_48 = arith.constant dense<0.000000e+00> : vector<4x16x16xf32>
    %99 = tpu.matmul %94, %96, %cst_48 {dimension_numbers = #tpu.dot_dimension_numbers<[2], [2], [1], [1], [0, 0, 0, 1, 1, 1], [0], [0]>} : vector<4x16x8xbf16>, vector<4x16x8xbf16>, vector<4x16x16xf32> -> vector<4x16x16xf32>
    "tpu.trace_stop"() : () -> ()
    %c0_49 = arith.constant 0 : index
    %c3 = arith.constant 3 : index
    %c0_50 = arith.constant 0 : index
    %c0_51 = arith.constant 0 : index
    %100 = vector.load %arg6[%c0_49, %c3, %c0_50, %c0_51] : memref<4x4x16x16xf32, #tpu.memory_space<vmem>>, vector<4x1x16x16xf32>
    %101 = vector.shape_cast %100 : vector<4x1x16x16xf32> to vector<4x16x16xf32>
    %102 = vector.shape_cast %99 : vector<4x16x16xf32> to vector<1x4x16x16xf32>
    %103 = vector.shape_cast %101 : vector<4x16x16xf32> to vector<1x4x16x16xf32>
    %104 = arith.addf %102, %103 : vector<1x4x16x16xf32>
    %105 = vector.shape_cast %104 : vector<1x4x16x16xf32> to vector<4x16x16xf32>
    %cst_52 = arith.constant dense<0xFF800000> : vector<4x16xf32>
    %106 = vector.multi_reduction <maximumf>, %105, %cst_52 [2] : vector<4x16x16xf32> to vector<4x16xf32>
    %107 = vector.shape_cast %106 : vector<4x16xf32> to vector<4x16x1xf32>
    %108 = vector.broadcast %107 : vector<4x16x1xf32> to vector<4x16x16xf32>
    %109 = arith.subf %105, %108 : vector<4x16x16xf32>
    %110 = math.exp %109 : vector<4x16x16xf32>
    %cst_53 = arith.constant dense<0.000000e+00> : vector<4x16xf32>
    %111 = vector.multi_reduction <add>, %110, %cst_53 [2] : vector<4x16x16xf32> to vector<4x16xf32>
    %112 = vector.shape_cast %111 : vector<4x16xf32> to vector<4x16x1xf32>
    %113 = tpu.reciprocal %112 {approx = true} : vector<4x16x1xf32> -> vector<4x16x1xf32>
    %114 = vector.broadcast %113 : vector<4x16x1xf32> to vector<4x16x16xf32>
    %115 = arith.mulf %110, %114 : vector<4x16x16xf32>
    %116 = arith.truncf %115 : vector<4x16x16xf32> to vector<4x16x16xbf16>
    "tpu.trace_start"() <{level = 10 : i32, message = "wnm,wmd->wnd"}> : () -> ()
    %cst_54 = arith.constant dense<0.000000e+00> : vector<4x16x8xf32>
    %117 = tpu.matmul %116, %98, %cst_54 {dimension_numbers = #tpu.dot_dimension_numbers<[2], [1], [1], [2], [0, 0, 0, 1, 1, 2], [0], [0]>} : vector<4x16x16xbf16>, vector<4x16x8xbf16>, vector<4x16x8xf32> -> vector<4x16x8xf32>
    "tpu.trace_stop"() : () -> ()
    %118 = vector.shape_cast %117 : vector<4x16x8xf32> to vector<64x8xf32>
    %119 = arith.truncf %118 : vector<64x8xf32> to vector<64x8xbf16>
    %c0_55 = arith.constant 0 : index
    %c24_56 = arith.constant 24 : index
    %120 = vector.load %arg9[%c0_55, %c24_56] : memref<64x32xbf16, #tpu.memory_space<vmem>>, vector<64x8xbf16>
    tpu.vector_store %arg9[%c0_55, %c24_56], %119 {strides = array<i32>} : memref<64x32xbf16, #tpu.memory_space<vmem>>, vector<64x8xbf16>,
    %c0_57 = arith.constant 0 : index
    %c0_58 = arith.constant 0 : index
    %121 = vector.load %arg9[%c0_57, %c0_58] : memref<64x32xbf16, #tpu.memory_space<vmem>>, vector<64x32xbf16>
    %c0_59 = arith.constant 0 : index
    %c0_60 = arith.constant 0 : index
    %122 = vector.load %arg4[%c0_59, %c0_60] : memref<32x32xbf16, #tpu.memory_space<vmem>>, vector<32x32xbf16>
    %cst_61 = arith.constant dense<0.000000e+00> : vector<64x32xf32>
    %123 = tpu.matmul %121, %122, %cst_61 {dimension_numbers = #tpu.dot_dimension_numbers<[1], [0], [0], [1], [0, 0, 1, 1], [], []>} : vector<64x32xbf16>, vector<32x32xbf16>, vector<64x32xf32> -> vector<64x32xf32>
    %c0_62 = arith.constant 0 : index
    %c0_63 = arith.constant 0 : index
    %124 = vector.load %arg5[%c0_62, %c0_63] : memref<1x32xf32, #tpu.memory_space<vmem>>, vector<1x32xf32>
    %125 = vector.broadcast %124 : vector<1x32xf32> to vector<64x32xf32>
    %126 = arith.addf %123, %125 : vector<64x32xf32>
    %c0_64 = arith.constant 0 : index
    %c0_65 = arith.constant 0 : index
    %127 = vector.load %arg7[%c0_64, %c0_65] : memref<64x32xf32, #tpu.memory_space<vmem>>, vector<64x32xf32>
    tpu.vector_store %arg7[%c0_64, %c0_65], %126 {strides = array<i32>} : memref<64x32xf32, #tpu.memory_space<vmem>>, vector<64x32xf32>,
    return
  }
  func.func @transform_0(%arg0: i32) -> (i32, i32) {
    %c0_i32 = arith.constant 0 : i32
    %c0_i32_0 = arith.constant 0 : i32
    return %arg0, %c0_i32 : i32, i32
  }
  func.func @transform_1(%arg0: i32) -> (i32, i32) {
    %c0_i32 = arith.constant 0 : i32
    %c0_i32_0 = arith.constant 0 : i32
    %c0_i32_1 = arith.constant 0 : i32
    return %c0_i32, %c0_i32_0 : i32, i32
  }
  func.func @transform_2(%arg0: i32) -> (i32, i32) {
    %c0_i32 = arith.constant 0 : i32
    %c0_i32_0 = arith.constant 0 : i32
    %c0_i32_1 = arith.constant 0 : i32
    return %c0_i32, %c0_i32_0 : i32, i32
  }
  func.func @transform_3(%arg0: i32) -> (i32, i32) {
    %c0_i32 = arith.constant 0 : i32
    %c0_i32_0 = arith.constant 0 : i32
    %c0_i32_1 = arith.constant 0 : i32
    return %c0_i32, %c0_i32_0 : i32, i32
  }
  func.func @transform_4(%arg0: i32) -> (i32, i32) {
    %c0_i32 = arith.constant 0 : i32
    %c0_i32_0 = arith.constant 0 : i32
    %c0_i32_1 = arith.constant 0 : i32
    return %c0_i32, %c0_i32_0 : i32, i32
  }
  func.func @transform_5(%arg0: i32) -> (i32, i32, i32, i32) {
    %c0_i32 = arith.constant 0 : i32
    %c0_i32_0 = arith.constant 0 : i32
    %c0_i32_1 = arith.constant 0 : i32
    %c0_i32_2 = arith.constant 0 : i32
    %c0_i32_3 = arith.constant 0 : i32
    return %c0_i32, %c0_i32_0, %c0_i32_1, %c0_i32_2 : i32, i32, i32, i32
  }
  func.func @transform_6(%arg0: i32) -> (i32, i32) {
    %c0_i32 = arith.constant 0 : i32
    %c0_i32_0 = arith.constant 0 : i32
    return %arg0, %c0_i32 : i32, i32
  }
}

</mosaic_0001>

<llo_original>
// kernel: tpu_custom_call.1
$region0: #{tpu_custom_call.1}
  #allocation0 [shape = 'u32[]', space=smem, size = 0x4, offset = 0x4, fixed_abs, tag = 'smem constant byte address 0x4 - core index']
  #allocation1 [shape = 'u32[144,128]{1,0:T(1,128)}', space=vmem, size = 0x12000, scoped, tag = 'internal scratch']
  #allocation2 [shape = 'bf16[64,96]{1,0:T(8,128)(2,1)}', space=vmem, size = 0x4000, scoped, tag = 'scratch operand']
  #allocation3 [shape = 'bf16[64,32]{1,0:T(8,128)(2,1)}', space=vmem, size = 0x4000, scoped, tag = 'scratch operand']
  %s0 = inlined_call_operand.vmem [shape: f32[128,32], index: 0, kind: input, shape index: {}]
  %s1 = inlined_call_operand.vmem [shape: bf16[32,96], index: 1, kind: input, shape index: {}]
  %s2 = inlined_call_operand.vmem [shape: f32[1,96], index: 2, kind: input, shape index: {}]
  %s3 = inlined_call_operand.vmem [shape: bf16[32,32], index: 3, kind: input, shape index: {}]
  %s4 = inlined_call_operand.vmem [shape: f32[1,32], index: 4, kind: input, shape index: {}]
  %s5 = inlined_call_operand.hbm [shape: f32[4,4,16,16], index: 5, kind: input, shape index: {}]
  %s6 = inlined_call_operand.vmem [shape: f32[128,32], index: 6, kind: output, shape index: {}]
  %s7 = sld [smem:[#allocation0]]
  $region61: #{tpu_custom_call.1} parent=0
    _
  %s9 = ssub.s32 1, %s7
  %s10 = scalar_select 0, %s9, %s7
  $region1: #{tpu_custom_call.1} parent=0
    #allocation4 [shape = 'u8[131072]{0}', space=vmem, size = 0x20000, scoped, tag = 'input window, operand 5, single buffered']
    #allocation5 [shape = 's32[2]{0}', space=sflag, size = 0x8, scoped, tag = 'scoped memory for tpu_custom_call.1']
    %11 = vsyncpa [#allocation5], 0
    loop: start=0, step=1, limit=4
    $region2: #{tpu_custom_call.1} parent=1 // loop_pre_header
      _
    $region3: #{tpu_custom_call.1} parent=1 // loop_header
      %s13 = sphi 0, %s17
      %p14 = scmp.ge.s32.totalorder %s13, 4
      %s23 = sphi 0, %s25
      %s26 = sphi 0, %s23
      %s27 = sphi 0, %s26
      %s43 = sphi 0, %s27
      %s47 = sphi 0, %s47
      %s49 = sphi 0, %s47
      %s50 = sphi 0, %s49
      %s64 = sphi 0, %s50
      %s68 = sphi 0, %s68
      %s70 = sphi 0, %s68
      %s71 = sphi 0, %s70
      %s85 = sphi 0, %s71
      %s89 = sphi 0, %s89
      %s91 = sphi 0, %s89
      %s92 = sphi 0, %s91
      %s106 = sphi 0, %s92
      %s110 = sphi 0, %s110
      %s112 = sphi 0, %s110
      %s113 = sphi 0, %s112
      %s127 = sphi 0, %s113
      %s131 = sphi 0, %s131
      %s133 = sphi 0, %s131
      %s134 = sphi 0, %s133
      %s148 = sphi 0, %s134
      %s154 = sphi 0, %s156
      %s157 = sphi 0, %s154
      %s158 = sphi 0, %s157
      %s174 = sphi 0, %s158
    $region4: #{tpu_custom_call.1} parent=1 // loop_header_branch
      %16 = sbr.rel (%p14) target = $region8
    $region5: #{tpu_custom_call.1} parent=1 // loop_body
      %s18 = ssub.s32 %s13, 1
      %s19 = ssub.s32 %s13, 2
      %s20 = sadd.s32 %s13, 1
      %s21 = ssub.s32 %s13, %s20
      %p22 = scmp.eq.s32.totalorder %s21, 0
      %s24 = sadd.s32 %s23, 1
      %s25 = scalar_select %p22, %s23, %s24
      %p28 = pneg %p22
      %p29 = scmp.eq.s32.totalorder %s13, 1
      %p30 = por %p28, %p29
      %p31 = scmp.ne.s32.totalorder %s23, %s26
      %p32 = scmp.eq.s32.totalorder %s13, 0
      %p33 = por %p31, %p32
      %p34 = scmp.ne.s32.totalorder %s23, %s26
      %p35 = scmp.eq.s32.totalorder %s18, 1
      %p36 = por %p34, %p35
      %p37 = scmp.ne.s32.totalorder %s26, %s27
      %p38 = scmp.eq.s32.totalorder %s18, 0
      %p39 = por %p37, %p38
      %p40 = scmp.ne.s32.totalorder %s26, %s27
      %p41 = scmp.eq.s32.totalorder %s19, 1
      %p42 = por %p40, %p41
      %p44 = scmp.ne.s32.totalorder %s27, %s43
      %p45 = scmp.eq.s32.totalorder %s19, 0
      %p46 = por %p44, %p45
      %s48 = sadd.s32 %s47, 1
      %p51 = scmp.eq.s32.totalorder %s13, 1
      %p52 = scmp.ne.s32.totalorder %s47, %s49
      %p53 = scmp.eq.s32.totalorder %s13, 0
      %p54 = por %p52, %p53
      %p55 = scmp.ne.s32.totalorder %s47, %s49
      %p56 = scmp.eq.s32.totalorder %s18, 1
      %p57 = por %p55, %p56
      %p58 = scmp.ne.s32.totalorder %s49, %s50
      %p59 = scmp.eq.s32.totalorder %s18, 0
      %p60 = por %p58, %p59
      %p61 = scmp.ne.s32.totalorder %s49, %s50
      %p62 = scmp.eq.s32.totalorder %s19, 1
      %p63 = por %p61, %p62
      %p65 = scmp.ne.s32.totalorder %s50, %s64
      %p66 = scmp.eq.s32.totalorder %s19, 0
      %p67 = por %p65, %p66
      %s69 = sadd.s32 %s68, 1
      %p72 = scmp.eq.s32.totalorder %s13, 1
      %p73 = scmp.ne.s32.totalorder %s68, %s70
      %p74 = scmp.eq.s32.totalorder %s13, 0
      %p75 = por %p73, %p74
      %p76 = scmp.ne.s32.totalorder %s68, %s70
      %p77 = scmp.eq.s32.totalorder %s18, 1
      %p78 = por %p76, %p77
      %p79 = scmp.ne.s32.totalorder %s70, %s71
      %p80 = scmp.eq.s32.totalorder %s18, 0
      %p81 = por %p79, %p80
      %p82 = scmp.ne.s32.totalorder %s70, %s71
      %p83 = scmp.eq.s32.totalorder %s19, 1
      %p84 = por %p82, %p83
      %p86 = scmp.ne.s32.totalorder %s71, %s85
      %p87 = scmp.eq.s32.totalorder %s19, 0
      %p88 = por %p86, %p87
      %s90 = sadd.s32 %s89, 1
      %p93 = scmp.eq.s32.totalorder %s13, 1
      %p94 = scmp.ne.s32.totalorder %s89, %s91
      %p95 = scmp.eq.s32.totalorder %s13, 0
      %p96 = por %p94, %p95
      %p97 = scmp.ne.s32.totalorder %s89, %s91
      %p98 = scmp.eq.s32.totalorder %s18, 1
      %p99 = por %p97, %p98
      %p100 = scmp.ne.s32.totalorder %s91, %s92
      %p101 = scmp.eq.s32.totalorder %s18, 0
      %p102 = por %p100, %p101
      %p103 = scmp.ne.s32.totalorder %s91, %s92
      %p104 = scmp.eq.s32.totalorder %s19, 1
      %p105 = por %p103, %p104
      %p107 = scmp.ne.s32.totalorder %s92, %s106
      %p108 = scmp.eq.s32.totalorder %s19, 0
      %p109 = por %p107, %p108
      %s111 = sadd.s32 %s110, 1
      %p114 = scmp.eq.s32.totalorder %s13, 1
      %p115 = scmp.ne.s32.totalorder %s110, %s112
      %p116 = scmp.eq.s32.totalorder %s13, 0
      %p117 = por %p115, %p116
      %p118 = scmp.ne.s32.totalorder %s110, %s112
      %p119 = scmp.eq.s32.totalorder %s18, 1
      %p120 = por %p118, %p119
      %p121 = scmp.ne.s32.totalorder %s112, %s113
      %p122 = scmp.eq.s32.totalorder %s18, 0
      %p123 = por %p121, %p122
      %p124 = scmp.ne.s32.totalorder %s112, %s113
      %p125 = scmp.eq.s32.totalorder %s19, 1
      %p126 = por %p124, %p125
      %p128 = scmp.ne.s32.totalorder %s113, %s127
      %p129 = scmp.eq.s32.totalorder %s19, 0
      %p130 = por %p128, %p129
      %s132 = sadd.s32 %s131, 1
      %p135 = scmp.eq.s32.totalorder %s13, 1
      %p136 = scmp.ne.s32.totalorder %s131, %s133
      %p137 = scmp.eq.s32.totalorder %s13, 0
      %p138 = por %p136, %p137
      %p139 = scmp.ne.s32.totalorder %s131, %s133
      %p140 = scmp.eq.s32.totalorder %s18, 1
      %p141 = por %p139, %p140
      %p142 = scmp.ne.s32.totalorder %s133, %s134
      %p143 = scmp.eq.s32.totalorder %s18, 0
      %p144 = por %p142, %p143
      %p145 = scmp.ne.s32.totalorder %s133, %s134
      %p146 = scmp.eq.s32.totalorder %s19, 1
      %p147 = por %p145, %p146
      %p149 = scmp.ne.s32.totalorder %s134, %s148
      %p150 = scmp.eq.s32.totalorder %s19, 0
      %p151 = por %p149, %p150
      %s152 = ssub.s32 %s13, %s20
      %p153 = scmp.eq.s32.totalorder %s152, 0
      %s155 = sadd.s32 %s154, 1
      %s156 = scalar_select %p153, %s154, %s155
      %p159 = pneg %p153
      %p160 = scmp.eq.s32.totalorder %s13, 1
      %p161 = por %p159, %p160
      %p162 = scmp.ne.s32.totalorder %s154, %s157
      %p163 = scmp.eq.s32.totalorder %s13, 0
      %p164 = por %p162, %p163
      %p165 = scmp.ne.s32.totalorder %s154, %s157
      %p166 = scmp.eq.s32.totalorder %s18, 1
      %p167 = por %p165, %p166
      %p168 = scmp.ne.s32.totalorder %s157, %s158
      %p169 = scmp.eq.s32.totalorder %s18, 0
      %p170 = por %p168, %p169
      %p171 = scmp.ne.s32.totalorder %s157, %s158
      %p172 = scmp.eq.s32.totalorder %s19, 1
      %p173 = por %p171, %p172
      %p175 = scmp.ne.s32.totalorder %s158, %s174
      %p176 = scmp.eq.s32.totalorder %s19, 0
      %p177 = por %p175, %p176
      %p178 = scmp.le.s32.totalorder 1, %s13
      %p179 = scmp.lt.s32.totalorder %s13, 3
      %p180 = pnand %p178, %p179
      %p181 = pneg %p180
      // Predicated region
      $region9: #{tpu_custom_call.1} parent=5 // pred_check
        _
      $region10: #{tpu_custom_call.1} parent=5 // pred_check_branch
        %183 = sbr.rel (%p180) target = $region12
      $region11: #{tpu_custom_call.1} parent=5 // pred_region
        %s184 = ssub.s32 %s13, 1
        // Predicated region
        $region13: #{tpu_custom_call.1} parent=11 // pred_check
          %p185 = pneg %p60
        $region14: #{tpu_custom_call.1} parent=11 // pred_check_branch
          %187 = sbr.rel (%p185) target = $region16
        $region15: #{tpu_custom_call.1} parent=11 // pred_region
          _
        $region16: #{tpu_custom_call.1} parent=11 // pred_fallthru
          _
        // Predicated region
        $region17: #{tpu_custom_call.1} parent=11 // pred_check
          %p188 = pneg %p81
        $region18: #{tpu_custom_call.1} parent=11 // pred_check_branch
          %190 = sbr.rel (%p188) target = $region20
        $region19: #{tpu_custom_call.1} parent=11 // pred_region
          _
        $region20: #{tpu_custom_call.1} parent=11 // pred_fallthru
          _
        // Predicated region
        $region21: #{tpu_custom_call.1} parent=11 // pred_check
          %p191 = pneg %p102
        $region22: #{tpu_custom_call.1} parent=11 // pred_check_branch
          %193 = sbr.rel (%p191) target = $region24
        $region23: #{tpu_custom_call.1} parent=11 // pred_region
          _
        $region24: #{tpu_custom_call.1} parent=11 // pred_fallthru
          _
        // Predicated region
        $region25: #{tpu_custom_call.1} parent=11 // pred_check
          %p194 = pneg %p123
        $region26: #{tpu_custom_call.1} parent=11 // pred_check_branch
          %196 = sbr.rel (%p194) target = $region28
        $region27: #{tpu_custom_call.1} parent=11 // pred_region
          _
        $region28: #{tpu_custom_call.1} parent=11 // pred_fallthru
          _
        // Predicated region
        $region29: #{tpu_custom_call.1} parent=11 // pred_check
          %p197 = pneg %p144
        $region30: #{tpu_custom_call.1} parent=11 // pred_check_branch
          %199 = sbr.rel (%p197) target = $region32
        $region31: #{tpu_custom_call.1} parent=11 // pred_region
          %s201 = ssub.s32 4096, 4096
          %202 = vsyncadd [#allocation5], %s201
          %s203 = sshll.u32 [#allocation4], 4
          %s204 = int_to_ptr.vmem [resolvable:$true] %s203
          %209 = dma.hbm_to_vmem [thread:$0]  %s5, 4096, %s204, [#allocation5], 128, 128, 8
        $region32: #{tpu_custom_call.1} parent=11 // pred_fallthru
          _
      $region12: #{tpu_custom_call.1} parent=5 // pred_fallthru
        _
      %p210 = scmp.lt.s32.totalorder %s13, 2
      // Predicated region
      $region33: #{tpu_custom_call.1} parent=5 // pred_check
        %p211 = pneg %p210
      $region34: #{tpu_custom_call.1} parent=5 // pred_check_branch
        %213 = sbr.rel (%p211) target = $region36
      $region35: #{tpu_custom_call.1} parent=5 // pred_region
        // Predicated region
        $region37: #{tpu_custom_call.1} parent=35 // pred_check
          %p214 = pneg %p33
        $region38: #{tpu_custom_call.1} parent=35 // pred_check_branch
          %216 = sbr.rel (%p214) target = $region40
        $region39: #{tpu_custom_call.1} parent=35 // pred_region
          %s217 = smul.u32 8, %s13
          %p218 = scmp.lt.s32.totalorder %s217, 15
          %s219 = scalar_select %p218, %s217, 15
          %s220 = smul.addr %s219, 8
          %s221 = scalar_lea.vmem %s0, %s220
          %s222 = smul.u32 8, %s13
        $region40: #{tpu_custom_call.1} parent=35 // pred_fallthru
          _
      $region36: #{tpu_custom_call.1} parent=5 // pred_fallthru
        _
      %p223 = scmp.le.s32.totalorder 1, %s13
      %p224 = scmp.lt.s32.totalorder %s13, 3
      %p225 = pnand %p223, %p224
      %p226 = pneg %p225
      // Predicated region
      $region41: #{tpu_custom_call.1} parent=5 // pred_check
        _
      $region42: #{tpu_custom_call.1} parent=5 // pred_check_branch
        %228 = sbr.rel (%p225) target = $region44
      $region43: #{tpu_custom_call.1} parent=5 // pred_region
        %s229 = ssub.s32 %s13, 1
        // Predicated region
        $region45: #{tpu_custom_call.1} parent=43 // pred_check
          %p230 = pneg %p144
        $region46: #{tpu_custom_call.1} parent=43 // pred_check_branch
          %232 = sbr.rel (%p230) target = $region48
        $region47: #{tpu_custom_call.1} parent=43 // pred_region
          %233 = dma.done [#allocation5], 4096
        $region48: #{tpu_custom_call.1} parent=43 // pred_fallthru
          _
        %s234 = smul.u32 8, %s18
        %p235 = scmp.lt.s32.totalorder %s234, 15
        %s236 = scalar_select %p235, %s234, 15
        %s237 = smul.addr %s236, 8
        %s238 = scalar_lea.vmem %s0, %s237
        %p239 = pneg %p39
        %p240 = pneg %p36
        %p241 = pneg %p60
        %p242 = pneg %p57
        %p243 = pneg %p81
        %p244 = pneg %p78
        %p245 = pneg %p102
        %p246 = pneg %p99
        %p247 = pneg %p123
        %p248 = pneg %p120
        %p249 = pneg %p144
        %p250 = pneg %p141
        %p251 = pneg %p170
        %p252 = pneg %p167
        %s253 = smul.u32 8, %s18
        %p254 = scmp.lt.s32.totalorder %s253, 15
        %s255 = scalar_select %p254, %s253, 15
        %s256 = smul.addr %s255, 8
        %s257 = scalar_lea.vmem %s6, %s256
        %s258 = smul.u32 8, %s18
        %p259 = scmp.lt.s32.totalorder %s258, 15
        %s260 = scalar_select %p259, %s258, 15
        %s261 = smul.addr %s260, 8
        %s262 = scalar_lea.vmem %s0, %s261
        %s263 = smul.u32 8, %s18
        %s264 = smul.u32 8, %s18
        %p265 = scmp.lt.s32.totalorder %s264, 15
        %s266 = scalar_select %p265, %s264, 15
        %s267 = smul.addr %s266, 8
        %s268 = scalar_lea.vmem %s6, %s267
        %s269 = smul.u32 8, %s18
        %v271 = vld [vmem:[%s262] sm:$0xff]
        %v272 = vld [vmem:[%s262 + $0x8] sm:$0xff]
        %v273 = vld [vmem:[%s262 + $0x10] sm:$0xff]
        %v274 = vld [vmem:[%s262 + $0x18] sm:$0xff]
        %v275 = vld [vmem:[%s262 + $0x20] sm:$0xff]
        %v276 = vld [vmem:[%s262 + $0x28] sm:$0xff]
        %v277 = vld [vmem:[%s262 + $0x30] sm:$0xff]
        %v278 = vld [vmem:[%s262 + $0x38] sm:$0xff]
        %v279 = vpack.c.bf16 %v272, %v271
        %v280 = vpack.c.bf16 %v274, %v273
        %v281 = vpack.c.bf16 %v276, %v275
        %v282 = vpack.c.bf16 %v278, %v277
        %v283 = vld [vmem:[%s1] sm:$0xf]
        %v284 = vld [vmem:[%s1 + $0x4] sm:$0xf]
        %v285 = vld [vmem:[%s1 + $0x8] sm:$0xf]
        %v286 = vld [vmem:[%s1 + $0xc] sm:$0xf]
        %v287 = vld [vmem:[%s2] sm:$0x1]
        %v289 = vlaneseq
        %v290 = vshrl.u32 %v289, 7
        %v291 = vsub.s32 0, %v290
        %v292 = vrot.slane %v287, %v291
        %v298 = vunpack.c.l.b16 %v283
        %v299 = vunpack.c.l.b16 %v284
        %v300 = vunpack.c.l.b16 %v285
        %v301 = vunpack.c.l.b16 %v286
        %v302 = vpack.c.b16 %v299, %v298
        %v303 = vpack.c.b16 %v301, %v300
        %vm306 = vcmask 261120
        %v308 = vsel %vm306, %v279, 0
        %v311 = vsel %vm306, %v280, 0
        %v314 = vsel %vm306, %v281, 0
        %v317 = vsel %vm306, %v282, 0
        %319 = vmatprep.subr.bf16.mxu0 0
        %320 = vmatpush1.bf16.msra.mxu0 0
        %321 = vmatprep.subr.bf16.mxu0 0
        %322 = vmatpush1.bf16.msra.mxu0 0
        %323 = vmatprep.subr.bf16.mxu0 0
        %324 = vmatpush1.bf16.msra.mxu0 0
        %325 = vmatprep.subr.bf16.mxu0 0
        %326 = vmatpush1.bf16.msra.mxu0 0
        %327 = vmatprep.subr.bf16.mxu0 0
        %328 = vmatpush1.bf16.msra.mxu0 0
        %329 = vmatprep.subr.bf16.mxu0 0
        %330 = vmatpush1.bf16.msra.mxu0 0
        %331 = vmatprep.subr.bf16.mxu0 0
        %332 = vmatpush1.bf16.msra.mxu0 %v303
        %333 = vmatprep.subr.bf16.mxu0 0
        %334 = vmatpush1.bf16.msra.mxu0 %v302
        %335 = vmatprep.subr.bf16.mxu0 0
        %336 = vmatpush2.bf16.msra.mxu0 0
        %337 = vmatprep.subr.bf16.mxu0 0
        %338 = vmatpush2.bf16.msra.mxu0 0
        %339 = vmatprep.subr.bf16.mxu0 0
        %340 = vmatpush2.bf16.msra.mxu0 0
        %341 = vmatprep.subr.bf16.mxu0 0
        %342 = vmatpush2.bf16.msra.mxu0 0
        %343 = vmatprep.subr.bf16.mxu0 0
        %344 = vmatpush2.bf16.msra.mxu0 0
        %345 = vmatprep.subr.bf16.mxu0 0
        %346 = vmatpush2.bf16.msra.mxu0 0
        %347 = vmatprep.subr.bf16.mxu0 0
        %348 = vmatpush2.bf16.msra.mxu0 0
        %349 = vmatprep.subr.bf16.mxu0 0
        %350 = vmatpush2.bf16.msra.mxu0 0
        %351 = vmatprep.mubr.bf16.mxu0 0
        %352 = vmatmul.mubr.bf16.gmra.mxu0 %v308
        %v353 = vpop.f32.mrf.mxu0
        %v354 = vadd.f32 %v292, %v353
        %v355 = vpop.f32.mrf.mxu0
        %v356 = vpop.f32.mrf.mxu0
        %v357 = vadd.f32 %v292, %v356
        %v358 = vpop.f32.mrf.mxu0
        %359 = vmatprep.mubr.bf16.mxu0 0
        %360 = vmatmul.mubr.bf16.gmra.mxu0 %v311
        %v361 = vpop.f32.mrf.mxu0
        %v362 = vadd.f32 %v292, %v361
        %v363 = vpop.f32.mrf.mxu0
        %v364 = vpop.f32.mrf.mxu0
        %v365 = vadd.f32 %v292, %v364
        %v366 = vpop.f32.mrf.mxu0
        %367 = vmatprep.mubr.bf16.mxu0 0
        %368 = vmatmul.mubr.bf16.gmra.mxu0 %v314
        %v369 = vpop.f32.mrf.mxu0
        %v370 = vadd.f32 %v292, %v369
        %v371 = vpop.f32.mrf.mxu0
        %v372 = vpop.f32.mrf.mxu0
        %v373 = vadd.f32 %v292, %v372
        %v374 = vpop.f32.mrf.mxu0
        %375 = vmatprep.mubr.bf16.mxu0 0
        %376 = vmatmul.mubr.bf16.gmra.mxu0 %v317
        %v377 = vpop.f32.mrf.mxu0
        %v378 = vadd.f32 %v292, %v377
        %v379 = vpop.f32.mrf.mxu0
        %v380 = vpop.f32.mrf.mxu0
        %v381 = vadd.f32 %v292, %v380
        %v382 = vpop.f32.mrf.mxu0
        %383 = vdwg.mxu0
        %v384 = vpack.c.bf16 %v357, %v354
        %v385 = vpack.c.bf16 %v365, %v362
        %v386 = vpack.c.bf16 %v373, %v370
        %v387 = vpack.c.bf16 %v381, %v378
        %v392 = vunpack.c.l.b16 %v384
        %v393 = vunpack.c.h.b16 %v384
        %v394 = vunpack.c.l.b16 %v385
        %v395 = vunpack.c.h.b16 %v385
        %v396 = vunpack.c.l.b16 %v386
        %v397 = vunpack.c.h.b16 %v386
        %v398 = vunpack.c.l.b16 %v387
        %v399 = vunpack.c.h.b16 %v387
        %v400 = vpack.c.b16 %v392, %v392
        %v401 = vpack.c.b16 %v393, %v393
        %v402 = vpack.c.b16 %v394, %v394
        %v403 = vpack.c.b16 %v395, %v395
        %v404 = vpack.c.b16 %v396, %v396
        %v405 = vpack.c.b16 %v397, %v397
        %v406 = vpack.c.b16 %v398, %v398
        %v407 = vpack.c.b16 %v399, %v399
        %vm416 = vcmask 781312
        %417 = vst.msk [vmem:[#allocation2] sm:$0xf] %vm416, %v400
        %418 = vst.msk [vmem:[#allocation2 + $0x4] sm:$0xf] %vm416, %v401
        %419 = vst.msk [vmem:[#allocation2 + $0x8] sm:$0xf] %vm416, %v402
        %420 = vst.msk [vmem:[#allocation2 + $0xc] sm:$0xf] %vm416, %v403
        %421 = vst.msk [vmem:[#allocation2 + $0x10] sm:$0xf] %vm416, %v404
        %422 = vst.msk [vmem:[#allocation2 + $0x14] sm:$0xf] %vm416, %v405
        %423 = vst.msk [vmem:[#allocation2 + $0x18] sm:$0xf] %vm416, %v406
        %424 = vst.msk [vmem:[#allocation2 + $0x1c] sm:$0xf] %vm416, %v407
        %v425 = vld [vmem:[#allocation2] sm:$0xf]
        %v426 = vld [vmem:[#allocation2 + $0x4] sm:$0xf]
        %v427 = vld [vmem:[#allocation2 + $0x8] sm:$0xf]
        %v428 = vld [vmem:[#allocation2 + $0xc] sm:$0xf]
        %v429 = vld [vmem:[#allocation2 + $0x10] sm:$0xf]
        %v430 = vld [vmem:[#allocation2 + $0x14] sm:$0xf]
        %v431 = vld [vmem:[#allocation2 + $0x18] sm:$0xf]
        %v432 = vld [vmem:[#allocation2 + $0x1c] sm:$0xf]
        %v435 = vunpack.c.l.b16 %v425
        %v436 = vunpack.c.l.b16 %v426
        %v437 = vpack.c.b16 %v436, %v435
        %438 = vrot.lane.b32.xlu0 %v437, 96
        %v439 = vpop.permute.xlu0 %438
        %vm440 = vcmask 64512
        %v442 = vsel %vm440, %v437, 0
        %v445 = vsel %vm440, %v439, 0
        %447 = vmatprep.subr.bf16.mxu0 0
        %448 = vmatpush1.bf16.xpose.msra.mxu0 0
        %449 = vmatprep.subr.bf16.mxu0 0
        %450 = vmatpush1.bf16.xpose.msra.mxu0 0
        %451 = vmatprep.subr.bf16.mxu0 0
        %452 = vmatpush1.bf16.xpose.msra.mxu0 0
        %453 = vmatprep.subr.bf16.mxu0 0
        %454 = vmatpush1.bf16.xpose.msra.mxu0 0
        %455 = vmatprep.subr.bf16.mxu0 0
        %456 = vmatpush1.bf16.xpose.msra.mxu0 0
        %457 = vmatprep.subr.bf16.mxu0 0
        %458 = vmatpush1.bf16.xpose.msra.mxu0 0
        %459 = vmatprep.subr.bf16.mxu0 0
        %460 = vmatpush1.bf16.xpose.msra.mxu0 0
        %461 = vmatprep.subr.bf16.mxu0 0
        %462 = vmatpush1.bf16.xpose.msra.mxu0 %v445
        %463 = vmatprep.subr.bf16.mxu0 0
        %464 = vmatpush2.bf16.xpose.msra.mxu0 0
        %465 = vmatprep.subr.bf16.mxu0 0
        %466 = vmatpush2.bf16.xpose.msra.mxu0 0
        %467 = vmatprep.subr.bf16.mxu0 0
        %468 = vmatpush2.bf16.xpose.msra.mxu0 0
        %469 = vmatprep.subr.bf16.mxu0 0
        %470 = vmatpush2.bf16.xpose.msra.mxu0 0
        %471 = vmatprep.subr.bf16.mxu0 0
        %472 = vmatpush2.bf16.xpose.msra.mxu0 0
        %473 = vmatprep.subr.bf16.mxu0 0
        %474 = vmatpush2.bf16.xpose.msra.mxu0 0
        %475 = vmatprep.subr.bf16.mxu0 0
        %476 = vmatpush2.bf16.xpose.msra.mxu0 0
        %477 = vmatprep.subr.bf16.mxu0 0
        %478 = vmatpush2.bf16.xpose.msra.mxu0 0
        %479 = vmatprep.mubr.bf16.mxu0 0
        %480 = vmatmul.mubr.bf16.gmra.mxu0 %v442
        %v481 = vpop.f32.mrf.mxu0
        %v482 = vadd.f32 0.0, %v481
        %v483 = vpop.f32.mrf.mxu0
        %v484 = vpop.f32.mrf.mxu0
        %v485 = vadd.f32 0.0, %v484
        %v486 = vpop.f32.mrf.mxu0
        %487 = vdwg.mxu0
        %v490 = vunpack.c.l.b16 %v427
        %v491 = vunpack.c.l.b16 %v428
        %v492 = vpack.c.b16 %v491, %v490
        %493 = vrot.lane.b32.xlu0 %v492, 96
        %v494 = vpop.permute.xlu0 %493
        %v496 = vsel %vm440, %v492, 0
        %v499 = vsel %vm440, %v494, 0
        %501 = vmatprep.subr.bf16.mxu0 0
        %502 = vmatpush1.bf16.xpose.msra.mxu0 0
        %503 = vmatprep.subr.bf16.mxu0 0
        %504 = vmatpush1.bf16.xpose.msra.mxu0 0
        %505 = vmatprep.subr.bf16.mxu0 0
        %506 = vmatpush1.bf16.xpose.msra.mxu0 0
        %507 = vmatprep.subr.bf16.mxu0 0
        %508 = vmatpush1.bf16.xpose.msra.mxu0 0
        %509 = vmatprep.subr.bf16.mxu0 0
        %510 = vmatpush1.bf16.xpose.msra.mxu0 0
        %511 = vmatprep.subr.bf16.mxu0 0
        %512 = vmatpush1.bf16.xpose.msra.mxu0 0
        %513 = vmatprep.subr.bf16.mxu0 0
        %514 = vmatpush1.bf16.xpose.msra.mxu0 0
        %515 = vmatprep.subr.bf16.mxu0 0
        %516 = vmatpush1.bf16.xpose.msra.mxu0 %v499
        %517 = vmatprep.subr.bf16.mxu0 0
        %518 = vmatpush2.bf16.xpose.msra.mxu0 0
        %519 = vmatprep.subr.bf16.mxu0 0
        %520 = vmatpush2.bf16.xpose.msra.mxu0 0
        %521 = vmatprep.subr.bf16.mxu0 0
        %522 = vmatpush2.bf16.xpose.msra.mxu0 0
        %523 = vmatprep.subr.bf16.mxu0 0
        %524 = vmatpush2.bf16.xpose.msra.mxu0 0
        %525 = vmatprep.subr.bf16.mxu0 0
        %526 = vmatpush2.bf16.xpose.msra.mxu0 0
        %527 = vmatprep.subr.bf16.mxu0 0
        %528 = vmatpush2.bf16.xpose.msra.mxu0 0
        %529 = vmatprep.subr.bf16.mxu0 0
        %530 = vmatpush2.bf16.xpose.msra.mxu0 0
        %531 = vmatprep.subr.bf16.mxu0 0
        %532 = vmatpush2.bf16.xpose.msra.mxu0 0
        %533 = vmatprep.mubr.bf16.mxu0 0
        %534 = vmatmul.mubr.bf16.gmra.mxu0 %v496
        %v535 = vpop.f32.mrf.mxu0
        %v536 = vadd.f32 0.0, %v535
        %v537 = vpop.f32.mrf.mxu0
        %v538 = vpop.f32.mrf.mxu0
        %v539 = vadd.f32 0.0, %v538
        %v540 = vpop.f32.mrf.mxu0
        %541 = vdwg.mxu0
        %v544 = vunpack.c.l.b16 %v429
        %v545 = vunpack.c.l.b16 %v430
        %v546 = vpack.c.b16 %v545, %v544
        %547 = vrot.lane.b32.xlu0 %v546, 96
        %v548 = vpop.permute.xlu0 %547
        %v550 = vsel %vm440, %v546, 0
        %v553 = vsel %vm440, %v548, 0
        %555 = vmatprep.subr.bf16.mxu0 0
        %556 = vmatpush1.bf16.xpose.msra.mxu0 0
        %557 = vmatprep.subr.bf16.mxu0 0
        %558 = vmatpush1.bf16.xpose.msra.mxu0 0
        %559 = vmatprep.subr.bf16.mxu0 0
        %560 = vmatpush1.bf16.xpose.msra.mxu0 0
        %561 = vmatprep.subr.bf16.mxu0 0
        %562 = vmatpush1.bf16.xpose.msra.mxu0 0
        %563 = vmatprep.subr.bf16.mxu0 0
        %564 = vmatpush1.bf16.xpose.msra.mxu0 0
        %565 = vmatprep.subr.bf16.mxu0 0
        %566 = vmatpush1.bf16.xpose.msra.mxu0 0
        %567 = vmatprep.subr.bf16.mxu0 0
        %568 = vmatpush1.bf16.xpose.msra.mxu0 0
        %569 = vmatprep.subr.bf16.mxu0 0
        %570 = vmatpush1.bf16.xpose.msra.mxu0 %v553
        %571 = vmatprep.subr.bf16.mxu0 0
        %572 = vmatpush2.bf16.xpose.msra.mxu0 0
        %573 = vmatprep.subr.bf16.mxu0 0
        %574 = vmatpush2.bf16.xpose.msra.mxu0 0
        %575 = vmatprep.subr.bf16.mxu0 0
        %576 = vmatpush2.bf16.xpose.msra.mxu0 0
        %577 = vmatprep.subr.bf16.mxu0 0
        %578 = vmatpush2.bf16.xpose.msra.mxu0 0
        %579 = vmatprep.subr.bf16.mxu0 0
        %580 = vmatpush2.bf16.xpose.msra.mxu0 0
        %581 = vmatprep.subr.bf16.mxu0 0
        %582 = vmatpush2.bf16.xpose.msra.mxu0 0
        %583 = vmatprep.subr.bf16.mxu0 0
        %584 = vmatpush2.bf16.xpose.msra.mxu0 0
        %585 = vmatprep.subr.bf16.mxu0 0
        %586 = vmatpush2.bf16.xpose.msra.mxu0 0
        %587 = vmatprep.mubr.bf16.mxu0 0
        %588 = vmatmul.mubr.bf16.gmra.mxu0 %v550
        %v589 = vpop.f32.mrf.mxu0
        %v590 = vadd.f32 0.0, %v589
        %v591 = vpop.f32.mrf.mxu0
        %v592 = vpop.f32.mrf.mxu0
        %v593 = vadd.f32 0.0, %v592
        %v594 = vpop.f32.mrf.mxu0
        %595 = vdwg.mxu0
        %v598 = vunpack.c.l.b16 %v431
        %v599 = vunpack.c.l.b16 %v432
        %v600 = vpack.c.b16 %v599, %v598
        %601 = vrot.lane.b32.xlu0 %v600, 96
        %v602 = vpop.permute.xlu0 %601
        %v604 = vsel %vm440, %v600, 0
        %v607 = vsel %vm440, %v602, 0
        %609 = vmatprep.subr.bf16.mxu0 0
        %610 = vmatpush1.bf16.xpose.msra.mxu0 0
        %611 = vmatprep.subr.bf16.mxu0 0
        %612 = vmatpush1.bf16.xpose.msra.mxu0 0
        %613 = vmatprep.subr.bf16.mxu0 0
        %614 = vmatpush1.bf16.xpose.msra.mxu0 0
        %615 = vmatprep.subr.bf16.mxu0 0
        %616 = vmatpush1.bf16.xpose.msra.mxu0 0
        %617 = vmatprep.subr.bf16.mxu0 0
        %618 = vmatpush1.bf16.xpose.msra.mxu0 0
        %619 = vmatprep.subr.bf16.mxu0 0
        %620 = vmatpush1.bf16.xpose.msra.mxu0 0
        %621 = vmatprep.subr.bf16.mxu0 0
        %622 = vmatpush1.bf16.xpose.msra.mxu0 0
        %623 = vmatprep.subr.bf16.mxu0 0
        %624 = vmatpush1.bf16.xpose.msra.mxu0 %v607
        %625 = vmatprep.subr.bf16.mxu0 0
        %626 = vmatpush2.bf16.xpose.msra.mxu0 0
        %627 = vmatprep.subr.bf16.mxu0 0
        %628 = vmatpush2.bf16.xpose.msra.mxu0 0
        %629 = vmatprep.subr.bf16.mxu0 0
        %630 = vmatpush2.bf16.xpose.msra.mxu0 0
        %631 = vmatprep.subr.bf16.mxu0 0
        %632 = vmatpush2.bf16.xpose.msra.mxu0 0
        %633 = vmatprep.subr.bf16.mxu0 0
        %634 = vmatpush2.bf16.xpose.msra.mxu0 0
        %635 = vmatprep.subr.bf16.mxu0 0
        %636 = vmatpush2.bf16.xpose.msra.mxu0 0
        %637 = vmatprep.subr.bf16.mxu0 0
        %638 = vmatpush2.bf16.xpose.msra.mxu0 0
        %639 = vmatprep.subr.bf16.mxu0 0
        %640 = vmatpush2.bf16.xpose.msra.mxu0 0
        %641 = vmatprep.mubr.bf16.mxu0 0
        %642 = vmatmul.mubr.bf16.gmra.mxu0 %v604
        %v643 = vpop.f32.mrf.mxu0
        %v644 = vadd.f32 0.0, %v643
        %v645 = vpop.f32.mrf.mxu0
        %v646 = vpop.f32.mrf.mxu0
        %v647 = vadd.f32 0.0, %v646
        %v648 = vpop.f32.mrf.mxu0
        %649 = vdwg.mxu0
        %v650 = vld [vmem:[#allocation4] sm:$0xff]
        %v651 = vld [vmem:[#allocation4 + $0x8] sm:$0xff]
        %v652 = vld [vmem:[#allocation4 + $0x40] sm:$0xff]
        %v653 = vld [vmem:[#allocation4 + $0x48] sm:$0xff]
        %v654 = vld [vmem:[#allocation4 + $0x80] sm:$0xff]
        %v655 = vld [vmem:[#allocation4 + $0x88] sm:$0xff]
        %v656 = vld [vmem:[#allocation4 + $0xc0] sm:$0xff]
        %v657 = vld [vmem:[#allocation4 + $0xc8] sm:$0xff]
        %v658 = vadd.f32 %v482, %v650
        %v659 = vadd.f32 %v485, %v651
        %v660 = vadd.f32 %v536, %v652
        %v661 = vadd.f32 %v539, %v653
        %v662 = vadd.f32 %v590, %v654
        %v663 = vadd.f32 %v593, %v655
        %v664 = vadd.f32 %v644, %v656
        %v665 = vadd.f32 %v647, %v657
        %vm666 = vcmask 130048
        %v667 = vsel %vm666, %v658, -inf
        %668 = vmax.xlane.f32.xlu0 %v667
        %v669 = vpop.xlane.xlu0 %668
        %v670 = vsel %vm666, %v659, -inf
        %671 = vmax.xlane.f32.xlu0 %v670
        %v672 = vpop.xlane.xlu0 %671
        %v673 = vsel %vm666, %v660, -inf
        %674 = vmax.xlane.f32.xlu0 %v673
        %v675 = vpop.xlane.xlu0 %674
        %v676 = vsel %vm666, %v661, -inf
        %677 = vmax.xlane.f32.xlu0 %v676
        %v678 = vpop.xlane.xlu0 %677
        %v679 = vsel %vm666, %v662, -inf
        %680 = vmax.xlane.f32.xlu0 %v679
        %v681 = vpop.xlane.xlu0 %680
        %v682 = vsel %vm666, %v663, -inf
        %683 = vmax.xlane.f32.xlu0 %v682
        %v684 = vpop.xlane.xlu0 %683
        %v685 = vsel %vm666, %v664, -inf
        %686 = vmax.xlane.f32.xlu0 %v685
        %v687 = vpop.xlane.xlu0 %686
        %v688 = vsel %vm666, %v665, -inf
        %689 = vmax.xlane.f32.xlu0 %v688
        %v690 = vpop.xlane.xlu0 %689
        %v691 = vsub.f32 %v658, %v669
        %v692 = vsub.f32 %v659, %v672
        %v693 = vsub.f32 %v660, %v675
        %v694 = vsub.f32 %v661, %v678
        %v695 = vsub.f32 %v662, %v681
        %v696 = vsub.f32 %v663, %v684
        %v697 = vsub.f32 %v664, %v687
        %v698 = vsub.f32 %v665, %v690
        %v699 = vmul.f32 %v691, 1.442695
        %v700 = vpow.pop %v699
        %v701 = vmul.f32 %v692, 1.442695
        %v702 = vpow.pop %v701
        %v703 = vmul.f32 %v693, 1.442695
        %v704 = vpow.pop %v703
        %v705 = vmul.f32 %v694, 1.442695
        %v706 = vpow.pop %v705
        %v707 = vmul.f32 %v695, 1.442695
        %v708 = vpow.pop %v707
        %v709 = vmul.f32 %v696, 1.442695
        %v710 = vpow.pop %v709
        %v711 = vmul.f32 %v697, 1.442695
        %v712 = vpow.pop %v711
        %v713 = vmul.f32 %v698, 1.442695
        %v714 = vpow.pop %v713
        %v715 = vsel %vm666, %v700, 0.0
        %716 = vadd.xlane.f32.xlu0 %v715
        %v717 = vpop.xlane.xlu0 %716
        %v718 = vsel %vm666, %v702, 0.0
        %719 = vadd.xlane.f32.xlu0 %v718
        %v720 = vpop.xlane.xlu0 %719
        %v721 = vsel %vm666, %v704, 0.0
        %722 = vadd.xlane.f32.xlu0 %v721
        %v723 = vpop.xlane.xlu0 %722
        %v724 = vsel %vm666, %v706, 0.0
        %725 = vadd.xlane.f32.xlu0 %v724
        %v726 = vpop.xlane.xlu0 %725
        %v727 = vsel %vm666, %v708, 0.0
        %728 = vadd.xlane.f32.xlu0 %v727
        %v729 = vpop.xlane.xlu0 %728
        %v730 = vsel %vm666, %v710, 0.0
        %731 = vadd.xlane.f32.xlu0 %v730
        %v732 = vpop.xlane.xlu0 %731
        %v733 = vsel %vm666, %v712, 0.0
        %734 = vadd.xlane.f32.xlu0 %v733
        %v735 = vpop.xlane.xlu0 %734
        %v736 = vsel %vm666, %v714, 0.0
        %737 = vadd.xlane.f32.xlu0 %v736
        %v738 = vpop.xlane.xlu0 %737
        %v739 = vrcp.pop %v717
        %v740 = vrcp.pop %v720
        %v741 = vrcp.pop %v723
        %v742 = vrcp.pop %v726
        %v743 = vrcp.pop %v729
        %v744 = vrcp.pop %v732
        %v745 = vrcp.pop %v735
        %v746 = vrcp.pop %v738
        %v747 = vmul.f32 %v700, %v739
        %v748 = vmul.f32 %v702, %v740
        %v749 = vmul.f32 %v704, %v741
        %v750 = vmul.f32 %v706, %v742
        %v751 = vmul.f32 %v708, %v743
        %v752 = vmul.f32 %v710, %v744
        %v753 = vmul.f32 %v712, %v745
        %v754 = vmul.f32 %v714, %v746
        %v755 = vpack.c.bf16 %v748, %v747
        %v756 = vpack.c.bf16 %v750, %v749
        %v757 = vpack.c.bf16 %v752, %v751
        %v758 = vpack.c.bf16 %v754, %v753
        %759 = vrot.lane.b32.xlu0 %v437, 64
        %v760 = vpop.permute.xlu0 %759
        %v763 = vsel %vm666, %v755, 0
        %765 = vmatprep.subr.bf16.mxu0 0
        %766 = vmatpush1.bf16.msra.mxu0 0
        %767 = vmatprep.subr.bf16.mxu0 0
        %768 = vmatpush1.bf16.msra.mxu0 0
        %769 = vmatprep.subr.bf16.mxu0 0
        %770 = vmatpush1.bf16.msra.mxu0 0
        %771 = vmatprep.subr.bf16.mxu0 0
        %772 = vmatpush1.bf16.msra.mxu0 0
        %773 = vmatprep.subr.bf16.mxu0 0
        %774 = vmatpush1.bf16.msra.mxu0 0
        %775 = vmatprep.subr.bf16.mxu0 0
        %776 = vmatpush1.bf16.msra.mxu0 0
        %777 = vmatprep.subr.bf16.mxu0 0
        %778 = vmatpush1.bf16.msra.mxu0 0
        %779 = vmatprep.subr.bf16.mxu0 0
        %780 = vmatpush1.bf16.msra.mxu0 %v760
        %781 = vmatprep.subr.bf16.mxu0 0
        %782 = vmatpush2.bf16.msra.mxu0 0
        %783 = vmatprep.subr.bf16.mxu0 0
        %784 = vmatpush2.bf16.msra.mxu0 0
        %785 = vmatprep.subr.bf16.mxu0 0
        %786 = vmatpush2.bf16.msra.mxu0 0
        %787 = vmatprep.subr.bf16.mxu0 0
        %788 = vmatpush2.bf16.msra.mxu0 0
        %789 = vmatprep.subr.bf16.mxu0 0
        %790 = vmatpush2.bf16.msra.mxu0 0
        %791 = vmatprep.subr.bf16.mxu0 0
        %792 = vmatpush2.bf16.msra.mxu0 0
        %793 = vmatprep.subr.bf16.mxu0 0
        %794 = vmatpush2.bf16.msra.mxu0 0
        %795 = vmatprep.subr.bf16.mxu0 0
        %796 = vmatpush2.bf16.msra.mxu0 0
        %797 = vmatprep.mubr.bf16.mxu0 0
        %798 = vmatmul.mubr.bf16.gmra.mxu0 %v763
        %v799 = vpop.f32.mrf.mxu0
        %v800 = vadd.f32 0.0, %v799
        %v801 = vpop.f32.mrf.mxu0
        %v802 = vpop.f32.mrf.mxu0
        %v803 = vadd.f32 0.0, %v802
        %v804 = vpop.f32.mrf.mxu0
        %805 = vdwg.mxu0
        %806 = vrot.lane.b32.xlu0 %v492, 64
        %v807 = vpop.permute.xlu0 %806
        %v810 = vsel %vm666, %v756, 0
        %812 = vmatprep.subr.bf16.mxu0 0
        %813 = vmatpush1.bf16.msra.mxu0 0
        %814 = vmatprep.subr.bf16.mxu0 0
        %815 = vmatpush1.bf16.msra.mxu0 0
        %816 = vmatprep.subr.bf16.mxu0 0
        %817 = vmatpush1.bf16.msra.mxu0 0
        %818 = vmatprep.subr.bf16.mxu0 0
        %819 = vmatpush1.bf16.msra.mxu0 0
        %820 = vmatprep.subr.bf16.mxu0 0
        %821 = vmatpush1.bf16.msra.mxu0 0
        %822 = vmatprep.subr.bf16.mxu0 0
        %823 = vmatpush1.bf16.msra.mxu0 0
        %824 = vmatprep.subr.bf16.mxu0 0
        %825 = vmatpush1.bf16.msra.mxu0 0
        %826 = vmatprep.subr.bf16.mxu0 0
        %827 = vmatpush1.bf16.msra.mxu0 %v807
        %828 = vmatprep.subr.bf16.mxu0 0
        %829 = vmatpush2.bf16.msra.mxu0 0
        %830 = vmatprep.subr.bf16.mxu0 0
        %831 = vmatpush2.bf16.msra.mxu0 0
        %832 = vmatprep.subr.bf16.mxu0 0
        %833 = vmatpush2.bf16.msra.mxu0 0
        %834 = vmatprep.subr.bf16.mxu0 0
        %835 = vmatpush2.bf16.msra.mxu0 0
        %836 = vmatprep.subr.bf16.mxu0 0
        %837 = vmatpush2.bf16.msra.mxu0 0
        %838 = vmatprep.subr.bf16.mxu0 0
        %839 = vmatpush2.bf16.msra.mxu0 0
        %840 = vmatprep.subr.bf16.mxu0 0
        %841 = vmatpush2.bf16.msra.mxu0 0
        %842 = vmatprep.subr.bf16.mxu0 0
        %843 = vmatpush2.bf16.msra.mxu0 0
        %844 = vmatprep.mubr.bf16.mxu0 0
        %845 = vmatmul.mubr.bf16.gmra.mxu0 %v810
        %v846 = vpop.f32.mrf.mxu0
        %v847 = vadd.f32 0.0, %v846
        %v848 = vpop.f32.mrf.mxu0
        %v849 = vpop.f32.mrf.mxu0
        %v850 = vadd.f32 0.0, %v849
        %v851 = vpop.f32.mrf.mxu0
        %852 = vdwg.mxu0
        %853 = vrot.lane.b32.xlu0 %v546, 64
        %v854 = vpop.permute.xlu0 %853
        %v857 = vsel %vm666, %v757, 0
        %859 = vmatprep.subr.bf16.mxu0 0
        %860 = vmatpush1.bf16.msra.mxu0 0
        %861 = vmatprep.subr.bf16.mxu0 0
        %862 = vmatpush1.bf16.msra.mxu0 0
        %863 = vmatprep.subr.bf16.mxu0 0
        %864 = vmatpush1.bf16.msra.mxu0 0
        %865 = vmatprep.subr.bf16.mxu0 0
        %866 = vmatpush1.bf16.msra.mxu0 0
        %867 = vmatprep.subr.bf16.mxu0 0
        %868 = vmatpush1.bf16.msra.mxu0 0
        %869 = vmatprep.subr.bf16.mxu0 0
        %870 = vmatpush1.bf16.msra.mxu0 0
        %871 = vmatprep.subr.bf16.mxu0 0
        %872 = vmatpush1.bf16.msra.mxu0 0
        %873 = vmatprep.subr.bf16.mxu0 0
        %874 = vmatpush1.bf16.msra.mxu0 %v854
        %875 = vmatprep.subr.bf16.mxu0 0
        %876 = vmatpush2.bf16.msra.mxu0 0
        %877 = vmatprep.subr.bf16.mxu0 0
        %878 = vmatpush2.bf16.msra.mxu0 0
        %879 = vmatprep.subr.bf16.mxu0 0
        %880 = vmatpush2.bf16.msra.mxu0 0
        %881 = vmatprep.subr.bf16.mxu0 0
        %882 = vmatpush2.bf16.msra.mxu0 0
        %883 = vmatprep.subr.bf16.mxu0 0
        %884 = vmatpush2.bf16.msra.mxu0 0
        %885 = vmatprep.subr.bf16.mxu0 0
        %886 = vmatpush2.bf16.msra.mxu0 0
        %887 = vmatprep.subr.bf16.mxu0 0
        %888 = vmatpush2.bf16.msra.mxu0 0
        %889 = vmatprep.subr.bf16.mxu0 0
        %890 = vmatpush2.bf16.msra.mxu0 0
        %891 = vmatprep.mubr.bf16.mxu0 0
        %892 = vmatmul.mubr.bf16.gmra.mxu0 %v857
        %v893 = vpop.f32.mrf.mxu0
        %v894 = vadd.f32 0.0, %v893
        %v895 = vpop.f32.mrf.mxu0
        %v896 = vpop.f32.mrf.mxu0
        %v897 = vadd.f32 0.0, %v896
        %v898 = vpop.f32.mrf.mxu0
        %899 = vdwg.mxu0
        %900 = vrot.lane.b32.xlu0 %v600, 64
        %v901 = vpop.permute.xlu0 %900
        %v904 = vsel %vm666, %v758, 0
        %906 = vmatprep.subr.bf16.mxu0 0
        %907 = vmatpush1.bf16.msra.mxu0 0
        %908 = vmatprep.subr.bf16.mxu0 0
        %909 = vmatpush1.bf16.msra.mxu0 0
        %910 = vmatprep.subr.bf16.mxu0 0
        %911 = vmatpush1.bf16.msra.mxu0 0
        %912 = vmatprep.subr.bf16.mxu0 0
        %913 = vmatpush1.bf16.msra.mxu0 0
        %914 = vmatprep.subr.bf16.mxu0 0
        %915 = vmatpush1.bf16.msra.mxu0 0
        %916 = vmatprep.subr.bf16.mxu0 0
        %917 = vmatpush1.bf16.msra.mxu0 0
        %918 = vmatprep.subr.bf16.mxu0 0
        %919 = vmatpush1.bf16.msra.mxu0 0
        %920 = vmatprep.subr.bf16.mxu0 0
        %921 = vmatpush1.bf16.msra.mxu0 %v901
        %922 = vmatprep.subr.bf16.mxu0 0
        %923 = vmatpush2.bf16.msra.mxu0 0
        %924 = vmatprep.subr.bf16.mxu0 0
        %925 = vmatpush2.bf16.msra.mxu0 0
        %926 = vmatprep.subr.bf16.mxu0 0
        %927 = vmatpush2.bf16.msra.mxu0 0
        %928 = vmatprep.subr.bf16.mxu0 0
        %929 = vmatpush2.bf16.msra.mxu0 0
        %930 = vmatprep.subr.bf16.mxu0 0
        %931 = vmatpush2.bf16.msra.mxu0 0
        %932 = vmatprep.subr.bf16.mxu0 0
        %933 = vmatpush2.bf16.msra.mxu0 0
        %934 = vmatprep.subr.bf16.mxu0 0
        %935 = vmatpush2.bf16.msra.mxu0 0
        %936 = vmatprep.subr.bf16.mxu0 0
        %937 = vmatpush2.bf16.msra.mxu0 0
        %938 = vmatprep.mubr.bf16.mxu0 0
        %939 = vmatmul.mubr.bf16.gmra.mxu0 %v904
        %v940 = vpop.f32.mrf.mxu0
        %v941 = vadd.f32 0.0, %v940
        %v942 = vpop.f32.mrf.mxu0
        %v943 = vpop.f32.mrf.mxu0
        %v944 = vadd.f32 0.0, %v943
        %v945 = vpop.f32.mrf.mxu0
        %946 = vdwg.mxu0
        %v947 = vpack.c.bf16 %v803, %v800
        %v948 = vpack.c.bf16 %v850, %v847
        %v949 = vpack.c.bf16 %v897, %v894
        %v950 = vpack.c.bf16 %v944, %v941
        %v955 = vunpack.c.l.b16 %v947
        %v956 = vunpack.c.h.b16 %v947
        %v957 = vunpack.c.l.b16 %v948
        %v958 = vunpack.c.h.b16 %v948
        %v959 = vunpack.c.l.b16 %v949
        %v960 = vunpack.c.h.b16 %v949
        %v961 = vunpack.c.l.b16 %v950
        %v962 = vunpack.c.h.b16 %v950
        %v963 = vpack.c.b16 %v955, %v955
        %v964 = vpack.c.b16 %v956, %v956
        %v965 = vpack.c.b16 %v957, %v957
        %v966 = vpack.c.b16 %v958, %v958
        %v967 = vpack.c.b16 %v959, %v959
        %v968 = vpack.c.b16 %v960, %v960
        %v969 = vpack.c.b16 %v961, %v961
        %v970 = vpack.c.b16 %v962, %v962
        %vm979 = vcmask 60416
        %980 = vst.msk [vmem:[#allocation3] sm:$0xf] %vm979, %v963
        %981 = vst.msk [vmem:[#allocation3 + $0x4] sm:$0xf] %vm979, %v964
        %982 = vst.msk [vmem:[#allocation3 + $0x8] sm:$0xf] %vm979, %v965
        %983 = vst.msk [vmem:[#allocation3 + $0xc] sm:$0xf] %vm979, %v966
        %984 = vst.msk [vmem:[#allocation3 + $0x10] sm:$0xf] %vm979, %v967
        %985 = vst.msk [vmem:[#allocation3 + $0x14] sm:$0xf] %vm979, %v968
        %986 = vst.msk [vmem:[#allocation3 + $0x18] sm:$0xf] %vm979, %v969
        %987 = vst.msk [vmem:[#allocation3 + $0x1c] sm:$0xf] %vm979, %v970
        %v988 = vld [vmem:[#allocation2] sm:$0xf]
        %v989 = vld [vmem:[#allocation2 + $0x4] sm:$0xf]
        %v990 = vld [vmem:[#allocation2 + $0x8] sm:$0xf]
        %v991 = vld [vmem:[#allocation2 + $0xc] sm:$0xf]
        %v992 = vld [vmem:[#allocation2 + $0x10] sm:$0xf]
        %v993 = vld [vmem:[#allocation2 + $0x14] sm:$0xf]
        %v994 = vld [vmem:[#allocation2 + $0x18] sm:$0xf]
        %v995 = vld [vmem:[#allocation2 + $0x1c] sm:$0xf]
        %v998 = vunpack.c.l.b16 %v988
        %v999 = vunpack.c.l.b16 %v989
        %v1000 = vpack.c.b16 %v999, %v998
        %1001 = vrot.lane.b32.xlu0 %v1000, 120
        %v1002 = vpop.permute.xlu0 %1001
        %1003 = vrot.lane.b32.xlu0 %v1000, 88
        %v1004 = vpop.permute.xlu0 %1003
        %v1006 = vsel %vm440, %v1002, 0
        %v1009 = vsel %vm440, %v1004, 0
        %1011 = vmatprep.subr.bf16.mxu0 0
        %1012 = vmatpush1.bf16.xpose.msra.mxu0 0
        %1013 = vmatprep.subr.bf16.mxu0 0
        %1014 = vmatpush1.bf16.xpose.msra.mxu0 0
        %1015 = vmatprep.subr.bf16.mxu0 0
        %1016 = vmatpush1.bf16.xpose.msra.mxu0 0
        %1017 = vmatprep.subr.bf16.mxu0 0
        %1018 = vmatpush1.bf16.xpose.msra.mxu0 0
        %1019 = vmatprep.subr.bf16.mxu0 0
        %1020 = vmatpush1.bf16.xpose.msra.mxu0 0
        %1021 = vmatprep.subr.bf16.mxu0 0
        %1022 = vmatpush1.bf16.xpose.msra.mxu0 0
        %1023 = vmatprep.subr.bf16.mxu0 0
        %1024 = vmatpush1.bf16.xpose.msra.mxu0 0
        %1025 = vmatprep.subr.bf16.mxu0 0
        %1026 = vmatpush1.bf16.xpose.msra.mxu0 %v1009
        %1027 = vmatprep.subr.bf16.mxu0 0
        %1028 = vmatpush2.bf16.xpose.msra.mxu0 0
        %1029 = vmatprep.subr.bf16.mxu0 0
        %1030 = vmatpush2.bf16.xpose.msra.mxu0 0
        %1031 = vmatprep.subr.bf16.mxu0 0
        %1032 = vmatpush2.bf16.xpose.msra.mxu0 0
        %1033 = vmatprep.subr.bf16.mxu0 0
        %1034 = vmatpush2.bf16.xpose.msra.mxu0 0
        %1035 = vmatprep.subr.bf16.mxu0 0
        %1036 = vmatpush2.bf16.xpose.msra.mxu0 0
        %1037 = vmatprep.subr.bf16.mxu0 0
        %1038 = vmatpush2.bf16.xpose.msra.mxu0 0
        %1039 = vmatprep.subr.bf16.mxu0 0
        %1040 = vmatpush2.bf16.xpose.msra.mxu0 0
        %1041 = vmatprep.subr.bf16.mxu0 0
        %1042 = vmatpush2.bf16.xpose.msra.mxu0 0
        %1043 = vmatprep.mubr.bf16.mxu0 0
        %1044 = vmatmul.mubr.bf16.gmra.mxu0 %v1006
        %v1045 = vpop.f32.mrf.mxu0
        %v1046 = vadd.f32 0.0, %v1045
        %v1047 = vpop.f32.mrf.mxu0
        %v1048 = vpop.f32.mrf.mxu0
        %v1049 = vadd.f32 0.0, %v1048
        %v1050 = vpop.f32.mrf.mxu0
        %1051 = vdwg.mxu0
        %v1054 = vunpack.c.l.b16 %v990
        %v1055 = vunpack.c.l.b16 %v991
        %v1056 = vpack.c.b16 %v1055, %v1054
        %1057 = vrot.lane.b32.xlu0 %v1056, 120
        %v1058 = vpop.permute.xlu0 %1057
        %1059 = vrot.lane.b32.xlu0 %v1056, 88
        %v1060 = vpop.permute.xlu0 %1059
        %v1062 = vsel %vm440, %v1058, 0
        %v1065 = vsel %vm440, %v1060, 0
        %1067 = vmatprep.subr.bf16.mxu0 0
        %1068 = vmatpush1.bf16.xpose.msra.mxu0 0
        %1069 = vmatprep.subr.bf16.mxu0 0
        %1070 = vmatpush1.bf16.xpose.msra.mxu0 0
        %1071 = vmatprep.subr.bf16.mxu0 0
        %1072 = vmatpush1.bf16.xpose.msra.mxu0 0
        %1073 = vmatprep.subr.bf16.mxu0 0
        %1074 = vmatpush1.bf16.xpose.msra.mxu0 0
        %1075 = vmatprep.subr.bf16.mxu0 0
        %1076 = vmatpush1.bf16.xpose.msra.mxu0 0
        %1077 = vmatprep.subr.bf16.mxu0 0
        %1078 = vmatpush1.bf16.xpose.msra.mxu0 0
        %1079 = vmatprep.subr.bf16.mxu0 0
        %1080 = vmatpush1.bf16.xpose.msra.mxu0 0
        %1081 = vmatprep.subr.bf16.mxu0 0
        %1082 = vmatpush1.bf16.xpose.msra.mxu0 %v1065
        %1083 = vmatprep.subr.bf16.mxu0 0
        %1084 = vmatpush2.bf16.xpose.msra.mxu0 0
        %1085 = vmatprep.subr.bf16.mxu0 0
        %1086 = vmatpush2.bf16.xpose.msra.mxu0 0
        %1087 = vmatprep.subr.bf16.mxu0 0
        %1088 = vmatpush2.bf16.xpose.msra.mxu0 0
        %1089 = vmatprep.subr.bf16.mxu0 0
        %1090 = vmatpush2.bf16.xpose.msra.mxu0 0
        %1091 = vmatprep.subr.bf16.mxu0 0
        %1092 = vmatpush2.bf16.xpose.msra.mxu0 0
        %1093 = vmatprep.subr.bf16.mxu0 0
        %1094 = vmatpush2.bf16.xpose.msra.mxu0 0
        %1095 = vmatprep.subr.bf16.mxu0 0
        %1096 = vmatpush2.bf16.xpose.msra.mxu0 0
        %1097 = vmatprep.subr.bf16.mxu0 0
        %1098 = vmatpush2.bf16.xpose.msra.mxu0 0
        %1099 = vmatprep.mubr.bf16.mxu0 0
        %1100 = vmatmul.mubr.bf16.gmra.mxu0 %v1062
        %v1101 = vpop.f32.mrf.mxu0
        %v1102 = vadd.f32 0.0, %v1101
        %v1103 = vpop.f32.mrf.mxu0
        %v1104 = vpop.f32.mrf.mxu0
        %v1105 = vadd.f32 0.0, %v1104
        %v1106 = vpop.f32.mrf.mxu0
        %1107 = vdwg.mxu0
        %v1110 = vunpack.c.l.b16 %v992
        %v1111 = vunpack.c.l.b16 %v993
        %v1112 = vpack.c.b16 %v1111, %v1110
        %1113 = vrot.lane.b32.xlu0 %v1112, 120
        %v1114 = vpop.permute.xlu0 %1113
        %1115 = vrot.lane.b32.xlu0 %v1112, 88
        %v1116 = vpop.permute.xlu0 %1115
        %v1118 = vsel %vm440, %v1114, 0
        %v1121 = vsel %vm440, %v1116, 0
        %1123 = vmatprep.subr.bf16.mxu0 0
        %1124 = vmatpush1.bf16.xpose.msra.mxu0 0
        %1125 = vmatprep.subr.bf16.mxu0 0
        %1126 = vmatpush1.bf16.xpose.msra.mxu0 0
        %1127 = vmatprep.subr.bf16.mxu0 0
        %1128 = vmatpush1.bf16.xpose.msra.mxu0 0
        %1129 = vmatprep.subr.bf16.mxu0 0
        %1130 = vmatpush1.bf16.xpose.msra.mxu0 0
        %1131 = vmatprep.subr.bf16.mxu0 0
        %1132 = vmatpush1.bf16.xpose.msra.mxu0 0
        %1133 = vmatprep.subr.bf16.mxu0 0
        %1134 = vmatpush1.bf16.xpose.msra.mxu0 0
        %1135 = vmatprep.subr.bf16.mxu0 0
        %1136 = vmatpush1.bf16.xpose.msra.mxu0 0
        %1137 = vmatprep.subr.bf16.mxu0 0
        %1138 = vmatpush1.bf16.xpose.msra.mxu0 %v1121
        %1139 = vmatprep.subr.bf16.mxu0 0
        %1140 = vmatpush2.bf16.xpose.msra.mxu0 0
        %1141 = vmatprep.subr.bf16.mxu0 0
        %1142 = vmatpush2.bf16.xpose.msra.mxu0 0
        %1143 = vmatprep.subr.bf16.mxu0 0
        %1144 = vmatpush2.bf16.xpose.msra.mxu0 0
        %1145 = vmatprep.subr.bf16.mxu0 0
        %1146 = vmatpush2.bf16.xpose.msra.mxu0 0
        %1147 = vmatprep.subr.bf16.mxu0 0
        %1148 = vmatpush2.bf16.xpose.msra.mxu0 0
        %1149 = vmatprep.subr.bf16.mxu0 0
        %1150 = vmatpush2.bf16.xpose.msra.mxu0 0
        %1151 = vmatprep.subr.bf16.mxu0 0
        %1152 = vmatpush2.bf16.xpose.msra.mxu0 0
        %1153 = vmatprep.subr.bf16.mxu0 0
        %1154 = vmatpush2.bf16.xpose.msra.mxu0 0
        %1155 = vmatprep.mubr.bf16.mxu0 0
        %1156 = vmatmul.mubr.bf16.gmra.mxu0 %v1118
        %v1157 = vpop.f32.mrf.mxu0
        %v1158 = vadd.f32 0.0, %v1157
        %v1159 = vpop.f32.mrf.mxu0
        %v1160 = vpop.f32.mrf.mxu0
        %v1161 = vadd.f32 0.0, %v1160
        %v1162 = vpop.f32.mrf.mxu0
        %1163 = vdwg.mxu0
        %v1166 = vunpack.c.l.b16 %v994
        %v1167 = vunpack.c.l.b16 %v995
        %v1168 = vpack.c.b16 %v1167, %v1166
        %1169 = vrot.lane.b32.xlu0 %v1168, 120
        %v1170 = vpop.permute.xlu0 %1169
        %1171 = vrot.lane.b32.xlu0 %v1168, 88
        %v1172 = vpop.permute.xlu0 %1171
        %v1174 = vsel %vm440, %v1170, 0
        %v1177 = vsel %vm440, %v1172, 0
        %1179 = vmatprep.subr.bf16.mxu0 0
        %1180 = vmatpush1.bf16.xpose.msra.mxu0 0
        %1181 = vmatprep.subr.bf16.mxu0 0
        %1182 = vmatpush1.bf16.xpose.msra.mxu0 0
        %1183 = vmatprep.subr.bf16.mxu0 0
        %1184 = vmatpush1.bf16.xpose.msra.mxu0 0
        %1185 = vmatprep.subr.bf16.mxu0 0
        %1186 = vmatpush1.bf16.xpose.msra.mxu0 0
        %1187 = vmatprep.subr.bf16.mxu0 0
        %1188 = vmatpush1.bf16.xpose.msra.mxu0 0
        %1189 = vmatprep.subr.bf16.mxu0 0
        %1190 = vmatpush1.bf16.xpose.msra.mxu0 0
        %1191 = vmatprep.subr.bf16.mxu0 0
        %1192 = vmatpush1.bf16.xpose.msra.mxu0 0
        %1193 = vmatprep.subr.bf16.mxu0 0
        %1194 = vmatpush1.bf16.xpose.msra.mxu0 %v1177
        %1195 = vmatprep.subr.bf16.mxu0 0
        %1196 = vmatpush2.bf16.xpose.msra.mxu0 0
        %1197 = vmatprep.subr.bf16.mxu0 0
        %1198 = vmatpush2.bf16.xpose.msra.mxu0 0
        %1199 = vmatprep.subr.bf16.mxu0 0
        %1200 = vmatpush2.bf16.xpose.msra.mxu0 0
        %1201 = vmatprep.subr.bf16.mxu0 0
        %1202 = vmatpush2.bf16.xpose.msra.mxu0 0
        %1203 = vmatprep.subr.bf16.mxu0 0
        %1204 = vmatpush2.bf16.xpose.msra.mxu0 0
        %1205 = vmatprep.subr.bf16.mxu0 0
        %1206 = vmatpush2.bf16.xpose.msra.mxu0 0
        %1207 = vmatprep.subr.bf16.mxu0 0
        %1208 = vmatpush2.bf16.xpose.msra.mxu0 0
        %1209 = vmatprep.subr.bf16.mxu0 0
        %1210 = vmatpush2.bf16.xpose.msra.mxu0 0
        %1211 = vmatprep.mubr.bf16.mxu0 0
        %1212 = vmatmul.mubr.bf16.gmra.mxu0 %v1174
        %v1213 = vpop.f32.mrf.mxu0
        %v1214 = vadd.f32 0.0, %v1213
        %v1215 = vpop.f32.mrf.mxu0
        %v1216 = vpop.f32.mrf.mxu0
        %v1217 = vadd.f32 0.0, %v1216
        %v1218 = vpop.f32.mrf.mxu0
        %1219 = vdwg.mxu0
        %s1220 = scalar_lea.vmem [#allocation4], 16
        %v1221 = vld [vmem:[%s1220] sm:$0xff]
        %v1222 = vld [vmem:[%s1220 + $0x8] sm:$0xff]
        %v1223 = vld [vmem:[%s1220 + $0x40] sm:$0xff]
        %v1224 = vld [vmem:[%s1220 + $0x48] sm:$0xff]
        %v1225 = vld [vmem:[%s1220 + $0x80] sm:$0xff]
        %v1226 = vld [vmem:[%s1220 + $0x88] sm:$0xff]
        %v1227 = vld [vmem:[%s1220 + $0xc0] sm:$0xff]
        %v1228 = vld [vmem:[%s1220 + $0xc8] sm:$0xff]
        %v1229 = vadd.f32 %v1046, %v1221
        %v1230 = vadd.f32 %v1049, %v1222
        %v1231 = vadd.f32 %v1102, %v1223
        %v1232 = vadd.f32 %v1105, %v1224
        %v1233 = vadd.f32 %v1158, %v1225
        %v1234 = vadd.f32 %v1161, %v1226
        %v1235 = vadd.f32 %v1214, %v1227
        %v1236 = vadd.f32 %v1217, %v1228
        %v1237 = vsel %vm666, %v1229, -inf
        %1238 = vmax.xlane.f32.xlu0 %v1237
        %v1239 = vpop.xlane.xlu0 %1238
        %v1240 = vsel %vm666, %v1230, -inf
        %1241 = vmax.xlane.f32.xlu0 %v1240
        %v1242 = vpop.xlane.xlu0 %1241
        %v1243 = vsel %vm666, %v1231, -inf
        %1244 = vmax.xlane.f32.xlu0 %v1243
        %v1245 = vpop.xlane.xlu0 %1244
        %v1246 = vsel %vm666, %v1232, -inf
        %1247 = vmax.xlane.f32.xlu0 %v1246
        %v1248 = vpop.xlane.xlu0 %1247
        %v1249 = vsel %vm666, %v1233, -inf
        %1250 = vmax.xlane.f32.xlu0 %v1249
        %v1251 = vpop.xlane.xlu0 %1250
        %v1252 = vsel %vm666, %v1234, -inf
        %1253 = vmax.xlane.f32.xlu0 %v1252
        %v1254 = vpop.xlane.xlu0 %1253
        %v1255 = vsel %vm666, %v1235, -inf
        %1256 = vmax.xlane.f32.xlu0 %v1255
        %v1257 = vpop.xlane.xlu0 %1256
        %v1258 = vsel %vm666, %v1236, -inf
        %1259 = vmax.xlane.f32.xlu0 %v1258
        %v1260 = vpop.xlane.xlu0 %1259
        %v1261 = vsub.f32 %v1229, %v1239
        %v1262 = vsub.f32 %v1230, %v1242
        %v1263 = vsub.f32 %v1231, %v1245
        %v1264 = vsub.f32 %v1232, %v1248
        %v1265 = vsub.f32 %v1233, %v1251
        %v1266 = vsub.f32 %v1234, %v1254
        %v1267 = vsub.f32 %v1235, %v1257
        %v1268 = vsub.f32 %v1236, %v1260
        %v1269 = vmul.f32 %v1261, 1.442695
        %v1270 = vpow.pop %v1269
        %v1271 = vmul.f32 %v1262, 1.442695
        %v1272 = vpow.pop %v1271
        %v1273 = vmul.f32 %v1263, 1.442695
        %v1274 = vpow.pop %v1273
        %v1275 = vmul.f32 %v1264, 1.442695
        %v1276 = vpow.pop %v1275
        %v1277 = vmul.f32 %v1265, 1.442695
        %v1278 = vpow.pop %v1277
        %v1279 = vmul.f32 %v1266, 1.442695
        %v1280 = vpow.pop %v1279
        %v1281 = vmul.f32 %v1267, 1.442695
        %v1282 = vpow.pop %v1281
        %v1283 = vmul.f32 %v1268, 1.442695
        %v1284 = vpow.pop %v1283
        %v1285 = vsel %vm666, %v1270, 0.0
        %1286 = vadd.xlane.f32.xlu0 %v1285
        %v1287 = vpop.xlane.xlu0 %1286
        %v1288 = vsel %vm666, %v1272, 0.0
        %1289 = vadd.xlane.f32.xlu0 %v1288
        %v1290 = vpop.xlane.xlu0 %1289
        %v1291 = vsel %vm666, %v1274, 0.0
        %1292 = vadd.xlane.f32.xlu0 %v1291
        %v1293 = vpop.xlane.xlu0 %1292
        %v1294 = vsel %vm666, %v1276, 0.0
        %1295 = vadd.xlane.f32.xlu0 %v1294
        %v1296 = vpop.xlane.xlu0 %1295
        %v1297 = vsel %vm666, %v1278, 0.0
        %1298 = vadd.xlane.f32.xlu0 %v1297
        %v1299 = vpop.xlane.xlu0 %1298
        %v1300 = vsel %vm666, %v1280, 0.0
        %1301 = vadd.xlane.f32.xlu0 %v1300
        %v1302 = vpop.xlane.xlu0 %1301
        %v1303 = vsel %vm666, %v1282, 0.0
        %1304 = vadd.xlane.f32.xlu0 %v1303
        %v1305 = vpop.xlane.xlu0 %1304
        %v1306 = vsel %vm666, %v1284, 0.0
        %1307 = vadd.xlane.f32.xlu0 %v1306
        %v1308 = vpop.xlane.xlu0 %1307
        %v1309 = vrcp.pop %v1287
        %v1310 = vrcp.pop %v1290
        %v1311 = vrcp.pop %v1293
        %v1312 = vrcp.pop %v1296
        %v1313 = vrcp.pop %v1299
        %v1314 = vrcp.pop %v1302
        %v1315 = vrcp.pop %v1305
        %v1316 = vrcp.pop %v1308
        %v1317 = vmul.f32 %v1270, %v1309
        %v1318 = vmul.f32 %v1272, %v1310
        %v1319 = vmul.f32 %v1274, %v1311
        %v1320 = vmul.f32 %v1276, %v1312
        %v1321 = vmul.f32 %v1278, %v1313
        %v1322 = vmul.f32 %v1280, %v1314
        %v1323 = vmul.f32 %v1282, %v1315
        %v1324 = vmul.f32 %v1284, %v1316
        %v1325 = vpack.c.bf16 %v1318, %v1317
        %v1326 = vpack.c.bf16 %v1320, %v1319
        %v1327 = vpack.c.bf16 %v1322, %v1321
        %v1328 = vpack.c.bf16 %v1324, %v1323
        %1329 = vrot.lane.b32.xlu0 %v1000, 56
        %v1330 = vpop.permute.xlu0 %1329
        %v1333 = vsel %vm666, %v1325, 0
        %1335 = vmatprep.subr.bf16.mxu0 0
        %1336 = vmatpush1.bf16.msra.mxu0 0
        %1337 = vmatprep.subr.bf16.mxu0 0
        %1338 = vmatpush1.bf16.msra.mxu0 0
        %1339 = vmatprep.subr.bf16.mxu0 0
        %1340 = vmatpush1.bf16.msra.mxu0 0
        %1341 = vmatprep.subr.bf16.mxu0 0
        %1342 = vmatpush1.bf16.msra.mxu0 0
        %1343 = vmatprep.subr.bf16.mxu0 0
        %1344 = vmatpush1.bf16.msra.mxu0 0
        %1345 = vmatprep.subr.bf16.mxu0 0
        %1346 = vmatpush1.bf16.msra.mxu0 0
        %1347 = vmatprep.subr.bf16.mxu0 0
        %1348 = vmatpush1.bf16.msra.mxu0 0
        %1349 = vmatprep.subr.bf16.mxu0 0
        %1350 = vmatpush1.bf16.msra.mxu0 %v1330
        %1351 = vmatprep.subr.bf16.mxu0 0
        %1352 = vmatpush2.bf16.msra.mxu0 0
        %1353 = vmatprep.subr.bf16.mxu0 0
        %1354 = vmatpush2.bf16.msra.mxu0 0
        %1355 = vmatprep.subr.bf16.mxu0 0
        %1356 = vmatpush2.bf16.msra.mxu0 0
        %1357 = vmatprep.subr.bf16.mxu0 0
        %1358 = vmatpush2.bf16.msra.mxu0 0
        %1359 = vmatprep.subr.bf16.mxu0 0
        %1360 = vmatpush2.bf16.msra.mxu0 0
        %1361 = vmatprep.subr.bf16.mxu0 0
        %1362 = vmatpush2.bf16.msra.mxu0 0
        %1363 = vmatprep.subr.bf16.mxu0 0
        %1364 = vmatpush2.bf16.msra.mxu0 0
        %1365 = vmatprep.subr.bf16.mxu0 0
        %1366 = vmatpush2.bf16.msra.mxu0 0
        %1367 = vmatprep.mubr.bf16.mxu0 0
        %1368 = vmatmul.mubr.bf16.gmra.mxu0 %v1333
        %v1369 = vpop.f32.mrf.mxu0
        %v1370 = vadd.f32 0.0, %v1369
        %v1371 = vpop.f32.mrf.mxu0
        %v1372 = vpop.f32.mrf.mxu0
        %v1373 = vadd.f32 0.0, %v1372
        %v1374 = vpop.f32.mrf.mxu0
        %1375 = vdwg.mxu0
        %1376 = vrot.lane.b32.xlu0 %v1056, 56
        %v1377 = vpop.permute.xlu0 %1376
        %v1380 = vsel %vm666, %v1326, 0
        %1382 = vmatprep.subr.bf16.mxu0 0
        %1383 = vmatpush1.bf16.msra.mxu0 0
        %1384 = vmatprep.subr.bf16.mxu0 0
        %1385 = vmatpush1.bf16.msra.mxu0 0
        %1386 = vmatprep.subr.bf16.mxu0 0
        %1387 = vmatpush1.bf16.msra.mxu0 0
        %1388 = vmatprep.subr.bf16.mxu0 0
        %1389 = vmatpush1.bf16.msra.mxu0 0
        %1390 = vmatprep.subr.bf16.mxu0 0
        %1391 = vmatpush1.bf16.msra.mxu0 0
        %1392 = vmatprep.subr.bf16.mxu0 0
        %1393 = vmatpush1.bf16.msra.mxu0 0
        %1394 = vmatprep.subr.bf16.mxu0 0
        %1395 = vmatpush1.bf16.msra.mxu0 0
        %1396 = vmatprep.subr.bf16.mxu0 0
        %1397 = vmatpush1.bf16.msra.mxu0 %v1377
        %1398 = vmatprep.subr.bf16.mxu0 0
        %1399 = vmatpush2.bf16.msra.mxu0 0
        %1400 = vmatprep.subr.bf16.mxu0 0
        %1401 = vmatpush2.bf16.msra.mxu0 0
        %1402 = vmatprep.subr.bf16.mxu0 0
        %1403 = vmatpush2.bf16.msra.mxu0 0
        %1404 = vmatprep.subr.bf16.mxu0 0
        %1405 = vmatpush2.bf16.msra.mxu0 0
        %1406 = vmatprep.subr.bf16.mxu0 0
        %1407 = vmatpush2.bf16.msra.mxu0 0
        %1408 = vmatprep.subr.bf16.mxu0 0
        %1409 = vmatpush2.bf16.msra.mxu0 0
        %1410 = vmatprep.subr.bf16.mxu0 0
        %1411 = vmatpush2.bf16.msra.mxu0 0
        %1412 = vmatprep.subr.bf16.mxu0 0
        %1413 = vmatpush2.bf16.msra.mxu0 0
        %1414 = vmatprep.mubr.bf16.mxu0 0
        %1415 = vmatmul.mubr.bf16.gmra.mxu0 %v1380
        %v1416 = vpop.f32.mrf.mxu0
        %v1417 = vadd.f32 0.0, %v1416
        %v1418 = vpop.f32.mrf.mxu0
        %v1419 = vpop.f32.mrf.mxu0
        %v1420 = vadd.f32 0.0, %v1419
        %v1421 = vpop.f32.mrf.mxu0
        %1422 = vdwg.mxu0
        %1423 = vrot.lane.b32.xlu0 %v1112, 56
        %v1424 = vpop.permute.xlu0 %1423
        %v1427 = vsel %vm666, %v1327, 0
        %1429 = vmatprep.subr.bf16.mxu0 0
        %1430 = vmatpush1.bf16.msra.mxu0 0
        %1431 = vmatprep.subr.bf16.mxu0 0
        %1432 = vmatpush1.bf16.msra.mxu0 0
        %1433 = vmatprep.subr.bf16.mxu0 0
        %1434 = vmatpush1.bf16.msra.mxu0 0
        %1435 = vmatprep.subr.bf16.mxu0 0
        %1436 = vmatpush1.bf16.msra.mxu0 0
        %1437 = vmatprep.subr.bf16.mxu0 0
        %1438 = vmatpush1.bf16.msra.mxu0 0
        %1439 = vmatprep.subr.bf16.mxu0 0
        %1440 = vmatpush1.bf16.msra.mxu0 0
        %1441 = vmatprep.subr.bf16.mxu0 0
        %1442 = vmatpush1.bf16.msra.mxu0 0
        %1443 = vmatprep.subr.bf16.mxu0 0
        %1444 = vmatpush1.bf16.msra.mxu0 %v1424
        %1445 = vmatprep.subr.bf16.mxu0 0
        %1446 = vmatpush2.bf16.msra.mxu0 0
        %1447 = vmatprep.subr.bf16.mxu0 0
        %1448 = vmatpush2.bf16.msra.mxu0 0
        %1449 = vmatprep.subr.bf16.mxu0 0
        %1450 = vmatpush2.bf16.msra.mxu0 0
        %1451 = vmatprep.subr.bf16.mxu0 0
        %1452 = vmatpush2.bf16.msra.mxu0 0
        %1453 = vmatprep.subr.bf16.mxu0 0
        %1454 = vmatpush2.bf16.msra.mxu0 0
        %1455 = vmatprep.subr.bf16.mxu0 0
        %1456 = vmatpush2.bf16.msra.mxu0 0
        %1457 = vmatprep.subr.bf16.mxu0 0
        %1458 = vmatpush2.bf16.msra.mxu0 0
        %1459 = vmatprep.subr.bf16.mxu0 0
        %1460 = vmatpush2.bf16.msra.mxu0 0
        %1461 = vmatprep.mubr.bf16.mxu0 0
        %1462 = vmatmul.mubr.bf16.gmra.mxu0 %v1427
        %v1463 = vpop.f32.mrf.mxu0
        %v1464 = vadd.f32 0.0, %v1463
        %v1465 = vpop.f32.mrf.mxu0
        %v1466 = vpop.f32.mrf.mxu0
        %v1467 = vadd.f32 0.0, %v1466
        %v1468 = vpop.f32.mrf.mxu0
        %1469 = vdwg.mxu0
        %1470 = vrot.lane.b32.xlu0 %v1168, 56
        %v1471 = vpop.permute.xlu0 %1470
        %v1474 = vsel %vm666, %v1328, 0
        %1476 = vmatprep.subr.bf16.mxu0 0
        %1477 = vmatpush1.bf16.msra.mxu0 0
        %1478 = vmatprep.subr.bf16.mxu0 0
        %1479 = vmatpush1.bf16.msra.mxu0 0
        %1480 = vmatprep.subr.bf16.mxu0 0
        %1481 = vmatpush1.bf16.msra.mxu0 0
        %1482 = vmatprep.subr.bf16.mxu0 0
        %1483 = vmatpush1.bf16.msra.mxu0 0
        %1484 = vmatprep.subr.bf16.mxu0 0
        %1485 = vmatpush1.bf16.msra.mxu0 0
        %1486 = vmatprep.subr.bf16.mxu0 0
        %1487 = vmatpush1.bf16.msra.mxu0 0
        %1488 = vmatprep.subr.bf16.mxu0 0
        %1489 = vmatpush1.bf16.msra.mxu0 0
        %1490 = vmatprep.subr.bf16.mxu0 0
        %1491 = vmatpush1.bf16.msra.mxu0 %v1471
        %1492 = vmatprep.subr.bf16.mxu0 0
        %1493 = vmatpush2.bf16.msra.mxu0 0
        %1494 = vmatprep.subr.bf16.mxu0 0
        %1495 = vmatpush2.bf16.msra.mxu0 0
        %1496 = vmatprep.subr.bf16.mxu0 0
        %1497 = vmatpush2.bf16.msra.mxu0 0
        %1498 = vmatprep.subr.bf16.mxu0 0
        %1499 = vmatpush2.bf16.msra.mxu0 0
        %1500 = vmatprep.subr.bf16.mxu0 0
        %1501 = vmatpush2.bf16.msra.mxu0 0
        %1502 = vmatprep.subr.bf16.mxu0 0
        %1503 = vmatpush2.bf16.msra.mxu0 0
        %1504 = vmatprep.subr.bf16.mxu0 0
        %1505 = vmatpush2.bf16.msra.mxu0 0
        %1506 = vmatprep.subr.bf16.mxu0 0
        %1507 = vmatpush2.bf16.msra.mxu0 0
        %1508 = vmatprep.mubr.bf16.mxu0 0
        %1509 = vmatmul.mubr.bf16.gmra.mxu0 %v1474
        %v1510 = vpop.f32.mrf.mxu0
        %v1511 = vadd.f32 0.0, %v1510
        %v1512 = vpop.f32.mrf.mxu0
        %v1513 = vpop.f32.mrf.mxu0
        %v1514 = vadd.f32 0.0, %v1513
        %v1515 = vpop.f32.mrf.mxu0
        %1516 = vdwg.mxu0
        %v1517 = vpack.c.bf16 %v1373, %v1370
        %v1518 = vpack.c.bf16 %v1420, %v1417
        %v1519 = vpack.c.bf16 %v1467, %v1464
        %v1520 = vpack.c.bf16 %v1514, %v1511
        %v1525 = vunpack.c.l.b16 %v1517
        %v1526 = vunpack.c.h.b16 %v1517
        %v1527 = vunpack.c.l.b16 %v1518
        %v1528 = vunpack.c.h.b16 %v1518
        %v1529 = vunpack.c.l.b16 %v1519
        %v1530 = vunpack.c.h.b16 %v1519
        %v1531 = vunpack.c.l.b16 %v1520
        %v1532 = vunpack.c.h.b16 %v1520
        %v1533 = vpack.c.b16 %v1525, %v1525
        %v1534 = vpack.c.b16 %v1526, %v1526
        %v1535 = vpack.c.b16 %v1527, %v1527
        %v1536 = vpack.c.b16 %v1528, %v1528
        %v1537 = vpack.c.b16 %v1529, %v1529
        %v1538 = vpack.c.b16 %v1530, %v1530
        %v1539 = vpack.c.b16 %v1531, %v1531
        %v1540 = vpack.c.b16 %v1532, %v1532
        %1541 = vrot.lane.b32.xlu0 %v1533, 8
        %v1542 = vpop.permute.xlu0 %1541
        %1543 = vrot.lane.b32.xlu0 %v1534, 8
        %v1544 = vpop.permute.xlu0 %1543
        %1545 = vrot.lane.b32.xlu0 %v1535, 8
        %v1546 = vpop.permute.xlu0 %1545
        %1547 = vrot.lane.b32.xlu0 %v1536, 8
        %v1548 = vpop.permute.xlu0 %1547
        %1549 = vrot.lane.b32.xlu0 %v1537, 8
        %v1550 = vpop.permute.xlu0 %1549
        %1551 = vrot.lane.b32.xlu0 %v1538, 8
        %v1552 = vpop.permute.xlu0 %1551
        %1553 = vrot.lane.b32.xlu0 %v1539, 8
        %v1554 = vpop.permute.xlu0 %1553
        %1555 = vrot.lane.b32.xlu0 %v1540, 8
        %v1556 = vpop.permute.xlu0 %1555
        %vm1565 = vcmask 126016
        %1566 = vst.msk [vmem:[#allocation3] sm:$0xf] %vm1565, %v1542
        %1567 = vst.msk [vmem:[#allocation3 + $0x4] sm:$0xf] %vm1565, %v1544
        %1568 = vst.msk [vmem:[#allocation3 + $0x8] sm:$0xf] %vm1565, %v1546
        %1569 = vst.msk [vmem:[#allocation3 + $0xc] sm:$0xf] %vm1565, %v1548
        %1570 = vst.msk [vmem:[#allocation3 + $0x10] sm:$0xf] %vm1565, %v1550
        %1571 = vst.msk [vmem:[#allocation3 + $0x14] sm:$0xf] %vm1565, %v1552
        %1572 = vst.msk [vmem:[#allocation3 + $0x18] sm:$0xf] %vm1565, %v1554
        %1573 = vst.msk [vmem:[#allocation3 + $0x1c] sm:$0xf] %vm1565, %v1556
        %v1574 = vld [vmem:[#allocation2] sm:$0xf]
        %v1575 = vld [vmem:[#allocation2 + $0x4] sm:$0xf]
        %v1576 = vld [vmem:[#allocation2 + $0x8] sm:$0xf]
        %v1577 = vld [vmem:[#allocation2 + $0xc] sm:$0xf]
        %v1578 = vld [vmem:[#allocation2 + $0x10] sm:$0xf]
        %v1579 = vld [vmem:[#allocation2 + $0x14] sm:$0xf]
        %v1580 = vld [vmem:[#allocation2 + $0x18] sm:$0xf]
        %v1581 = vld [vmem:[#allocation2 + $0x1c] sm:$0xf]
        %v1584 = vunpack.c.l.b16 %v1574
        %v1585 = vunpack.c.l.b16 %v1575
        %v1586 = vpack.c.b16 %v1585, %v1584
        %1587 = vrot.lane.b32.xlu0 %v1586, 112
        %v1588 = vpop.permute.xlu0 %1587
        %1589 = vrot.lane.b32.xlu0 %v1586, 80
        %v1590 = vpop.permute.xlu0 %1589
        %v1592 = vsel %vm440, %v1588, 0
        %v1595 = vsel %vm440, %v1590, 0
        %1597 = vmatprep.subr.bf16.mxu0 0
        %1598 = vmatpush1.bf16.xpose.msra.mxu0 0
        %1599 = vmatprep.subr.bf16.mxu0 0
        %1600 = vmatpush1.bf16.xpose.msra.mxu0 0
        %1601 = vmatprep.subr.bf16.mxu0 0
        %1602 = vmatpush1.bf16.xpose.msra.mxu0 0
        %1603 = vmatprep.subr.bf16.mxu0 0
        %1604 = vmatpush1.bf16.xpose.msra.mxu0 0
        %1605 = vmatprep.subr.bf16.mxu0 0
        %1606 = vmatpush1.bf16.xpose.msra.mxu0 0
        %1607 = vmatprep.subr.bf16.mxu0 0
        %1608 = vmatpush1.bf16.xpose.msra.mxu0 0
        %1609 = vmatprep.subr.bf16.mxu0 0
        %1610 = vmatpush1.bf16.xpose.msra.mxu0 0
        %1611 = vmatprep.subr.bf16.mxu0 0
        %1612 = vmatpush1.bf16.xpose.msra.mxu0 %v1595
        %1613 = vmatprep.subr.bf16.mxu0 0
        %1614 = vmatpush2.bf16.xpose.msra.mxu0 0
        %1615 = vmatprep.subr.bf16.mxu0 0
        %1616 = vmatpush2.bf16.xpose.msra.mxu0 0
        %1617 = vmatprep.subr.bf16.mxu0 0
        %1618 = vmatpush2.bf16.xpose.msra.mxu0 0
        %1619 = vmatprep.subr.bf16.mxu0 0
        %1620 = vmatpush2.bf16.xpose.msra.mxu0 0
        %1621 = vmatprep.subr.bf16.mxu0 0
        %1622 = vmatpush2.bf16.xpose.msra.mxu0 0
        %1623 = vmatprep.subr.bf16.mxu0 0
        %1624 = vmatpush2.bf16.xpose.msra.mxu0 0
        %1625 = vmatprep.subr.bf16.mxu0 0
        %1626 = vmatpush2.bf16.xpose.msra.mxu0 0
        %1627 = vmatprep.subr.bf16.mxu0 0
        %1628 = vmatpush2.bf16.xpose.msra.mxu0 0
        %1629 = vmatprep.mubr.bf16.mxu0 0
        %1630 = vmatmul.mubr.bf16.gmra.mxu0 %v1592
        %v1631 = vpop.f32.mrf.mxu0
        %v1632 = vadd.f32 0.0, %v1631
        %v1633 = vpop.f32.mrf.mxu0
        %v1634 = vpop.f32.mrf.mxu0
        %v1635 = vadd.f32 0.0, %v1634
        %v1636 = vpop.f32.mrf.mxu0
        %1637 = vdwg.mxu0
        %v1640 = vunpack.c.l.b16 %v1576
        %v1641 = vunpack.c.l.b16 %v1577
        %v1642 = vpack.c.b16 %v1641, %v1640
        %1643 = vrot.lane.b32.xlu0 %v1642, 112
        %v1644 = vpop.permute.xlu0 %1643
        %1645 = vrot.lane.b32.xlu0 %v1642, 80
        %v1646 = vpop.permute.xlu0 %1645
        %v1648 = vsel %vm440, %v1644, 0
        %v1651 = vsel %vm440, %v1646, 0
        %1653 = vmatprep.subr.bf16.mxu0 0
        %1654 = vmatpush1.bf16.xpose.msra.mxu0 0
        %1655 = vmatprep.subr.bf16.mxu0 0
        %1656 = vmatpush1.bf16.xpose.msra.mxu0 0
        %1657 = vmatprep.subr.bf16.mxu0 0
        %1658 = vmatpush1.bf16.xpose.msra.mxu0 0
        %1659 = vmatprep.subr.bf16.mxu0 0
        %1660 = vmatpush1.bf16.xpose.msra.mxu0 0
        %1661 = vmatprep.subr.bf16.mxu0 0
        %1662 = vmatpush1.bf16.xpose.msra.mxu0 0
        %1663 = vmatprep.subr.bf16.mxu0 0
        %1664 = vmatpush1.bf16.xpose.msra.mxu0 0
        %1665 = vmatprep.subr.bf16.mxu0 0
        %1666 = vmatpush1.bf16.xpose.msra.mxu0 0
        %1667 = vmatprep.subr.bf16.mxu0 0
        %1668 = vmatpush1.bf16.xpose.msra.mxu0 %v1651
        %1669 = vmatprep.subr.bf16.mxu0 0
        %1670 = vmatpush2.bf16.xpose.msra.mxu0 0
        %1671 = vmatprep.subr.bf16.mxu0 0
        %1672 = vmatpush2.bf16.xpose.msra.mxu0 0
        %1673 = vmatprep.subr.bf16.mxu0 0
        %1674 = vmatpush2.bf16.xpose.msra.mxu0 0
        %1675 = vmatprep.subr.bf16.mxu0 0
        %1676 = vmatpush2.bf16.xpose.msra.mxu0 0
        %1677 = vmatprep.subr.bf16.mxu0 0
        %1678 = vmatpush2.bf16.xpose.msra.mxu0 0
        %1679 = vmatprep.subr.bf16.mxu0 0
        %1680 = vmatpush2.bf16.xpose.msra.mxu0 0
        %1681 = vmatprep.subr.bf16.mxu0 0
        %1682 = vmatpush2.bf16.xpose.msra.mxu0 0
        %1683 = vmatprep.subr.bf16.mxu0 0
        %1684 = vmatpush2.bf16.xpose.msra.mxu0 0
        %1685 = vmatprep.mubr.bf16.mxu0 0
        %1686 = vmatmul.mubr.bf16.gmra.mxu0 %v1648
        %v1687 = vpop.f32.mrf.mxu0
        %v1688 = vadd.f32 0.0, %v1687
        %v1689 = vpop.f32.mrf.mxu0
        %v1690 = vpop.f32.mrf.mxu0
        %v1691 = vadd.f32 0.0, %v1690
        %v1692 = vpop.f32.mrf.mxu0
        %1693 = vdwg.mxu0
        %v1696 = vunpack.c.l.b16 %v1578
        %v1697 = vunpack.c.l.b16 %v1579
        %v1698 = vpack.c.b16 %v1697, %v1696
        %1699 = vrot.lane.b32.xlu0 %v1698, 112
        %v1700 = vpop.permute.xlu0 %1699
        %1701 = vrot.lane.b32.xlu0 %v1698, 80
        %v1702 = vpop.permute.xlu0 %1701
        %v1704 = vsel %vm440, %v1700, 0
        %v1707 = vsel %vm440, %v1702, 0
        %1709 = vmatprep.subr.bf16.mxu0 0
        %1710 = vmatpush1.bf16.xpose.msra.mxu0 0
        %1711 = vmatprep.subr.bf16.mxu0 0
        %1712 = vmatpush1.bf16.xpose.msra.mxu0 0
        %1713 = vmatprep.subr.bf16.mxu0 0
        %1714 = vmatpush1.bf16.xpose.msra.mxu0 0
        %1715 = vmatprep.subr.bf16.mxu0 0
        %1716 = vmatpush1.bf16.xpose.msra.mxu0 0
        %1717 = vmatprep.subr.bf16.mxu0 0
        %1718 = vmatpush1.bf16.xpose.msra.mxu0 0
        %1719 = vmatprep.subr.bf16.mxu0 0
        %1720 = vmatpush1.bf16.xpose.msra.mxu0 0
        %1721 = vmatprep.subr.bf16.mxu0 0
        %1722 = vmatpush1.bf16.xpose.msra.mxu0 0
        %1723 = vmatprep.subr.bf16.mxu0 0
        %1724 = vmatpush1.bf16.xpose.msra.mxu0 %v1707
        %1725 = vmatprep.subr.bf16.mxu0 0
        %1726 = vmatpush2.bf16.xpose.msra.mxu0 0
        %1727 = vmatprep.subr.bf16.mxu0 0
        %1728 = vmatpush2.bf16.xpose.msra.mxu0 0
        %1729 = vmatprep.subr.bf16.mxu0 0
        %1730 = vmatpush2.bf16.xpose.msra.mxu0 0
        %1731 = vmatprep.subr.bf16.mxu0 0
        %1732 = vmatpush2.bf16.xpose.msra.mxu0 0
        %1733 = vmatprep.subr.bf16.mxu0 0
        %1734 = vmatpush2.bf16.xpose.msra.mxu0 0
        %1735 = vmatprep.subr.bf16.mxu0 0
        %1736 = vmatpush2.bf16.xpose.msra.mxu0 0
        %1737 = vmatprep.subr.bf16.mxu0 0
        %1738 = vmatpush2.bf16.xpose.msra.mxu0 0
        %1739 = vmatprep.subr.bf16.mxu0 0
        %1740 = vmatpush2.bf16.xpose.msra.mxu0 0
        %1741 = vmatprep.mubr.bf16.mxu0 0
        %1742 = vmatmul.mubr.bf16.gmra.mxu0 %v1704
        %v1743 = vpop.f32.mrf.mxu0
        %v1744 = vadd.f32 0.0, %v1743
        %v1745 = vpop.f32.mrf.mxu0
        %v1746 = vpop.f32.mrf.mxu0
        %v1747 = vadd.f32 0.0, %v1746
        %v1748 = vpop.f32.mrf.mxu0
        %1749 = vdwg.mxu0
        %v1752 = vunpack.c.l.b16 %v1580
        %v1753 = vunpack.c.l.b16 %v1581
        %v1754 = vpack.c.b16 %v1753, %v1752
        %1755 = vrot.lane.b32.xlu0 %v1754, 112
        %v1756 = vpop.permute.xlu0 %1755
        %1757 = vrot.lane.b32.xlu0 %v1754, 80
        %v1758 = vpop.permute.xlu0 %1757
        %v1760 = vsel %vm440, %v1756, 0
        %v1763 = vsel %vm440, %v1758, 0
        %1765 = vmatprep.subr.bf16.mxu0 0
        %1766 = vmatpush1.bf16.xpose.msra.mxu0 0
        %1767 = vmatprep.subr.bf16.mxu0 0
        %1768 = vmatpush1.bf16.xpose.msra.mxu0 0
        %1769 = vmatprep.subr.bf16.mxu0 0
        %1770 = vmatpush1.bf16.xpose.msra.mxu0 0
        %1771 = vmatprep.subr.bf16.mxu0 0
        %1772 = vmatpush1.bf16.xpose.msra.mxu0 0
        %1773 = vmatprep.subr.bf16.mxu0 0
        %1774 = vmatpush1.bf16.xpose.msra.mxu0 0
        %1775 = vmatprep.subr.bf16.mxu0 0
        %1776 = vmatpush1.bf16.xpose.msra.mxu0 0
        %1777 = vmatprep.subr.bf16.mxu0 0
        %1778 = vmatpush1.bf16.xpose.msra.mxu0 0
        %1779 = vmatprep.subr.bf16.mxu0 0
        %1780 = vmatpush1.bf16.xpose.msra.mxu0 %v1763
        %1781 = vmatprep.subr.bf16.mxu0 0
        %1782 = vmatpush2.bf16.xpose.msra.mxu0 0
        %1783 = vmatprep.subr.bf16.mxu0 0
        %1784 = vmatpush2.bf16.xpose.msra.mxu0 0
        %1785 = vmatprep.subr.bf16.mxu0 0
        %1786 = vmatpush2.bf16.xpose.msra.mxu0 0
        %1787 = vmatprep.subr.bf16.mxu0 0
        %1788 = vmatpush2.bf16.xpose.msra.mxu0 0
        %1789 = vmatprep.subr.bf16.mxu0 0
        %1790 = vmatpush2.bf16.xpose.msra.mxu0 0
        %1791 = vmatprep.subr.bf16.mxu0 0
        %1792 = vmatpush2.bf16.xpose.msra.mxu0 0
        %1793 = vmatprep.subr.bf16.mxu0 0
        %1794 = vmatpush2.bf16.xpose.msra.mxu0 0
        %1795 = vmatprep.subr.bf16.mxu0 0
        %1796 = vmatpush2.bf16.xpose.msra.mxu0 0
        %1797 = vmatprep.mubr.bf16.mxu0 0
        %1798 = vmatmul.mubr.bf16.gmra.mxu0 %v1760
        %v1799 = vpop.f32.mrf.mxu0
        %v1800 = vadd.f32 0.0, %v1799
        %v1801 = vpop.f32.mrf.mxu0
        %v1802 = vpop.f32.mrf.mxu0
        %v1803 = vadd.f32 0.0, %v1802
        %v1804 = vpop.f32.mrf.mxu0
        %1805 = vdwg.mxu0
        %s1806 = scalar_lea.vmem [#allocation4], 32
        %v1807 = vld [vmem:[%s1806] sm:$0xff]
        %v1808 = vld [vmem:[%s1806 + $0x8] sm:$0xff]
        %v1809 = vld [vmem:[%s1806 + $0x40] sm:$0xff]
        %v1810 = vld [vmem:[%s1806 + $0x48] sm:$0xff]
        %v1811 = vld [vmem:[%s1806 + $0x80] sm:$0xff]
        %v1812 = vld [vmem:[%s1806 + $0x88] sm:$0xff]
        %v1813 = vld [vmem:[%s1806 + $0xc0] sm:$0xff]
        %v1814 = vld [vmem:[%s1806 + $0xc8] sm:$0xff]
        %v1815 = vadd.f32 %v1632, %v1807
        %v1816 = vadd.f32 %v1635, %v1808
        %v1817 = vadd.f32 %v1688, %v1809
        %v1818 = vadd.f32 %v1691, %v1810
        %v1819 = vadd.f32 %v1744, %v1811
        %v1820 = vadd.f32 %v1747, %v1812
        %v1821 = vadd.f32 %v1800, %v1813
        %v1822 = vadd.f32 %v1803, %v1814
        %v1823 = vsel %vm666, %v1815, -inf
        %1824 = vmax.xlane.f32.xlu0 %v1823
        %v1825 = vpop.xlane.xlu0 %1824
        %v1826 = vsel %vm666, %v1816, -inf
        %1827 = vmax.xlane.f32.xlu0 %v1826
        %v1828 = vpop.xlane.xlu0 %1827
        %v1829 = vsel %vm666, %v1817, -inf
        %1830 = vmax.xlane.f32.xlu0 %v1829
        %v1831 = vpop.xlane.xlu0 %1830
        %v1832 = vsel %vm666, %v1818, -inf
        %1833 = vmax.xlane.f32.xlu0 %v1832
        %v1834 = vpop.xlane.xlu0 %1833
        %v1835 = vsel %vm666, %v1819, -inf
        %1836 = vmax.xlane.f32.xlu0 %v1835
        %v1837 = vpop.xlane.xlu0 %1836
        %v1838 = vsel %vm666, %v1820, -inf
        %1839 = vmax.xlane.f32.xlu0 %v1838
        %v1840 = vpop.xlane.xlu0 %1839
        %v1841 = vsel %vm666, %v1821, -inf
        %1842 = vmax.xlane.f32.xlu0 %v1841
        %v1843 = vpop.xlane.xlu0 %1842
        %v1844 = vsel %vm666, %v1822, -inf
        %1845 = vmax.xlane.f32.xlu0 %v1844
        %v1846 = vpop.xlane.xlu0 %1845
        %v1847 = vsub.f32 %v1815, %v1825
        %v1848 = vsub.f32 %v1816, %v1828
        %v1849 = vsub.f32 %v1817, %v1831
        %v1850 = vsub.f32 %v1818, %v1834
        %v1851 = vsub.f32 %v1819, %v1837
        %v1852 = vsub.f32 %v1820, %v1840
        %v1853 = vsub.f32 %v1821, %v1843
        %v1854 = vsub.f32 %v1822, %v1846
        %v1855 = vmul.f32 %v1847, 1.442695
        %v1856 = vpow.pop %v1855
        %v1857 = vmul.f32 %v1848, 1.442695
        %v1858 = vpow.pop %v1857
        %v1859 = vmul.f32 %v1849, 1.442695
        %v1860 = vpow.pop %v1859
        %v1861 = vmul.f32 %v1850, 1.442695
        %v1862 = vpow.pop %v1861
        %v1863 = vmul.f32 %v1851, 1.442695
        %v1864 = vpow.pop %v1863
        %v1865 = vmul.f32 %v1852, 1.442695
        %v1866 = vpow.pop %v1865
        %v1867 = vmul.f32 %v1853, 1.442695
        %v1868 = vpow.pop %v1867
        %v1869 = vmul.f32 %v1854, 1.442695
        %v1870 = vpow.pop %v1869
        %v1871 = vsel %vm666, %v1856, 0.0
        %1872 = vadd.xlane.f32.xlu0 %v1871
        %v1873 = vpop.xlane.xlu0 %1872
        %v1874 = vsel %vm666, %v1858, 0.0
        %1875 = vadd.xlane.f32.xlu0 %v1874
        %v1876 = vpop.xlane.xlu0 %1875
        %v1877 = vsel %vm666, %v1860, 0.0
        %1878 = vadd.xlane.f32.xlu0 %v1877
        %v1879 = vpop.xlane.xlu0 %1878
        %v1880 = vsel %vm666, %v1862, 0.0
        %1881 = vadd.xlane.f32.xlu0 %v1880
        %v1882 = vpop.xlane.xlu0 %1881
        %v1883 = vsel %vm666, %v1864, 0.0
        %1884 = vadd.xlane.f32.xlu0 %v1883
        %v1885 = vpop.xlane.xlu0 %1884
        %v1886 = vsel %vm666, %v1866, 0.0
        %1887 = vadd.xlane.f32.xlu0 %v1886
        %v1888 = vpop.xlane.xlu0 %1887
        %v1889 = vsel %vm666, %v1868, 0.0
        %1890 = vadd.xlane.f32.xlu0 %v1889
        %v1891 = vpop.xlane.xlu0 %1890
        %v1892 = vsel %vm666, %v1870, 0.0
        %1893 = vadd.xlane.f32.xlu0 %v1892
        %v1894 = vpop.xlane.xlu0 %1893
        %v1895 = vrcp.pop %v1873
        %v1896 = vrcp.pop %v1876
        %v1897 = vrcp.pop %v1879
        %v1898 = vrcp.pop %v1882
        %v1899 = vrcp.pop %v1885
        %v1900 = vrcp.pop %v1888
        %v1901 = vrcp.pop %v1891
        %v1902 = vrcp.pop %v1894
        %v1903 = vmul.f32 %v1856, %v1895
        %v1904 = vmul.f32 %v1858, %v1896
        %v1905 = vmul.f32 %v1860, %v1897
        %v1906 = vmul.f32 %v1862, %v1898
        %v1907 = vmul.f32 %v1864, %v1899
        %v1908 = vmul.f32 %v1866, %v1900
        %v1909 = vmul.f32 %v1868, %v1901
        %v1910 = vmul.f32 %v1870, %v1902
        %v1911 = vpack.c.bf16 %v1904, %v1903
        %v1912 = vpack.c.bf16 %v1906, %v1905
        %v1913 = vpack.c.bf16 %v1908, %v1907
        %v1914 = vpack.c.bf16 %v1910, %v1909
        %1915 = vrot.lane.b32.xlu0 %v1586, 48
        %v1916 = vpop.permute.xlu0 %1915
        %v1919 = vsel %vm666, %v1911, 0
        %1921 = vmatprep.subr.bf16.mxu0 0
        %1922 = vmatpush1.bf16.msra.mxu0 0
        %1923 = vmatprep.subr.bf16.mxu0 0
        %1924 = vmatpush1.bf16.msra.mxu0 0
        %1925 = vmatprep.subr.bf16.mxu0 0
        %1926 = vmatpush1.bf16.msra.mxu0 0
        %1927 = vmatprep.subr.bf16.mxu0 0
        %1928 = vmatpush1.bf16.msra.mxu0 0
        %1929 = vmatprep.subr.bf16.mxu0 0
        %1930 = vmatpush1.bf16.msra.mxu0 0
        %1931 = vmatprep.subr.bf16.mxu0 0
        %1932 = vmatpush1.bf16.msra.mxu0 0
        %1933 = vmatprep.subr.bf16.mxu0 0
        %1934 = vmatpush1.bf16.msra.mxu0 0
        %1935 = vmatprep.subr.bf16.mxu0 0
        %1936 = vmatpush1.bf16.msra.mxu0 %v1916
        %1937 = vmatprep.subr.bf16.mxu0 0
        %1938 = vmatpush2.bf16.msra.mxu0 0
        %1939 = vmatprep.subr.bf16.mxu0 0
        %1940 = vmatpush2.bf16.msra.mxu0 0
        %1941 = vmatprep.subr.bf16.mxu0 0
        %1942 = vmatpush2.bf16.msra.mxu0 0
        %1943 = vmatprep.subr.bf16.mxu0 0
        %1944 = vmatpush2.bf16.msra.mxu0 0
        %1945 = vmatprep.subr.bf16.mxu0 0
        %1946 = vmatpush2.bf16.msra.mxu0 0
        %1947 = vmatprep.subr.bf16.mxu0 0
        %1948 = vmatpush2.bf16.msra.mxu0 0
        %1949 = vmatprep.subr.bf16.mxu0 0
        %1950 = vmatpush2.bf16.msra.mxu0 0
        %1951 = vmatprep.subr.bf16.mxu0 0
        %1952 = vmatpush2.bf16.msra.mxu0 0
        %1953 = vmatprep.mubr.bf16.mxu0 0
        %1954 = vmatmul.mubr.bf16.gmra.mxu0 %v1919
        %v1955 = vpop.f32.mrf.mxu0
        %v1956 = vadd.f32 0.0, %v1955
        %v1957 = vpop.f32.mrf.mxu0
        %v1958 = vpop.f32.mrf.mxu0
        %v1959 = vadd.f32 0.0, %v1958
        %v1960 = vpop.f32.mrf.mxu0
        %1961 = vdwg.mxu0
        %1962 = vrot.lane.b32.xlu0 %v1642, 48
        %v1963 = vpop.permute.xlu0 %1962
        %v1966 = vsel %vm666, %v1912, 0
        %1968 = vmatprep.subr.bf16.mxu0 0
        %1969 = vmatpush1.bf16.msra.mxu0 0
        %1970 = vmatprep.subr.bf16.mxu0 0
        %1971 = vmatpush1.bf16.msra.mxu0 0
        %1972 = vmatprep.subr.bf16.mxu0 0
        %1973 = vmatpush1.bf16.msra.mxu0 0
        %1974 = vmatprep.subr.bf16.mxu0 0
        %1975 = vmatpush1.bf16.msra.mxu0 0
        %1976 = vmatprep.subr.bf16.mxu0 0
        %1977 = vmatpush1.bf16.msra.mxu0 0
        %1978 = vmatprep.subr.bf16.mxu0 0
        %1979 = vmatpush1.bf16.msra.mxu0 0
        %1980 = vmatprep.subr.bf16.mxu0 0
        %1981 = vmatpush1.bf16.msra.mxu0 0
        %1982 = vmatprep.subr.bf16.mxu0 0
        %1983 = vmatpush1.bf16.msra.mxu0 %v1963
        %1984 = vmatprep.subr.bf16.mxu0 0
        %1985 = vmatpush2.bf16.msra.mxu0 0
        %1986 = vmatprep.subr.bf16.mxu0 0
        %1987 = vmatpush2.bf16.msra.mxu0 0
        %1988 = vmatprep.subr.bf16.mxu0 0
        %1989 = vmatpush2.bf16.msra.mxu0 0
        %1990 = vmatprep.subr.bf16.mxu0 0
        %1991 = vmatpush2.bf16.msra.mxu0 0
        %1992 = vmatprep.subr.bf16.mxu0 0
        %1993 = vmatpush2.bf16.msra.mxu0 0
        %1994 = vmatprep.subr.bf16.mxu0 0
        %1995 = vmatpush2.bf16.msra.mxu0 0
        %1996 = vmatprep.subr.bf16.mxu0 0
        %1997 = vmatpush2.bf16.msra.mxu0 0
        %1998 = vmatprep.subr.bf16.mxu0 0
        %1999 = vmatpush2.bf16.msra.mxu0 0
        %2000 = vmatprep.mubr.bf16.mxu0 0
        %2001 = vmatmul.mubr.bf16.gmra.mxu0 %v1966
        %v2002 = vpop.f32.mrf.mxu0
        %v2003 = vadd.f32 0.0, %v2002
        %v2004 = vpop.f32.mrf.mxu0
        %v2005 = vpop.f32.mrf.mxu0
        %v2006 = vadd.f32 0.0, %v2005
        %v2007 = vpop.f32.mrf.mxu0
        %2008 = vdwg.mxu0
        %2009 = vrot.lane.b32.xlu0 %v1698, 48
        %v2010 = vpop.permute.xlu0 %2009
        %v2013 = vsel %vm666, %v1913, 0
        %2015 = vmatprep.subr.bf16.mxu0 0
        %2016 = vmatpush1.bf16.msra.mxu0 0
        %2017 = vmatprep.subr.bf16.mxu0 0
        %2018 = vmatpush1.bf16.msra.mxu0 0
        %2019 = vmatprep.subr.bf16.mxu0 0
        %2020 = vmatpush1.bf16.msra.mxu0 0
        %2021 = vmatprep.subr.bf16.mxu0 0
        %2022 = vmatpush1.bf16.msra.mxu0 0
        %2023 = vmatprep.subr.bf16.mxu0 0
        %2024 = vmatpush1.bf16.msra.mxu0 0
        %2025 = vmatprep.subr.bf16.mxu0 0
        %2026 = vmatpush1.bf16.msra.mxu0 0
        %2027 = vmatprep.subr.bf16.mxu0 0
        %2028 = vmatpush1.bf16.msra.mxu0 0
        %2029 = vmatprep.subr.bf16.mxu0 0
        %2030 = vmatpush1.bf16.msra.mxu0 %v2010
        %2031 = vmatprep.subr.bf16.mxu0 0
        %2032 = vmatpush2.bf16.msra.mxu0 0
        %2033 = vmatprep.subr.bf16.mxu0 0
        %2034 = vmatpush2.bf16.msra.mxu0 0
        %2035 = vmatprep.subr.bf16.mxu0 0
        %2036 = vmatpush2.bf16.msra.mxu0 0
        %2037 = vmatprep.subr.bf16.mxu0 0
        %2038 = vmatpush2.bf16.msra.mxu0 0
        %2039 = vmatprep.subr.bf16.mxu0 0
        %2040 = vmatpush2.bf16.msra.mxu0 0
        %2041 = vmatprep.subr.bf16.mxu0 0
        %2042 = vmatpush2.bf16.msra.mxu0 0
        %2043 = vmatprep.subr.bf16.mxu0 0
        %2044 = vmatpush2.bf16.msra.mxu0 0
        %2045 = vmatprep.subr.bf16.mxu0 0
        %2046 = vmatpush2.bf16.msra.mxu0 0
        %2047 = vmatprep.mubr.bf16.mxu0 0
        %2048 = vmatmul.mubr.bf16.gmra.mxu0 %v2013
        %v2049 = vpop.f32.mrf.mxu0
        %v2050 = vadd.f32 0.0, %v2049
        %v2051 = vpop.f32.mrf.mxu0
        %v2052 = vpop.f32.mrf.mxu0
        %v2053 = vadd.f32 0.0, %v2052
        %v2054 = vpop.f32.mrf.mxu0
        %2055 = vdwg.mxu0
        %2056 = vrot.lane.b32.xlu0 %v1754, 48
        %v2057 = vpop.permute.xlu0 %2056
        %v2060 = vsel %vm666, %v1914, 0
        %2062 = vmatprep.subr.bf16.mxu0 0
        %2063 = vmatpush1.bf16.msra.mxu0 0
        %2064 = vmatprep.subr.bf16.mxu0 0
        %2065 = vmatpush1.bf16.msra.mxu0 0
        %2066 = vmatprep.subr.bf16.mxu0 0
        %2067 = vmatpush1.bf16.msra.mxu0 0
        %2068 = vmatprep.subr.bf16.mxu0 0
        %2069 = vmatpush1.bf16.msra.mxu0 0
        %2070 = vmatprep.subr.bf16.mxu0 0
        %2071 = vmatpush1.bf16.msra.mxu0 0
        %2072 = vmatprep.subr.bf16.mxu0 0
        %2073 = vmatpush1.bf16.msra.mxu0 0
        %2074 = vmatprep.subr.bf16.mxu0 0
        %2075 = vmatpush1.bf16.msra.mxu0 0
        %2076 = vmatprep.subr.bf16.mxu0 0
        %2077 = vmatpush1.bf16.msra.mxu0 %v2057
        %2078 = vmatprep.subr.bf16.mxu0 0
        %2079 = vmatpush2.bf16.msra.mxu0 0
        %2080 = vmatprep.subr.bf16.mxu0 0
        %2081 = vmatpush2.bf16.msra.mxu0 0
        %2082 = vmatprep.subr.bf16.mxu0 0
        %2083 = vmatpush2.bf16.msra.mxu0 0
        %2084 = vmatprep.subr.bf16.mxu0 0
        %2085 = vmatpush2.bf16.msra.mxu0 0
        %2086 = vmatprep.subr.bf16.mxu0 0
        %2087 = vmatpush2.bf16.msra.mxu0 0
        %2088 = vmatprep.subr.bf16.mxu0 0
        %2089 = vmatpush2.bf16.msra.mxu0 0
        %2090 = vmatprep.subr.bf16.mxu0 0
        %2091 = vmatpush2.bf16.msra.mxu0 0
        %2092 = vmatprep.subr.bf16.mxu0 0
        %2093 = vmatpush2.bf16.msra.mxu0 0
        %2094 = vmatprep.mubr.bf16.mxu0 0
        %2095 = vmatmul.mubr.bf16.gmra.mxu0 %v2060
        %v2096 = vpop.f32.mrf.mxu0
        %v2097 = vadd.f32 0.0, %v2096
        %v2098 = vpop.f32.mrf.mxu0
        %v2099 = vpop.f32.mrf.mxu0
        %v2100 = vadd.f32 0.0, %v2099
        %v2101 = vpop.f32.mrf.mxu0
        %2102 = vdwg.mxu0
        %v2103 = vpack.c.bf16 %v1959, %v1956
        %v2104 = vpack.c.bf16 %v2006, %v2003
        %v2105 = vpack.c.bf16 %v2053, %v2050
        %v2106 = vpack.c.bf16 %v2100, %v2097
        %v2111 = vunpack.c.l.b16 %v2103
        %v2112 = vunpack.c.h.b16 %v2103
        %v2113 = vunpack.c.l.b16 %v2104
        %v2114 = vunpack.c.h.b16 %v2104
        %v2115 = vunpack.c.l.b16 %v2105
        %v2116 = vunpack.c.h.b16 %v2105
        %v2117 = vunpack.c.l.b16 %v2106
        %v2118 = vunpack.c.h.b16 %v2106
        %v2119 = vpack.c.b16 %v2111, %v2111
        %v2120 = vpack.c.b16 %v2112, %v2112
        %v2121 = vpack.c.b16 %v2113, %v2113
        %v2122 = vpack.c.b16 %v2114, %v2114
        %v2123 = vpack.c.b16 %v2115, %v2115
        %v2124 = vpack.c.b16 %v2116, %v2116
        %v2125 = vpack.c.b16 %v2117, %v2117
        %v2126 = vpack.c.b16 %v2118, %v2118
        %2127 = vrot.lane.b32.xlu0 %v2119, 16
        %v2128 = vpop.permute.xlu0 %2127
        %2129 = vrot.lane.b32.xlu0 %v2120, 16
        %v2130 = vpop.permute.xlu0 %2129
        %2131 = vrot.lane.b32.xlu0 %v2121, 16
        %v2132 = vpop.permute.xlu0 %2131
        %2133 = vrot.lane.b32.xlu0 %v2122, 16
        %v2134 = vpop.permute.xlu0 %2133
        %2135 = vrot.lane.b32.xlu0 %v2123, 16
        %v2136 = vpop.permute.xlu0 %2135
        %2137 = vrot.lane.b32.xlu0 %v2124, 16
        %v2138 = vpop.permute.xlu0 %2137
        %2139 = vrot.lane.b32.xlu0 %v2125, 16
        %v2140 = vpop.permute.xlu0 %2139
        %2141 = vrot.lane.b32.xlu0 %v2126, 16
        %v2142 = vpop.permute.xlu0 %2141
        %vm2151 = vcmask 191616
        %2152 = vst.msk [vmem:[#allocation3] sm:$0xf] %vm2151, %v2128
        %2153 = vst.msk [vmem:[#allocation3 + $0x4] sm:$0xf] %vm2151, %v2130
        %2154 = vst.msk [vmem:[#allocation3 + $0x8] sm:$0xf] %vm2151, %v2132
        %2155 = vst.msk [vmem:[#allocation3 + $0xc] sm:$0xf] %vm2151, %v2134
        %2156 = vst.msk [vmem:[#allocation3 + $0x10] sm:$0xf] %vm2151, %v2136
        %2157 = vst.msk [vmem:[#allocation3 + $0x14] sm:$0xf] %vm2151, %v2138
        %2158 = vst.msk [vmem:[#allocation3 + $0x18] sm:$0xf] %vm2151, %v2140
        %2159 = vst.msk [vmem:[#allocation3 + $0x1c] sm:$0xf] %vm2151, %v2142
        %v2160 = vld [vmem:[#allocation2] sm:$0xf]
        %v2161 = vld [vmem:[#allocation2 + $0x4] sm:$0xf]
        %v2162 = vld [vmem:[#allocation2 + $0x8] sm:$0xf]
        %v2163 = vld [vmem:[#allocation2 + $0xc] sm:$0xf]
        %v2164 = vld [vmem:[#allocation2 + $0x10] sm:$0xf]
        %v2165 = vld [vmem:[#allocation2 + $0x14] sm:$0xf]
        %v2166 = vld [vmem:[#allocation2 + $0x18] sm:$0xf]
        %v2167 = vld [vmem:[#allocation2 + $0x1c] sm:$0xf]
        %v2170 = vunpack.c.l.b16 %v2160
        %v2171 = vunpack.c.l.b16 %v2161
        %v2172 = vpack.c.b16 %v2171, %v2170
        %2173 = vrot.lane.b32.xlu0 %v2172, 104
        %v2174 = vpop.permute.xlu0 %2173
        %2175 = vrot.lane.b32.xlu0 %v2172, 72
        %v2176 = vpop.permute.xlu0 %2175
        %v2178 = vsel %vm440, %v2174, 0
        %v2181 = vsel %vm440, %v2176, 0
        %2183 = vmatprep.subr.bf16.mxu0 0
        %2184 = vmatpush1.bf16.xpose.msra.mxu0 0
        %2185 = vmatprep.subr.bf16.mxu0 0
        %2186 = vmatpush1.bf16.xpose.msra.mxu0 0
        %2187 = vmatprep.subr.bf16.mxu0 0
        %2188 = vmatpush1.bf16.xpose.msra.mxu0 0
        %2189 = vmatprep.subr.bf16.mxu0 0
        %2190 = vmatpush1.bf16.xpose.msra.mxu0 0
        %2191 = vmatprep.subr.bf16.mxu0 0
        %2192 = vmatpush1.bf16.xpose.msra.mxu0 0
        %2193 = vmatprep.subr.bf16.mxu0 0
        %2194 = vmatpush1.bf16.xpose.msra.mxu0 0
        %2195 = vmatprep.subr.bf16.mxu0 0
        %2196 = vmatpush1.bf16.xpose.msra.mxu0 0
        %2197 = vmatprep.subr.bf16.mxu0 0
        %2198 = vmatpush1.bf16.xpose.msra.mxu0 %v2181
        %2199 = vmatprep.subr.bf16.mxu0 0
        %2200 = vmatpush2.bf16.xpose.msra.mxu0 0
        %2201 = vmatprep.subr.bf16.mxu0 0
        %2202 = vmatpush2.bf16.xpose.msra.mxu0 0
        %2203 = vmatprep.subr.bf16.mxu0 0
        %2204 = vmatpush2.bf16.xpose.msra.mxu0 0
        %2205 = vmatprep.subr.bf16.mxu0 0
        %2206 = vmatpush2.bf16.xpose.msra.mxu0 0
        %2207 = vmatprep.subr.bf16.mxu0 0
        %2208 = vmatpush2.bf16.xpose.msra.mxu0 0
        %2209 = vmatprep.subr.bf16.mxu0 0
        %2210 = vmatpush2.bf16.xpose.msra.mxu0 0
        %2211 = vmatprep.subr.bf16.mxu0 0
        %2212 = vmatpush2.bf16.xpose.msra.mxu0 0
        %2213 = vmatprep.subr.bf16.mxu0 0
        %2214 = vmatpush2.bf16.xpose.msra.mxu0 0
        %2215 = vmatprep.mubr.bf16.mxu0 0
        %2216 = vmatmul.mubr.bf16.gmra.mxu0 %v2178
        %v2217 = vpop.f32.mrf.mxu0
        %v2218 = vadd.f32 0.0, %v2217
        %v2219 = vpop.f32.mrf.mxu0
        %v2220 = vpop.f32.mrf.mxu0
        %v2221 = vadd.f32 0.0, %v2220
        %v2222 = vpop.f32.mrf.mxu0
        %2223 = vdwg.mxu0
        %v2226 = vunpack.c.l.b16 %v2162
        %v2227 = vunpack.c.l.b16 %v2163
        %v2228 = vpack.c.b16 %v2227, %v2226
        %2229 = vrot.lane.b32.xlu0 %v2228, 104
        %v2230 = vpop.permute.xlu0 %2229
        %2231 = vrot.lane.b32.xlu0 %v2228, 72
        %v2232 = vpop.permute.xlu0 %2231
        %v2234 = vsel %vm440, %v2230, 0
        %v2237 = vsel %vm440, %v2232, 0
        %2239 = vmatprep.subr.bf16.mxu0 0
        %2240 = vmatpush1.bf16.xpose.msra.mxu0 0
        %2241 = vmatprep.subr.bf16.mxu0 0
        %2242 = vmatpush1.bf16.xpose.msra.mxu0 0
        %2243 = vmatprep.subr.bf16.mxu0 0
        %2244 = vmatpush1.bf16.xpose.msra.mxu0 0
        %2245 = vmatprep.subr.bf16.mxu0 0
        %2246 = vmatpush1.bf16.xpose.msra.mxu0 0
        %2247 = vmatprep.subr.bf16.mxu0 0
        %2248 = vmatpush1.bf16.xpose.msra.mxu0 0
        %2249 = vmatprep.subr.bf16.mxu0 0
        %2250 = vmatpush1.bf16.xpose.msra.mxu0 0
        %2251 = vmatprep.subr.bf16.mxu0 0
        %2252 = vmatpush1.bf16.xpose.msra.mxu0 0
        %2253 = vmatprep.subr.bf16.mxu0 0
        %2254 = vmatpush1.bf16.xpose.msra.mxu0 %v2237
        %2255 = vmatprep.subr.bf16.mxu0 0
        %2256 = vmatpush2.bf16.xpose.msra.mxu0 0
        %2257 = vmatprep.subr.bf16.mxu0 0
        %2258 = vmatpush2.bf16.xpose.msra.mxu0 0
        %2259 = vmatprep.subr.bf16.mxu0 0
        %2260 = vmatpush2.bf16.xpose.msra.mxu0 0
        %2261 = vmatprep.subr.bf16.mxu0 0
        %2262 = vmatpush2.bf16.xpose.msra.mxu0 0
        %2263 = vmatprep.subr.bf16.mxu0 0
        %2264 = vmatpush2.bf16.xpose.msra.mxu0 0
        %2265 = vmatprep.subr.bf16.mxu0 0
        %2266 = vmatpush2.bf16.xpose.msra.mxu0 0
        %2267 = vmatprep.subr.bf16.mxu0 0
        %2268 = vmatpush2.bf16.xpose.msra.mxu0 0
        %2269 = vmatprep.subr.bf16.mxu0 0
        %2270 = vmatpush2.bf16.xpose.msra.mxu0 0
        %2271 = vmatprep.mubr.bf16.mxu0 0
        %2272 = vmatmul.mubr.bf16.gmra.mxu0 %v2234
        %v2273 = vpop.f32.mrf.mxu0
        %v2274 = vadd.f32 0.0, %v2273
        %v2275 = vpop.f32.mrf.mxu0
        %v2276 = vpop.f32.mrf.mxu0
        %v2277 = vadd.f32 0.0, %v2276
        %v2278 = vpop.f32.mrf.mxu0
        %2279 = vdwg.mxu0
        %v2282 = vunpack.c.l.b16 %v2164
        %v2283 = vunpack.c.l.b16 %v2165
        %v2284 = vpack.c.b16 %v2283, %v2282
        %2285 = vrot.lane.b32.xlu0 %v2284, 104
        %v2286 = vpop.permute.xlu0 %2285
        %2287 = vrot.lane.b32.xlu0 %v2284, 72
        %v2288 = vpop.permute.xlu0 %2287
        %v2290 = vsel %vm440, %v2286, 0
        %v2293 = vsel %vm440, %v2288, 0
        %2295 = vmatprep.subr.bf16.mxu0 0
        %2296 = vmatpush1.bf16.xpose.msra.mxu0 0
        %2297 = vmatprep.subr.bf16.mxu0 0
        %2298 = vmatpush1.bf16.xpose.msra.mxu0 0
        %2299 = vmatprep.subr.bf16.mxu0 0
        %2300 = vmatpush1.bf16.xpose.msra.mxu0 0
        %2301 = vmatprep.subr.bf16.mxu0 0
        %2302 = vmatpush1.bf16.xpose.msra.mxu0 0
        %2303 = vmatprep.subr.bf16.mxu0 0
        %2304 = vmatpush1.bf16.xpose.msra.mxu0 0
        %2305 = vmatprep.subr.bf16.mxu0 0
        %2306 = vmatpush1.bf16.xpose.msra.mxu0 0
        %2307 = vmatprep.subr.bf16.mxu0 0
        %2308 = vmatpush1.bf16.xpose.msra.mxu0 0
        %2309 = vmatprep.subr.bf16.mxu0 0
        %2310 = vmatpush1.bf16.xpose.msra.mxu0 %v2293
        %2311 = vmatprep.subr.bf16.mxu0 0
        %2312 = vmatpush2.bf16.xpose.msra.mxu0 0
        %2313 = vmatprep.subr.bf16.mxu0 0
        %2314 = vmatpush2.bf16.xpose.msra.mxu0 0
        %2315 = vmatprep.subr.bf16.mxu0 0
        %2316 = vmatpush2.bf16.xpose.msra.mxu0 0
        %2317 = vmatprep.subr.bf16.mxu0 0
        %2318 = vmatpush2.bf16.xpose.msra.mxu0 0
        %2319 = vmatprep.subr.bf16.mxu0 0
        %2320 = vmatpush2.bf16.xpose.msra.mxu0 0
        %2321 = vmatprep.subr.bf16.mxu0 0
        %2322 = vmatpush2.bf16.xpose.msra.mxu0 0
        %2323 = vmatprep.subr.bf16.mxu0 0
        %2324 = vmatpush2.bf16.xpose.msra.mxu0 0
        %2325 = vmatprep.subr.bf16.mxu0 0
        %2326 = vmatpush2.bf16.xpose.msra.mxu0 0
        %2327 = vmatprep.mubr.bf16.mxu0 0
        %2328 = vmatmul.mubr.bf16.gmra.mxu0 %v2290
        %v2329 = vpop.f32.mrf.mxu0
        %v2330 = vadd.f32 0.0, %v2329
        %v2331 = vpop.f32.mrf.mxu0
        %v2332 = vpop.f32.mrf.mxu0
        %v2333 = vadd.f32 0.0, %v2332
        %v2334 = vpop.f32.mrf.mxu0
        %2335 = vdwg.mxu0
        %v2338 = vunpack.c.l.b16 %v2166
        %v2339 = vunpack.c.l.b16 %v2167
        %v2340 = vpack.c.b16 %v2339, %v2338
        %2341 = vrot.lane.b32.xlu0 %v2340, 104
        %v2342 = vpop.permute.xlu0 %2341
        %2343 = vrot.lane.b32.xlu0 %v2340, 72
        %v2344 = vpop.permute.xlu0 %2343
        %v2346 = vsel %vm440, %v2342, 0
        %v2349 = vsel %vm440, %v2344, 0
        %2351 = vmatprep.subr.bf16.mxu0 0
        %2352 = vmatpush1.bf16.xpose.msra.mxu0 0
        %2353 = vmatprep.subr.bf16.mxu0 0
        %2354 = vmatpush1.bf16.xpose.msra.mxu0 0
        %2355 = vmatprep.subr.bf16.mxu0 0
        %2356 = vmatpush1.bf16.xpose.msra.mxu0 0
        %2357 = vmatprep.subr.bf16.mxu0 0
        %2358 = vmatpush1.bf16.xpose.msra.mxu0 0
        %2359 = vmatprep.subr.bf16.mxu0 0
        %2360 = vmatpush1.bf16.xpose.msra.mxu0 0
        %2361 = vmatprep.subr.bf16.mxu0 0
        %2362 = vmatpush1.bf16.xpose.msra.mxu0 0
        %2363 = vmatprep.subr.bf16.mxu0 0
        %2364 = vmatpush1.bf16.xpose.msra.mxu0 0
        %2365 = vmatprep.subr.bf16.mxu0 0
        %2366 = vmatpush1.bf16.xpose.msra.mxu0 %v2349
        %2367 = vmatprep.subr.bf16.mxu0 0
        %2368 = vmatpush2.bf16.xpose.msra.mxu0 0
        %2369 = vmatprep.subr.bf16.mxu0 0
        %2370 = vmatpush2.bf16.xpose.msra.mxu0 0
        %2371 = vmatprep.subr.bf16.mxu0 0
        %2372 = vmatpush2.bf16.xpose.msra.mxu0 0
        %2373 = vmatprep.subr.bf16.mxu0 0
        %2374 = vmatpush2.bf16.xpose.msra.mxu0 0
        %2375 = vmatprep.subr.bf16.mxu0 0
        %2376 = vmatpush2.bf16.xpose.msra.mxu0 0
        %2377 = vmatprep.subr.bf16.mxu0 0
        %2378 = vmatpush2.bf16.xpose.msra.mxu0 0
        %2379 = vmatprep.subr.bf16.mxu0 0
        %2380 = vmatpush2.bf16.xpose.msra.mxu0 0
        %2381 = vmatprep.subr.bf16.mxu0 0
        %2382 = vmatpush2.bf16.xpose.msra.mxu0 0
        %2383 = vmatprep.mubr.bf16.mxu0 0
        %2384 = vmatmul.mubr.bf16.gmra.mxu0 %v2346
        %v2385 = vpop.f32.mrf.mxu0
        %v2386 = vadd.f32 0.0, %v2385
        %v2387 = vpop.f32.mrf.mxu0
        %v2388 = vpop.f32.mrf.mxu0
        %v2389 = vadd.f32 0.0, %v2388
        %v2390 = vpop.f32.mrf.mxu0
        %2391 = vdwg.mxu0
        %s2392 = scalar_lea.vmem [#allocation4], 48
        %v2393 = vld [vmem:[%s2392] sm:$0xff]
        %v2394 = vld [vmem:[%s2392 + $0x8] sm:$0xff]
        %v2395 = vld [vmem:[%s2392 + $0x40] sm:$0xff]
        %v2396 = vld [vmem:[%s2392 + $0x48] sm:$0xff]
        %v2397 = vld [vmem:[%s2392 + $0x80] sm:$0xff]
        %v2398 = vld [vmem:[%s2392 + $0x88] sm:$0xff]
        %v2399 = vld [vmem:[%s2392 + $0xc0] sm:$0xff]
        %v2400 = vld [vmem:[%s2392 + $0xc8] sm:$0xff]
        %v2401 = vadd.f32 %v2218, %v2393
        %v2402 = vadd.f32 %v2221, %v2394
        %v2403 = vadd.f32 %v2274, %v2395
        %v2404 = vadd.f32 %v2277, %v2396
        %v2405 = vadd.f32 %v2330, %v2397
        %v2406 = vadd.f32 %v2333, %v2398
        %v2407 = vadd.f32 %v2386, %v2399
        %v2408 = vadd.f32 %v2389, %v2400
        %v2409 = vsel %vm666, %v2401, -inf
        %2410 = vmax.xlane.f32.xlu0 %v2409
        %v2411 = vpop.xlane.xlu0 %2410
        %v2412 = vsel %vm666, %v2402, -inf
        %2413 = vmax.xlane.f32.xlu0 %v2412
        %v2414 = vpop.xlane.xlu0 %2413
        %v2415 = vsel %vm666, %v2403, -inf
        %2416 = vmax.xlane.f32.xlu0 %v2415
        %v2417 = vpop.xlane.xlu0 %2416
        %v2418 = vsel %vm666, %v2404, -inf
        %2419 = vmax.xlane.f32.xlu0 %v2418
        %v2420 = vpop.xlane.xlu0 %2419
        %v2421 = vsel %vm666, %v2405, -inf
        %2422 = vmax.xlane.f32.xlu0 %v2421
        %v2423 = vpop.xlane.xlu0 %2422
        %v2424 = vsel %vm666, %v2406, -inf
        %2425 = vmax.xlane.f32.xlu0 %v2424
        %v2426 = vpop.xlane.xlu0 %2425
        %v2427 = vsel %vm666, %v2407, -inf
        %2428 = vmax.xlane.f32.xlu0 %v2427
        %v2429 = vpop.xlane.xlu0 %2428
        %v2430 = vsel %vm666, %v2408, -inf
        %2431 = vmax.xlane.f32.xlu0 %v2430
        %v2432 = vpop.xlane.xlu0 %2431
        %v2433 = vsub.f32 %v2401, %v2411
        %v2434 = vsub.f32 %v2402, %v2414
        %v2435 = vsub.f32 %v2403, %v2417
        %v2436 = vsub.f32 %v2404, %v2420
        %v2437 = vsub.f32 %v2405, %v2423
        %v2438 = vsub.f32 %v2406, %v2426
        %v2439 = vsub.f32 %v2407, %v2429
        %v2440 = vsub.f32 %v2408, %v2432
        %v2441 = vmul.f32 %v2433, 1.442695
        %v2442 = vpow.pop %v2441
        %v2443 = vmul.f32 %v2434, 1.442695
        %v2444 = vpow.pop %v2443
        %v2445 = vmul.f32 %v2435, 1.442695
        %v2446 = vpow.pop %v2445
        %v2447 = vmul.f32 %v2436, 1.442695
        %v2448 = vpow.pop %v2447
        %v2449 = vmul.f32 %v2437, 1.442695
        %v2450 = vpow.pop %v2449
        %v2451 = vmul.f32 %v2438, 1.442695
        %v2452 = vpow.pop %v2451
        %v2453 = vmul.f32 %v2439, 1.442695
        %v2454 = vpow.pop %v2453
        %v2455 = vmul.f32 %v2440, 1.442695
        %v2456 = vpow.pop %v2455
        %v2457 = vsel %vm666, %v2442, 0.0
        %2458 = vadd.xlane.f32.xlu0 %v2457
        %v2459 = vpop.xlane.xlu0 %2458
        %v2460 = vsel %vm666, %v2444, 0.0
        %2461 = vadd.xlane.f32.xlu0 %v2460
        %v2462 = vpop.xlane.xlu0 %2461
        %v2463 = vsel %vm666, %v2446, 0.0
        %2464 = vadd.xlane.f32.xlu0 %v2463
        %v2465 = vpop.xlane.xlu0 %2464
        %v2466 = vsel %vm666, %v2448, 0.0
        %2467 = vadd.xlane.f32.xlu0 %v2466
        %v2468 = vpop.xlane.xlu0 %2467
        %v2469 = vsel %vm666, %v2450, 0.0
        %2470 = vadd.xlane.f32.xlu0 %v2469
        %v2471 = vpop.xlane.xlu0 %2470
        %v2472 = vsel %vm666, %v2452, 0.0
        %2473 = vadd.xlane.f32.xlu0 %v2472
        %v2474 = vpop.xlane.xlu0 %2473
        %v2475 = vsel %vm666, %v2454, 0.0
        %2476 = vadd.xlane.f32.xlu0 %v2475
        %v2477 = vpop.xlane.xlu0 %2476
        %v2478 = vsel %vm666, %v2456, 0.0
        %2479 = vadd.xlane.f32.xlu0 %v2478
        %v2480 = vpop.xlane.xlu0 %2479
        %v2481 = vrcp.pop %v2459
        %v2482 = vrcp.pop %v2462
        %v2483 = vrcp.pop %v2465
        %v2484 = vrcp.pop %v2468
        %v2485 = vrcp.pop %v2471
        %v2486 = vrcp.pop %v2474
        %v2487 = vrcp.pop %v2477
        %v2488 = vrcp.pop %v2480
        %v2489 = vmul.f32 %v2442, %v2481
        %v2490 = vmul.f32 %v2444, %v2482
        %v2491 = vmul.f32 %v2446, %v2483
        %v2492 = vmul.f32 %v2448, %v2484
        %v2493 = vmul.f32 %v2450, %v2485
        %v2494 = vmul.f32 %v2452, %v2486
        %v2495 = vmul.f32 %v2454, %v2487
        %v2496 = vmul.f32 %v2456, %v2488
        %v2497 = vpack.c.bf16 %v2490, %v2489
        %v2498 = vpack.c.bf16 %v2492, %v2491
        %v2499 = vpack.c.bf16 %v2494, %v2493
        %v2500 = vpack.c.bf16 %v2496, %v2495
        %2501 = vrot.lane.b32.xlu0 %v2172, 40
        %v2502 = vpop.permute.xlu0 %2501
        %v2505 = vsel %vm666, %v2497, 0
        %2507 = vmatprep.subr.bf16.mxu0 0
        %2508 = vmatpush1.bf16.msra.mxu0 0
        %2509 = vmatprep.subr.bf16.mxu0 0
        %2510 = vmatpush1.bf16.msra.mxu0 0
        %2511 = vmatprep.subr.bf16.mxu0 0
        %2512 = vmatpush1.bf16.msra.mxu0 0
        %2513 = vmatprep.subr.bf16.mxu0 0
        %2514 = vmatpush1.bf16.msra.mxu0 0
        %2515 = vmatprep.subr.bf16.mxu0 0
        %2516 = vmatpush1.bf16.msra.mxu0 0
        %2517 = vmatprep.subr.bf16.mxu0 0
        %2518 = vmatpush1.bf16.msra.mxu0 0
        %2519 = vmatprep.subr.bf16.mxu0 0
        %2520 = vmatpush1.bf16.msra.mxu0 0
        %2521 = vmatprep.subr.bf16.mxu0 0
        %2522 = vmatpush1.bf16.msra.mxu0 %v2502
        %2523 = vmatprep.subr.bf16.mxu0 0
        %2524 = vmatpush2.bf16.msra.mxu0 0
        %2525 = vmatprep.subr.bf16.mxu0 0
        %2526 = vmatpush2.bf16.msra.mxu0 0
        %2527 = vmatprep.subr.bf16.mxu0 0
        %2528 = vmatpush2.bf16.msra.mxu0 0
        %2529 = vmatprep.subr.bf16.mxu0 0
        %2530 = vmatpush2.bf16.msra.mxu0 0
        %2531 = vmatprep.subr.bf16.mxu0 0
        %2532 = vmatpush2.bf16.msra.mxu0 0
        %2533 = vmatprep.subr.bf16.mxu0 0
        %2534 = vmatpush2.bf16.msra.mxu0 0
        %2535 = vmatprep.subr.bf16.mxu0 0
        %2536 = vmatpush2.bf16.msra.mxu0 0
        %2537 = vmatprep.subr.bf16.mxu0 0
        %2538 = vmatpush2.bf16.msra.mxu0 0
        %2539 = vmatprep.mubr.bf16.mxu0 0
        %2540 = vmatmul.mubr.bf16.gmra.mxu0 %v2505
        %v2541 = vpop.f32.mrf.mxu0
        %v2542 = vadd.f32 0.0, %v2541
        %v2543 = vpop.f32.mrf.mxu0
        %v2544 = vpop.f32.mrf.mxu0
        %v2545 = vadd.f32 0.0, %v2544
        %v2546 = vpop.f32.mrf.mxu0
        %2547 = vdwg.mxu0
        %2548 = vrot.lane.b32.xlu0 %v2228, 40
        %v2549 = vpop.permute.xlu0 %2548
        %v2552 = vsel %vm666, %v2498, 0
        %2554 = vmatprep.subr.bf16.mxu0 0
        %2555 = vmatpush1.bf16.msra.mxu0 0
        %2556 = vmatprep.subr.bf16.mxu0 0
        %2557 = vmatpush1.bf16.msra.mxu0 0
        %2558 = vmatprep.subr.bf16.mxu0 0
        %2559 = vmatpush1.bf16.msra.mxu0 0
        %2560 = vmatprep.subr.bf16.mxu0 0
        %2561 = vmatpush1.bf16.msra.mxu0 0
        %2562 = vmatprep.subr.bf16.mxu0 0
        %2563 = vmatpush1.bf16.msra.mxu0 0
        %2564 = vmatprep.subr.bf16.mxu0 0
        %2565 = vmatpush1.bf16.msra.mxu0 0
        %2566 = vmatprep.subr.bf16.mxu0 0
        %2567 = vmatpush1.bf16.msra.mxu0 0
        %2568 = vmatprep.subr.bf16.mxu0 0
        %2569 = vmatpush1.bf16.msra.mxu0 %v2549
        %2570 = vmatprep.subr.bf16.mxu0 0
        %2571 = vmatpush2.bf16.msra.mxu0 0
        %2572 = vmatprep.subr.bf16.mxu0 0
        %2573 = vmatpush2.bf16.msra.mxu0 0
        %2574 = vmatprep.subr.bf16.mxu0 0
        %2575 = vmatpush2.bf16.msra.mxu0 0
        %2576 = vmatprep.subr.bf16.mxu0 0
        %2577 = vmatpush2.bf16.msra.mxu0 0
        %2578 = vmatprep.subr.bf16.mxu0 0
        %2579 = vmatpush2.bf16.msra.mxu0 0
        %2580 = vmatprep.subr.bf16.mxu0 0
        %2581 = vmatpush2.bf16.msra.mxu0 0
        %2582 = vmatprep.subr.bf16.mxu0 0
        %2583 = vmatpush2.bf16.msra.mxu0 0
        %2584 = vmatprep.subr.bf16.mxu0 0
        %2585 = vmatpush2.bf16.msra.mxu0 0
        %2586 = vmatprep.mubr.bf16.mxu0 0
        %2587 = vmatmul.mubr.bf16.gmra.mxu0 %v2552
        %v2588 = vpop.f32.mrf.mxu0
        %v2589 = vadd.f32 0.0, %v2588
        %v2590 = vpop.f32.mrf.mxu0
        %v2591 = vpop.f32.mrf.mxu0
        %v2592 = vadd.f32 0.0, %v2591
        %v2593 = vpop.f32.mrf.mxu0
        %2594 = vdwg.mxu0
        %2595 = vrot.lane.b32.xlu0 %v2284, 40
        %v2596 = vpop.permute.xlu0 %2595
        %v2599 = vsel %vm666, %v2499, 0
        %2601 = vmatprep.subr.bf16.mxu0 0
        %2602 = vmatpush1.bf16.msra.mxu0 0
        %2603 = vmatprep.subr.bf16.mxu0 0
        %2604 = vmatpush1.bf16.msra.mxu0 0
        %2605 = vmatprep.subr.bf16.mxu0 0
        %2606 = vmatpush1.bf16.msra.mxu0 0
        %2607 = vmatprep.subr.bf16.mxu0 0
        %2608 = vmatpush1.bf16.msra.mxu0 0
        %2609 = vmatprep.subr.bf16.mxu0 0
        %2610 = vmatpush1.bf16.msra.mxu0 0
        %2611 = vmatprep.subr.bf16.mxu0 0
        %2612 = vmatpush1.bf16.msra.mxu0 0
        %2613 = vmatprep.subr.bf16.mxu0 0
        %2614 = vmatpush1.bf16.msra.mxu0 0
        %2615 = vmatprep.subr.bf16.mxu0 0
        %2616 = vmatpush1.bf16.msra.mxu0 %v2596
        %2617 = vmatprep.subr.bf16.mxu0 0
        %2618 = vmatpush2.bf16.msra.mxu0 0
        %2619 = vmatprep.subr.bf16.mxu0 0
        %2620 = vmatpush2.bf16.msra.mxu0 0
        %2621 = vmatprep.subr.bf16.mxu0 0
        %2622 = vmatpush2.bf16.msra.mxu0 0
        %2623 = vmatprep.subr.bf16.mxu0 0
        %2624 = vmatpush2.bf16.msra.mxu0 0
        %2625 = vmatprep.subr.bf16.mxu0 0
        %2626 = vmatpush2.bf16.msra.mxu0 0
        %2627 = vmatprep.subr.bf16.mxu0 0
        %2628 = vmatpush2.bf16.msra.mxu0 0
        %2629 = vmatprep.subr.bf16.mxu0 0
        %2630 = vmatpush2.bf16.msra.mxu0 0
        %2631 = vmatprep.subr.bf16.mxu0 0
        %2632 = vmatpush2.bf16.msra.mxu0 0
        %2633 = vmatprep.mubr.bf16.mxu0 0
        %2634 = vmatmul.mubr.bf16.gmra.mxu0 %v2599
        %v2635 = vpop.f32.mrf.mxu0
        %v2636 = vadd.f32 0.0, %v2635
        %v2637 = vpop.f32.mrf.mxu0
        %v2638 = vpop.f32.mrf.mxu0
        %v2639 = vadd.f32 0.0, %v2638
        %v2640 = vpop.f32.mrf.mxu0
        %2641 = vdwg.mxu0
        %2642 = vrot.lane.b32.xlu0 %v2340, 40
        %v2643 = vpop.permute.xlu0 %2642
        %v2646 = vsel %vm666, %v2500, 0
        %2648 = vmatprep.subr.bf16.mxu0 0
        %2649 = vmatpush1.bf16.msra.mxu0 0
        %2650 = vmatprep.subr.bf16.mxu0 0
        %2651 = vmatpush1.bf16.msra.mxu0 0
        %2652 = vmatprep.subr.bf16.mxu0 0
        %2653 = vmatpush1.bf16.msra.mxu0 0
        %2654 = vmatprep.subr.bf16.mxu0 0
        %2655 = vmatpush1.bf16.msra.mxu0 0
        %2656 = vmatprep.subr.bf16.mxu0 0
        %2657 = vmatpush1.bf16.msra.mxu0 0
        %2658 = vmatprep.subr.bf16.mxu0 0
        %2659 = vmatpush1.bf16.msra.mxu0 0
        %2660 = vmatprep.subr.bf16.mxu0 0
        %2661 = vmatpush1.bf16.msra.mxu0 0
        %2662 = vmatprep.subr.bf16.mxu0 0
        %2663 = vmatpush1.bf16.msra.mxu0 %v2643
        %2664 = vmatprep.subr.bf16.mxu0 0
        %2665 = vmatpush2.bf16.msra.mxu0 0
        %2666 = vmatprep.subr.bf16.mxu0 0
        %2667 = vmatpush2.bf16.msra.mxu0 0
        %2668 = vmatprep.subr.bf16.mxu0 0
        %2669 = vmatpush2.bf16.msra.mxu0 0
        %2670 = vmatprep.subr.bf16.mxu0 0
        %2671 = vmatpush2.bf16.msra.mxu0 0
        %2672 = vmatprep.subr.bf16.mxu0 0
        %2673 = vmatpush2.bf16.msra.mxu0 0
        %2674 = vmatprep.subr.bf16.mxu0 0
        %2675 = vmatpush2.bf16.msra.mxu0 0
        %2676 = vmatprep.subr.bf16.mxu0 0
        %2677 = vmatpush2.bf16.msra.mxu0 0
        %2678 = vmatprep.subr.bf16.mxu0 0
        %2679 = vmatpush2.bf16.msra.mxu0 0
        %2680 = vmatprep.mubr.bf16.mxu0 0
        %2681 = vmatmul.mubr.bf16.gmra.mxu0 %v2646
        %v2682 = vpop.f32.mrf.mxu0
        %v2683 = vadd.f32 0.0, %v2682
        %v2684 = vpop.f32.mrf.mxu0
        %v2685 = vpop.f32.mrf.mxu0
        %v2686 = vadd.f32 0.0, %v2685
        %v2687 = vpop.f32.mrf.mxu0
        %2688 = vdwg.mxu0
        %v2689 = vpack.c.bf16 %v2545, %v2542
        %v2690 = vpack.c.bf16 %v2592, %v2589
        %v2691 = vpack.c.bf16 %v2639, %v2636
        %v2692 = vpack.c.bf16 %v2686, %v2683
        %v2697 = vunpack.c.l.b16 %v2689
        %v2698 = vunpack.c.h.b16 %v2689
        %v2699 = vunpack.c.l.b16 %v2690
        %v2700 = vunpack.c.h.b16 %v2690
        %v2701 = vunpack.c.l.b16 %v2691
        %v2702 = vunpack.c.h.b16 %v2691
        %v2703 = vunpack.c.l.b16 %v2692
        %v2704 = vunpack.c.h.b16 %v2692
        %v2705 = vpack.c.b16 %v2697, %v2697
        %v2706 = vpack.c.b16 %v2698, %v2698
        %v2707 = vpack.c.b16 %v2699, %v2699
        %v2708 = vpack.c.b16 %v2700, %v2700
        %v2709 = vpack.c.b16 %v2701, %v2701
        %v2710 = vpack.c.b16 %v2702, %v2702
        %v2711 = vpack.c.b16 %v2703, %v2703
        %v2712 = vpack.c.b16 %v2704, %v2704
        %2713 = vrot.lane.b32.xlu0 %v2705, 24
        %v2714 = vpop.permute.xlu0 %2713
        %2715 = vrot.lane.b32.xlu0 %v2706, 24
        %v2716 = vpop.permute.xlu0 %2715
        %2717 = vrot.lane.b32.xlu0 %v2707, 24
        %v2718 = vpop.permute.xlu0 %2717
        %2719 = vrot.lane.b32.xlu0 %v2708, 24
        %v2720 = vpop.permute.xlu0 %2719
        %2721 = vrot.lane.b32.xlu0 %v2709, 24
        %v2722 = vpop.permute.xlu0 %2721
        %2723 = vrot.lane.b32.xlu0 %v2710, 24
        %v2724 = vpop.permute.xlu0 %2723
        %2725 = vrot.lane.b32.xlu0 %v2711, 24
        %v2726 = vpop.permute.xlu0 %2725
        %2727 = vrot.lane.b32.xlu0 %v2712, 24
        %v2728 = vpop.permute.xlu0 %2727
        %vm2737 = vcmask 257216
        %2738 = vst.msk [vmem:[#allocation3] sm:$0xf] %vm2737, %v2714
        %2739 = vst.msk [vmem:[#allocation3 + $0x4] sm:$0xf] %vm2737, %v2716
        %2740 = vst.msk [vmem:[#allocation3 + $0x8] sm:$0xf] %vm2737, %v2718
        %2741 = vst.msk [vmem:[#allocation3 + $0xc] sm:$0xf] %vm2737, %v2720
        %2742 = vst.msk [vmem:[#allocation3 + $0x10] sm:$0xf] %vm2737, %v2722
        %2743 = vst.msk [vmem:[#allocation3 + $0x14] sm:$0xf] %vm2737, %v2724
        %2744 = vst.msk [vmem:[#allocation3 + $0x18] sm:$0xf] %vm2737, %v2726
        %2745 = vst.msk [vmem:[#allocation3 + $0x1c] sm:$0xf] %vm2737, %v2728
        %v2746 = vld [vmem:[#allocation3] sm:$0xf]
        %v2747 = vld [vmem:[#allocation3 + $0x4] sm:$0xf]
        %v2748 = vld [vmem:[#allocation3 + $0x8] sm:$0xf]
        %v2749 = vld [vmem:[#allocation3 + $0xc] sm:$0xf]
        %v2750 = vld [vmem:[#allocation3 + $0x10] sm:$0xf]
        %v2751 = vld [vmem:[#allocation3 + $0x14] sm:$0xf]
        %v2752 = vld [vmem:[#allocation3 + $0x18] sm:$0xf]
        %v2753 = vld [vmem:[#allocation3 + $0x1c] sm:$0xf]
        %v2754 = vld [vmem:[%s3] sm:$0xf]
        %v2755 = vld [vmem:[%s3 + $0x4] sm:$0xf]
        %v2756 = vld [vmem:[%s3 + $0x8] sm:$0xf]
        %v2757 = vld [vmem:[%s3 + $0xc] sm:$0xf]
        %v2758 = vld [vmem:[%s4] sm:$0x1]
        %v2760 = vlaneseq
        %v2761 = vshrl.u32 %v2760, 7
        %v2762 = vsub.s32 0, %v2761
        %v2763 = vrot.slane %v2758, %v2762
        %v2773 = vunpack.c.l.b16 %v2746
        %v2774 = vunpack.c.l.b16 %v2747
        %v2775 = vunpack.c.l.b16 %v2748
        %v2776 = vunpack.c.l.b16 %v2749
        %v2777 = vunpack.c.l.b16 %v2750
        %v2778 = vunpack.c.l.b16 %v2751
        %v2779 = vunpack.c.l.b16 %v2752
        %v2780 = vunpack.c.l.b16 %v2753
        %v2781 = vpack.c.b16 %v2774, %v2773
        %v2782 = vpack.c.b16 %v2776, %v2775
        %v2783 = vpack.c.b16 %v2778, %v2777
        %v2784 = vpack.c.b16 %v2780, %v2779
        %v2789 = vunpack.c.l.b16 %v2754
        %v2790 = vunpack.c.l.b16 %v2755
        %v2791 = vunpack.c.l.b16 %v2756
        %v2792 = vunpack.c.l.b16 %v2757
        %v2793 = vpack.c.b16 %v2790, %v2789
        %v2794 = vpack.c.b16 %v2792, %v2791
        %v2798 = vsel %vm306, %v2781, 0
        %v2801 = vsel %vm306, %v2782, 0
        %v2804 = vsel %vm306, %v2783, 0
        %v2807 = vsel %vm306, %v2784, 0
        %2809 = vmatprep.subr.bf16.mxu0 0
        %2810 = vmatpush1.bf16.msra.mxu0 0
        %2811 = vmatprep.subr.bf16.mxu0 0
        %2812 = vmatpush1.bf16.msra.mxu0 0
        %2813 = vmatprep.subr.bf16.mxu0 0
        %2814 = vmatpush1.bf16.msra.mxu0 0
        %2815 = vmatprep.subr.bf16.mxu0 0
        %2816 = vmatpush1.bf16.msra.mxu0 0
        %2817 = vmatprep.subr.bf16.mxu0 0
        %2818 = vmatpush1.bf16.msra.mxu0 0
        %2819 = vmatprep.subr.bf16.mxu0 0
        %2820 = vmatpush1.bf16.msra.mxu0 0
        %2821 = vmatprep.subr.bf16.mxu0 0
        %2822 = vmatpush1.bf16.msra.mxu0 %v2794
        %2823 = vmatprep.subr.bf16.mxu0 0
        %2824 = vmatpush1.bf16.msra.mxu0 %v2793
        %2825 = vmatprep.subr.bf16.mxu0 0
        %2826 = vmatpush2.bf16.msra.mxu0 0
        %2827 = vmatprep.subr.bf16.mxu0 0
        %2828 = vmatpush2.bf16.msra.mxu0 0
        %2829 = vmatprep.subr.bf16.mxu0 0
        %2830 = vmatpush2.bf16.msra.mxu0 0
        %2831 = vmatprep.subr.bf16.mxu0 0
        %2832 = vmatpush2.bf16.msra.mxu0 0
        %2833 = vmatprep.subr.bf16.mxu0 0
        %2834 = vmatpush2.bf16.msra.mxu0 0
        %2835 = vmatprep.subr.bf16.mxu0 0
        %2836 = vmatpush2.bf16.msra.mxu0 0
        %2837 = vmatprep.subr.bf16.mxu0 0
        %2838 = vmatpush2.bf16.msra.mxu0 0
        %2839 = vmatprep.subr.bf16.mxu0 0
        %2840 = vmatpush2.bf16.msra.mxu0 0
        %2841 = vmatprep.mubr.bf16.mxu0 0
        %2842 = vmatmul.mubr.bf16.gmra.mxu0 %v2798
        %v2843 = vpop.f32.mrf.mxu0
        %v2844 = vadd.f32 %v2763, %v2843
        %v2845 = vpop.f32.mrf.mxu0
        %v2846 = vpop.f32.mrf.mxu0
        %v2847 = vadd.f32 %v2763, %v2846
        %v2848 = vpop.f32.mrf.mxu0
        %2849 = vmatprep.mubr.bf16.mxu0 0
        %2850 = vmatmul.mubr.bf16.gmra.mxu0 %v2801
        %v2851 = vpop.f32.mrf.mxu0
        %v2852 = vadd.f32 %v2763, %v2851
        %v2853 = vpop.f32.mrf.mxu0
        %v2854 = vpop.f32.mrf.mxu0
        %v2855 = vadd.f32 %v2763, %v2854
        %v2856 = vpop.f32.mrf.mxu0
        %2857 = vmatprep.mubr.bf16.mxu0 0
        %2858 = vmatmul.mubr.bf16.gmra.mxu0 %v2804
        %v2859 = vpop.f32.mrf.mxu0
        %v2860 = vadd.f32 %v2763, %v2859
        %v2861 = vpop.f32.mrf.mxu0
        %v2862 = vpop.f32.mrf.mxu0
        %v2863 = vadd.f32 %v2763, %v2862
        %v2864 = vpop.f32.mrf.mxu0
        %2865 = vmatprep.mubr.bf16.mxu0 0
        %2866 = vmatmul.mubr.bf16.gmra.mxu0 %v2807
        %v2867 = vpop.f32.mrf.mxu0
        %v2868 = vadd.f32 %v2763, %v2867
        %v2869 = vpop.f32.mrf.mxu0
        %v2870 = vpop.f32.mrf.mxu0
        %v2871 = vadd.f32 %v2763, %v2870
        %v2872 = vpop.f32.mrf.mxu0
        %2873 = vdwg.mxu0
        %2874 = vst.msk [vmem:[%s268] sm:$0xff] %vm306, %v2844
        %2875 = vst.msk [vmem:[%s268 + $0x8] sm:$0xff] %vm306, %v2847
        %2876 = vst.msk [vmem:[%s268 + $0x10] sm:$0xff] %vm306, %v2852
        %2877 = vst.msk [vmem:[%s268 + $0x18] sm:$0xff] %vm306, %v2855
        %2878 = vst.msk [vmem:[%s268 + $0x20] sm:$0xff] %vm306, %v2860
        %2879 = vst.msk [vmem:[%s268 + $0x28] sm:$0xff] %vm306, %v2863
        %2880 = vst.msk [vmem:[%s268 + $0x30] sm:$0xff] %vm306, %v2868
        %2881 = vst.msk [vmem:[%s268 + $0x38] sm:$0xff] %vm306, %v2871
        %s2882 = smul.u32 8, %s18
        %p2883 = scmp.lt.s32.totalorder %s2882, 15
        %s2884 = scalar_select %p2883, %s2882, 15
        %s2885 = smul.addr %s2884, 8
        %s2886 = scalar_lea.vmem %s6, %s2885
        // Predicated region
        $region49: #{tpu_custom_call.1} parent=43 // pred_check
          %p2887 = pneg %p167
        $region50: #{tpu_custom_call.1} parent=43 // pred_check_branch
          %2889 = sbr.rel (%p2887) target = $region52
        $region51: #{tpu_custom_call.1} parent=43 // pred_region
          %s2890 = smul.u32 8, %s18
        $region52: #{tpu_custom_call.1} parent=43 // pred_fallthru
          _
      $region44: #{tpu_custom_call.1} parent=5 // pred_fallthru
        _
      %p2891 = scmp.le.s32.totalorder 2, %s13
      // Predicated region
      $region53: #{tpu_custom_call.1} parent=5 // pred_check
        %p2892 = pneg %p2891
      $region54: #{tpu_custom_call.1} parent=5 // pred_check_branch
        %2894 = sbr.rel (%p2892) target = $region56
      $region55: #{tpu_custom_call.1} parent=5 // pred_region
        %s2895 = ssub.s32 %s13, 2
        // Predicated region
        $region57: #{tpu_custom_call.1} parent=55 // pred_check
          %p2896 = pneg %p173
        $region58: #{tpu_custom_call.1} parent=55 // pred_check_branch
          %2898 = sbr.rel (%p2896) target = $region60
        $region59: #{tpu_custom_call.1} parent=55 // pred_region
          %s2899 = smul.u32 8, %s19
          %p2900 = scmp.lt.s32.totalorder %s2899, 15
          %s2901 = scalar_select %p2900, %s2899, 15
          %s2902 = smul.addr %s2901, 8
          %s2903 = scalar_lea.vmem %s6, %s2902
        $region60: #{tpu_custom_call.1} parent=55 // pred_fallthru
          _
      $region56: #{tpu_custom_call.1} parent=5 // pred_fallthru
        _
    $region6: #{tpu_custom_call.1} parent=1 // loop_footer
      %s17 = sadd.s32 1, %s13
    $region7: #{tpu_custom_call.1} parent=1 // loop_footer_branch
      %12 = sbr.rel target = $region3
    $region8: #{tpu_custom_call.1} parent=1 // loop_exit
      _
    %2904 = vsyncpa [#allocation5], 1
    %s2905 = scalar_lea.sflag [#allocation5], 1
    %2906 = vsyncpa %s2905, 1

// kernel: tpu_custom_call.1
$region0: #{tpu_custom_call.1}
  #allocation0 [shape = 'u32[]', space=smem, size = 0x4, offset = 0x4, fixed_abs, tag = 'smem constant byte address 0x4 - core index']
  #allocation1 [shape = 'u32[144,128]{1,0:T(1,128)}', space=vmem, size = 0x12000, scoped, tag = 'internal scratch']
  #allocation2 [shape = 'bf16[64,96]{1,0:T(8,128)(2,1)}', space=vmem, size = 0x4000, scoped, tag = 'scratch operand']
  #allocation3 [shape = 'bf16[64,32]{1,0:T(8,128)(2,1)}', space=vmem, size = 0x4000, scoped, tag = 'scratch operand']
  %s0 = inlined_call_operand.vmem [shape: f32[128,32], index: 0, kind: input, shape index: {}]
  %s1 = inlined_call_operand.vmem [shape: bf16[32,96], index: 1, kind: input, shape index: {}]
  %s2 = inlined_call_operand.vmem [shape: f32[1,96], index: 2, kind: input, shape index: {}]
  %s3 = inlined_call_operand.vmem [shape: bf16[32,32], index: 3, kind: input, shape index: {}]
  %s4 = inlined_call_operand.vmem [shape: f32[1,32], index: 4, kind: input, shape index: {}]
  %s5 = inlined_call_operand.hbm [shape: f32[4,4,16,16], index: 5, kind: input, shape index: {}]
  %s6 = inlined_call_operand.vmem [shape: f32[128,32], index: 6, kind: output, shape index: {}]
  %s7 = sld [smem:[#allocation0]]
  $region61: #{tpu_custom_call.1} parent=0
    _
  %s9 = ssub.s32 1, %s7
  %s10 = scalar_select 0, %s9, %s7
  $region1: #{tpu_custom_call.1} parent=0
    #allocation4 [shape = 'u8[131072]{0}', space=vmem, size = 0x20000, scoped, tag = 'input window, operand 5, single buffered']
    #allocation5 [shape = 's32[2]{0}', space=sflag, size = 0x8, scoped, tag = 'scoped memory for tpu_custom_call.1']
    %11 = vsyncpa [#allocation5], 0
    loop: start=0, step=1, limit=4
    $region2: #{tpu_custom_call.1} parent=1 // loop_pre_header
      _
    $region3: #{tpu_custom_call.1} parent=1 // loop_header
      %s13 = sphi 0, %s17
      %p14 = scmp.ge.s32.totalorder %s13, 4
      %s23 = sphi 0, %s25
      %s26 = sphi 0, %s23
      %s27 = sphi 0, %s26
      %s43 = sphi 0, %s27
      %s47 = sphi 0, %s47
      %s49 = sphi 0, %s47
      %s50 = sphi 0, %s49
      %s64 = sphi 0, %s50
      %s68 = sphi 0, %s68
      %s70 = sphi 0, %s68
      %s71 = sphi 0, %s70
      %s85 = sphi 0, %s71
      %s89 = sphi 0, %s89
      %s91 = sphi 0, %s89
      %s92 = sphi 0, %s91
      %s106 = sphi 0, %s92
      %s110 = sphi 0, %s110
      %s112 = sphi 0, %s110
      %s113 = sphi 0, %s112
      %s127 = sphi 0, %s113
      %s131 = sphi 0, %s131
      %s133 = sphi 0, %s131
      %s134 = sphi 0, %s133
      %s148 = sphi 0, %s134
      %s154 = sphi 0, %s156
      %s157 = sphi 0, %s154
      %s158 = sphi 0, %s157
      %s174 = sphi 0, %s158
    $region4: #{tpu_custom_call.1} parent=1 // loop_header_branch
      %16 = sbr.rel (%p14) target = $region8
    $region5: #{tpu_custom_call.1} parent=1 // loop_body
      %s18 = ssub.s32 %s13, 1
      %s19 = ssub.s32 %s13, 2
      %s20 = sadd.s32 %s13, 1
      %s21 = ssub.s32 %s13, %s20
      %p22 = scmp.eq.s32.totalorder %s21, 0
      %s24 = sadd.s32 %s23, 1
      %s25 = scalar_select %p22, %s23, %s24
      %p28 = pneg %p22
      %p29 = scmp.eq.s32.totalorder %s13, 1
      %p30 = por %p28, %p29
      %p31 = scmp.ne.s32.totalorder %s23, %s26
      %p32 = scmp.eq.s32.totalorder %s13, 0
      %p33 = por %p31, %p32
      %p34 = scmp.ne.s32.totalorder %s23, %s26
      %p35 = scmp.eq.s32.totalorder %s18, 1
      %p36 = por %p34, %p35
      %p37 = scmp.ne.s32.totalorder %s26, %s27
      %p38 = scmp.eq.s32.totalorder %s18, 0
      %p39 = por %p37, %p38
      %p40 = scmp.ne.s32.totalorder %s26, %s27
      %p41 = scmp.eq.s32.totalorder %s19, 1
      %p42 = por %p40, %p41
      %p44 = scmp.ne.s32.totalorder %s27, %s43
      %p45 = scmp.eq.s32.totalorder %s19, 0
      %p46 = por %p44, %p45
      %s48 = sadd.s32 %s47, 1
      %p51 = scmp.eq.s32.totalorder %s13, 1
      %p52 = scmp.ne.s32.totalorder %s47, %s49
      %p53 = scmp.eq.s32.totalorder %s13, 0
      %p54 = por %p52, %p53
      %p55 = scmp.ne.s32.totalorder %s47, %s49
      %p56 = scmp.eq.s32.totalorder %s18, 1
      %p57 = por %p55, %p56
      %p58 = scmp.ne.s32.totalorder %s49, %s50
      %p59 = scmp.eq.s32.totalorder %s18, 0
      %p60 = por %p58, %p59
      %p61 = scmp.ne.s32.totalorder %s49, %s50
      %p62 = scmp.eq.s32.totalorder %s19, 1
      %p63 = por %p61, %p62
      %p65 = scmp.ne.s32.totalorder %s50, %s64
      %p66 = scmp.eq.s32.totalorder %s19, 0
      %p67 = por %p65, %p66
      %s69 = sadd.s32 %s68, 1
      %p72 = scmp.eq.s32.totalorder %s13, 1
      %p73 = scmp.ne.s32.totalorder %s68, %s70
      %p74 = scmp.eq.s32.totalorder %s13, 0
      %p75 = por %p73, %p74
      %p76 = scmp.ne.s32.totalorder %s68, %s70
      %p77 = scmp.eq.s32.totalorder %s18, 1
      %p78 = por %p76, %p77
      %p79 = scmp.ne.s32.totalorder %s70, %s71
      %p80 = scmp.eq.s32.totalorder %s18, 0
      %p81 = por %p79, %p80
      %p82 = scmp.ne.s32.totalorder %s70, %s71
      %p83 = scmp.eq.s32.totalorder %s19, 1
      %p84 = por %p82, %p83
      %p86 = scmp.ne.s32.totalorder %s71, %s85
      %p87 = scmp.eq.s32.totalorder %s19, 0
      %p88 = por %p86, %p87
      %s90 = sadd.s32 %s89, 1
      %p93 = scmp.eq.s32.totalorder %s13, 1
      %p94 = scmp.ne.s32.totalorder %s89, %s91
      %p95 = scmp.eq.s32.totalorder %s13, 0
      %p96 = por %p94, %p95
      %p97 = scmp.ne.s32.totalorder %s89, %s91
      %p98 = scmp.eq.s32.totalorder %s18, 1
      %p99 = por %p97, %p98
      %p100 = scmp.ne.s32.totalorder %s91, %s92
      %p101 = scmp.eq.s32.totalorder %s18, 0
      %p102 = por %p100, %p101
      %p103 = scmp.ne.s32.totalorder %s91, %s92
      %p104 = scmp.eq.s32.totalorder %s19, 1
      %p105 = por %p103, %p104
      %p107 = scmp.ne.s32.totalorder %s92, %s106
      %p108 = scmp.eq.s32.totalorder %s19, 0
      %p109 = por %p107, %p108
      %s111 = sadd.s32 %s110, 1
      %p114 = scmp.eq.s32.totalorder %s13, 1
      %p115 = scmp.ne.s32.totalorder %s110, %s112
      %p116 = scmp.eq.s32.totalorder %s13, 0
      %p117 = por %p115, %p116
      %p118 = scmp.ne.s32.totalorder %s110, %s112
      %p119 = scmp.eq.s32.totalorder %s18, 1
      %p120 = por %p118, %p119
      %p121 = scmp.ne.s32.totalorder %s112, %s113
      %p122 = scmp.eq.s32.totalorder %s18, 0
      %p123 = por %p121, %p122
      %p124 = scmp.ne.s32.totalorder %s112, %s113
      %p125 = scmp.eq.s32.totalorder %s19, 1
      %p126 = por %p124, %p125
      %p128 = scmp.ne.s32.totalorder %s113, %s127
      %p129 = scmp.eq.s32.totalorder %s19, 0
      %p130 = por %p128, %p129
      %s132 = sadd.s32 %s131, 1
      %p135 = scmp.eq.s32.totalorder %s13, 1
      %p136 = scmp.ne.s32.totalorder %s131, %s133
      %p137 = scmp.eq.s32.totalorder %s13, 0
      %p138 = por %p136, %p137
      %p139 = scmp.ne.s32.totalorder %s131, %s133
      %p140 = scmp.eq.s32.totalorder %s18, 1
      %p141 = por %p139, %p140
      %p142 = scmp.ne.s32.totalorder %s133, %s134
      %p143 = scmp.eq.s32.totalorder %s18, 0
      %p144 = por %p142, %p143
      %p145 = scmp.ne.s32.totalorder %s133, %s134
      %p146 = scmp.eq.s32.totalorder %s19, 1
      %p147 = por %p145, %p146
      %p149 = scmp.ne.s32.totalorder %s134, %s148
      %p150 = scmp.eq.s32.totalorder %s19, 0
      %p151 = por %p149, %p150
      %s152 = ssub.s32 %s13, %s20
      %p153 = scmp.eq.s32.totalorder %s152, 0
      %s155 = sadd.s32 %s154, 1
      %s156 = scalar_select %p153, %s154, %s155
      %p159 = pneg %p153
      %p160 = scmp.eq.s32.totalorder %s13, 1
      %p161 = por %p159, %p160
      %p162 = scmp.ne.s32.totalorder %s154, %s157
      %p163 = scmp.eq.s32.totalorder %s13, 0
      %p164 = por %p162, %p163
      %p165 = scmp.ne.s32.totalorder %s154, %s157
      %p166 = scmp.eq.s32.totalorder %s18, 1
      %p167 = por %p165, %p166
      %p168 = scmp.ne.s32.totalorder %s157, %s158
      %p169 = scmp.eq.s32.totalorder %s18, 0
      %p170 = por %p168, %p169
      %p171 = scmp.ne.s32.totalorder %s157, %s158
      %p172 = scmp.eq.s32.totalorder %s19, 1
      %p173 = por %p171, %p172
      %p175 = scmp.ne.s32.totalorder %s158, %s174
      %p176 = scmp.eq.s32.totalorder %s19, 0
      %p177 = por %p175, %p176
      %p178 = scmp.le.s32.totalorder 1, %s13
      %p179 = scmp.lt.s32.totalorder %s13, 3
      %p180 = pnand %p178, %p179
      %p181 = pneg %p180
      // Predicated region
      $region9: #{tpu_custom_call.1} parent=5 // pred_check
        _
      $region10: #{tpu_custom_call.1} parent=5 // pred_check_branch
        %183 = sbr.rel (%p180) target = $region12
      $region11: #{tpu_custom_call.1} parent=5 // pred_region
        %s184 = ssub.s32 %s13, 1
        // Predicated region
        $region13: #{tpu_custom_call.1} parent=11 // pred_check
          %p185 = pneg %p60
        $region14: #{tpu_custom_call.1} parent=11 // pred_check_branch
          %187 = sbr.rel (%p185) target = $region16
        $region15: #{tpu_custom_call.1} parent=11 // pred_region
          _
        $region16: #{tpu_custom_call.1} parent=11 // pred_fallthru
          _
        // Predicated region
        $region17: #{tpu_custom_call.1} parent=11 // pred_check
          %p188 = pneg %p81
        $region18: #{tpu_custom_call.1} parent=11 // pred_check_branch
          %190 = sbr.rel (%p188) target = $region20
        $region19: #{tpu_custom_call.1} parent=11 // pred_region
          _
        $region20: #{tpu_custom_call.1} parent=11 // pred_fallthru
          _
        // Predicated region
        $region21: #{tpu_custom_call.1} parent=11 // pred_check
          %p191 = pneg %p102
        $region22: #{tpu_custom_call.1} parent=11 // pred_check_branch
          %193 = sbr.rel (%p191) target = $region24
        $region23: #{tpu_custom_call.1} parent=11 // pred_region
          _
        $region24: #{tpu_custom_call.1} parent=11 // pred_fallthru
          _
        // Predicated region
        $region25: #{tpu_custom_call.1} parent=11 // pred_check
          %p194 = pneg %p123
        $region26: #{tpu_custom_call.1} parent=11 // pred_check_branch
          %196 = sbr.rel (%p194) target = $region28
        $region27: #{tpu_custom_call.1} parent=11 // pred_region
          _
        $region28: #{tpu_custom_call.1} parent=11 // pred_fallthru
          _
        // Predicated region
        $region29: #{tpu_custom_call.1} parent=11 // pred_check
          %p197 = pneg %p144
        $region30: #{tpu_custom_call.1} parent=11 // pred_check_branch
          %199 = sbr.rel (%p197) target = $region32
        $region31: #{tpu_custom_call.1} parent=11 // pred_region
          %s201 = ssub.s32 4096, 4096
          %202 = vsyncadd [#allocation5], %s201
          %s203 = sshll.u32 [#allocation4], 4
          %s204 = int_to_ptr.vmem [resolvable:$true] %s203
          %209 = dma.hbm_to_vmem [thread:$0]  %s5, 4096, %s204, [#allocation5], 128, 128, 8
        $region32: #{tpu_custom_call.1} parent=11 // pred_fallthru
          _
      $region12: #{tpu_custom_call.1} parent=5 // pred_fallthru
        _
      %p210 = scmp.lt.s32.totalorder %s13, 2
      // Predicated region
      $region33: #{tpu_custom_call.1} parent=5 // pred_check
        %p211 = pneg %p210
      $region34: #{tpu_custom_call.1} parent=5 // pred_check_branch
        %213 = sbr.rel (%p211) target = $region36
      $region35: #{tpu_custom_call.1} parent=5 // pred_region
        // Predicated region
        $region37: #{tpu_custom_call.1} parent=35 // pred_check
          %p214 = pneg %p33
        $region38: #{tpu_custom_call.1} parent=35 // pred_check_branch
          %216 = sbr.rel (%p214) target = $region40
        $region39: #{tpu_custom_call.1} parent=35 // pred_region
          %s217 = smul.u32 8, %s13
          %p218 = scmp.lt.s32.totalorder %s217, 15
          %s219 = scalar_select %p218, %s217, 15
          %s220 = smul.addr %s219, 8
          %s221 = scalar_lea.vmem %s0, %s220
          %s222 = smul.u32 8, %s13
        $region40: #{tpu_custom_call.1} parent=35 // pred_fallthru
          _
      $region36: #{tpu_custom_call.1} parent=5 // pred_fallthru
        _
      %p223 = scmp.le.s32.totalorder 1, %s13
      %p224 = scmp.lt.s32.totalorder %s13, 3
      %p225 = pnand %p223, %p224
      %p226 = pneg %p225
      // Predicated region
      $region41: #{tpu_custom_call.1} parent=5 // pred_check
        _
      $region42: #{tpu_custom_call.1} parent=5 // pred_check_branch
        %228 = sbr.rel (%p225) target = $region44
      $region43: #{tpu_custom_call.1} parent=5 // pred_region
        %s229 = ssub.s32 %s13, 1
        // Predicated region
        $region45: #{tpu_custom_call.1} parent=43 // pred_check
          %p230 = pneg %p144
        $region46: #{tpu_custom_call.1} parent=43 // pred_check_branch
          %232 = sbr.rel (%p230) target = $region48
        $region47: #{tpu_custom_call.1} parent=43 // pred_region
          %233 = dma.done [#allocation5], 4096
        $region48: #{tpu_custom_call.1} parent=43 // pred_fallthru
          _
        %s234 = smul.u32 8, %s18
        %p235 = scmp.lt.s32.totalorder %s234, 15
        %s236 = scalar_select %p235, %s234, 15
        %s237 = smul.addr %s236, 8
        %s238 = scalar_lea.vmem %s0, %s237
        %p239 = pneg %p39
        %p240 = pneg %p36
        %p241 = pneg %p60
        %p242 = pneg %p57
        %p243 = pneg %p81
        %p244 = pneg %p78
        %p245 = pneg %p102
        %p246 = pneg %p99
        %p247 = pneg %p123
        %p248 = pneg %p120
        %p249 = pneg %p144
        %p250 = pneg %p141
        %p251 = pneg %p170
        %p252 = pneg %p167
        %s253 = smul.u32 8, %s18
        %p254 = scmp.lt.s32.totalorder %s253, 15
        %s255 = scalar_select %p254, %s253, 15
        %s256 = smul.addr %s255, 8
        %s257 = scalar_lea.vmem %s6, %s256
        %s258 = smul.u32 8, %s18
        %p259 = scmp.lt.s32.totalorder %s258, 15
        %s260 = scalar_select %p259, %s258, 15
        %s261 = smul.addr %s260, 8
        %s262 = scalar_lea.vmem %s0, %s261
        %s263 = smul.u32 8, %s18
        %s264 = smul.u32 8, %s18
        %p265 = scmp.lt.s32.totalorder %s264, 15
        %s266 = scalar_select %p265, %s264, 15
        %s267 = smul.addr %s266, 8
        %s268 = scalar_lea.vmem %s6, %s267
        %s269 = smul.u32 8, %s18
        %v271 = vld [vmem:[%s262] sm:$0xff]
        %v272 = vld [vmem:[%s262 + $0x8] sm:$0xff]
        %v273 = vld [vmem:[%s262 + $0x10] sm:$0xff]
        %v274 = vld [vmem:[%s262 + $0x18] sm:$0xff]
        %v275 = vld [vmem:[%s262 + $0x20] sm:$0xff]
        %v276 = vld [vmem:[%s262 + $0x28] sm:$0xff]
        %v277 = vld [vmem:[%s262 + $0x30] sm:$0xff]
        %v278 = vld [vmem:[%s262 + $0x38] sm:$0xff]
        %v279 = vpack.c.bf16 %v272, %v271
        %v280 = vpack.c.bf16 %v274, %v273
        %v281 = vpack.c.bf16 %v276, %v275
        %v282 = vpack.c.bf16 %v278, %v277
        %v283 = vld [vmem:[%s1] sm:$0xf]
        %v284 = vld [vmem:[%s1 + $0x4] sm:$0xf]
        %v285 = vld [vmem:[%s1 + $0x8] sm:$0xf]
        %v286 = vld [vmem:[%s1 + $0xc] sm:$0xf]
        %v287 = vld [vmem:[%s2] sm:$0x1]
        %v289 = vlaneseq
        %v290 = vshrl.u32 %v289, 7
        %v291 = vsub.s32 0, %v290
        %v292 = vrot.slane %v287, %v291
        %v298 = vunpack.c.l.b16 %v283
        %v299 = vunpack.c.l.b16 %v284
        %v300 = vunpack.c.l.b16 %v285
        %v301 = vunpack.c.l.b16 %v286
        %v302 = vpack.c.b16 %v299, %v298
        %v303 = vpack.c.b16 %v301, %v300
        %vm306 = vcmask 261120
        %v308 = vsel %vm306, %v279, 0
        %v311 = vsel %vm306, %v280, 0
        %v314 = vsel %vm306, %v281, 0
        %v317 = vsel %vm306, %v282, 0
        %319 = vmatprep.subr.bf16.mxu0 0
        %320 = vmatpush1.bf16.msra.mxu0 0
        %321 = vmatprep.subr.bf16.mxu0 0
        %322 = vmatpush1.bf16.msra.mxu0 0
        %323 = vmatprep.subr.bf16.mxu0 0
        %324 = vmatpush1.bf16.msra.mxu0 0
        %325 = vmatprep.subr.bf16.mxu0 0
        %326 = vmatpush1.bf16.msra.mxu0 0
        %327 = vmatprep.subr.bf16.mxu0 0
        %328 = vmatpush1.bf16.msra.mxu0 0
        %329 = vmatprep.subr.bf16.mxu0 0
        %330 = vmatpush1.bf16.msra.mxu0 0
        %331 = vmatprep.subr.bf16.mxu0 0
        %332 = vmatpush1.bf16.msra.mxu0 %v303
        %333 = vmatprep.subr.bf16.mxu0 0
        %334 = vmatpush1.bf16.msra.mxu0 %v302
        %335 = vmatprep.subr.bf16.mxu0 0
        %336 = vmatpush2.bf16.msra.mxu0 0
        %337 = vmatprep.subr.bf16.mxu0 0
        %338 = vmatpush2.bf16.msra.mxu0 0
        %339 = vmatprep.subr.bf16.mxu0 0
        %340 = vmatpush2.bf16.msra.mxu0 0
        %341 = vmatprep.subr.bf16.mxu0 0
        %342 = vmatpush2.bf16.msra.mxu0 0
        %343 = vmatprep.subr.bf16.mxu0 0
        %344 = vmatpush2.bf16.msra.mxu0 0
        %345 = vmatprep.subr.bf16.mxu0 0
        %346 = vmatpush2.bf16.msra.mxu0 0
        %347 = vmatprep.subr.bf16.mxu0 0
        %348 = vmatpush2.bf16.msra.mxu0 0
        %349 = vmatprep.subr.bf16.mxu0 0
        %350 = vmatpush2.bf16.msra.mxu0 0
        %351 = vmatprep.mubr.bf16.mxu0 0
        %352 = vmatmul.mubr.bf16.gmra.mxu0 %v308
        %v353 = vpop.f32.mrf.mxu0
        %v354 = vadd.f32 %v292, %v353
        %v355 = vpop.f32.mrf.mxu0
        %v356 = vpop.f32.mrf.mxu0
        %v357 = vadd.f32 %v292, %v356
        %v358 = vpop.f32.mrf.mxu0
        %359 = vmatprep.mubr.bf16.mxu0 0
        %360 = vmatmul.mubr.bf16.gmra.mxu0 %v311
        %v361 = vpop.f32.mrf.mxu0
        %v362 = vadd.f32 %v292, %v361
        %v363 = vpop.f32.mrf.mxu0
        %v364 = vpop.f32.mrf.mxu0
        %v365 = vadd.f32 %v292, %v364
        %v366 = vpop.f32.mrf.mxu0
        %367 = vmatprep.mubr.bf16.mxu0 0
        %368 = vmatmul.mubr.bf16.gmra.mxu0 %v314
        %v369 = vpop.f32.mrf.mxu0
        %v370 = vadd.f32 %v292, %v369
        %v371 = vpop.f32.mrf.mxu0
        %v372 = vpop.f32.mrf.mxu0
        %v373 = vadd.f32 %v292, %v372
        %v374 = vpop.f32.mrf.mxu0
        %375 = vmatprep.mubr.bf16.mxu0 0
        %376 = vmatmul.mubr.bf16.gmra.mxu0 %v317
        %v377 = vpop.f32.mrf.mxu0
        %v378 = vadd.f32 %v292, %v377
        %v379 = vpop.f32.mrf.mxu0
        %v380 = vpop.f32.mrf.mxu0
        %v381 = vadd.f32 %v292, %v380
        %v382 = vpop.f32.mrf.mxu0
        %383 = vdwg.mxu0
        %v384 = vpack.c.bf16 %v357, %v354
        %v385 = vpack.c.bf16 %v365, %v362
        %v386 = vpack.c.bf16 %v373, %v370
        %v387 = vpack.c.bf16 %v381, %v378
        %v392 = vunpack.c.l.b16 %v384
        %v393 = vunpack.c.h.b16 %v384
        %v394 = vunpack.c.l.b16 %v385
        %v395 = vunpack.c.h.b16 %v385
        %v396 = vunpack.c.l.b16 %v386
        %v397 = vunpack.c.h.b16 %v386
        %v398 = vunpack.c.l.b16 %v387
        %v399 = vunpack.c.h.b16 %v387
        %v400 = vpack.c.b16 %v392, %v392
        %v401 = vpack.c.b16 %v393, %v393
        %v402 = vpack.c.b16 %v394, %v394
        %v403 = vpack.c.b16 %v395, %v395
        %v404 = vpack.c.b16 %v396, %v396
        %v405 = vpack.c.b16 %v397, %v397
        %v406 = vpack.c.b16 %v398, %v398
        %v407 = vpack.c.b16 %v399, %v399
        %vm416 = vcmask 781312
        %417 = vst.msk [vmem:[#allocation2] sm:$0xf] %vm416, %v400
        %418 = vst.msk [vmem:[#allocation2 + $0x4] sm:$0xf] %vm416, %v401
        %419 = vst.msk [vmem:[#allocation2 + $0x8] sm:$0xf] %vm416, %v402
        %420 = vst.msk [vmem:[#allocation2 + $0xc] sm:$0xf] %vm416, %v403
        %421 = vst.msk [vmem:[#allocation2 + $0x10] sm:$0xf] %vm416, %v404
        %422 = vst.msk [vmem:[#allocation2 + $0x14] sm:$0xf] %vm416, %v405
        %423 = vst.msk [vmem:[#allocation2 + $0x18] sm:$0xf] %vm416, %v406
        %424 = vst.msk [vmem:[#allocation2 + $0x1c] sm:$0xf] %vm416, %v407
        %v425 = vld [vmem:[#allocation2] sm:$0xf]
        %v426 = vld [vmem:[#allocation2 + $0x4] sm:$0xf]
        %v427 = vld [vmem:[#allocation2 + $0x8] sm:$0xf]
        %v428 = vld [vmem:[#allocation2 + $0xc] sm:$0xf]
        %v429 = vld [vmem:[#allocation2 + $0x10] sm:$0xf]
        %v430 = vld [vmem:[#allocation2 + $0x14] sm:$0xf]
        %v431 = vld [vmem:[#allocation2 + $0x18] sm:$0xf]
        %v432 = vld [vmem:[#allocation2 + $0x1c] sm:$0xf]
        %v435 = vunpack.c.l.b16 %v425
        %v436 = vunpack.c.l.b16 %v426
        %v437 = vpack.c.b16 %v436, %v435
        %438 = vrot.lane.b32.xlu0 %v437, 96
        %v439 = vpop.permute.xlu0 %438
        %vm440 = vcmask 64512
        %v442 = vsel %vm440, %v437, 0
        %v445 = vsel %vm440, %v439, 0
        %447 = vmatprep.subr.bf16.mxu0 0
        %448 = vmatpush1.bf16.xpose.msra.mxu0 0
        %449 = vmatprep.subr.bf16.mxu0 0
        %450 = vmatpush1.bf16.xpose.msra.mxu0 0
        %451 = vmatprep.subr.bf16.mxu0 0
        %452 = vmatpush1.bf16.xpose.msra.mxu0 0
        %453 = vmatprep.subr.bf16.mxu0 0
        %454 = vmatpush1.bf16.xpose.msra.mxu0 0
        %455 = vmatprep.subr.bf16.mxu0 0
        %456 = vmatpush1.bf16.xpose.msra.mxu0 0
        %457 = vmatprep.subr.bf16.mxu0 0
        %458 = vmatpush1.bf16.xpose.msra.mxu0 0
        %459 = vmatprep.subr.bf16.mxu0 0
        %460 = vmatpush1.bf16.xpose.msra.mxu0 0
        %461 = vmatprep.subr.bf16.mxu0 0
        %462 = vmatpush1.bf16.xpose.msra.mxu0 %v445
        %463 = vmatprep.subr.bf16.mxu0 0
        %464 = vmatpush2.bf16.xpose.msra.mxu0 0
        %465 = vmatprep.subr.bf16.mxu0 0
        %466 = vmatpush2.bf16.xpose.msra.mxu0 0
        %467 = vmatprep.subr.bf16.mxu0 0
        %468 = vmatpush2.bf16.xpose.msra.mxu0 0
        %469 = vmatprep.subr.bf16.mxu0 0
        %470 = vmatpush2.bf16.xpose.msra.mxu0 0
        %471 = vmatprep.subr.bf16.mxu0 0
        %472 = vmatpush2.bf16.xpose.msra.mxu0 0
        %473 = vmatprep.subr.bf16.mxu0 0
        %474 = vmatpush2.bf16.xpose.msra.mxu0 0
        %475 = vmatprep.subr.bf16.mxu0 0
        %476 = vmatpush2.bf16.xpose.msra.mxu0 0
        %477 = vmatprep.subr.bf16.mxu0 0
        %478 = vmatpush2.bf16.xpose.msra.mxu0 0
        %479 = vmatprep.mubr.bf16.mxu0 0
        %480 = vmatmul.mubr.bf16.gmra.mxu0 %v442
        %v481 = vpop.f32.mrf.mxu0
        %v482 = vadd.f32 0.0, %v481
        %v483 = vpop.f32.mrf.mxu0
        %v484 = vpop.f32.mrf.mxu0
        %v485 = vadd.f32 0.0, %v484
        %v486 = vpop.f32.mrf.mxu0
        %487 = vdwg.mxu0
        %v490 = vunpack.c.l.b16 %v427
        %v491 = vunpack.c.l.b16 %v428
        %v492 = vpack.c.b16 %v491, %v490
        %493 = vrot.lane.b32.xlu0 %v492, 96
        %v494 = vpop.permute.xlu0 %493
        %v496 = vsel %vm440, %v492, 0
        %v499 = vsel %vm440, %v494, 0
        %501 = vmatprep.subr.bf16.mxu0 0
        %502 = vmatpush1.bf16.xpose.msra.mxu0 0
        %503 = vmatprep.subr.bf16.mxu0 0
        %504 = vmatpush1.bf16.xpose.msra.mxu0 0
        %505 = vmatprep.subr.bf16.mxu0 0
        %506 = vmatpush1.bf16.xpose.msra.mxu0 0
        %507 = vmatprep.subr.bf16.mxu0 0
        %508 = vmatpush1.bf16.xpose.msra.mxu0 0
        %509 = vmatprep.subr.bf16.mxu0 0
        %510 = vmatpush1.bf16.xpose.msra.mxu0 0
        %511 = vmatprep.subr.bf16.mxu0 0
        %512 = vmatpush1.bf16.xpose.msra.mxu0 0
        %513 = vmatprep.subr.bf16.mxu0 0
        %514 = vmatpush1.bf16.xpose.msra.mxu0 0
        %515 = vmatprep.subr.bf16.mxu0 0
        %516 = vmatpush1.bf16.xpose.msra.mxu0 %v499
        %517 = vmatprep.subr.bf16.mxu0 0
        %518 = vmatpush2.bf16.xpose.msra.mxu0 0
        %519 = vmatprep.subr.bf16.mxu0 0
        %520 = vmatpush2.bf16.xpose.msra.mxu0 0
        %521 = vmatprep.subr.bf16.mxu0 0
        %522 = vmatpush2.bf16.xpose.msra.mxu0 0
        %523 = vmatprep.subr.bf16.mxu0 0
        %524 = vmatpush2.bf16.xpose.msra.mxu0 0
        %525 = vmatprep.subr.bf16.mxu0 0
        %526 = vmatpush2.bf16.xpose.msra.mxu0 0
        %527 = vmatprep.subr.bf16.mxu0 0
        %528 = vmatpush2.bf16.xpose.msra.mxu0 0
        %529 = vmatprep.subr.bf16.mxu0 0
        %530 = vmatpush2.bf16.xpose.msra.mxu0 0
        %531 = vmatprep.subr.bf16.mxu0 0
        %532 = vmatpush2.bf16.xpose.msra.mxu0 0
        %533 = vmatprep.mubr.bf16.mxu0 0
        %534 = vmatmul.mubr.bf16.gmra.mxu0 %v496
        %v535 = vpop.f32.mrf.mxu0
        %v536 = vadd.f32 0.0, %v535
        %v537 = vpop.f32.mrf.mxu0
        %v538 = vpop.f32.mrf.mxu0
        %v539 = vadd.f32 0.0, %v538
        %v540 = vpop.f32.mrf.mxu0
        %541 = vdwg.mxu0
        %v544 = vunpack.c.l.b16 %v429
        %v545 = vunpack.c.l.b16 %v430
        %v546 = vpack.c.b16 %v545, %v544
        %547 = vrot.lane.b32.xlu0 %v546, 96
        %v548 = vpop.permute.xlu0 %547
        %v550 = vsel %vm440, %v546, 0
        %v553 = vsel %vm440, %v548, 0
        %555 = vmatprep.subr.bf16.mxu0 0
        %556 = vmatpush1.bf16.xpose.msra.mxu0 0
        %557 = vmatprep.subr.bf16.mxu0 0
        %558 = vmatpush1.bf16.xpose.msra.mxu0 0
        %559 = vmatprep.subr.bf16.mxu0 0
        %560 = vmatpush1.bf16.xpose.msra.mxu0 0
        %561 = vmatprep.subr.bf16.mxu0 0
        %562 = vmatpush1.bf16.xpose.msra.mxu0 0
        %563 = vmatprep.subr.bf16.mxu0 0
        %564 = vmatpush1.bf16.xpose.msra.mxu0 0
        %565 = vmatprep.subr.bf16.mxu0 0
        %566 = vmatpush1.bf16.xpose.msra.mxu0 0
        %567 = vmatprep.subr.bf16.mxu0 0
        %568 = vmatpush1.bf16.xpose.msra.mxu0 0
        %569 = vmatprep.subr.bf16.mxu0 0
        %570 = vmatpush1.bf16.xpose.msra.mxu0 %v553
        %571 = vmatprep.subr.bf16.mxu0 0
        %572 = vmatpush2.bf16.xpose.msra.mxu0 0
        %573 = vmatprep.subr.bf16.mxu0 0
        %574 = vmatpush2.bf16.xpose.msra.mxu0 0
        %575 = vmatprep.subr.bf16.mxu0 0
        %576 = vmatpush2.bf16.xpose.msra.mxu0 0
        %577 = vmatprep.subr.bf16.mxu0 0
        %578 = vmatpush2.bf16.xpose.msra.mxu0 0
        %579 = vmatprep.subr.bf16.mxu0 0
        %580 = vmatpush2.bf16.xpose.msra.mxu0 0
        %581 = vmatprep.subr.bf16.mxu0 0
        %582 = vmatpush2.bf16.xpose.msra.mxu0 0
        %583 = vmatprep.subr.bf16.mxu0 0
        %584 = vmatpush2.bf16.xpose.msra.mxu0 0
        %585 = vmatprep.subr.bf16.mxu0 0
        %586 = vmatpush2.bf16.xpose.msra.mxu0 0
        %587 = vmatprep.mubr.bf16.mxu0 0
        %588 = vmatmul.mubr.bf16.gmra.mxu0 %v550
        %v589 = vpop.f32.mrf.mxu0
        %v590 = vadd.f32 0.0, %v589
        %v591 = vpop.f32.mrf.mxu0
        %v592 = vpop.f32.mrf.mxu0
        %v593 = vadd.f32 0.0, %v592
        %v594 = vpop.f32.mrf.mxu0
        %595 = vdwg.mxu0
        %v598 = vunpack.c.l.b16 %v431
        %v599 = vunpack.c.l.b16 %v432
        %v600 = vpack.c.b16 %v599, %v598
        %601 = vrot.lane.b32.xlu0 %v600, 96
        %v602 = vpop.permute.xlu0 %601
        %v604 = vsel %vm440, %v600, 0
        %v607 = vsel %vm440, %v602, 0
        %609 = vmatprep.subr.bf16.mxu0 0
        %610 = vmatpush1.bf16.xpose.msra.mxu0 0
        %611 = vmatprep.subr.bf16.mxu0 0
        %612 = vmatpush1.bf16.xpose.msra.mxu0 0
        %613 = vmatprep.subr.bf16.mxu0 0
        %614 = vmatpush1.bf16.xpose.msra.mxu0 0
        %615 = vmatprep.subr.bf16.mxu0 0
        %616 = vmatpush1.bf16.xpose.msra.mxu0 0
        %617 = vmatprep.subr.bf16.mxu0 0
        %618 = vmatpush1.bf16.xpose.msra.mxu0 0
        %619 = vmatprep.subr.bf16.mxu0 0
        %620 = vmatpush1.bf16.xpose.msra.mxu0 0
        %621 = vmatprep.subr.bf16.mxu0 0
        %622 = vmatpush1.bf16.xpose.msra.mxu0 0
        %623 = vmatprep.subr.bf16.mxu0 0
        %624 = vmatpush1.bf16.xpose.msra.mxu0 %v607
        %625 = vmatprep.subr.bf16.mxu0 0
        %626 = vmatpush2.bf16.xpose.msra.mxu0 0
        %627 = vmatprep.subr.bf16.mxu0 0
        %628 = vmatpush2.bf16.xpose.msra.mxu0 0
        %629 = vmatprep.subr.bf16.mxu0 0
        %630 = vmatpush2.bf16.xpose.msra.mxu0 0
        %631 = vmatprep.subr.bf16.mxu0 0
        %632 = vmatpush2.bf16.xpose.msra.mxu0 0
        %633 = vmatprep.subr.bf16.mxu0 0
        %634 = vmatpush2.bf16.xpose.msra.mxu0 0
        %635 = vmatprep.subr.bf16.mxu0 0
        %636 = vmatpush2.bf16.xpose.msra.mxu0 0
        %637 = vmatprep.subr.bf16.mxu0 0
        %638 = vmatpush2.bf16.xpose.msra.mxu0 0
        %639 = vmatprep.subr.bf16.mxu0 0
        %640 = vmatpush2.bf16.xpose.msra.mxu0 0
        %641 = vmatprep.mubr.bf16.mxu0 0
        %642 = vmatmul.mubr.bf16.gmra.mxu0 %v604
        %v643 = vpop.f32.mrf.mxu0
        %v644 = vadd.f32 0.0, %v643
        %v645 = vpop.f32.mrf.mxu0
        %v646 = vpop.f32.mrf.mxu0
        %v647 = vadd.f32 0.0, %v646
        %v648 = vpop.f32.mrf.mxu0
        %649 = vdwg.mxu0
        %v650 = vld [vmem:[#allocation4] sm:$0xff]
        %v651 = vld [vmem:[#allocation4 + $0x8] sm:$0xff]
        %v652 = vld [vmem:[#allocation4 + $0x40] sm:$0xff]
        %v653 = vld [vmem:[#allocation4 + $0x48] sm:$0xff]
        %v654 = vld [vmem:[#allocation4 + $0x80] sm:$0xff]
        %v655 = vld [vmem:[#allocation4 + $0x88] sm:$0xff]
        %v656 = vld [vmem:[#allocation4 + $0xc0] sm:$0xff]
        %v657 = vld [vmem:[#allocation4 + $0xc8] sm:$0xff]
        %v658 = vadd.f32 %v482, %v650
        %v659 = vadd.f32 %v485, %v651
        %v660 = vadd.f32 %v536, %v652
        %v661 = vadd.f32 %v539, %v653
        %v662 = vadd.f32 %v590, %v654
        %v663 = vadd.f32 %v593, %v655
        %v664 = vadd.f32 %v644, %v656
        %v665 = vadd.f32 %v647, %v657
        %vm666 = vcmask 130048
        %v667 = vsel %vm666, %v658, -inf
        %668 = vmax.xlane.f32.xlu0 %v667
        %v669 = vpop.xlane.xlu0 %668
        %v670 = vsel %vm666, %v659, -inf
        %671 = vmax.xlane.f32.xlu0 %v670
        %v672 = vpop.xlane.xlu0 %671
        %v673 = vsel %vm666, %v660, -inf
        %674 = vmax.xlane.f32.xlu0 %v673
        %v675 = vpop.xlane.xlu0 %674
        %v676 = vsel %vm666, %v661, -inf
        %677 = vmax.xlane.f32.xlu0 %v676
        %v678 = vpop.xlane.xlu0 %677
        %v679 = vsel %vm666, %v662, -inf
        %680 = vmax.xlane.f32.xlu0 %v679
        %v681 = vpop.xlane.xlu0 %680
        %v682 = vsel %vm666, %v663, -inf
        %683 = vmax.xlane.f32.xlu0 %v682
        %v684 = vpop.xlane.xlu0 %683
        %v685 = vsel %vm666, %v664, -inf
        %686 = vmax.xlane.f32.xlu0 %v685
        %v687 = vpop.xlane.xlu0 %686
        %v688 = vsel %vm666, %v665, -inf
        %689 = vmax.xlane.f32.xlu0 %v688
        %v690 = vpop.xlane.xlu0 %689
        %v691 = vsub.f32 %v658, %v669
        %v692 = vsub.f32 %v659, %v672
        %v693 = vsub.f32 %v660, %v675
        %v694 = vsub.f32 %v661, %v678
        %v695 = vsub.f32 %v662, %v681
        %v696 = vsub.f32 %v663, %v684
        %v697 = vsub.f32 %v664, %v687
        %v698 = vsub.f32 %v665, %v690
        %v699 = vmul.f32 %v691, 1.442695
        %v700 = vpow.pop %v699
        %v701 = vmul.f32 %v692, 1.442695
        %v702 = vpow.pop %v701
        %v703 = vmul.f32 %v693, 1.442695
        %v704 = vpow.pop %v703
        %v705 = vmul.f32 %v694, 1.442695
        %v706 = vpow.pop %v705
        %v707 = vmul.f32 %v695, 1.442695
        %v708 = vpow.pop %v707
        %v709 = vmul.f32 %v696, 1.442695
        %v710 = vpow.pop %v709
        %v711 = vmul.f32 %v697, 1.442695
        %v712 = vpow.pop %v711
        %v713 = vmul.f32 %v698, 1.442695
        %v714 = vpow.pop %v713
        %v715 = vsel %vm666, %v700, 0.0
        %716 = vadd.xlane.f32.xlu0 %v715
        %v717 = vpop.xlane.xlu0 %716
        %v718 = vsel %vm666, %v702, 0.0
        %719 = vadd.xlane.f32.xlu0 %v718
        %v720 = vpop.xlane.xlu0 %719
        %v721 = vsel %vm666, %v704, 0.0
        %722 = vadd.xlane.f32.xlu0 %v721
        %v723 = vpop.xlane.xlu0 %722
        %v724 = vsel %vm666, %v706, 0.0
        %725 = vadd.xlane.f32.xlu0 %v724
        %v726 = vpop.xlane.xlu0 %725
        %v727 = vsel %vm666, %v708, 0.0
        %728 = vadd.xlane.f32.xlu0 %v727
        %v729 = vpop.xlane.xlu0 %728
        %v730 = vsel %vm666, %v710, 0.0
        %731 = vadd.xlane.f32.xlu0 %v730
        %v732 = vpop.xlane.xlu0 %731
        %v733 = vsel %vm666, %v712, 0.0
        %734 = vadd.xlane.f32.xlu0 %v733
        %v735 = vpop.xlane.xlu0 %734
        %v736 = vsel %vm666, %v714, 0.0
        %737 = vadd.xlane.f32.xlu0 %v736
        %v738 = vpop.xlane.xlu0 %737
        %v739 = vrcp.pop %v717
        %v740 = vrcp.pop %v720
        %v741 = vrcp.pop %v723
        %v742 = vrcp.pop %v726
        %v743 = vrcp.pop %v729
        %v744 = vrcp.pop %v732
        %v745 = vrcp.pop %v735
        %v746 = vrcp.pop %v738
        %v747 = vmul.f32 %v700, %v739
        %v748 = vmul.f32 %v702, %v740
        %v749 = vmul.f32 %v704, %v741
        %v750 = vmul.f32 %v706, %v742
        %v751 = vmul.f32 %v708, %v743
        %v752 = vmul.f32 %v710, %v744
        %v753 = vmul.f32 %v712, %v745
        %v754 = vmul.f32 %v714, %v746
        %v755 = vpack.c.bf16 %v748, %v747
        %v756 = vpack.c.bf16 %v750, %v749
        %v757 = vpack.c.bf16 %v752, %v751
        %v758 = vpack.c.bf16 %v754, %v753
        %759 = vrot.lane.b32.xlu0 %v437, 64
        %v760 = vpop.permute.xlu0 %759
        %v763 = vsel %vm666, %v755, 0
        %765 = vmatprep.subr.bf16.mxu0 0
        %766 = vmatpush1.bf16.msra.mxu0 0
        %767 = vmatprep.subr.bf16.mxu0 0
        %768 = vmatpush1.bf16.msra.mxu0 0
        %769 = vmatprep.subr.bf16.mxu0 0
        %770 = vmatpush1.bf16.msra.mxu0 0
        %771 = vmatprep.subr.bf16.mxu0 0
        %772 = vmatpush1.bf16.msra.mxu0 0
        %773 = vmatprep.subr.bf16.mxu0 0
        %774 = vmatpush1.bf16.msra.mxu0 0
        %775 = vmatprep.subr.bf16.mxu0 0
        %776 = vmatpush1.bf16.msra.mxu0 0
        %777 = vmatprep.subr.bf16.mxu0 0
        %778 = vmatpush1.bf16.msra.mxu0 0
        %779 = vmatprep.subr.bf16.mxu0 0
        %780 = vmatpush1.bf16.msra.mxu0 %v760
        %781 = vmatprep.subr.bf16.mxu0 0
        %782 = vmatpush2.bf16.msra.mxu0 0
        %783 = vmatprep.subr.bf16.mxu0 0
        %784 = vmatpush2.bf16.msra.mxu0 0
        %785 = vmatprep.subr.bf16.mxu0 0
        %786 = vmatpush2.bf16.msra.mxu0 0
        %787 = vmatprep.subr.bf16.mxu0 0
        %788 = vmatpush2.bf16.msra.mxu0 0
        %789 = vmatprep.subr.bf16.mxu0 0
        %790 = vmatpush2.bf16.msra.mxu0 0
        %791 = vmatprep.subr.bf16.mxu0 0
        %792 = vmatpush2.bf16.msra.mxu0 0
        %793 = vmatprep.subr.bf16.mxu0 0
        %794 = vmatpush2.bf16.msra.mxu0 0
        %795 = vmatprep.subr.bf16.mxu0 0
        %796 = vmatpush2.bf16.msra.mxu0 0
        %797 = vmatprep.mubr.bf16.mxu0 0
        %798 = vmatmul.mubr.bf16.gmra.mxu0 %v763
        %v799 = vpop.f32.mrf.mxu0
        %v800 = vadd.f32 0.0, %v799
        %v801 = vpop.f32.mrf.mxu0
        %v802 = vpop.f32.mrf.mxu0
        %v803 = vadd.f32 0.0, %v802
        %v804 = vpop.f32.mrf.mxu0
        %805 = vdwg.mxu0
        %806 = vrot.lane.b32.xlu0 %v492, 64
        %v807 = vpop.permute.xlu0 %806
        %v810 = vsel %vm666, %v756, 0
        %812 = vmatprep.subr.bf16.mxu0 0
        %813 = vmatpush1.bf16.msra.mxu0 0
        %814 = vmatprep.subr.bf16.mxu0 0
        %815 = vmatpush1.bf16.msra.mxu0 0
        %816 = vmatprep.subr.bf16.mxu0 0
        %817 = vmatpush1.bf16.msra.mxu0 0
        %818 = vmatprep.subr.bf16.mxu0 0
        %819 = vmatpush1.bf16.msra.mxu0 0
        %820 = vmatprep.subr.bf16.mxu0 0
        %821 = vmatpush1.bf16.msra.mxu0 0
        %822 = vmatprep.subr.bf16.mxu0 0
        %823 = vmatpush1.bf16.msra.mxu0 0
        %824 = vmatprep.subr.bf16.mxu0 0
        %825 = vmatpush1.bf16.msra.mxu0 0
        %826 = vmatprep.subr.bf16.mxu0 0
        %827 = vmatpush1.bf16.msra.mxu0 %v807
        %828 = vmatprep.subr.bf16.mxu0 0
        %829 = vmatpush2.bf16.msra.mxu0 0
        %830 = vmatprep.subr.bf16.mxu0 0
        %831 = vmatpush2.bf16.msra.mxu0 0
        %832 = vmatprep.subr.bf16.mxu0 0
        %833 = vmatpush2.bf16.msra.mxu0 0
        %834 = vmatprep.subr.bf16.mxu0 0
        %835 = vmatpush2.bf16.msra.mxu0 0
        %836 = vmatprep.subr.bf16.mxu0 0
        %837 = vmatpush2.bf16.msra.mxu0 0
        %838 = vmatprep.subr.bf16.mxu0 0
        %839 = vmatpush2.bf16.msra.mxu0 0
        %840 = vmatprep.subr.bf16.mxu0 0
        %841 = vmatpush2.bf16.msra.mxu0 0
        %842 = vmatprep.subr.bf16.mxu0 0
        %843 = vmatpush2.bf16.msra.mxu0 0
        %844 = vmatprep.mubr.bf16.mxu0 0
        %845 = vmatmul.mubr.bf16.gmra.mxu0 %v810
        %v846 = vpop.f32.mrf.mxu0
        %v847 = vadd.f32 0.0, %v846
        %v848 = vpop.f32.mrf.mxu0
        %v849 = vpop.f32.mrf.mxu0
        %v850 = vadd.f32 0.0, %v849
        %v851 = vpop.f32.mrf.mxu0
        %852 = vdwg.mxu0
        %853 = vrot.lane.b32.xlu0 %v546, 64
        %v854 = vpop.permute.xlu0 %853
        %v857 = vsel %vm666, %v757, 0
        %859 = vmatprep.subr.bf16.mxu0 0
        %860 = vmatpush1.bf16.msra.mxu0 0
        %861 = vmatprep.subr.bf16.mxu0 0
        %862 = vmatpush1.bf16.msra.mxu0 0
        %863 = vmatprep.subr.bf16.mxu0 0
        %864 = vmatpush1.bf16.msra.mxu0 0
        %865 = vmatprep.subr.bf16.mxu0 0
        %866 = vmatpush1.bf16.msra.mxu0 0
        %867 = vmatprep.subr.bf16.mxu0 0
        %868 = vmatpush1.bf16.msra.mxu0 0
        %869 = vmatprep.subr.bf16.mxu0 0
        %870 = vmatpush1.bf16.msra.mxu0 0
        %871 = vmatprep.subr.bf16.mxu0 0
        %872 = vmatpush1.bf16.msra.mxu0 0
        %873 = vmatprep.subr.bf16.mxu0 0
        %874 = vmatpush1.bf16.msra.mxu0 %v854
        %875 = vmatprep.subr.bf16.mxu0 0
        %876 = vmatpush2.bf16.msra.mxu0 0
        %877 = vmatprep.subr.bf16.mxu0 0
        %878 = vmatpush2.bf16.msra.mxu0 0
        %879 = vmatprep.subr.bf16.mxu0 0
        %880 = vmatpush2.bf16.msra.mxu0 0
        %881 = vmatprep.subr.bf16.mxu0 0
        %882 = vmatpush2.bf16.msra.mxu0 0
        %883 = vmatprep.subr.bf16.mxu0 0
        %884 = vmatpush2.bf16.msra.mxu0 0
        %885 = vmatprep.subr.bf16.mxu0 0
        %886 = vmatpush2.bf16.msra.mxu0 0
        %887 = vmatprep.subr.bf16.mxu0 0
        %888 = vmatpush2.bf16.msra.mxu0 0
        %889 = vmatprep.subr.bf16.mxu0 0
        %890 = vmatpush2.bf16.msra.mxu0 0
        %891 = vmatprep.mubr.bf16.mxu0 0
        %892 = vmatmul.mubr.bf16.gmra.mxu0 %v857
        %v893 = vpop.f32.mrf.mxu0
        %v894 = vadd.f32 0.0, %v893
        %v895 = vpop.f32.mrf.mxu0
        %v896 = vpop.f32.mrf.mxu0
        %v897 = vadd.f32 0.0, %v896
        %v898 = vpop.f32.mrf.mxu0
        %899 = vdwg.mxu0
        %900 = vrot.lane.b32.xlu0 %v600, 64
        %v901 = vpop.permute.xlu0 %900
        %v904 = vsel %vm666, %v758, 0
        %906 = vmatprep.subr.bf16.mxu0 0
        %907 = vmatpush1.bf16.msra.mxu0 0
        %908 = vmatprep.subr.bf16.mxu0 0
        %909 = vmatpush1.bf16.msra.mxu0 0
        %910 = vmatprep.subr.bf16.mxu0 0
        %911 = vmatpush1.bf16.msra.mxu0 0
        %912 = vmatprep.subr.bf16.mxu0 0
        %913 = vmatpush1.bf16.msra.mxu0 0
        %914 = vmatprep.subr.bf16.mxu0 0
        %915 = vmatpush1.bf16.msra.mxu0 0
        %916 = vmatprep.subr.bf16.mxu0 0
        %917 = vmatpush1.bf16.msra.mxu0 0
        %918 = vmatprep.subr.bf16.mxu0 0
        %919 = vmatpush1.bf16.msra.mxu0 0
        %920 = vmatprep.subr.bf16.mxu0 0
        %921 = vmatpush1.bf16.msra.mxu0 %v901
        %922 = vmatprep.subr.bf16.mxu0 0
        %923 = vmatpush2.bf16.msra.mxu0 0
        %924 = vmatprep.subr.bf16.mxu0 0
        %925 = vmatpush2.bf16.msra.mxu0 0
        %926 = vmatprep.subr.bf16.mxu0 0
        %927 = vmatpush2.bf16.msra.mxu0 0
        %928 = vmatprep.subr.bf16.mxu0 0
        %929 = vmatpush2.bf16.msra.mxu0 0
        %930 = vmatprep.subr.bf16.mxu0 0
        %931 = vmatpush2.bf16.msra.mxu0 0
        %932 = vmatprep.subr.bf16.mxu0 0
        %933 = vmatpush2.bf16.msra.mxu0 0
        %934 = vmatprep.subr.bf16.mxu0 0
        %935 = vmatpush2.bf16.msra.mxu0 0
        %936 = vmatprep.subr.bf16.mxu0 0
        %937 = vmatpush2.bf16.msra.mxu0 0
        %938 = vmatprep.mubr.bf16.mxu0 0
        %939 = vmatmul.mubr.bf16.gmra.mxu0 %v904
        %v940 = vpop.f32.mrf.mxu0
        %v941 = vadd.f32 0.0, %v940
        %v942 = vpop.f32.mrf.mxu0
        %v943 = vpop.f32.mrf.mxu0
        %v944 = vadd.f32 0.0, %v943
        %v945 = vpop.f32.mrf.mxu0
        %946 = vdwg.mxu0
        %v947 = vpack.c.bf16 %v803, %v800
        %v948 = vpack.c.bf16 %v850, %v847
        %v949 = vpack.c.bf16 %v897, %v894
        %v950 = vpack.c.bf16 %v944, %v941
        %v955 = vunpack.c.l.b16 %v947
        %v956 = vunpack.c.h.b16 %v947
        %v957 = vunpack.c.l.b16 %v948
        %v958 = vunpack.c.h.b16 %v948
        %v959 = vunpack.c.l.b16 %v949
        %v960 = vunpack.c.h.b16 %v949
        %v961 = vunpack.c.l.b16 %v950
        %v962 = vunpack.c.h.b16 %v950
        %v963 = vpack.c.b16 %v955, %v955
        %v964 = vpack.c.b16 %v956, %v956
        %v965 = vpack.c.b16 %v957, %v957
        %v966 = vpack.c.b16 %v958, %v958
        %v967 = vpack.c.b16 %v959, %v959
        %v968 = vpack.c.b16 %v960, %v960
        %v969 = vpack.c.b16 %v961, %v961
        %v970 = vpack.c.b16 %v962, %v962
        %vm979 = vcmask 60416
        %980 = vst.msk [vmem:[#allocation3] sm:$0xf] %vm979, %v963
        %981 = vst.msk [vmem:[#allocation3 + $0x4] sm:$0xf] %vm979, %v964
        %982 = vst.msk [vmem:[#allocation3 + $0x8] sm:$0xf] %vm979, %v965
        %983 = vst.msk [vmem:[#allocation3 + $0xc] sm:$0xf] %vm979, %v966
        %984 = vst.msk [vmem:[#allocation3 + $0x10] sm:$0xf] %vm979, %v967
        %985 = vst.msk [vmem:[#allocation3 + $0x14] sm:$0xf] %vm979, %v968
        %986 = vst.msk [vmem:[#allocation3 + $0x18] sm:$0xf] %vm979, %v969
        %987 = vst.msk [vmem:[#allocation3 + $0x1c] sm:$0xf] %vm979, %v970
        %v988 = vld [vmem:[#allocation2] sm:$0xf]
        %v989 = vld [vmem:[#allocation2 + $0x4] sm:$0xf]
        %v990 = vld [vmem:[#allocation2 + $0x8] sm:$0xf]
        %v991 = vld [vmem:[#allocation2 + $0xc] sm:$0xf]
        %v992 = vld [vmem:[#allocation2 + $0x10] sm:$0xf]
        %v993 = vld [vmem:[#allocation2 + $0x14] sm:$0xf]
        %v994 = vld [vmem:[#allocation2 + $0x18] sm:$0xf]
        %v995 = vld [vmem:[#allocation2 + $0x1c] sm:$0xf]
        %v998 = vunpack.c.l.b16 %v988
        %v999 = vunpack.c.l.b16 %v989
        %v1000 = vpack.c.b16 %v999, %v998
        %1001 = vrot.lane.b32.xlu0 %v1000, 120
        %v1002 = vpop.permute.xlu0 %1001
        %1003 = vrot.lane.b32.xlu0 %v1000, 88
        %v1004 = vpop.permute.xlu0 %1003
        %v1006 = vsel %vm440, %v1002, 0
        %v1009 = vsel %vm440, %v1004, 0
        %1011 = vmatprep.subr.bf16.mxu0 0
        %1012 = vmatpush1.bf16.xpose.msra.mxu0 0
        %1013 = vmatprep.subr.bf16.mxu0 0
        %1014 = vmatpush1.bf16.xpose.msra.mxu0 0
        %1015 = vmatprep.subr.bf16.mxu0 0
        %1016 = vmatpush1.bf16.xpose.msra.mxu0 0
        %1017 = vmatprep.subr.bf16.mxu0 0
        %1018 = vmatpush1.bf16.xpose.msra.mxu0 0
        %1019 = vmatprep.subr.bf16.mxu0 0
        %1020 = vmatpush1.bf16.xpose.msra.mxu0 0
        %1021 = vmatprep.subr.bf16.mxu0 0
        %1022 = vmatpush1.bf16.xpose.msra.mxu0 0
        %1023 = vmatprep.subr.bf16.mxu0 0
        %1024 = vmatpush1.bf16.xpose.msra.mxu0 0
        %1025 = vmatprep.subr.bf16.mxu0 0
        %1026 = vmatpush1.bf16.xpose.msra.mxu0 %v1009
        %1027 = vmatprep.subr.bf16.mxu0 0
        %1028 = vmatpush2.bf16.xpose.msra.mxu0 0
        %1029 = vmatprep.subr.bf16.mxu0 0
        %1030 = vmatpush2.bf16.xpose.msra.mxu0 0
        %1031 = vmatprep.subr.bf16.mxu0 0
        %1032 = vmatpush2.bf16.xpose.msra.mxu0 0
        %1033 = vmatprep.subr.bf16.mxu0 0
        %1034 = vmatpush2.bf16.xpose.msra.mxu0 0
        %1035 = vmatprep.subr.bf16.mxu0 0
        %1036 = vmatpush2.bf16.xpose.msra.mxu0 0
        %1037 = vmatprep.subr.bf16.mxu0 0
        %1038 = vmatpush2.bf16.xpose.msra.mxu0 0
        %1039 = vmatprep.subr.bf16.mxu0 0
        %1040 = vmatpush2.bf16.xpose.msra.mxu0 0
        %1041 = vmatprep.subr.bf16.mxu0 0
        %1042 = vmatpush2.bf16.xpose.msra.mxu0 0
        %1043 = vmatprep.mubr.bf16.mxu0 0
        %1044 = vmatmul.mubr.bf16.gmra.mxu0 %v1006
        %v1045 = vpop.f32.mrf.mxu0
        %v1046 = vadd.f32 0.0, %v1045
        %v1047 = vpop.f32.mrf.mxu0
        %v1048 = vpop.f32.mrf.mxu0
        %v1049 = vadd.f32 0.0, %v1048
        %v1050 = vpop.f32.mrf.mxu0
        %1051 = vdwg.mxu0
        %v1054 = vunpack.c.l.b16 %v990
        %v1055 = vunpack.c.l.b16 %v991
        %v1056 = vpack.c.b16 %v1055, %v1054
        %1057 = vrot.lane.b32.xlu0 %v1056, 120
        %v1058 = vpop.permute.xlu0 %1057
        %1059 = vrot.lane.b32.xlu0 %v1056, 88
        %v1060 = vpop.permute.xlu0 %1059
        %v1062 = vsel %vm440, %v1058, 0
        %v1065 = vsel %vm440, %v1060, 0
        %1067 = vmatprep.subr.bf16.mxu0 0
        %1068 = vmatpush1.bf16.xpose.msra.mxu0 0
        %1069 = vmatprep.subr.bf16.mxu0 0
        %1070 = vmatpush1.bf16.xpose.msra.mxu0 0
        %1071 = vmatprep.subr.bf16.mxu0 0
        %1072 = vmatpush1.bf16.xpose.msra.mxu0 0
        %1073 = vmatprep.subr.bf16.mxu0 0
        %1074 = vmatpush1.bf16.xpose.msra.mxu0 0
        %1075 = vmatprep.subr.bf16.mxu0 0
        %1076 = vmatpush1.bf16.xpose.msra.mxu0 0
        %1077 = vmatprep.subr.bf16.mxu0 0
        %1078 = vmatpush1.bf16.xpose.msra.mxu0 0
        %1079 = vmatprep.subr.bf16.mxu0 0
        %1080 = vmatpush1.bf16.xpose.msra.mxu0 0
        %1081 = vmatprep.subr.bf16.mxu0 0
        %1082 = vmatpush1.bf16.xpose.msra.mxu0 %v1065
        %1083 = vmatprep.subr.bf16.mxu0 0
        %1084 = vmatpush2.bf16.xpose.msra.mxu0 0
        %1085 = vmatprep.subr.bf16.mxu0 0
        %1086 = vmatpush2.bf16.xpose.msra.mxu0 0
        %1087 = vmatprep.subr.bf16.mxu0 0
        %1088 = vmatpush2.bf16.xpose.msra.mxu0 0
        %1089 = vmatprep.subr.bf16.mxu0 0
        %1090 = vmatpush2.bf16.xpose.msra.mxu0 0
        %1091 = vmatprep.subr.bf16.mxu0 0
        %1092 = vmatpush2.bf16.xpose.msra.mxu0 0
        %1093 = vmatprep.subr.bf16.mxu0 0
        %1094 = vmatpush2.bf16.xpose.msra.mxu0 0
        %1095 = vmatprep.subr.bf16.mxu0 0
        %1096 = vmatpush2.bf16.xpose.msra.mxu0 0
        %1097 = vmatprep.subr.bf16.mxu0 0
        %1098 = vmatpush2.bf16.xpose.msra.mxu0 0
        %1099 = vmatprep.mubr.bf16.mxu0 0
        %1100 = vmatmul.mubr.bf16.gmra.mxu0 %v1062
        %v1101 = vpop.f32.mrf.mxu0
        %v1102 = vadd.f32 0.0, %v1101
        %v1103 = vpop.f32.mrf.mxu0
        %v1104 = vpop.f32.mrf.mxu0
        %v1105 = vadd.f32 0.0, %v1104
        %v1106 = vpop.f32.mrf.mxu0
        %1107 = vdwg.mxu0
        %v1110 = vunpack.c.l.b16 %v992
        %v1111 = vunpack.c.l.b16 %v993
        %v1112 = vpack.c.b16 %v1111, %v1110
        %1113 = vrot.lane.b32.xlu0 %v1112, 120
        %v1114 = vpop.permute.xlu0 %1113
        %1115 = vrot.lane.b32.xlu0 %v1112, 88
        %v1116 = vpop.permute.xlu0 %1115
        %v1118 = vsel %vm440, %v1114, 0
        %v1121 = vsel %vm440, %v1116, 0
        %1123 = vmatprep.subr.bf16.mxu0 0
        %1124 = vmatpush1.bf16.xpose.msra.mxu0 0
        %1125 = vmatprep.subr.bf16.mxu0 0
        %1126 = vmatpush1.bf16.xpose.msra.mxu0 0
        %1127 = vmatprep.subr.bf16.mxu0 0
        %1128 = vmatpush1.bf16.xpose.msra.mxu0 0
        %1129 = vmatprep.subr.bf16.mxu0 0
        %1130 = vmatpush1.bf16.xpose.msra.mxu0 0
        %1131 = vmatprep.subr.bf16.mxu0 0
        %1132 = vmatpush1.bf16.xpose.msra.mxu0 0
        %1133 = vmatprep.subr.bf16.mxu0 0
        %1134 = vmatpush1.bf16.xpose.msra.mxu0 0
        %1135 = vmatprep.subr.bf16.mxu0 0
        %1136 = vmatpush1.bf16.xpose.msra.mxu0 0
        %1137 = vmatprep.subr.bf16.mxu0 0
        %1138 = vmatpush1.bf16.xpose.msra.mxu0 %v1121
        %1139 = vmatprep.subr.bf16.mxu0 0
        %1140 = vmatpush2.bf16.xpose.msra.mxu0 0
        %1141 = vmatprep.subr.bf16.mxu0 0
        %1142 = vmatpush2.bf16.xpose.msra.mxu0 0
        %1143 = vmatprep.subr.bf16.mxu0 0
        %1144 = vmatpush2.bf16.xpose.msra.mxu0 0
        %1145 = vmatprep.subr.bf16.mxu0 0
        %1146 = vmatpush2.bf16.xpose.msra.mxu0 0
        %1147 = vmatprep.subr.bf16.mxu0 0
        %1148 = vmatpush2.bf16.xpose.msra.mxu0 0
        %1149 = vmatprep.subr.bf16.mxu0 0
        %1150 = vmatpush2.bf16.xpose.msra.mxu0 0
        %1151 = vmatprep.subr.bf16.mxu0 0
        %1152 = vmatpush2.bf16.xpose.msra.mxu0 0
        %1153 = vmatprep.subr.bf16.mxu0 0
        %1154 = vmatpush2.bf16.xpose.msra.mxu0 0
        %1155 = vmatprep.mubr.bf16.mxu0 0
        %1156 = vmatmul.mubr.bf16.gmra.mxu0 %v1118
        %v1157 = vpop.f32.mrf.mxu0
        %v1158 = vadd.f32 0.0, %v1157
        %v1159 = vpop.f32.mrf.mxu0
        %v1160 = vpop.f32.mrf.mxu0
        %v1161 = vadd.f32 0.0, %v1160
        %v1162 = vpop.f32.mrf.mxu0
        %1163 = vdwg.mxu0
        %v1166 = vunpack.c.l.b16 %v994
        %v1167 = vunpack.c.l.b16 %v995
        %v1168 = vpack.c.b16 %v1167, %v1166
        %1169 = vrot.lane.b32.xlu0 %v1168, 120
        %v1170 = vpop.permute.xlu0 %1169
        %1171 = vrot.lane.b32.xlu0 %v1168, 88
        %v1172 = vpop.permute.xlu0 %1171
        %v1174 = vsel %vm440, %v1170, 0
        %v1177 = vsel %vm440, %v1172, 0
        %1179 = vmatprep.subr.bf16.mxu0 0
        %1180 = vmatpush1.bf16.xpose.msra.mxu0 0
        %1181 = vmatprep.subr.bf16.mxu0 0
        %1182 = vmatpush1.bf16.xpose.msra.mxu0 0
        %1183 = vmatprep.subr.bf16.mxu0 0
        %1184 = vmatpush1.bf16.xpose.msra.mxu0 0
        %1185 = vmatprep.subr.bf16.mxu0 0
        %1186 = vmatpush1.bf16.xpose.msra.mxu0 0
        %1187 = vmatprep.subr.bf16.mxu0 0
        %1188 = vmatpush1.bf16.xpose.msra.mxu0 0
        %1189 = vmatprep.subr.bf16.mxu0 0
        %1190 = vmatpush1.bf16.xpose.msra.mxu0 0
        %1191 = vmatprep.subr.bf16.mxu0 0
        %1192 = vmatpush1.bf16.xpose.msra.mxu0 0
        %1193 = vmatprep.subr.bf16.mxu0 0
        %1194 = vmatpush1.bf16.xpose.msra.mxu0 %v1177
        %1195 = vmatprep.subr.bf16.mxu0 0
        %1196 = vmatpush2.bf16.xpose.msra.mxu0 0
        %1197 = vmatprep.subr.bf16.mxu0 0
        %1198 = vmatpush2.bf16.xpose.msra.mxu0 0
        %1199 = vmatprep.subr.bf16.mxu0 0
        %1200 = vmatpush2.bf16.xpose.msra.mxu0 0
        %1201 = vmatprep.subr.bf16.mxu0 0
        %1202 = vmatpush2.bf16.xpose.msra.mxu0 0
        %1203 = vmatprep.subr.bf16.mxu0 0
        %1204 = vmatpush2.bf16.xpose.msra.mxu0 0
        %1205 = vmatprep.subr.bf16.mxu0 0
        %1206 = vmatpush2.bf16.xpose.msra.mxu0 0
        %1207 = vmatprep.subr.bf16.mxu0 0
        %1208 = vmatpush2.bf16.xpose.msra.mxu0 0
        %1209 = vmatprep.subr.bf16.mxu0 0
        %1210 = vmatpush2.bf16.xpose.msra.mxu0 0
        %1211 = vmatprep.mubr.bf16.mxu0 0
        %1212 = vmatmul.mubr.bf16.gmra.mxu0 %v1174
        %v1213 = vpop.f32.mrf.mxu0
        %v1214 = vadd.f32 0.0, %v1213
        %v1215 = vpop.f32.mrf.mxu0
        %v1216 = vpop.f32.mrf.mxu0
        %v1217 = vadd.f32 0.0, %v1216
        %v1218 = vpop.f32.mrf.mxu0
        %1219 = vdwg.mxu0
        %s1220 = scalar_lea.vmem [#allocation4], 16
        %v1221 = vld [vmem:[%s1220] sm:$0xff]
        %v1222 = vld [vmem:[%s1220 + $0x8] sm:$0xff]
        %v1223 = vld [vmem:[%s1220 + $0x40] sm:$0xff]
        %v1224 = vld [vmem:[%s1220 + $0x48] sm:$0xff]
        %v1225 = vld [vmem:[%s1220 + $0x80] sm:$0xff]
        %v1226 = vld [vmem:[%s1220 + $0x88] sm:$0xff]
        %v1227 = vld [vmem:[%s1220 + $0xc0] sm:$0xff]
        %v1228 = vld [vmem:[%s1220 + $0xc8] sm:$0xff]
        %v1229 = vadd.f32 %v1046, %v1221
        %v1230 = vadd.f32 %v1049, %v1222
        %v1231 = vadd.f32 %v1102, %v1223
        %v1232 = vadd.f32 %v1105, %v1224
        %v1233 = vadd.f32 %v1158, %v1225
        %v1234 = vadd.f32 %v1161, %v1226
        %v1235 = vadd.f32 %v1214, %v1227
        %v1236 = vadd.f32 %v1217, %v1228
        %v1237 = vsel %vm666, %v1229, -inf
        %1238 = vmax.xlane.f32.xlu0 %v1237
        %v1239 = vpop.xlane.xlu0 %1238
        %v1240 = vsel %vm666, %v1230, -inf
        %1241 = vmax.xlane.f32.xlu0 %v1240
        %v1242 = vpop.xlane.xlu0 %1241
        %v1243 = vsel %vm666, %v1231, -inf
        %1244 = vmax.xlane.f32.xlu0 %v1243
        %v1245 = vpop.xlane.xlu0 %1244
        %v1246 = vsel %vm666, %v1232, -inf
        %1247 = vmax.xlane.f32.xlu0 %v1246
        %v1248 = vpop.xlane.xlu0 %1247
        %v1249 = vsel %vm666, %v1233, -inf
        %1250 = vmax.xlane.f32.xlu0 %v1249
        %v1251 = vpop.xlane.xlu0 %1250
        %v1252 = vsel %vm666, %v1234, -inf
        %1253 = vmax.xlane.f32.xlu0 %v1252
        %v1254 = vpop.xlane.xlu0 %1253
        %v1255 = vsel %vm666, %v1235, -inf
        %1256 = vmax.xlane.f32.xlu0 %v1255
        %v1257 = vpop.xlane.xlu0 %1256
        %v1258 = vsel %vm666, %v1236, -inf
        %1259 = vmax.xlane.f32.xlu0 %v1258
        %v1260 = vpop.xlane.xlu0 %1259
        %v1261 = vsub.f32 %v1229, %v1239
        %v1262 = vsub.f32 %v1230, %v1242
        %v1263 = vsub.f32 %v1231, %v1245
        %v1264 = vsub.f32 %v1232, %v1248
        %v1265 = vsub.f32 %v1233, %v1251
        %v1266 = vsub.f32 %v1234, %v1254
        %v1267 = vsub.f32 %v1235, %v1257
        %v1268 = vsub.f32 %v1236, %v1260
        %v1269 = vmul.f32 %v1261, 1.442695
        %v1270 = vpow.pop %v1269
        %v1271 = vmul.f32 %v1262, 1.442695
        %v1272 = vpow.pop %v1271
        %v1273 = vmul.f32 %v1263, 1.442695
        %v1274 = vpow.pop %v1273
        %v1275 = vmul.f32 %v1264, 1.442695
        %v1276 = vpow.pop %v1275
        %v1277 = vmul.f32 %v1265, 1.442695
        %v1278 = vpow.pop %v1277
        %v1279 = vmul.f32 %v1266, 1.442695
        %v1280 = vpow.pop %v1279
        %v1281 = vmul.f32 %v1267, 1.442695
        %v1282 = vpow.pop %v1281
        %v1283 = vmul.f32 %v1268, 1.442695
        %v1284 = vpow.pop %v1283
        %v1285 = vsel %vm666, %v1270, 0.0
        %1286 = vadd.xlane.f32.xlu0 %v1285
        %v1287 = vpop.xlane.xlu0 %1286
        %v1288 = vsel %vm666, %v1272, 0.0
        %1289 = vadd.xlane.f32.xlu0 %v1288
        %v1290 = vpop.xlane.xlu0 %1289
        %v1291 = vsel %vm666, %v1274, 0.0
        %1292 = vadd.xlane.f32.xlu0 %v1291
        %v1293 = vpop.xlane.xlu0 %1292
        %v1294 = vsel %vm666, %v1276, 0.0
        %1295 = vadd.xlane.f32.xlu0 %v1294
        %v1296 = vpop.xlane.xlu0 %1295
        %v1297 = vsel %vm666, %v1278, 0.0
        %1298 = vadd.xlane.f32.xlu0 %v1297
        %v1299 = vpop.xlane.xlu0 %1298
        %v1300 = vsel %vm666, %v1280, 0.0
        %1301 = vadd.xlane.f32.xlu0 %v1300
        %v1302 = vpop.xlane.xlu0 %1301
        %v1303 = vsel %vm666, %v1282, 0.0
        %1304 = vadd.xlane.f32.xlu0 %v1303
        %v1305 = vpop.xlane.xlu0 %1304
        %v1306 = vsel %vm666, %v1284, 0.0
        %1307 = vadd.xlane.f32.xlu0 %v1306
        %v1308 = vpop.xlane.xlu0 %1307
        %v1309 = vrcp.pop %v1287
        %v1310 = vrcp.pop %v1290
        %v1311 = vrcp.pop %v1293
        %v1312 = vrcp.pop %v1296
        %v1313 = vrcp.pop %v1299
        %v1314 = vrcp.pop %v1302
        %v1315 = vrcp.pop %v1305
        %v1316 = vrcp.pop %v1308
        %v1317 = vmul.f32 %v1270, %v1309
        %v1318 = vmul.f32 %v1272, %v1310
        %v1319 = vmul.f32 %v1274, %v1311
        %v1320 = vmul.f32 %v1276, %v1312
        %v1321 = vmul.f32 %v1278, %v1313
        %v1322 = vmul.f32 %v1280, %v1314
        %v1323 = vmul.f32 %v1282, %v1315
        %v1324 = vmul.f32 %v1284, %v1316
        %v1325 = vpack.c.bf16 %v1318, %v1317
        %v1326 = vpack.c.bf16 %v1320, %v1319
        %v1327 = vpack.c.bf16 %v1322, %v1321
        %v1328 = vpack.c.bf16 %v1324, %v1323
        %1329 = vrot.lane.b32.xlu0 %v1000, 56
        %v1330 = vpop.permute.xlu0 %1329
        %v1333 = vsel %vm666, %v1325, 0
        %1335 = vmatprep.subr.bf16.mxu0 0
        %1336 = vmatpush1.bf16.msra.mxu0 0
        %1337 = vmatprep.subr.bf16.mxu0 0
        %1338 = vmatpush1.bf16.msra.mxu0 0
        %1339 = vmatprep.subr.bf16.mxu0 0
        %1340 = vmatpush1.bf16.msra.mxu0 0
        %1341 = vmatprep.subr.bf16.mxu0 0
        %1342 = vmatpush1.bf16.msra.mxu0 0
        %1343 = vmatprep.subr.bf16.mxu0 0
        %1344 = vmatpush1.bf16.msra.mxu0 0
        %1345 = vmatprep.subr.bf16.mxu0 0
        %1346 = vmatpush1.bf16.msra.mxu0 0
        %1347 = vmatprep.subr.bf16.mxu0 0
        %1348 = vmatpush1.bf16.msra.mxu0 0
        %1349 = vmatprep.subr.bf16.mxu0 0
        %1350 = vmatpush1.bf16.msra.mxu0 %v1330
        %1351 = vmatprep.subr.bf16.mxu0 0
        %1352 = vmatpush2.bf16.msra.mxu0 0
        %1353 = vmatprep.subr.bf16.mxu0 0
        %1354 = vmatpush2.bf16.msra.mxu0 0
        %1355 = vmatprep.subr.bf16.mxu0 0
        %1356 = vmatpush2.bf16.msra.mxu0 0
        %1357 = vmatprep.subr.bf16.mxu0 0
        %1358 = vmatpush2.bf16.msra.mxu0 0
        %1359 = vmatprep.subr.bf16.mxu0 0
        %1360 = vmatpush2.bf16.msra.mxu0 0
        %1361 = vmatprep.subr.bf16.mxu0 0
        %1362 = vmatpush2.bf16.msra.mxu0 0
        %1363 = vmatprep.subr.bf16.mxu0 0
        %1364 = vmatpush2.bf16.msra.mxu0 0
        %1365 = vmatprep.subr.bf16.mxu0 0
        %1366 = vmatpush2.bf16.msra.mxu0 0
        %1367 = vmatprep.mubr.bf16.mxu0 0
        %1368 = vmatmul.mubr.bf16.gmra.mxu0 %v1333
        %v1369 = vpop.f32.mrf.mxu0
        %v1370 = vadd.f32 0.0, %v1369
        %v1371 = vpop.f32.mrf.mxu0
        %v1372 = vpop.f32.mrf.mxu0
        %v1373 = vadd.f32 0.0, %v1372
        %v1374 = vpop.f32.mrf.mxu0
        %1375 = vdwg.mxu0
        %1376 = vrot.lane.b32.xlu0 %v1056, 56
        %v1377 = vpop.permute.xlu0 %1376
        %v1380 = vsel %vm666, %v1326, 0
        %1382 = vmatprep.subr.bf16.mxu0 0
        %1383 = vmatpush1.bf16.msra.mxu0 0
        %1384 = vmatprep.subr.bf16.mxu0 0
        %1385 = vmatpush1.bf16.msra.mxu0 0
        %1386 = vmatprep.subr.bf16.mxu0 0
        %1387 = vmatpush1.bf16.msra.mxu0 0
        %1388 = vmatprep.subr.bf16.mxu0 0
        %1389 = vmatpush1.bf16.msra.mxu0 0
        %1390 = vmatprep.subr.bf16.mxu0 0
        %1391 = vmatpush1.bf16.msra.mxu0 0
        %1392 = vmatprep.subr.bf16.mxu0 0
        %1393 = vmatpush1.bf16.msra.mxu0 0
        %1394 = vmatprep.subr.bf16.mxu0 0
        %1395 = vmatpush1.bf16.msra.mxu0 0
        %1396 = vmatprep.subr.bf16.mxu0 0
        %1397 = vmatpush1.bf16.msra.mxu0 %v1377
        %1398 = vmatprep.subr.bf16.mxu0 0
        %1399 = vmatpush2.bf16.msra.mxu0 0
        %1400 = vmatprep.subr.bf16.mxu0 0
        %1401 = vmatpush2.bf16.msra.mxu0 0
        %1402 = vmatprep.subr.bf16.mxu0 0
        %1403 = vmatpush2.bf16.msra.mxu0 0
        %1404 = vmatprep.subr.bf16.mxu0 0
        %1405 = vmatpush2.bf16.msra.mxu0 0
        %1406 = vmatprep.subr.bf16.mxu0 0
        %1407 = vmatpush2.bf16.msra.mxu0 0
        %1408 = vmatprep.subr.bf16.mxu0 0
        %1409 = vmatpush2.bf16.msra.mxu0 0
        %1410 = vmatprep.subr.bf16.mxu0 0
        %1411 = vmatpush2.bf16.msra.mxu0 0
        %1412 = vmatprep.subr.bf16.mxu0 0
        %1413 = vmatpush2.bf16.msra.mxu0 0
        %1414 = vmatprep.mubr.bf16.mxu0 0
        %1415 = vmatmul.mubr.bf16.gmra.mxu0 %v1380
        %v1416 = vpop.f32.mrf.mxu0
        %v1417 = vadd.f32 0.0, %v1416
        %v1418 = vpop.f32.mrf.mxu0
        %v1419 = vpop.f32.mrf.mxu0
        %v1420 = vadd.f32 0.0, %v1419
        %v1421 = vpop.f32.mrf.mxu0
        %1422 = vdwg.mxu0
        %1423 = vrot.lane.b32.xlu0 %v1112, 56
        %v1424 = vpop.permute.xlu0 %1423
        %v1427 = vsel %vm666, %v1327, 0
        %1429 = vmatprep.subr.bf16.mxu0 0
        %1430 = vmatpush1.bf16.msra.mxu0 0
        %1431 = vmatprep.subr.bf16.mxu0 0
        %1432 = vmatpush1.bf16.msra.mxu0 0
        %1433 = vmatprep.subr.bf16.mxu0 0
        %1434 = vmatpush1.bf16.msra.mxu0 0
        %1435 = vmatprep.subr.bf16.mxu0 0
        %1436 = vmatpush1.bf16.msra.mxu0 0
        %1437 = vmatprep.subr.bf16.mxu0 0
        %1438 = vmatpush1.bf16.msra.mxu0 0
        %1439 = vmatprep.subr.bf16.mxu0 0
        %1440 = vmatpush1.bf16.msra.mxu0 0
        %1441 = vmatprep.subr.bf16.mxu0 0
        %1442 = vmatpush1.bf16.msra.mxu0 0
        %1443 = vmatprep.subr.bf16.mxu0 0
        %1444 = vmatpush1.bf16.msra.mxu0 %v1424
        %1445 = vmatprep.subr.bf16.mxu0 0
        %1446 = vmatpush2.bf16.msra.mxu0 0
        %1447 = vmatprep.subr.bf16.mxu0 0
        %1448 = vmatpush2.bf16.msra.mxu0 0
        %1449 = vmatprep.subr.bf16.mxu0 0
        %1450 = vmatpush2.bf16.msra.mxu0 0
        %1451 = vmatprep.subr.bf16.mxu0 0
        %1452 = vmatpush2.bf16.msra.mxu0 0
        %1453 = vmatprep.subr.bf16.mxu0 0
        %1454 = vmatpush2.bf16.msra.mxu0 0
        %1455 = vmatprep.subr.bf16.mxu0 0
        %1456 = vmatpush2.bf16.msra.mxu0 0
        %1457 = vmatprep.subr.bf16.mxu0 0
        %1458 = vmatpush2.bf16.msra.mxu0 0
        %1459 = vmatprep.subr.bf16.mxu0 0
        %1460 = vmatpush2.bf16.msra.mxu0 0
        %1461 = vmatprep.mubr.bf16.mxu0 0
        %1462 = vmatmul.mubr.bf16.gmra.mxu0 %v1427
        %v1463 = vpop.f32.mrf.mxu0
        %v1464 = vadd.f32 0.0, %v1463
        %v1465 = vpop.f32.mrf.mxu0
        %v1466 = vpop.f32.mrf.mxu0
        %v1467 = vadd.f32 0.0, %v1466
        %v1468 = vpop.f32.mrf.mxu0
        %1469 = vdwg.mxu0
        %1470 = vrot.lane.b32.xlu0 %v1168, 56
        %v1471 = vpop.permute.xlu0 %1470
        %v1474 = vsel %vm666, %v1328, 0
        %1476 = vmatprep.subr.bf16.mxu0 0
        %1477 = vmatpush1.bf16.msra.mxu0 0
        %1478 = vmatprep.subr.bf16.mxu0 0
        %1479 = vmatpush1.bf16.msra.mxu0 0
        %1480 = vmatprep.subr.bf16.mxu0 0
        %1481 = vmatpush1.bf16.msra.mxu0 0
        %1482 = vmatprep.subr.bf16.mxu0 0
        %1483 = vmatpush1.bf16.msra.mxu0 0
        %1484 = vmatprep.subr.bf16.mxu0 0
        %1485 = vmatpush1.bf16.msra.mxu0 0
        %1486 = vmatprep.subr.bf16.mxu0 0
        %1487 = vmatpush1.bf16.msra.mxu0 0
        %1488 = vmatprep.subr.bf16.mxu0 0
        %1489 = vmatpush1.bf16.msra.mxu0 0
        %1490 = vmatprep.subr.bf16.mxu0 0
        %1491 = vmatpush1.bf16.msra.mxu0 %v1471
        %1492 = vmatprep.subr.bf16.mxu0 0
        %1493 = vmatpush2.bf16.msra.mxu0 0
        %1494 = vmatprep.subr.bf16.mxu0 0
        %1495 = vmatpush2.bf16.msra.mxu0 0
        %1496 = vmatprep.subr.bf16.mxu0 0
        %1497 = vmatpush2.bf16.msra.mxu0 0
        %1498 = vmatprep.subr.bf16.mxu0 0
        %1499 = vmatpush2.bf16.msra.mxu0 0
        %1500 = vmatprep.subr.bf16.mxu0 0
        %1501 = vmatpush2.bf16.msra.mxu0 0
        %1502 = vmatprep.subr.bf16.mxu0 0
        %1503 = vmatpush2.bf16.msra.mxu0 0
        %1504 = vmatprep.subr.bf16.mxu0 0
        %1505 = vmatpush2.bf16.msra.mxu0 0
        %1506 = vmatprep.subr.bf16.mxu0 0
        %1507 = vmatpush2.bf16.msra.mxu0 0
        %1508 = vmatprep.mubr.bf16.mxu0 0
        %1509 = vmatmul.mubr.bf16.gmra.mxu0 %v1474
        %v1510 = vpop.f32.mrf.mxu0
        %v1511 = vadd.f32 0.0, %v1510
        %v1512 = vpop.f32.mrf.mxu0
        %v1513 = vpop.f32.mrf.mxu0
        %v1514 = vadd.f32 0.0, %v1513
        %v1515 = vpop.f32.mrf.mxu0
        %1516 = vdwg.mxu0
        %v1517 = vpack.c.bf16 %v1373, %v1370
        %v1518 = vpack.c.bf16 %v1420, %v1417
        %v1519 = vpack.c.bf16 %v1467, %v1464
        %v1520 = vpack.c.bf16 %v1514, %v1511
        %v1525 = vunpack.c.l.b16 %v1517
        %v1526 = vunpack.c.h.b16 %v1517
        %v1527 = vunpack.c.l.b16 %v1518
        %v1528 = vunpack.c.h.b16 %v1518
        %v1529 = vunpack.c.l.b16 %v1519
        %v1530 = vunpack.c.h.b16 %v1519
        %v1531 = vunpack.c.l.b16 %v1520
        %v1532 = vunpack.c.h.b16 %v1520
        %v1533 = vpack.c.b16 %v1525, %v1525
        %v1534 = vpack.c.b16 %v1526, %v1526
        %v1535 = vpack.c.b16 %v1527, %v1527
        %v1536 = vpack.c.b16 %v1528, %v1528
        %v1537 = vpack.c.b16 %v1529, %v1529
        %v1538 = vpack.c.b16 %v1530, %v1530
        %v1539 = vpack.c.b16 %v1531, %v1531
        %v1540 = vpack.c.b16 %v1532, %v1532
        %1541 = vrot.lane.b32.xlu0 %v1533, 8
        %v1542 = vpop.permute.xlu0 %1541
        %1543 = vrot.lane.b32.xlu0 %v1534, 8
        %v1544 = vpop.permute.xlu0 %1543
        %1545 = vrot.lane.b32.xlu0 %v1535, 8
        %v1546 = vpop.permute.xlu0 %1545
        %1547 = vrot.lane.b32.xlu0 %v1536, 8
        %v1548 = vpop.permute.xlu0 %1547
        %1549 = vrot.lane.b32.xlu0 %v1537, 8
        %v1550 = vpop.permute.xlu0 %1549
        %1551 = vrot.lane.b32.xlu0 %v1538, 8
        %v1552 = vpop.permute.xlu0 %1551
        %1553 = vrot.lane.b32.xlu0 %v1539, 8
        %v1554 = vpop.permute.xlu0 %1553
        %1555 = vrot.lane.b32.xlu0 %v1540, 8
        %v1556 = vpop.permute.xlu0 %1555
        %vm1565 = vcmask 126016
        %1566 = vst.msk [vmem:[#allocation3] sm:$0xf] %vm1565, %v1542
        %1567 = vst.msk [vmem:[#allocation3 + $0x4] sm:$0xf] %vm1565, %v1544
        %1568 = vst.msk [vmem:[#allocation3 + $0x8] sm:$0xf] %vm1565, %v1546
        %1569 = vst.msk [vmem:[#allocation3 + $0xc] sm:$0xf] %vm1565, %v1548
        %1570 = vst.msk [vmem:[#allocation3 + $0x10] sm:$0xf] %vm1565, %v1550
        %1571 = vst.msk [vmem:[#allocation3 + $0x14] sm:$0xf] %vm1565, %v1552
        %1572 = vst.msk [vmem:[#allocation3 + $0x18] sm:$0xf] %vm1565, %v1554
        %1573 = vst.msk [vmem:[#allocation3 + $0x1c] sm:$0xf] %vm1565, %v1556
        %v1574 = vld [vmem:[#allocation2] sm:$0xf]
        %v1575 = vld [vmem:[#allocation2 + $0x4] sm:$0xf]
        %v1576 = vld [vmem:[#allocation2 + $0x8] sm:$0xf]
        %v1577 = vld [vmem:[#allocation2 + $0xc] sm:$0xf]
        %v1578 = vld [vmem:[#allocation2 + $0x10] sm:$0xf]
        %v1579 = vld [vmem:[#allocation2 + $0x14] sm:$0xf]
        %v1580 = vld [vmem:[#allocation2 + $0x18] sm:$0xf]
        %v1581 = vld [vmem:[#allocation2 + $0x1c] sm:$0xf]
        %v1584 = vunpack.c.l.b16 %v1574
        %v1585 = vunpack.c.l.b16 %v1575
        %v1586 = vpack.c.b16 %v1585, %v1584
        %1587 = vrot.lane.b32.xlu0 %v1586, 112
        %v1588 = vpop.permute.xlu0 %1587
        %1589 = vrot.lane.b32.xlu0 %v1586, 80
        %v1590 = vpop.permute.xlu0 %1589
        %v1592 = vsel %vm440, %v1588, 0
        %v1595 = vsel %vm440, %v1590, 0
        %1597 = vmatprep.subr.bf16.mxu0 0
        %1598 = vmatpush1.bf16.xpose.msra.mxu0 0
        %1599 = vmatprep.subr.bf16.mxu0 0
        %1600 = vmatpush1.bf16.xpose.msra.mxu0 0
        %1601 = vmatprep.subr.bf16.mxu0 0
        %1602 = vmatpush1.bf16.xpose.msra.mxu0 0
        %1603 = vmatprep.subr.bf16.mxu0 0
        %1604 = vmatpush1.bf16.xpose.msra.mxu0 0
        %1605 = vmatprep.subr.bf16.mxu0 0
        %1606 = vmatpush1.bf16.xpose.msra.mxu0 0
        %1607 = vmatprep.subr.bf16.mxu0 0
        %1608 = vmatpush1.bf16.xpose.msra.mxu0 0
        %1609 = vmatprep.subr.bf16.mxu0 0
        %1610 = vmatpush1.bf16.xpose.msra.mxu0 0
        %1611 = vmatprep.subr.bf16.mxu0 0
        %1612 = vmatpush1.bf16.xpose.msra.mxu0 %v1595
        %1613 = vmatprep.subr.bf16.mxu0 0
        %1614 = vmatpush2.bf16.xpose.msra.mxu0 0
        %1615 = vmatprep.subr.bf16.mxu0 0
        %1616 = vmatpush2.bf16.xpose.msra.mxu0 0
        %1617 = vmatprep.subr.bf16.mxu0 0
        %1618 = vmatpush2.bf16.xpose.msra.mxu0 0
        %1619 = vmatprep.subr.bf16.mxu0 0
        %1620 = vmatpush2.bf16.xpose.msra.mxu0 0
        %1621 = vmatprep.subr.bf16.mxu0 0
        %1622 = vmatpush2.bf16.xpose.msra.mxu0 0
        %1623 = vmatprep.subr.bf16.mxu0 0
        %1624 = vmatpush2.bf16.xpose.msra.mxu0 0
        %1625 = vmatprep.subr.bf16.mxu0 0
        %1626 = vmatpush2.bf16.xpose.msra.mxu0 0
        %1627 = vmatprep.subr.bf16.mxu0 0
        %1628 = vmatpush2.bf16.xpose.msra.mxu0 0
        %1629 = vmatprep.mubr.bf16.mxu0 0
        %1630 = vmatmul.mubr.bf16.gmra.mxu0 %v1592
        %v1631 = vpop.f32.mrf.mxu0
        %v1632 = vadd.f32 0.0, %v1631
        %v1633 = vpop.f32.mrf.mxu0
        %v1634 = vpop.f32.mrf.mxu0
        %v1635 = vadd.f32 0.0, %v1634
        %v1636 = vpop.f32.mrf.mxu0
        %1637 = vdwg.mxu0
        %v1640 = vunpack.c.l.b16 %v1576
        %v1641 = vunpack.c.l.b16 %v1577
        %v1642 = vpack.c.b16 %v1641, %v1640
        %1643 = vrot.lane.b32.xlu0 %v1642, 112
        %v1644 = vpop.permute.xlu0 %1643
        %1645 = vrot.lane.b32.xlu0 %v1642, 80
        %v1646 = vpop.permute.xlu0 %1645
        %v1648 = vsel %vm440, %v1644, 0
        %v1651 = vsel %vm440, %v1646, 0
        %1653 = vmatprep.subr.bf16.mxu0 0
        %1654 = vmatpush1.bf16.xpose.msra.mxu0 0
        %1655 = vmatprep.subr.bf16.mxu0 0
        %1656 = vmatpush1.bf16.xpose.msra.mxu0 0
        %1657 = vmatprep.subr.bf16.mxu0 0
        %1658 = vmatpush1.bf16.xpose.msra.mxu0 0
        %1659 = vmatprep.subr.bf16.mxu0 0
        %1660 = vmatpush1.bf16.xpose.msra.mxu0 0
        %1661 = vmatprep.subr.bf16.mxu0 0
        %1662 = vmatpush1.bf16.xpose.msra.mxu0 0
        %1663 = vmatprep.subr.bf16.mxu0 0
        %1664 = vmatpush1.bf16.xpose.msra.mxu0 0
        %1665 = vmatprep.subr.bf16.mxu0 0
        %1666 = vmatpush1.bf16.xpose.msra.mxu0 0
        %1667 = vmatprep.subr.bf16.mxu0 0
        %1668 = vmatpush1.bf16.xpose.msra.mxu0 %v1651
        %1669 = vmatprep.subr.bf16.mxu0 0
        %1670 = vmatpush2.bf16.xpose.msra.mxu0 0
        %1671 = vmatprep.subr.bf16.mxu0 0
        %1672 = vmatpush2.bf16.xpose.msra.mxu0 0
        %1673 = vmatprep.subr.bf16.mxu0 0
        %1674 = vmatpush2.bf16.xpose.msra.mxu0 0
        %1675 = vmatprep.subr.bf16.mxu0 0
        %1676 = vmatpush2.bf16.xpose.msra.mxu0 0
        %1677 = vmatprep.subr.bf16.mxu0 0
        %1678 = vmatpush2.bf16.xpose.msra.mxu0 0
        %1679 = vmatprep.subr.bf16.mxu0 0
        %1680 = vmatpush2.bf16.xpose.msra.mxu0 0
        %1681 = vmatprep.subr.bf16.mxu0 0
        %1682 = vmatpush2.bf16.xpose.msra.mxu0 0
        %1683 = vmatprep.subr.bf16.mxu0 0
        %1684 = vmatpush2.bf16.xpose.msra.mxu0 0
        %1685 = vmatprep.mubr.bf16.mxu0 0
        %1686 = vmatmul.mubr.bf16.gmra.mxu0 %v1648
        %v1687 = vpop.f32.mrf.mxu0
        %v1688 = vadd.f32 0.0, %v1687
        %v1689 = vpop.f32.mrf.mxu0
        %v1690 = vpop.f32.mrf.mxu0
        %v1691 = vadd.f32 0.0, %v1690
        %v1692 = vpop.f32.mrf.mxu0
        %1693 = vdwg.mxu0
        %v1696 = vunpack.c.l.b16 %v1578
        %v1697 = vunpack.c.l.b16 %v1579
        %v1698 = vpack.c.b16 %v1697, %v1696
        %1699 = vrot.lane.b32.xlu0 %v1698, 112
        %v1700 = vpop.permute.xlu0 %1699
        %1701 = vrot.lane.b32.xlu0 %v1698, 80
        %v1702 = vpop.permute.xlu0 %1701
        %v1704 = vsel %vm440, %v1700, 0
        %v1707 = vsel %vm440, %v1702, 0
        %1709 = vmatprep.subr.bf16.mxu0 0
        %1710 = vmatpush1.bf16.xpose.msra.mxu0 0
        %1711 = vmatprep.subr.bf16.mxu0 0
        %1712 = vmatpush1.bf16.xpose.msra.mxu0 0
        %1713 = vmatprep.subr.bf16.mxu0 0
        %1714 = vmatpush1.bf16.xpose.msra.mxu0 0
        %1715 = vmatprep.subr.bf16.mxu0 0
        %1716 = vmatpush1.bf16.xpose.msra.mxu0 0
        %1717 = vmatprep.subr.bf16.mxu0 0
        %1718 = vmatpush1.bf16.xpose.msra.mxu0 0
        %1719 = vmatprep.subr.bf16.mxu0 0
        %1720 = vmatpush1.bf16.xpose.msra.mxu0 0
        %1721 = vmatprep.subr.bf16.mxu0 0
        %1722 = vmatpush1.bf16.xpose.msra.mxu0 0
        %1723 = vmatprep.subr.bf16.mxu0 0
        %1724 = vmatpush1.bf16.xpose.msra.mxu0 %v1707
        %1725 = vmatprep.subr.bf16.mxu0 0
        %1726 = vmatpush2.bf16.xpose.msra.mxu0 0
        %1727 = vmatprep.subr.bf16.mxu0 0
        %1728 = vmatpush2.bf16.xpose.msra.mxu0 0
        %1729 = vmatprep.subr.bf16.mxu0 0
        %1730 = vmatpush2.bf16.xpose.msra.mxu0 0
        %1731 = vmatprep.subr.bf16.mxu0 0
        %1732 = vmatpush2.bf16.xpose.msra.mxu0 0
        %1733 = vmatprep.subr.bf16.mxu0 0
        %1734 = vmatpush2.bf16.xpose.msra.mxu0 0
        %1735 = vmatprep.subr.bf16.mxu0 0
        %1736 = vmatpush2.bf16.xpose.msra.mxu0 0
        %1737 = vmatprep.subr.bf16.mxu0 0
        %1738 = vmatpush2.bf16.xpose.msra.mxu0 0
        %1739 = vmatprep.subr.bf16.mxu0 0
        %1740 = vmatpush2.bf16.xpose.msra.mxu0 0
        %1741 = vmatprep.mubr.bf16.mxu0 0
        %1742 = vmatmul.mubr.bf16.gmra.mxu0 %v1704
        %v1743 = vpop.f32.mrf.mxu0
        %v1744 = vadd.f32 0.0, %v1743
        %v1745 = vpop.f32.mrf.mxu0
        %v1746 = vpop.f32.mrf.mxu0
        %v1747 = vadd.f32 0.0, %v1746
        %v1748 = vpop.f32.mrf.mxu0
        %1749 = vdwg.mxu0
        %v1752 = vunpack.c.l.b16 %v1580
        %v1753 = vunpack.c.l.b16 %v1581
        %v1754 = vpack.c.b16 %v1753, %v1752
        %1755 = vrot.lane.b32.xlu0 %v1754, 112
        %v1756 = vpop.permute.xlu0 %1755
        %1757 = vrot.lane.b32.xlu0 %v1754, 80
        %v1758 = vpop.permute.xlu0 %1757
        %v1760 = vsel %vm440, %v1756, 0
        %v1763 = vsel %vm440, %v1758, 0
        %1765 = vmatprep.subr.bf16.mxu0 0
        %1766 = vmatpush1.bf16.xpose.msra.mxu0 0
        %1767 = vmatprep.subr.bf16.mxu0 0
        %1768 = vmatpush1.bf16.xpose.msra.mxu0 0
        %1769 = vmatprep.subr.bf16.mxu0 0
        %1770 = vmatpush1.bf16.xpose.msra.mxu0 0
        %1771 = vmatprep.subr.bf16.mxu0 0
        %1772 = vmatpush1.bf16.xpose.msra.mxu0 0
        %1773 = vmatprep.subr.bf16.mxu0 0
        %1774 = vmatpush1.bf16.xpose.msra.mxu0 0
        %1775 = vmatprep.subr.bf16.mxu0 0
        %1776 = vmatpush1.bf16.xpose.msra.mxu0 0
        %1777 = vmatprep.subr.bf16.mxu0 0
        %1778 = vmatpush1.bf16.xpose.msra.mxu0 0
        %1779 = vmatprep.subr.bf16.mxu0 0
        %1780 = vmatpush1.bf16.xpose.msra.mxu0 %v1763
        %1781 = vmatprep.subr.bf16.mxu0 0
        %1782 = vmatpush2.bf16.xpose.msra.mxu0 0
        %1783 = vmatprep.subr.bf16.mxu0 0
        %1784 = vmatpush2.bf16.xpose.msra.mxu0 0
        %1785 = vmatprep.subr.bf16.mxu0 0
        %1786 = vmatpush2.bf16.xpose.msra.mxu0 0
        %1787 = vmatprep.subr.bf16.mxu0 0
        %1788 = vmatpush2.bf16.xpose.msra.mxu0 0
        %1789 = vmatprep.subr.bf16.mxu0 0
        %1790 = vmatpush2.bf16.xpose.msra.mxu0 0
        %1791 = vmatprep.subr.bf16.mxu0 0
        %1792 = vmatpush2.bf16.xpose.msra.mxu0 0
        %1793 = vmatprep.subr.bf16.mxu0 0
        %1794 = vmatpush2.bf16.xpose.msra.mxu0 0
        %1795 = vmatprep.subr.bf16.mxu0 0
        %1796 = vmatpush2.bf16.xpose.msra.mxu0 0
        %1797 = vmatprep.mubr.bf16.mxu0 0
        %1798 = vmatmul.mubr.bf16.gmra.mxu0 %v1760
        %v1799 = vpop.f32.mrf.mxu0
        %v1800 = vadd.f32 0.0, %v1799
        %v1801 = vpop.f32.mrf.mxu0
        %v1802 = vpop.f32.mrf.mxu0
        %v1803 = vadd.f32 0.0, %v1802
        %v1804 = vpop.f32.mrf.mxu0
        %1805 = vdwg.mxu0
        %s1806 = scalar_lea.vmem [#allocation4], 32
        %v1807 = vld [vmem:[%s1806] sm:$0xff]
        %v1808 = vld [vmem:[%s1806 + $0x8] sm:$0xff]
        %v1809 = vld [vmem:[%s1806 + $0x40] sm:$0xff]
        %v1810 = vld [vmem:[%s1806 + $0x48] sm:$0xff]
        %v1811 = vld [vmem:[%s1806 + $0x80] sm:$0xff]
        %v1812 = vld [vmem:[%s1806 + $0x88] sm:$0xff]
        %v1813 = vld [vmem:[%s1806 + $0xc0] sm:$0xff]
        %v1814 = vld [vmem:[%s1806 + $0xc8] sm:$0xff]
        %v1815 = vadd.f32 %v1632, %v1807
        %v1816 = vadd.f32 %v1635, %v1808
        %v1817 = vadd.f32 %v1688, %v1809
        %v1818 = vadd.f32 %v1691, %v1810
        %v1819 = vadd.f32 %v1744, %v1811
        %v1820 = vadd.f32 %v1747, %v1812
        %v1821 = vadd.f32 %v1800, %v1813
        %v1822 = vadd.f32 %v1803, %v1814
        %v1823 = vsel %vm666, %v1815, -inf
        %1824 = vmax.xlane.f32.xlu0 %v1823
        %v1825 = vpop.xlane.xlu0 %1824
        %v1826 = vsel %vm666, %v1816, -inf
        %1827 = vmax.xlane.f32.xlu0 %v1826
        %v1828 = vpop.xlane.xlu0 %1827
        %v1829 = vsel %vm666, %v1817, -inf
        %1830 = vmax.xlane.f32.xlu0 %v1829
        %v1831 = vpop.xlane.xlu0 %1830
        %v1832 = vsel %vm666, %v1818, -inf
        %1833 = vmax.xlane.f32.xlu0 %v1832
        %v1834 = vpop.xlane.xlu0 %1833
        %v1835 = vsel %vm666, %v1819, -inf
        %1836 = vmax.xlane.f32.xlu0 %v1835
        %v1837 = vpop.xlane.xlu0 %1836
        %v1838 = vsel %vm666, %v1820, -inf
        %1839 = vmax.xlane.f32.xlu0 %v1838
        %v1840 = vpop.xlane.xlu0 %1839
        %v1841 = vsel %vm666, %v1821, -inf
        %1842 = vmax.xlane.f32.xlu0 %v1841
        %v1843 = vpop.xlane.xlu0 %1842
        %v1844 = vsel %vm666, %v1822, -inf
        %1845 = vmax.xlane.f32.xlu0 %v1844
        %v1846 = vpop.xlane.xlu0 %1845
        %v1847 = vsub.f32 %v1815, %v1825
        %v1848 = vsub.f32 %v1816, %v1828
        %v1849 = vsub.f32 %v1817, %v1831
        %v1850 = vsub.f32 %v1818, %v1834
        %v1851 = vsub.f32 %v1819, %v1837
        %v1852 = vsub.f32 %v1820, %v1840
        %v1853 = vsub.f32 %v1821, %v1843
        %v1854 = vsub.f32 %v1822, %v1846
        %v1855 = vmul.f32 %v1847, 1.442695
        %v1856 = vpow.pop %v1855
        %v1857 = vmul.f32 %v1848, 1.442695
        %v1858 = vpow.pop %v1857
        %v1859 = vmul.f32 %v1849, 1.442695
        %v1860 = vpow.pop %v1859
        %v1861 = vmul.f32 %v1850, 1.442695
        %v1862 = vpow.pop %v1861
        %v1863 = vmul.f32 %v1851, 1.442695
        %v1864 = vpow.pop %v1863
        %v1865 = vmul.f32 %v1852, 1.442695
        %v1866 = vpow.pop %v1865
        %v1867 = vmul.f32 %v1853, 1.442695
        %v1868 = vpow.pop %v1867
        %v1869 = vmul.f32 %v1854, 1.442695
        %v1870 = vpow.pop %v1869
        %v1871 = vsel %vm666, %v1856, 0.0
        %1872 = vadd.xlane.f32.xlu0 %v1871
        %v1873 = vpop.xlane.xlu0 %1872
        %v1874 = vsel %vm666, %v1858, 0.0
        %1875 = vadd.xlane.f32.xlu0 %v1874
        %v1876 = vpop.xlane.xlu0 %1875
        %v1877 = vsel %vm666, %v1860, 0.0
        %1878 = vadd.xlane.f32.xlu0 %v1877
        %v1879 = vpop.xlane.xlu0 %1878
        %v1880 = vsel %vm666, %v1862, 0.0
        %1881 = vadd.xlane.f32.xlu0 %v1880
        %v1882 = vpop.xlane.xlu0 %1881
        %v1883 = vsel %vm666, %v1864, 0.0
        %1884 = vadd.xlane.f32.xlu0 %v1883
        %v1885 = vpop.xlane.xlu0 %1884
        %v1886 = vsel %vm666, %v1866, 0.0
        %1887 = vadd.xlane.f32.xlu0 %v1886
        %v1888 = vpop.xlane.xlu0 %1887
        %v1889 = vsel %vm666, %v1868, 0.0
        %1890 = vadd.xlane.f32.xlu0 %v1889
        %v1891 = vpop.xlane.xlu0 %1890
        %v1892 = vsel %vm666, %v1870, 0.0
        %1893 = vadd.xlane.f32.xlu0 %v1892
        %v1894 = vpop.xlane.xlu0 %1893
        %v1895 = vrcp.pop %v1873
        %v1896 = vrcp.pop %v1876
        %v1897 = vrcp.pop %v1879
        %v1898 = vrcp.pop %v1882
        %v1899 = vrcp.pop %v1885
        %v1900 = vrcp.pop %v1888
        %v1901 = vrcp.pop %v1891
        %v1902 = vrcp.pop %v1894
        %v1903 = vmul.f32 %v1856, %v1895
        %v1904 = vmul.f32 %v1858, %v1896
        %v1905 = vmul.f32 %v1860, %v1897
        %v1906 = vmul.f32 %v1862, %v1898
        %v1907 = vmul.f32 %v1864, %v1899
        %v1908 = vmul.f32 %v1866, %v1900
        %v1909 = vmul.f32 %v1868, %v1901
        %v1910 = vmul.f32 %v1870, %v1902
        %v1911 = vpack.c.bf16 %v1904, %v1903
        %v1912 = vpack.c.bf16 %v1906, %v1905
        %v1913 = vpack.c.bf16 %v1908, %v1907
        %v1914 = vpack.c.bf16 %v1910, %v1909
        %1915 = vrot.lane.b32.xlu0 %v1586, 48
        %v1916 = vpop.permute.xlu0 %1915
        %v1919 = vsel %vm666, %v1911, 0
        %1921 = vmatprep.subr.bf16.mxu0 0
        %1922 = vmatpush1.bf16.msra.mxu0 0
        %1923 = vmatprep.subr.bf16.mxu0 0
        %1924 = vmatpush1.bf16.msra.mxu0 0
        %1925 = vmatprep.subr.bf16.mxu0 0
        %1926 = vmatpush1.bf16.msra.mxu0 0
        %1927 = vmatprep.subr.bf16.mxu0 0
        %1928 = vmatpush1.bf16.msra.mxu0 0
        %1929 = vmatprep.subr.bf16.mxu0 0
        %1930 = vmatpush1.bf16.msra.mxu0 0
        %1931 = vmatprep.subr.bf16.mxu0 0
        %1932 = vmatpush1.bf16.msra.mxu0 0
        %1933 = vmatprep.subr.bf16.mxu0 0
        %1934 = vmatpush1.bf16.msra.mxu0 0
        %1935 = vmatprep.subr.bf16.mxu0 0
        %1936 = vmatpush1.bf16.msra.mxu0 %v1916
        %1937 = vmatprep.subr.bf16.mxu0 0
        %1938 = vmatpush2.bf16.msra.mxu0 0
        %1939 = vmatprep.subr.bf16.mxu0 0
        %1940 = vmatpush2.bf16.msra.mxu0 0
        %1941 = vmatprep.subr.bf16.mxu0 0
        %1942 = vmatpush2.bf16.msra.mxu0 0
        %1943 = vmatprep.subr.bf16.mxu0 0
        %1944 = vmatpush2.bf16.msra.mxu0 0
        %1945 = vmatprep.subr.bf16.mxu0 0
        %1946 = vmatpush2.bf16.msra.mxu0 0
        %1947 = vmatprep.subr.bf16.mxu0 0
        %1948 = vmatpush2.bf16.msra.mxu0 0
        %1949 = vmatprep.subr.bf16.mxu0 0
        %1950 = vmatpush2.bf16.msra.mxu0 0
        %1951 = vmatprep.subr.bf16.mxu0 0
        %1952 = vmatpush2.bf16.msra.mxu0 0
        %1953 = vmatprep.mubr.bf16.mxu0 0
        %1954 = vmatmul.mubr.bf16.gmra.mxu0 %v1919
        %v1955 = vpop.f32.mrf.mxu0
        %v1956 = vadd.f32 0.0, %v1955
        %v1957 = vpop.f32.mrf.mxu0
        %v1958 = vpop.f32.mrf.mxu0
        %v1959 = vadd.f32 0.0, %v1958
        %v1960 = vpop.f32.mrf.mxu0
        %1961 = vdwg.mxu0
        %1962 = vrot.lane.b32.xlu0 %v1642, 48
        %v1963 = vpop.permute.xlu0 %1962
        %v1966 = vsel %vm666, %v1912, 0
        %1968 = vmatprep.subr.bf16.mxu0 0
        %1969 = vmatpush1.bf16.msra.mxu0 0
        %1970 = vmatprep.subr.bf16.mxu0 0
        %1971 = vmatpush1.bf16.msra.mxu0 0
        %1972 = vmatprep.subr.bf16.mxu0 0
        %1973 = vmatpush1.bf16.msra.mxu0 0
        %1974 = vmatprep.subr.bf16.mxu0 0
        %1975 = vmatpush1.bf16.msra.mxu0 0
        %1976 = vmatprep.subr.bf16.mxu0 0
        %1977 = vmatpush1.bf16.msra.mxu0 0
        %1978 = vmatprep.subr.bf16.mxu0 0
        %1979 = vmatpush1.bf16.msra.mxu0 0
        %1980 = vmatprep.subr.bf16.mxu0 0
        %1981 = vmatpush1.bf16.msra.mxu0 0
        %1982 = vmatprep.subr.bf16.mxu0 0
        %1983 = vmatpush1.bf16.msra.mxu0 %v1963
        %1984 = vmatprep.subr.bf16.mxu0 0
        %1985 = vmatpush2.bf16.msra.mxu0 0
        %1986 = vmatprep.subr.bf16.mxu0 0
        %1987 = vmatpush2.bf16.msra.mxu0 0
        %1988 = vmatprep.subr.bf16.mxu0 0
        %1989 = vmatpush2.bf16.msra.mxu0 0
        %1990 = vmatprep.subr.bf16.mxu0 0
        %1991 = vmatpush2.bf16.msra.mxu0 0
        %1992 = vmatprep.subr.bf16.mxu0 0
        %1993 = vmatpush2.bf16.msra.mxu0 0
        %1994 = vmatprep.subr.bf16.mxu0 0
        %1995 = vmatpush2.bf16.msra.mxu0 0
        %1996 = vmatprep.subr.bf16.mxu0 0
        %1997 = vmatpush2.bf16.msra.mxu0 0
        %1998 = vmatprep.subr.bf16.mxu0 0
        %1999 = vmatpush2.bf16.msra.mxu0 0
        %2000 = vmatprep.mubr.bf16.mxu0 0
        %2001 = vmatmul.mubr.bf16.gmra.mxu0 %v1966
        %v2002 = vpop.f32.mrf.mxu0
        %v2003 = vadd.f32 0.0, %v2002
        %v2004 = vpop.f32.mrf.mxu0
        %v2005 = vpop.f32.mrf.mxu0
        %v2006 = vadd.f32 0.0, %v2005
        %v2007 = vpop.f32.mrf.mxu0
        %2008 = vdwg.mxu0
        %2009 = vrot.lane.b32.xlu0 %v1698, 48
        %v2010 = vpop.permute.xlu0 %2009
        %v2013 = vsel %vm666, %v1913, 0
        %2015 = vmatprep.subr.bf16.mxu0 0
        %2016 = vmatpush1.bf16.msra.mxu0 0
        %2017 = vmatprep.subr.bf16.mxu0 0
        %2018 = vmatpush1.bf16.msra.mxu0 0
        %2019 = vmatprep.subr.bf16.mxu0 0
        %2020 = vmatpush1.bf16.msra.mxu0 0
        %2021 = vmatprep.subr.bf16.mxu0 0
        %2022 = vmatpush1.bf16.msra.mxu0 0
        %2023 = vmatprep.subr.bf16.mxu0 0
        %2024 = vmatpush1.bf16.msra.mxu0 0
        %2025 = vmatprep.subr.bf16.mxu0 0
        %2026 = vmatpush1.bf16.msra.mxu0 0
        %2027 = vmatprep.subr.bf16.mxu0 0
        %2028 = vmatpush1.bf16.msra.mxu0 0
        %2029 = vmatprep.subr.bf16.mxu0 0
        %2030 = vmatpush1.bf16.msra.mxu0 %v2010
        %2031 = vmatprep.subr.bf16.mxu0 0
        %2032 = vmatpush2.bf16.msra.mxu0 0
        %2033 = vmatprep.subr.bf16.mxu0 0
        %2034 = vmatpush2.bf16.msra.mxu0 0
        %2035 = vmatprep.subr.bf16.mxu0 0
        %2036 = vmatpush2.bf16.msra.mxu0 0
        %2037 = vmatprep.subr.bf16.mxu0 0
        %2038 = vmatpush2.bf16.msra.mxu0 0
        %2039 = vmatprep.subr.bf16.mxu0 0
        %2040 = vmatpush2.bf16.msra.mxu0 0
        %2041 = vmatprep.subr.bf16.mxu0 0
        %2042 = vmatpush2.bf16.msra.mxu0 0
        %2043 = vmatprep.subr.bf16.mxu0 0
        %2044 = vmatpush2.bf16.msra.mxu0 0
        %2045 = vmatprep.subr.bf16.mxu0 0
        %2046 = vmatpush2.bf16.msra.mxu0 0
        %2047 = vmatprep.mubr.bf16.mxu0 0
        %2048 = vmatmul.mubr.bf16.gmra.mxu0 %v2013
        %v2049 = vpop.f32.mrf.mxu0
        %v2050 = vadd.f32 0.0, %v2049
        %v2051 = vpop.f32.mrf.mxu0
        %v2052 = vpop.f32.mrf.mxu0
        %v2053 = vadd.f32 0.0, %v2052
        %v2054 = vpop.f32.mrf.mxu0
        %2055 = vdwg.mxu0
        %2056 = vrot.lane.b32.xlu0 %v1754, 48
        %v2057 = vpop.permute.xlu0 %2056
        %v2060 = vsel %vm666, %v1914, 0
        %2062 = vmatprep.subr.bf16.mxu0 0
        %2063 = vmatpush1.bf16.msra.mxu0 0
        %2064 = vmatprep.subr.bf16.mxu0 0
        %2065 = vmatpush1.bf16.msra.mxu0 0
        %2066 = vmatprep.subr.bf16.mxu0 0
        %2067 = vmatpush1.bf16.msra.mxu0 0
        %2068 = vmatprep.subr.bf16.mxu0 0
        %2069 = vmatpush1.bf16.msra.mxu0 0
        %2070 = vmatprep.subr.bf16.mxu0 0
        %2071 = vmatpush1.bf16.msra.mxu0 0
        %2072 = vmatprep.subr.bf16.mxu0 0
        %2073 = vmatpush1.bf16.msra.mxu0 0
        %2074 = vmatprep.subr.bf16.mxu0 0
        %2075 = vmatpush1.bf16.msra.mxu0 0
        %2076 = vmatprep.subr.bf16.mxu0 0
        %2077 = vmatpush1.bf16.msra.mxu0 %v2057
        %2078 = vmatprep.subr.bf16.mxu0 0
        %2079 = vmatpush2.bf16.msra.mxu0 0
        %2080 = vmatprep.subr.bf16.mxu0 0
        %2081 = vmatpush2.bf16.msra.mxu0 0
        %2082 = vmatprep.subr.bf16.mxu0 0
        %2083 = vmatpush2.bf16.msra.mxu0 0
        %2084 = vmatprep.subr.bf16.mxu0 0
        %2085 = vmatpush2.bf16.msra.mxu0 0
        %2086 = vmatprep.subr.bf16.mxu0 0
        %2087 = vmatpush2.bf16.msra.mxu0 0
        %2088 = vmatprep.subr.bf16.mxu0 0
        %2089 = vmatpush2.bf16.msra.mxu0 0
        %2090 = vmatprep.subr.bf16.mxu0 0
        %2091 = vmatpush2.bf16.msra.mxu0 0
        %2092 = vmatprep.subr.bf16.mxu0 0
        %2093 = vmatpush2.bf16.msra.mxu0 0
        %2094 = vmatprep.mubr.bf16.mxu0 0
        %2095 = vmatmul.mubr.bf16.gmra.mxu0 %v2060
        %v2096 = vpop.f32.mrf.mxu0
        %v2097 = vadd.f32 0.0, %v2096
        %v2098 = vpop.f32.mrf.mxu0
        %v2099 = vpop.f32.mrf.mxu0
        %v2100 = vadd.f32 0.0, %v2099
        %v2101 = vpop.f32.mrf.mxu0
        %2102 = vdwg.mxu0
        %v2103 = vpack.c.bf16 %v1959, %v1956
        %v2104 = vpack.c.bf16 %v2006, %v2003
        %v2105 = vpack.c.bf16 %v2053, %v2050
        %v2106 = vpack.c.bf16 %v2100, %v2097
        %v2111 = vunpack.c.l.b16 %v2103
        %v2112 = vunpack.c.h.b16 %v2103
        %v2113 = vunpack.c.l.b16 %v2104
        %v2114 = vunpack.c.h.b16 %v2104
        %v2115 = vunpack.c.l.b16 %v2105
        %v2116 = vunpack.c.h.b16 %v2105
        %v2117 = vunpack.c.l.b16 %v2106
        %v2118 = vunpack.c.h.b16 %v2106
        %v2119 = vpack.c.b16 %v2111, %v2111
        %v2120 = vpack.c.b16 %v2112, %v2112
        %v2121 = vpack.c.b16 %v2113, %v2113
        %v2122 = vpack.c.b16 %v2114, %v2114
        %v2123 = vpack.c.b16 %v2115, %v2115
        %v2124 = vpack.c.b16 %v2116, %v2116
        %v2125 = vpack.c.b16 %v2117, %v2117
        %v2126 = vpack.c.b16 %v2118, %v2118
        %2127 = vrot.lane.b32.xlu0 %v2119, 16
        %v2128 = vpop.permute.xlu0 %2127
        %2129 = vrot.lane.b32.xlu0 %v2120, 16
        %v2130 = vpop.permute.xlu0 %2129
        %2131 = vrot.lane.b32.xlu0 %v2121, 16
        %v2132 = vpop.permute.xlu0 %2131
        %2133 = vrot.lane.b32.xlu0 %v2122, 16
        %v2134 = vpop.permute.xlu0 %2133
        %2135 = vrot.lane.b32.xlu0 %v2123, 16
        %v2136 = vpop.permute.xlu0 %2135
        %2137 = vrot.lane.b32.xlu0 %v2124, 16
        %v2138 = vpop.permute.xlu0 %2137
        %2139 = vrot.lane.b32.xlu0 %v2125, 16
        %v2140 = vpop.permute.xlu0 %2139
        %2141 = vrot.lane.b32.xlu0 %v2126, 16
        %v2142 = vpop.permute.xlu0 %2141
        %vm2151 = vcmask 191616
        %2152 = vst.msk [vmem:[#allocation3] sm:$0xf] %vm2151, %v2128
        %2153 = vst.msk [vmem:[#allocation3 + $0x4] sm:$0xf] %vm2151, %v2130
        %2154 = vst.msk [vmem:[#allocation3 + $0x8] sm:$0xf] %vm2151, %v2132
        %2155 = vst.msk [vmem:[#allocation3 + $0xc] sm:$0xf] %vm2151, %v2134
        %2156 = vst.msk [vmem:[#allocation3 + $0x10] sm:$0xf] %vm2151, %v2136
        %2157 = vst.msk [vmem:[#allocation3 + $0x14] sm:$0xf] %vm2151, %v2138
        %2158 = vst.msk [vmem:[#allocation3 + $0x18] sm:$0xf] %vm2151, %v2140
        %2159 = vst.msk [vmem:[#allocation3 + $0x1c] sm:$0xf] %vm2151, %v2142
        %v2160 = vld [vmem:[#allocation2] sm:$0xf]
        %v2161 = vld [vmem:[#allocation2 + $0x4] sm:$0xf]
        %v2162 = vld [vmem:[#allocation2 + $0x8] sm:$0xf]
        %v2163 = vld [vmem:[#allocation2 + $0xc] sm:$0xf]
        %v2164 = vld [vmem:[#allocation2 + $0x10] sm:$0xf]
        %v2165 = vld [vmem:[#allocation2 + $0x14] sm:$0xf]
        %v2166 = vld [vmem:[#allocation2 + $0x18] sm:$0xf]
        %v2167 = vld [vmem:[#allocation2 + $0x1c] sm:$0xf]
        %v2170 = vunpack.c.l.b16 %v2160
        %v2171 = vunpack.c.l.b16 %v2161
        %v2172 = vpack.c.b16 %v2171, %v2170
        %2173 = vrot.lane.b32.xlu0 %v2172, 104
        %v2174 = vpop.permute.xlu0 %2173
        %2175 = vrot.lane.b32.xlu0 %v2172, 72
        %v2176 = vpop.permute.xlu0 %2175
        %v2178 = vsel %vm440, %v2174, 0
        %v2181 = vsel %vm440, %v2176, 0
        %2183 = vmatprep.subr.bf16.mxu0 0
        %2184 = vmatpush1.bf16.xpose.msra.mxu0 0
        %2185 = vmatprep.subr.bf16.mxu0 0
        %2186 = vmatpush1.bf16.xpose.msra.mxu0 0
        %2187 = vmatprep.subr.bf16.mxu0 0
        %2188 = vmatpush1.bf16.xpose.msra.mxu0 0
        %2189 = vmatprep.subr.bf16.mxu0 0
        %2190 = vmatpush1.bf16.xpose.msra.mxu0 0
        %2191 = vmatprep.subr.bf16.mxu0 0
        %2192 = vmatpush1.bf16.xpose.msra.mxu0 0
        %2193 = vmatprep.subr.bf16.mxu0 0
        %2194 = vmatpush1.bf16.xpose.msra.mxu0 0
        %2195 = vmatprep.subr.bf16.mxu0 0
        %2196 = vmatpush1.bf16.xpose.msra.mxu0 0
        %2197 = vmatprep.subr.bf16.mxu0 0
        %2198 = vmatpush1.bf16.xpose.msra.mxu0 %v2181
        %2199 = vmatprep.subr.bf16.mxu0 0
        %2200 = vmatpush2.bf16.xpose.msra.mxu0 0
        %2201 = vmatprep.subr.bf16.mxu0 0
        %2202 = vmatpush2.bf16.xpose.msra.mxu0 0
        %2203 = vmatprep.subr.bf16.mxu0 0
        %2204 = vmatpush2.bf16.xpose.msra.mxu0 0
        %2205 = vmatprep.subr.bf16.mxu0 0
        %2206 = vmatpush2.bf16.xpose.msra.mxu0 0
        %2207 = vmatprep.subr.bf16.mxu0 0
        %2208 = vmatpush2.bf16.xpose.msra.mxu0 0
        %2209 = vmatprep.subr.bf16.mxu0 0
        %2210 = vmatpush2.bf16.xpose.msra.mxu0 0
        %2211 = vmatprep.subr.bf16.mxu0 0
        %2212 = vmatpush2.bf16.xpose.msra.mxu0 0
        %2213 = vmatprep.subr.bf16.mxu0 0
        %2214 = vmatpush2.bf16.xpose.msra.mxu0 0
        %2215 = vmatprep.mubr.bf16.mxu0 0
        %2216 = vmatmul.mubr.bf16.gmra.mxu0 %v2178
        %v2217 = vpop.f32.mrf.mxu0
        %v2218 = vadd.f32 0.0, %v2217
        %v2219 = vpop.f32.mrf.mxu0
        %v2220 = vpop.f32.mrf.mxu0
        %v2221 = vadd.f32 0.0, %v2220
        %v2222 = vpop.f32.mrf.mxu0
        %2223 = vdwg.mxu0
        %v2226 = vunpack.c.l.b16 %v2162
        %v2227 = vunpack.c.l.b16 %v2163
        %v2228 = vpack.c.b16 %v2227, %v2226
        %2229 = vrot.lane.b32.xlu0 %v2228, 104
        %v2230 = vpop.permute.xlu0 %2229
        %2231 = vrot.lane.b32.xlu0 %v2228, 72
        %v2232 = vpop.permute.xlu0 %2231
        %v2234 = vsel %vm440, %v2230, 0
        %v2237 = vsel %vm440, %v2232, 0
        %2239 = vmatprep.subr.bf16.mxu0 0
        %2240 = vmatpush1.bf16.xpose.msra.mxu0 0
        %2241 = vmatprep.subr.bf16.mxu0 0
        %2242 = vmatpush1.bf16.xpose.msra.mxu0 0
        %2243 = vmatprep.subr.bf16.mxu0 0
        %2244 = vmatpush1.bf16.xpose.msra.mxu0 0
        %2245 = vmatprep.subr.bf16.mxu0 0
        %2246 = vmatpush1.bf16.xpose.msra.mxu0 0
        %2247 = vmatprep.subr.bf16.mxu0 0
        %2248 = vmatpush1.bf16.xpose.msra.mxu0 0
        %2249 = vmatprep.subr.bf16.mxu0 0
        %2250 = vmatpush1.bf16.xpose.msra.mxu0 0
        %2251 = vmatprep.subr.bf16.mxu0 0
        %2252 = vmatpush1.bf16.xpose.msra.mxu0 0
        %2253 = vmatprep.subr.bf16.mxu0 0
        %2254 = vmatpush1.bf16.xpose.msra.mxu0 %v2237
        %2255 = vmatprep.subr.bf16.mxu0 0
        %2256 = vmatpush2.bf16.xpose.msra.mxu0 0
        %2257 = vmatprep.subr.bf16.mxu0 0
        %2258 = vmatpush2.bf16.xpose.msra.mxu0 0
        %2259 = vmatprep.subr.bf16.mxu0 0
        %2260 = vmatpush2.bf16.xpose.msra.mxu0 0
        %2261 = vmatprep.subr.bf16.mxu0 0
        %2262 = vmatpush2.bf16.xpose.msra.mxu0 0
        %2263 = vmatprep.subr.bf16.mxu0 0
        %2264 = vmatpush2.bf16.xpose.msra.mxu0 0
        %2265 = vmatprep.subr.bf16.mxu0 0
        %2266 = vmatpush2.bf16.xpose.msra.mxu0 0
        %2267 = vmatprep.subr.bf16.mxu0 0
        %2268 = vmatpush2.bf16.xpose.msra.mxu0 0
        %2269 = vmatprep.subr.bf16.mxu0 0
        %2270 = vmatpush2.bf16.xpose.msra.mxu0 0
        %2271 = vmatprep.mubr.bf16.mxu0 0
        %2272 = vmatmul.mubr.bf16.gmra.mxu0 %v2234
        %v2273 = vpop.f32.mrf.mxu0
        %v2274 = vadd.f32 0.0, %v2273
        %v2275 = vpop.f32.mrf.mxu0
        %v2276 = vpop.f32.mrf.mxu0
        %v2277 = vadd.f32 0.0, %v2276
        %v2278 = vpop.f32.mrf.mxu0
        %2279 = vdwg.mxu0
        %v2282 = vunpack.c.l.b16 %v2164
        %v2283 = vunpack.c.l.b16 %v2165
        %v2284 = vpack.c.b16 %v2283, %v2282
        %2285 = vrot.lane.b32.xlu0 %v2284, 104
        %v2286 = vpop.permute.xlu0 %2285
        %2287 = vrot.lane.b32.xlu0 %v2284, 72
        %v2288 = vpop.permute.xlu0 %2287
        %v2290 = vsel %vm440, %v2286, 0
        %v2293 = vsel %vm440, %v2288, 0
        %2295 = vmatprep.subr.bf16.mxu0 0
        %2296 = vmatpush1.bf16.xpose.msra.mxu0 0
        %2297 = vmatprep.subr.bf16.mxu0 0
        %2298 = vmatpush1.bf16.xpose.msra.mxu0 0
        %2299 = vmatprep.subr.bf16.mxu0 0
        %2300 = vmatpush1.bf16.xpose.msra.mxu0 0
        %2301 = vmatprep.subr.bf16.mxu0 0
        %2302 = vmatpush1.bf16.xpose.msra.mxu0 0
        %2303 = vmatprep.subr.bf16.mxu0 0
        %2304 = vmatpush1.bf16.xpose.msra.mxu0 0
        %2305 = vmatprep.subr.bf16.mxu0 0
        %2306 = vmatpush1.bf16.xpose.msra.mxu0 0
        %2307 = vmatprep.subr.bf16.mxu0 0
        %2308 = vmatpush1.bf16.xpose.msra.mxu0 0
        %2309 = vmatprep.subr.bf16.mxu0 0
        %2310 = vmatpush1.bf16.xpose.msra.mxu0 %v2293
        %2311 = vmatprep.subr.bf16.mxu0 0
        %2312 = vmatpush2.bf16.xpose.msra.mxu0 0
        %2313 = vmatprep.subr.bf16.mxu0 0
        %2314 = vmatpush2.bf16.xpose.msra.mxu0 0
        %2315 = vmatprep.subr.bf16.mxu0 0
        %2316 = vmatpush2.bf16.xpose.msra.mxu0 0
        %2317 = vmatprep.subr.bf16.mxu0 0
        %2318 = vmatpush2.bf16.xpose.msra.mxu0 0
        %2319 = vmatprep.subr.bf16.mxu0 0
        %2320 = vmatpush2.bf16.xpose.msra.mxu0 0
        %2321 = vmatprep.subr.bf16.mxu0 0
        %2322 = vmatpush2.bf16.xpose.msra.mxu0 0
        %2323 = vmatprep.subr.bf16.mxu0 0
        %2324 = vmatpush2.bf16.xpose.msra.mxu0 0
        %2325 = vmatprep.subr.bf16.mxu0 0
        %2326 = vmatpush2.bf16.xpose.msra.mxu0 0
        %2327 = vmatprep.mubr.bf16.mxu0 0
        %2328 = vmatmul.mubr.bf16.gmra.mxu0 %v2290
        %v2329 = vpop.f32.mrf.mxu0
        %v2330 = vadd.f32 0.0, %v2329
        %v2331 = vpop.f32.mrf.mxu0
        %v2332 = vpop.f32.mrf.mxu0
        %v2333 = vadd.f32 0.0, %v2332
        %v2334 = vpop.f32.mrf.mxu0
        %2335 = vdwg.mxu0
        %v2338 = vunpack.c.l.b16 %v2166
        %v2339 = vunpack.c.l.b16 %v2167
        %v2340 = vpack.c.b16 %v2339, %v2338
        %2341 = vrot.lane.b32.xlu0 %v2340, 104
        %v2342 = vpop.permute.xlu0 %2341
        %2343 = vrot.lane.b32.xlu0 %v2340, 72
        %v2344 = vpop.permute.xlu0 %2343
        %v2346 = vsel %vm440, %v2342, 0
        %v2349 = vsel %vm440, %v2344, 0
        %2351 = vmatprep.subr.bf16.mxu0 0
        %2352 = vmatpush1.bf16.xpose.msra.mxu0 0
        %2353 = vmatprep.subr.bf16.mxu0 0
        %2354 = vmatpush1.bf16.xpose.msra.mxu0 0
        %2355 = vmatprep.subr.bf16.mxu0 0
        %2356 = vmatpush1.bf16.xpose.msra.mxu0 0
        %2357 = vmatprep.subr.bf16.mxu0 0
        %2358 = vmatpush1.bf16.xpose.msra.mxu0 0
        %2359 = vmatprep.subr.bf16.mxu0 0
        %2360 = vmatpush1.bf16.xpose.msra.mxu0 0
        %2361 = vmatprep.subr.bf16.mxu0 0
        %2362 = vmatpush1.bf16.xpose.msra.mxu0 0
        %2363 = vmatprep.subr.bf16.mxu0 0
        %2364 = vmatpush1.bf16.xpose.msra.mxu0 0
        %2365 = vmatprep.subr.bf16.mxu0 0
        %2366 = vmatpush1.bf16.xpose.msra.mxu0 %v2349
        %2367 = vmatprep.subr.bf16.mxu0 0
        %2368 = vmatpush2.bf16.xpose.msra.mxu0 0
        %2369 = vmatprep.subr.bf16.mxu0 0
        %2370 = vmatpush2.bf16.xpose.msra.mxu0 0
        %2371 = vmatprep.subr.bf16.mxu0 0
        %2372 = vmatpush2.bf16.xpose.msra.mxu0 0
        %2373 = vmatprep.subr.bf16.mxu0 0
        %2374 = vmatpush2.bf16.xpose.msra.mxu0 0
        %2375 = vmatprep.subr.bf16.mxu0 0
        %2376 = vmatpush2.bf16.xpose.msra.mxu0 0
        %2377 = vmatprep.subr.bf16.mxu0 0
        %2378 = vmatpush2.bf16.xpose.msra.mxu0 0
        %2379 = vmatprep.subr.bf16.mxu0 0
        %2380 = vmatpush2.bf16.xpose.msra.mxu0 0
        %2381 = vmatprep.subr.bf16.mxu0 0
        %2382 = vmatpush2.bf16.xpose.msra.mxu0 0
        %2383 = vmatprep.mubr.bf16.mxu0 0
        %2384 = vmatmul.mubr.bf16.gmra.mxu0 %v2346
        %v2385 = vpop.f32.mrf.mxu0
        %v2386 = vadd.f32 0.0, %v2385
        %v2387 = vpop.f32.mrf.mxu0
        %v2388 = vpop.f32.mrf.mxu0
        %v2389 = vadd.f32 0.0, %v2388
        %v2390 = vpop.f32.mrf.mxu0
        %2391 = vdwg.mxu0
        %s2392 = scalar_lea.vmem [#allocation4], 48
        %v2393 = vld [vmem:[%s2392] sm:$0xff]
        %v2394 = vld [vmem:[%s2392 + $0x8] sm:$0xff]
        %v2395 = vld [vmem:[%s2392 + $0x40] sm:$0xff]
        %v2396 = vld [vmem:[%s2392 + $0x48] sm:$0xff]
        %v2397 = vld [vmem:[%s2392 + $0x80] sm:$0xff]
        %v2398 = vld [vmem:[%s2392 + $0x88] sm:$0xff]
        %v2399 = vld [vmem:[%s2392 + $0xc0] sm:$0xff]
        %v2400 = vld [vmem:[%s2392 + $0xc8] sm:$0xff]
        %v2401 = vadd.f32 %v2218, %v2393
        %v2402 = vadd.f32 %v2221, %v2394
        %v2403 = vadd.f32 %v2274, %v2395
        %v2404 = vadd.f32 %v2277, %v2396
        %v2405 = vadd.f32 %v2330, %v2397
        %v2406 = vadd.f32 %v2333, %v2398
        %v2407 = vadd.f32 %v2386, %v2399
        %v2408 = vadd.f32 %v2389, %v2400
        %v2409 = vsel %vm666, %v2401, -inf
        %2410 = vmax.xlane.f32.xlu0 %v2409
        %v2411 = vpop.xlane.xlu0 %2410
        %v2412 = vsel %vm666, %v2402, -inf
        %2413 = vmax.xlane.f32.xlu0 %v2412
        %v2414 = vpop.xlane.xlu0 %2413
        %v2415 = vsel %vm666, %v2403, -inf
        %2416 = vmax.xlane.f32.xlu0 %v2415
        %v2417 = vpop.xlane.xlu0 %2416
        %v2418 = vsel %vm666, %v2404, -inf
        %2419 = vmax.xlane.f32.xlu0 %v2418
        %v2420 = vpop.xlane.xlu0 %2419
        %v2421 = vsel %vm666, %v2405, -inf
        %2422 = vmax.xlane.f32.xlu0 %v2421
        %v2423 = vpop.xlane.xlu0 %2422
        %v2424 = vsel %vm666, %v2406, -inf
        %2425 = vmax.xlane.f32.xlu0 %v2424
        %v2426 = vpop.xlane.xlu0 %2425
        %v2427 = vsel %vm666, %v2407, -inf
        %2428 = vmax.xlane.f32.xlu0 %v2427
        %v2429 = vpop.xlane.xlu0 %2428
        %v2430 = vsel %vm666, %v2408, -inf
        %2431 = vmax.xlane.f32.xlu0 %v2430
        %v2432 = vpop.xlane.xlu0 %2431
        %v2433 = vsub.f32 %v2401, %v2411
        %v2434 = vsub.f32 %v2402, %v2414
        %v2435 = vsub.f32 %v2403, %v2417
        %v2436 = vsub.f32 %v2404, %v2420
        %v2437 = vsub.f32 %v2405, %v2423
        %v2438 = vsub.f32 %v2406, %v2426
        %v2439 = vsub.f32 %v2407, %v2429
        %v2440 = vsub.f32 %v2408, %v2432
        %v2441 = vmul.f32 %v2433, 1.442695
        %v2442 = vpow.pop %v2441
        %v2443 = vmul.f32 %v2434, 1.442695
        %v2444 = vpow.pop %v2443
        %v2445 = vmul.f32 %v2435, 1.442695
        %v2446 = vpow.pop %v2445
        %v2447 = vmul.f32 %v2436, 1.442695
        %v2448 = vpow.pop %v2447
        %v2449 = vmul.f32 %v2437, 1.442695
        %v2450 = vpow.pop %v2449
        %v2451 = vmul.f32 %v2438, 1.442695
        %v2452 = vpow.pop %v2451
        %v2453 = vmul.f32 %v2439, 1.442695
        %v2454 = vpow.pop %v2453
        %v2455 = vmul.f32 %v2440, 1.442695
        %v2456 = vpow.pop %v2455
        %v2457 = vsel %vm666, %v2442, 0.0
        %2458 = vadd.xlane.f32.xlu0 %v2457
        %v2459 = vpop.xlane.xlu0 %2458
        %v2460 = vsel %vm666, %v2444, 0.0
        %2461 = vadd.xlane.f32.xlu0 %v2460
        %v2462 = vpop.xlane.xlu0 %2461
        %v2463 = vsel %vm666, %v2446, 0.0
        %2464 = vadd.xlane.f32.xlu0 %v2463
        %v2465 = vpop.xlane.xlu0 %2464
        %v2466 = vsel %vm666, %v2448, 0.0
        %2467 = vadd.xlane.f32.xlu0 %v2466
        %v2468 = vpop.xlane.xlu0 %2467
        %v2469 = vsel %vm666, %v2450, 0.0
        %2470 = vadd.xlane.f32.xlu0 %v2469
        %v2471 = vpop.xlane.xlu0 %2470
        %v2472 = vsel %vm666, %v2452, 0.0
        %2473 = vadd.xlane.f32.xlu0 %v2472
        %v2474 = vpop.xlane.xlu0 %2473
        %v2475 = vsel %vm666, %v2454, 0.0
        %2476 = vadd.xlane.f32.xlu0 %v2475
        %v2477 = vpop.xlane.xlu0 %2476
        %v2478 = vsel %vm666, %v2456, 0.0
        %2479 = vadd.xlane.f32.xlu0 %v2478
        %v2480 = vpop.xlane.xlu0 %2479
        %v2481 = vrcp.pop %v2459
        %v2482 = vrcp.pop %v2462
        %v2483 = vrcp.pop %v2465
        %v2484 = vrcp.pop %v2468
        %v2485 = vrcp.pop %v2471
        %v2486 = vrcp.pop %v2474
        %v2487 = vrcp.pop %v2477
        %v2488 = vrcp.pop %v2480
        %v2489 = vmul.f32 %v2442, %v2481
        %v2490 = vmul.f32 %v2444, %v2482
        %v2491 = vmul.f32 %v2446, %v2483
        %v2492 = vmul.f32 %v2448, %v2484
        %v2493 = vmul.f32 %v2450, %v2485
        %v2494 = vmul.f32 %v2452, %v2486
        %v2495 = vmul.f32 %v2454, %v2487
        %v2496 = vmul.f32 %v2456, %v2488
        %v2497 = vpack.c.bf16 %v2490, %v2489
        %v2498 = vpack.c.bf16 %v2492, %v2491
        %v2499 = vpack.c.bf16 %v2494, %v2493
        %v2500 = vpack.c.bf16 %v2496, %v2495
        %2501 = vrot.lane.b32.xlu0 %v2172, 40
        %v2502 = vpop.permute.xlu0 %2501
        %v2505 = vsel %vm666, %v2497, 0
        %2507 = vmatprep.subr.bf16.mxu0 0
        %2508 = vmatpush1.bf16.msra.mxu0 0
        %2509 = vmatprep.subr.bf16.mxu0 0
        %2510 = vmatpush1.bf16.msra.mxu0 0
        %2511 = vmatprep.subr.bf16.mxu0 0
        %2512 = vmatpush1.bf16.msra.mxu0 0
        %2513 = vmatprep.subr.bf16.mxu0 0
        %2514 = vmatpush1.bf16.msra.mxu0 0
        %2515 = vmatprep.subr.bf16.mxu0 0
        %2516 = vmatpush1.bf16.msra.mxu0 0
        %2517 = vmatprep.subr.bf16.mxu0 0
        %2518 = vmatpush1.bf16.msra.mxu0 0
        %2519 = vmatprep.subr.bf16.mxu0 0
        %2520 = vmatpush1.bf16.msra.mxu0 0
        %2521 = vmatprep.subr.bf16.mxu0 0
        %2522 = vmatpush1.bf16.msra.mxu0 %v2502
        %2523 = vmatprep.subr.bf16.mxu0 0
        %2524 = vmatpush2.bf16.msra.mxu0 0
        %2525 = vmatprep.subr.bf16.mxu0 0
        %2526 = vmatpush2.bf16.msra.mxu0 0
        %2527 = vmatprep.subr.bf16.mxu0 0
        %2528 = vmatpush2.bf16.msra.mxu0 0
        %2529 = vmatprep.subr.bf16.mxu0 0
        %2530 = vmatpush2.bf16.msra.mxu0 0
        %2531 = vmatprep.subr.bf16.mxu0 0
        %2532 = vmatpush2.bf16.msra.mxu0 0
        %2533 = vmatprep.subr.bf16.mxu0 0
        %2534 = vmatpush2.bf16.msra.mxu0 0
        %2535 = vmatprep.subr.bf16.mxu0 0
        %2536 = vmatpush2.bf16.msra.mxu0 0
        %2537 = vmatprep.subr.bf16.mxu0 0
        %2538 = vmatpush2.bf16.msra.mxu0 0
        %2539 = vmatprep.mubr.bf16.mxu0 0
        %2540 = vmatmul.mubr.bf16.gmra.mxu0 %v2505
        %v2541 = vpop.f32.mrf.mxu0
        %v2542 = vadd.f32 0.0, %v2541
        %v2543 = vpop.f32.mrf.mxu0
        %v2544 = vpop.f32.mrf.mxu0
        %v2545 = vadd.f32 0.0, %v2544
        %v2546 = vpop.f32.mrf.mxu0
        %2547 = vdwg.mxu0
        %2548 = vrot.lane.b32.xlu0 %v2228, 40
        %v2549 = vpop.permute.xlu0 %2548
        %v2552 = vsel %vm666, %v2498, 0
        %2554 = vmatprep.subr.bf16.mxu0 0
        %2555 = vmatpush1.bf16.msra.mxu0 0
        %2556 = vmatprep.subr.bf16.mxu0 0
        %2557 = vmatpush1.bf16.msra.mxu0 0
        %2558 = vmatprep.subr.bf16.mxu0 0
        %2559 = vmatpush1.bf16.msra.mxu0 0
        %2560 = vmatprep.subr.bf16.mxu0 0
        %2561 = vmatpush1.bf16.msra.mxu0 0
        %2562 = vmatprep.subr.bf16.mxu0 0
        %2563 = vmatpush1.bf16.msra.mxu0 0
        %2564 = vmatprep.subr.bf16.mxu0 0
        %2565 = vmatpush1.bf16.msra.mxu0 0
        %2566 = vmatprep.subr.bf16.mxu0 0
        %2567 = vmatpush1.bf16.msra.mxu0 0
        %2568 = vmatprep.subr.bf16.mxu0 0
        %2569 = vmatpush1.bf16.msra.mxu0 %v2549
        %2570 = vmatprep.subr.bf16.mxu0 0
        %2571 = vmatpush2.bf16.msra.mxu0 0
        %2572 = vmatprep.subr.bf16.mxu0 0
        %2573 = vmatpush2.bf16.msra.mxu0 0
        %2574 = vmatprep.subr.bf16.mxu0 0
        %2575 = vmatpush2.bf16.msra.mxu0 0
        %2576 = vmatprep.subr.bf16.mxu0 0
        %2577 = vmatpush2.bf16.msra.mxu0 0
        %2578 = vmatprep.subr.bf16.mxu0 0
        %2579 = vmatpush2.bf16.msra.mxu0 0
        %2580 = vmatprep.subr.bf16.mxu0 0
        %2581 = vmatpush2.bf16.msra.mxu0 0
        %2582 = vmatprep.subr.bf16.mxu0 0
        %2583 = vmatpush2.bf16.msra.mxu0 0
        %2584 = vmatprep.subr.bf16.mxu0 0
        %2585 = vmatpush2.bf16.msra.mxu0 0
        %2586 = vmatprep.mubr.bf16.mxu0 0
        %2587 = vmatmul.mubr.bf16.gmra.mxu0 %v2552
        %v2588 = vpop.f32.mrf.mxu0
        %v2589 = vadd.f32 0.0, %v2588
        %v2590 = vpop.f32.mrf.mxu0
        %v2591 = vpop.f32.mrf.mxu0
        %v2592 = vadd.f32 0.0, %v2591
        %v2593 = vpop.f32.mrf.mxu0
        %2594 = vdwg.mxu0
        %2595 = vrot.lane.b32.xlu0 %v2284, 40
        %v2596 = vpop.permute.xlu0 %2595
        %v2599 = vsel %vm666, %v2499, 0
        %2601 = vmatprep.subr.bf16.mxu0 0
        %2602 = vmatpush1.bf16.msra.mxu0 0
        %2603 = vmatprep.subr.bf16.mxu0 0
        %2604 = vmatpush1.bf16.msra.mxu0 0
        %2605 = vmatprep.subr.bf16.mxu0 0
        %2606 = vmatpush1.bf16.msra.mxu0 0
        %2607 = vmatprep.subr.bf16.mxu0 0
        %2608 = vmatpush1.bf16.msra.mxu0 0
        %2609 = vmatprep.subr.bf16.mxu0 0
        %2610 = vmatpush1.bf16.msra.mxu0 0
        %2611 = vmatprep.subr.bf16.mxu0 0
        %2612 = vmatpush1.bf16.msra.mxu0 0
        %2613 = vmatprep.subr.bf16.mxu0 0
        %2614 = vmatpush1.bf16.msra.mxu0 0
        %2615 = vmatprep.subr.bf16.mxu0 0
        %2616 = vmatpush1.bf16.msra.mxu0 %v2596
        %2617 = vmatprep.subr.bf16.mxu0 0
        %2618 = vmatpush2.bf16.msra.mxu0 0
        %2619 = vmatprep.subr.bf16.mxu0 0
        %2620 = vmatpush2.bf16.msra.mxu0 0
        %2621 = vmatprep.subr.bf16.mxu0 0
        %2622 = vmatpush2.bf16.msra.mxu0 0
        %2623 = vmatprep.subr.bf16.mxu0 0
        %2624 = vmatpush2.bf16.msra.mxu0 0
        %2625 = vmatprep.subr.bf16.mxu0 0
        %2626 = vmatpush2.bf16.msra.mxu0 0
        %2627 = vmatprep.subr.bf16.mxu0 0
        %2628 = vmatpush2.bf16.msra.mxu0 0
        %2629 = vmatprep.subr.bf16.mxu0 0
        %2630 = vmatpush2.bf16.msra.mxu0 0
        %2631 = vmatprep.subr.bf16.mxu0 0
        %2632 = vmatpush2.bf16.msra.mxu0 0
        %2633 = vmatprep.mubr.bf16.mxu0 0
        %2634 = vmatmul.mubr.bf16.gmra.mxu0 %v2599
        %v2635 = vpop.f32.mrf.mxu0
        %v2636 = vadd.f32 0.0, %v2635
        %v2637 = vpop.f32.mrf.mxu0
        %v2638 = vpop.f32.mrf.mxu0
        %v2639 = vadd.f32 0.0, %v2638
        %v2640 = vpop.f32.mrf.mxu0
        %2641 = vdwg.mxu0
        %2642 = vrot.lane.b32.xlu0 %v2340, 40
        %v2643 = vpop.permute.xlu0 %2642
        %v2646 = vsel %vm666, %v2500, 0
        %2648 = vmatprep.subr.bf16.mxu0 0
        %2649 = vmatpush1.bf16.msra.mxu0 0
        %2650 = vmatprep.subr.bf16.mxu0 0
        %2651 = vmatpush1.bf16.msra.mxu0 0
        %2652 = vmatprep.subr.bf16.mxu0 0
        %2653 = vmatpush1.bf16.msra.mxu0 0
        %2654 = vmatprep.subr.bf16.mxu0 0
        %2655 = vmatpush1.bf16.msra.mxu0 0
        %2656 = vmatprep.subr.bf16.mxu0 0
        %2657 = vmatpush1.bf16.msra.mxu0 0
        %2658 = vmatprep.subr.bf16.mxu0 0
        %2659 = vmatpush1.bf16.msra.mxu0 0
        %2660 = vmatprep.subr.bf16.mxu0 0
        %2661 = vmatpush1.bf16.msra.mxu0 0
        %2662 = vmatprep.subr.bf16.mxu0 0
        %2663 = vmatpush1.bf16.msra.mxu0 %v2643
        %2664 = vmatprep.subr.bf16.mxu0 0
        %2665 = vmatpush2.bf16.msra.mxu0 0
        %2666 = vmatprep.subr.bf16.mxu0 0
        %2667 = vmatpush2.bf16.msra.mxu0 0
        %2668 = vmatprep.subr.bf16.mxu0 0
        %2669 = vmatpush2.bf16.msra.mxu0 0
        %2670 = vmatprep.subr.bf16.mxu0 0
        %2671 = vmatpush2.bf16.msra.mxu0 0
        %2672 = vmatprep.subr.bf16.mxu0 0
        %2673 = vmatpush2.bf16.msra.mxu0 0
        %2674 = vmatprep.subr.bf16.mxu0 0
        %2675 = vmatpush2.bf16.msra.mxu0 0
        %2676 = vmatprep.subr.bf16.mxu0 0
        %2677 = vmatpush2.bf16.msra.mxu0 0
        %2678 = vmatprep.subr.bf16.mxu0 0
        %2679 = vmatpush2.bf16.msra.mxu0 0
        %2680 = vmatprep.mubr.bf16.mxu0 0
        %2681 = vmatmul.mubr.bf16.gmra.mxu0 %v2646
        %v2682 = vpop.f32.mrf.mxu0
        %v2683 = vadd.f32 0.0, %v2682
        %v2684 = vpop.f32.mrf.mxu0
        %v2685 = vpop.f32.mrf.mxu0
        %v2686 = vadd.f32 0.0, %v2685
        %v2687 = vpop.f32.mrf.mxu0
        %2688 = vdwg.mxu0
        %v2689 = vpack.c.bf16 %v2545, %v2542
        %v2690 = vpack.c.bf16 %v2592, %v2589
        %v2691 = vpack.c.bf16 %v2639, %v2636
        %v2692 = vpack.c.bf16 %v2686, %v2683
        %v2697 = vunpack.c.l.b16 %v2689
        %v2698 = vunpack.c.h.b16 %v2689
        %v2699 = vunpack.c.l.b16 %v2690
        %v2700 = vunpack.c.h.b16 %v2690
        %v2701 = vunpack.c.l.b16 %v2691
        %v2702 = vunpack.c.h.b16 %v2691
        %v2703 = vunpack.c.l.b16 %v2692
        %v2704 = vunpack.c.h.b16 %v2692
        %v2705 = vpack.c.b16 %v2697, %v2697
        %v2706 = vpack.c.b16 %v2698, %v2698
        %v2707 = vpack.c.b16 %v2699, %v2699
        %v2708 = vpack.c.b16 %v2700, %v2700
        %v2709 = vpack.c.b16 %v2701, %v2701
        %v2710 = vpack.c.b16 %v2702, %v2702
        %v2711 = vpack.c.b16 %v2703, %v2703
        %v2712 = vpack.c.b16 %v2704, %v2704
        %2713 = vrot.lane.b32.xlu0 %v2705, 24
        %v2714 = vpop.permute.xlu0 %2713
        %2715 = vrot.lane.b32.xlu0 %v2706, 24
        %v2716 = vpop.permute.xlu0 %2715
        %2717 = vrot.lane.b32.xlu0 %v2707, 24
        %v2718 = vpop.permute.xlu0 %2717
        %2719 = vrot.lane.b32.xlu0 %v2708, 24
        %v2720 = vpop.permute.xlu0 %2719
        %2721 = vrot.lane.b32.xlu0 %v2709, 24
        %v2722 = vpop.permute.xlu0 %2721
        %2723 = vrot.lane.b32.xlu0 %v2710, 24
        %v2724 = vpop.permute.xlu0 %2723
        %2725 = vrot.lane.b32.xlu0 %v2711, 24
        %v2726 = vpop.permute.xlu0 %2725
        %2727 = vrot.lane.b32.xlu0 %v2712, 24
        %v2728 = vpop.permute.xlu0 %2727
        %vm2737 = vcmask 257216
        %2738 = vst.msk [vmem:[#allocation3] sm:$0xf] %vm2737, %v2714
        %2739 = vst.msk [vmem:[#allocation3 + $0x4] sm:$0xf] %vm2737, %v2716
        %2740 = vst.msk [vmem:[#allocation3 + $0x8] sm:$0xf] %vm2737, %v2718
        %2741 = vst.msk [vmem:[#allocation3 + $0xc] sm:$0xf] %vm2737, %v2720
        %2742 = vst.msk [vmem:[#allocation3 + $0x10] sm:$0xf] %vm2737, %v2722
        %2743 = vst.msk [vmem:[#allocation3 + $0x14] sm:$0xf] %vm2737, %v2724
        %2744 = vst.msk [vmem:[#allocation3 + $0x18] sm:$0xf] %vm2737, %v2726
        %2745 = vst.msk [vmem:[#allocation3 + $0x1c] sm:$0xf] %vm2737, %v2728
        %v2746 = vld [vmem:[#allocation3] sm:$0xf]
        %v2747 = vld [vmem:[#allocation3 + $0x4] sm:$0xf]
        %v2748 = vld [vmem:[#allocation3 + $0x8] sm:$0xf]
        %v2749 = vld [vmem:[#allocation3 + $0xc] sm:$0xf]
        %v2750 = vld [vmem:[#allocation3 + $0x10] sm:$0xf]
        %v2751 = vld [vmem:[#allocation3 + $0x14] sm:$0xf]
        %v2752 = vld [vmem:[#allocation3 + $0x18] sm:$0xf]
        %v2753 = vld [vmem:[#allocation3 + $0x1c] sm:$0xf]
        %v2754 = vld [vmem:[%s3] sm:$0xf]
        %v2755 = vld [vmem:[%s3 + $0x4] sm:$0xf]
        %v2756 = vld [vmem:[%s3 + $0x8] sm:$0xf]
        %v2757 = vld [vmem:[%s3 + $0xc] sm:$0xf]
        %v2758 = vld [vmem:[%s4] sm:$0x1]
        %v2760 = vlaneseq
        %v2761 = vshrl.u32 %v2760, 7
        %v2762 = vsub.s32 0, %v2761
        %v2763 = vrot.slane %v2758, %v2762
        %v2773 = vunpack.c.l.b16 %v2746
        %v2774 = vunpack.c.l.b16 %v2747
        %v2775 = vunpack.c.l.b16 %v2748
        %v2776 = vunpack.c.l.b16 %v2749
        %v2777 = vunpack.c.l.b16 %v2750
        %v2778 = vunpack.c.l.b16 %v2751
        %v2779 = vunpack.c.l.b16 %v2752
        %v2780 = vunpack.c.l.b16 %v2753
        %v2781 = vpack.c.b16 %v2774, %v2773
        %v2782 = vpack.c.b16 %v2776, %v2775
        %v2783 = vpack.c.b16 %v2778, %v2777
        %v2784 = vpack.c.b16 %v2780, %v2779
        %v2789 = vunpack.c.l.b16 %v2754
        %v2790 = vunpack.c.l.b16 %v2755
        %v2791 = vunpack.c.l.b16 %v2756
        %v2792 = vunpack.c.l.b16 %v2757
        %v2793 = vpack.c.b16 %v2790, %v2789
        %v2794 = vpack.c.b16 %v2792, %v2791
        %v2798 = vsel %vm306, %v2781, 0
        %v2801 = vsel %vm306, %v2782, 0
        %v2804 = vsel %vm306, %v2783, 0
        %v2807 = vsel %vm306, %v2784, 0
        %2809 = vmatprep.subr.bf16.mxu0 0
        %2810 = vmatpush1.bf16.msra.mxu0 0
        %2811 = vmatprep.subr.bf16.mxu0 0
        %2812 = vmatpush1.bf16.msra.mxu0 0
        %2813 = vmatprep.subr.bf16.mxu0 0
        %2814 = vmatpush1.bf16.msra.mxu0 0
        %2815 = vmatprep.subr.bf16.mxu0 0
        %2816 = vmatpush1.bf16.msra.mxu0 0
        %2817 = vmatprep.subr.bf16.mxu0 0
        %2818 = vmatpush1.bf16.msra.mxu0 0
        %2819 = vmatprep.subr.bf16.mxu0 0
        %2820 = vmatpush1.bf16.msra.mxu0 0
        %2821 = vmatprep.subr.bf16.mxu0 0
        %2822 = vmatpush1.bf16.msra.mxu0 %v2794
        %2823 = vmatprep.subr.bf16.mxu0 0
        %2824 = vmatpush1.bf16.msra.mxu0 %v2793
        %2825 = vmatprep.subr.bf16.mxu0 0
        %2826 = vmatpush2.bf16.msra.mxu0 0
        %2827 = vmatprep.subr.bf16.mxu0 0
        %2828 = vmatpush2.bf16.msra.mxu0 0
        %2829 = vmatprep.subr.bf16.mxu0 0
        %2830 = vmatpush2.bf16.msra.mxu0 0
        %2831 = vmatprep.subr.bf16.mxu0 0
        %2832 = vmatpush2.bf16.msra.mxu0 0
        %2833 = vmatprep.subr.bf16.mxu0 0
        %2834 = vmatpush2.bf16.msra.mxu0 0
        %2835 = vmatprep.subr.bf16.mxu0 0
        %2836 = vmatpush2.bf16.msra.mxu0 0
        %2837 = vmatprep.subr.bf16.mxu0 0
        %2838 = vmatpush2.bf16.msra.mxu0 0
        %2839 = vmatprep.subr.bf16.mxu0 0
        %2840 = vmatpush2.bf16.msra.mxu0 0
        %2841 = vmatprep.mubr.bf16.mxu0 0
        %2842 = vmatmul.mubr.bf16.gmra.mxu0 %v2798
        %v2843 = vpop.f32.mrf.mxu0
        %v2844 = vadd.f32 %v2763, %v2843
        %v2845 = vpop.f32.mrf.mxu0
        %v2846 = vpop.f32.mrf.mxu0
        %v2847 = vadd.f32 %v2763, %v2846
        %v2848 = vpop.f32.mrf.mxu0
        %2849 = vmatprep.mubr.bf16.mxu0 0
        %2850 = vmatmul.mubr.bf16.gmra.mxu0 %v2801
        %v2851 = vpop.f32.mrf.mxu0
        %v2852 = vadd.f32 %v2763, %v2851
        %v2853 = vpop.f32.mrf.mxu0
        %v2854 = vpop.f32.mrf.mxu0
        %v2855 = vadd.f32 %v2763, %v2854
        %v2856 = vpop.f32.mrf.mxu0
        %2857 = vmatprep.mubr.bf16.mxu0 0
        %2858 = vmatmul.mubr.bf16.gmra.mxu0 %v2804
        %v2859 = vpop.f32.mrf.mxu0
        %v2860 = vadd.f32 %v2763, %v2859
        %v2861 = vpop.f32.mrf.mxu0
        %v2862 = vpop.f32.mrf.mxu0
        %v2863 = vadd.f32 %v2763, %v2862
        %v2864 = vpop.f32.mrf.mxu0
        %2865 = vmatprep.mubr.bf16.mxu0 0
        %2866 = vmatmul.mubr.bf16.gmra.mxu0 %v2807
        %v2867 = vpop.f32.mrf.mxu0
        %v2868 = vadd.f32 %v2763, %v2867
        %v2869 = vpop.f32.mrf.mxu0
        %v2870 = vpop.f32.mrf.mxu0
        %v2871 = vadd.f32 %v2763, %v2870
        %v2872 = vpop.f32.mrf.mxu0
        %2873 = vdwg.mxu0
        %2874 = vst.msk [vmem:[%s268] sm:$0xff] %vm306, %v2844
        %2875 = vst.msk [vmem:[%s268 + $0x8] sm:$0xff] %vm306, %v2847
        %2876 = vst.msk [vmem:[%s268 + $0x10] sm:$0xff] %vm306, %v2852
        %2877 = vst.msk [vmem:[%s268 + $0x18] sm:$0xff] %vm306, %v2855
        %2878 = vst.msk [vmem:[%s268 + $0x20] sm:$0xff] %vm306, %v2860
        %2879 = vst.msk [vmem:[%s268 + $0x28] sm:$0xff] %vm306, %v2863
        %2880 = vst.msk [vmem:[%s268 + $0x30] sm:$0xff] %vm306, %v2868
        %2881 = vst.msk [vmem:[%s268 + $0x38] sm:$0xff] %vm306, %v2871
        %s2882 = smul.u32 8, %s18
        %p2883 = scmp.lt.s32.totalorder %s2882, 15
        %s2884 = scalar_select %p2883, %s2882, 15
        %s2885 = smul.addr %s2884, 8
        %s2886 = scalar_lea.vmem %s6, %s2885
        // Predicated region
        $region49: #{tpu_custom_call.1} parent=43 // pred_check
          %p2887 = pneg %p167
        $region50: #{tpu_custom_call.1} parent=43 // pred_check_branch
          %2889 = sbr.rel (%p2887) target = $region52
        $region51: #{tpu_custom_call.1} parent=43 // pred_region
          %s2890 = smul.u32 8, %s18
        $region52: #{tpu_custom_call.1} parent=43 // pred_fallthru
          _
      $region44: #{tpu_custom_call.1} parent=5 // pred_fallthru
        _
      %p2891 = scmp.le.s32.totalorder 2, %s13
      // Predicated region
      $region53: #{tpu_custom_call.1} parent=5 // pred_check
        %p2892 = pneg %p2891
      $region54: #{tpu_custom_call.1} parent=5 // pred_check_branch
        %2894 = sbr.rel (%p2892) target = $region56
      $region55: #{tpu_custom_call.1} parent=5 // pred_region
        %s2895 = ssub.s32 %s13, 2
        // Predicated region
        $region57: #{tpu_custom_call.1} parent=55 // pred_check
          %p2896 = pneg %p173
        $region58: #{tpu_custom_call.1} parent=55 // pred_check_branch
          %2898 = sbr.rel (%p2896) target = $region60
        $region59: #{tpu_custom_call.1} parent=55 // pred_region
          %s2899 = smul.u32 8, %s19
          %p2900 = scmp.lt.s32.totalorder %s2899, 15
          %s2901 = scalar_select %p2900, %s2899, 15
          %s2902 = smul.addr %s2901, 8
          %s2903 = scalar_lea.vmem %s6, %s2902
        $region60: #{tpu_custom_call.1} parent=55 // pred_fallthru
          _
      $region56: #{tpu_custom_call.1} parent=5 // pred_fallthru
        _
    $region6: #{tpu_custom_call.1} parent=1 // loop_footer
      %s17 = sadd.s32 1, %s13
    $region7: #{tpu_custom_call.1} parent=1 // loop_footer_branch
      %12 = sbr.rel target = $region3
    $region8: #{tpu_custom_call.1} parent=1 // loop_exit
      _
    %2904 = vsyncpa [#allocation5], 1
    %s2905 = scalar_lea.sflag [#allocation5], 1
    %2906 = vsyncpa %s2905, 1

</llo_original>
